<compile_context>
chip_gen: v7x
topology: tpu7x:2x2x1
jax: 0.10.0
libtpu: 0.0.40
codegen_flags: <defaults>
</compile_context>

<pallas_src>
import functools

import jax
import jax.numpy as jnp
from jax import lax
from jax.experimental import pallas as pl
from jax.experimental.pallas import tpu as pltpu


_VMEM_LIMIT = 40 * 1024 * 1024  # fused per-image working set fits easily; < v7x 64 MiB


def _round_up(x, m):
    return -(-x // m) * m


# ----------------------------------------------------------------------------
# Fused kernel: conv3x3+IN+ReLU -> conv3x3+IN+ReLU -> 1x1 conv + bias
# ----------------------------------------------------------------------------
def _fused_head_kernel(xf_ref, w1_ref, w2_ref, wd_ref, bd_ref, mask_ref, o_ref,
                       s_ref, *, H, W, Wp, Cin_pad, mid, eps):
    """One image.

    xf_ref  : (1, Lf, Cin_pad) bf16 flat zero-padded slab, valid at rows [2,H+2), cols [0,W)
    w1_ref  : (9, Cin_pad, mid) bf16, tap-major (dy*3 + dx)
    w2_ref  : (3, 3*mid, mid)  bf16, per-dy rows packed [dx0; dx1; dx2]
    wd_ref  : (mid, C_pad) bf16   depth 1x1 weights (C zero-padded to 128 lanes)
    bd_ref  : (1, C_pad) f32      depth bias
    mask_ref: (H*Wp, 1) f32       1.0 on valid (w < W) columns
    o_ref   : (1, H*Wp, C_pad) f32
    s_ref   : (Lf, >=max(Cin_pad, 2*mid)) bf16 scratch (shift slab / conv2 pack)
    """
    Lf = (H + 4) * Wp
    HWp = H * Wp
    Lcpy = Lf - Wp                       # shifted-slab rows actually consumed (mult of 16)
    inv_n = 1.0 / float(H * W)
    f32 = jnp.float32

    mask = mask_ref[...]                 # (HWp, 1)

    # ------------------------------------------------------------------ conv1
    # Hoisted dx shift: s[r] = xf[r + 1]; sublane-aligned store, one shifted load.
    s_ref[pl.ds(0, Lcpy), pl.ds(0, Cin_pad)] = xf_ref[0, pl.ds(1, Lcpy), :]

    def conv1_tap(dy, dx):
        base = (dy + 1) * Wp             # multiple of 16 -> bf16-tile aligned
        if dx == 1:                      # center tap: straight from the input block
            lhs = xf_ref[0, pl.ds(base, HWp), :]
        elif dx == 2:                    # +1 tap: aligned slice of the shifted slab
            lhs = s_ref[pl.ds(base, HWp), pl.ds(0, Cin_pad)]
        else:                            # -1 tap: even offset (32-bit sublane aligned)
            lhs = s_ref[pl.ds(base - 2, HWp), pl.ds(0, Cin_pad)]
        return jnp.dot(lhs, w1_ref[dy * 3 + dx], preferred_element_type=f32)

    acc = conv1_tap(0, 0)
    for dy in range(3):
        for dx in range(3):
            if (dy, dx) != (0, 0):
                acc = acc + conv1_tap(dy, dx)

    # Masked one-pass InstanceNorm stats over the true H*W extent.
    am = acc * mask
    mean = jnp.sum(am, axis=0, keepdims=True) * inv_n
    var = jnp.maximum(jnp.sum(am * acc, axis=0, keepdims=True) * inv_n - mean * mean, 0.0)
    y1 = jnp.maximum((acc - mean) * lax.rsqrt(var + eps), 0.0) * mask
    y1 = y1.astype(jnp.bfloat16)         # (HWp, mid), pad cols zeroed

    # ------------------------------------------------------------------ conv2
    # Reuse s_ref as a [center | +1-shifted] column pack of the y1 slab.
    zrow = jnp.zeros((2 * Wp, mid), jnp.bfloat16)
    s_ref[pl.ds(0, 2 * Wp), pl.ds(0, mid)] = zrow                     # top pad rows
    s_ref[pl.ds(2 * Wp, HWp), pl.ds(0, mid)] = y1                     # valid rows
    s_ref[pl.ds(2 * Wp + HWp, 2 * Wp), pl.ds(0, mid)] = zrow          # bottom pad rows
    s_ref[pl.ds(0, Lcpy), pl.ds(mid, mid)] = s_ref[pl.ds(1, Lcpy), pl.ds(0, mid)]

    def conv2_tap(dy):
        base = (dy + 1) * Wp
        # dx=1 and dx=2 merged into one K=2*mid matmul over the packed columns.
        d12 = jnp.dot(s_ref[pl.ds(base, HWp), pl.ds(0, 2 * mid)],
                      w2_ref[dy, pl.ds(mid, 2 * mid), :],
                      preferred_element_type=f32)
        # dx=0 tap: +1-shifted block read at an even row offset of -2.
        d0 = jnp.dot(s_ref[pl.ds(base - 2, HWp), pl.ds(mid, mid)],
                     w2_ref[dy, pl.ds(0, mid), :],
                     preferred_element_type=f32)
        return d12 + d0

    acc2 = conv2_tap(0) + conv2_tap(1) + conv2_tap(2)

    am2 = acc2 * mask
    mean2 = jnp.sum(am2, axis=0, keepdims=True) * inv_n
    var2 = jnp.maximum(jnp.sum(am2 * acc2, axis=0, keepdims=True) * inv_n - mean2 * mean2, 0.0)
    y2 = jnp.maximum((acc2 - mean2) * lax.rsqrt(var2 + eps), 0.0)

    # --------------------------------------------------------- depth_layer
    # Fused 1x1 conv + bias; lane-dense (128-wide) f32 store.
    o_ref[0] = (jnp.dot(y2.astype(jnp.bfloat16), wd_ref[...],
                        preferred_element_type=f32) + bd_ref[...])


# ----------------------------------------------------------------------------
# JAX glue (layout / padding / bilinear upsample)
# ----------------------------------------------------------------------------
def upsample2x_bilinear_nhwc(x):
    """nn.Upsample(scale_factor=2, mode='bilinear', align_corners=False), NHWC."""
    def up_axis(a, axis):
        n = a.shape[axis]
        pad = [(0, 0)] * a.ndim
        pad[axis] = (1, 1)
        ap = jnp.pad(a, pad, mode="edge")
        prev = lax.slice_in_dim(ap, 0, n, axis=axis)
        nxt = lax.slice_in_dim(ap, 2, n + 2, axis=axis)
        even = 0.25 * prev + 0.75 * a
        odd = 0.75 * a + 0.25 * nxt
        y = jnp.stack([even, odd], axis=axis + 1)
        return y.reshape(a.shape[:axis] + (2 * n,) + a.shape[axis + 1:])

    x = up_axis(x, 1)  # H
    x = up_axis(x, 2)  # W
    return x


def encoder_eff_forward(feat_r4_nchw, feat_r3_nchw, w_conv1, w_conv2, w_depth, b_depth,
                        *, eps=1e-5):
    """Post-backbone forward of Encoder_eff (b4, downsample=8).

    feat_r4_nchw: (B, 160, Hs, Ws)   -> input_1 (reduction_4)
    feat_r3_nchw: (B,  56, 2Hs, 2Ws) -> input_2 (reduction_3)
    Conv weights are HWIO; returns NCHW like depth_layer(upsampling_layer(...)).
    """
    x1 = jnp.transpose(feat_r4_nchw, (0, 2, 3, 1)).astype(jnp.float32)
    x2 = jnp.transpose(feat_r3_nchw, (0, 2, 3, 1)).astype(jnp.float32)

    up = upsample2x_bilinear_nhwc(x1)
    # TODO(synk): fusing the bilinear upsample + concat into the conv kernel
    # (split K-sum over the two endpoint slabs) would remove these XLA-side
    # HBM passes entirely; bf16 concat/pad already halves their traffic.
    cat = jnp.concatenate([x2.astype(jnp.bfloat16), up.astype(jnp.bfloat16)], axis=-1)

    B, H, W, Cin = cat.shape
    mid = w_conv1.shape[-1]
    C = w_depth.shape[-1]
    Wp = _round_up(W + 2, 16)            # bf16-pack-aligned padded width (>= W+2)
    Cin_pad = _round_up(Cin, 128)        # 216 -> 256 lane-aligned K
    C_pad = _round_up(C, 128)            # lane-dense depth output
    Lf = (H + 4) * Wp
    HWp = H * Wp
    assert Cin_pad >= 2 * mid            # conv2 pack reuses the conv1 scratch columns

    # Flat zero-padded slab: valid data at rows [2, H+2), cols [0, W).
    xf = jnp.pad(cat, ((0, 0), (2, 2), (0, Wp - W), (0, Cin_pad - Cin)))
    xf = xf.reshape(B, Lf, Cin_pad)

    # conv1 weights: HWIO -> zero-pad K -> (9, Cin_pad, mid), tap-major.
    w1 = jnp.pad(w_conv1, ((0, 0), (0, 0), (0, Cin_pad - Cin), (0, 0)))
    w1 = w1.reshape(9, Cin_pad, mid).astype(jnp.bfloat16)
    # conv2 weights: (3,3,mid,mid) -> (3, 3*mid, mid), per-dy rows [dx0; dx1; dx2].
    w2 = w_conv2.reshape(3, 3 * mid, mid).astype(jnp.bfloat16)
    # depth layer: pad out-channels to a lane-dense 128.
    wd = jnp.pad(w_depth, ((0, 0), (0, C_pad - C))).astype(jnp.bfloat16)
    bd = jnp.pad(b_depth.reshape(1, C), ((0, 0), (0, C_pad - C))).astype(jnp.float32)

    # Valid-column mask (1.0 where w < W) keeps InstanceNorm stats exact.
    col = jnp.arange(HWp, dtype=jnp.int32) % Wp
    mask = (col < W).astype(jnp.float32)[:, None]

    kernel = functools.partial(_fused_head_kernel, H=H, W=W, Wp=Wp,
                               Cin_pad=Cin_pad, mid=mid, eps=eps)

    # TODO(synk): when B == 1 on v7x, add a second parallel grid axis (split H
    # across the two TensorCores with a cross-core InstanceNorm stats merge).
    out = pl.pallas_call(
        kernel,
        out_shape=jax.ShapeDtypeStruct((B, HWp, C_pad), jnp.float32),
        grid=(B,),
        in_specs=[
            pl.BlockSpec((1, Lf, Cin_pad), lambda b: (b, 0, 0)),
            pl.BlockSpec((9, Cin_pad, mid), lambda b: (0, 0, 0)),   # resident weights
            pl.BlockSpec((3, 3 * mid, mid), lambda b: (0, 0, 0)),
            pl.BlockSpec((mid, C_pad), lambda b: (0, 0)),
            pl.BlockSpec((1, C_pad), lambda b: (0, 0)),
            pl.BlockSpec((HWp, 1), lambda b: (0, 0)),               # resident mask
        ],
        out_specs=pl.BlockSpec((1, HWp, C_pad), lambda b: (b, 0, 0)),
        scratch_shapes=[pltpu.VMEM((Lf, max(Cin_pad, 2 * mid)), jnp.bfloat16)],
        compiler_params=pltpu.CompilerParams(
            dimension_semantics=("parallel",),
            vmem_limit_bytes=_VMEM_LIMIT,
        ),
    )(xf, w1, w2, wd, bd, mask)

    z = out.reshape(B, H, Wp, C_pad)[:, :, :W, :C]   # drop pad columns / pad channels
    return jnp.transpose(z, (0, 3, 1, 2))            # back to NCHW


# ----------------------------------------------------------------------------
# Demo
# ----------------------------------------------------------------------------
if __name__ == "__main__":
    key = jax.random.PRNGKey(0)
    ks = jax.random.split(key, 6)

    B = 2
    C_out = 16              # self.C
    H16, W16 = 8, 8         # stride-16 feature spatial (small)
    H8, W8 = 16, 16         # stride-8 feature spatial
    C_r4, C_r3 = 160, 56    # b4 / downsample=8 endpoint channels
    Cin1 = C_r4 + C_r3      # 216 = upsampling_in_channels
    mid = 128               # upsampling_out_channels

    # Backbone endpoint stand-ins (NCHW, like PyTorch).
    feat_r4 = jax.random.normal(ks[0], (B, C_r4, H16, W16), jnp.float32)
    feat_r3 = jax.random.normal(ks[1], (B, C_r3, H8, W8), jnp.float32)

    # Deterministic parameters (HWIO conv weights; bias for the depth layer).
    w_conv1 = jax.random.normal(ks[2], (3, 3, Cin1, mid), jnp.float32) * 0.05
    w_conv2 = jax.random.normal(ks[3], (3, 3, mid, mid), jnp.float32) * 0.05
    w_depth = jax.random.normal(ks[4], (mid, C_out), jnp.float32) * 0.05
    b_depth = jax.random.normal(ks[5], (1, C_out), jnp.float32) * 0.05

    out = jax.jit(encoder_eff_forward)(feat_r4, feat_r3, w_conv1, w_conv2,
                                       w_depth, b_depth)
    jax.block_until_ready(out)
    assert out.shape == (B, C_out, H8, W8), out.shape
    assert bool(jnp.all(jnp.isfinite(out)))
    print("KERNEL_OK")
</pallas_src>

<mosaic_0001>
module attributes {stable_mosaic.version = 11 : i64} {
  func.func @_fused_head_kernel(%arg0: i32, %arg1: memref<1x640x256xbf16, #tpu.memory_space<vmem>>, %arg2: memref<9x256x128xbf16, #tpu.memory_space<vmem>>, %arg3: memref<3x384x128xbf16, #tpu.memory_space<vmem>>, %arg4: memref<128x128xbf16, #tpu.memory_space<vmem>>, %arg5: memref<1x128xf32, #tpu.memory_space<vmem>>, %arg6: memref<512x1xf32, #tpu.memory_space<vmem>>, %arg7: memref<1x512x128xf32, #tpu.memory_space<vmem>>, %arg8: memref<640x256xbf16, #tpu.memory_space<vmem>>) attributes {dimension_semantics = [#tpu.dimension_semantics<parallel>], iteration_bounds = array<i64: 2>, scalar_prefetch = 0 : i64, scratch_operands = 1 : i64, tpu.core_type = #tpu.core_type<tc>, window_params = [{transform_indices = @transform_0, window_bounds = array<i64: 1, 640, 256>}, {pipeline_mode = #tpu.pipeline_mode<synchronous>, transform_indices = @transform_1, window_bounds = array<i64: 9, 256, 128>}, {pipeline_mode = #tpu.pipeline_mode<synchronous>, transform_indices = @transform_2, window_bounds = array<i64: 3, 384, 128>}, {pipeline_mode = #tpu.pipeline_mode<synchronous>, transform_indices = @transform_3, window_bounds = array<i64: 128, 128>}, {pipeline_mode = #tpu.pipeline_mode<synchronous>, transform_indices = @transform_4, window_bounds = array<i64: 1, 128>}, {pipeline_mode = #tpu.pipeline_mode<synchronous>, transform_indices = @transform_5, window_bounds = array<i64: 512, 1>}, {transform_indices = @transform_6, window_bounds = array<i64: 1, 512, 128>}]} {
    %c0 = arith.constant 0 : index
    %c0_0 = arith.constant 0 : index
    %0 = vector.load %arg6[%c0, %c0_0] : memref<512x1xf32, #tpu.memory_space<vmem>>, vector<512x1xf32>
    %c0_1 = arith.constant 0 : index
    %c1 = arith.constant 1 : index
    %c0_2 = arith.constant 0 : index
    %1 = vector.load %arg1[%c0_1, %c1, %c0_2] : memref<1x640x256xbf16, #tpu.memory_space<vmem>>, vector<1x608x256xbf16>
    %2 = vector.shape_cast %1 : vector<1x608x256xbf16> to vector<608x256xbf16>
    %c0_3 = arith.constant 0 : index
    %c0_4 = arith.constant 0 : index
    %3 = vector.load %arg8[%c0_3, %c0_4] : memref<640x256xbf16, #tpu.memory_space<vmem>>, vector<608x256xbf16>
    tpu.vector_store %arg8[%c0_3, %c0_4], %2 {strides = array<i32>} : memref<640x256xbf16, #tpu.memory_space<vmem>>, vector<608x256xbf16>,
    %c30 = arith.constant 30 : index
    %c0_5 = arith.constant 0 : index
    %4 = vector.load %arg8[%c30, %c0_5] : memref<640x256xbf16, #tpu.memory_space<vmem>>, vector<512x256xbf16>
    %c0_6 = arith.constant 0 : index
    %c0_7 = arith.constant 0 : index
    %c0_8 = arith.constant 0 : index
    %5 = vector.load %arg2[%c0_6, %c0_7, %c0_8] : memref<9x256x128xbf16, #tpu.memory_space<vmem>>, vector<1x256x128xbf16>
    %6 = vector.shape_cast %5 : vector<1x256x128xbf16> to vector<256x128xbf16>
    %cst = arith.constant dense<0.000000e+00> : vector<512x128xf32>
    %7 = tpu.matmul %4, %6, %cst {dimension_numbers = #tpu.dot_dimension_numbers<[1], [0], [0], [1], [0, 0, 1, 1], [], []>} : vector<512x256xbf16>, vector<256x128xbf16>, vector<512x128xf32> -> vector<512x128xf32>
    %c0_9 = arith.constant 0 : index
    %c32 = arith.constant 32 : index
    %c0_10 = arith.constant 0 : index
    %8 = vector.load %arg1[%c0_9, %c32, %c0_10] : memref<1x640x256xbf16, #tpu.memory_space<vmem>>, vector<1x512x256xbf16>
    %9 = vector.shape_cast %8 : vector<1x512x256xbf16> to vector<512x256xbf16>
    %c1_11 = arith.constant 1 : index
    %c0_12 = arith.constant 0 : index
    %c0_13 = arith.constant 0 : index
    %10 = vector.load %arg2[%c1_11, %c0_12, %c0_13] : memref<9x256x128xbf16, #tpu.memory_space<vmem>>, vector<1x256x128xbf16>
    %11 = vector.shape_cast %10 : vector<1x256x128xbf16> to vector<256x128xbf16>
    %cst_14 = arith.constant dense<0.000000e+00> : vector<512x128xf32>
    %12 = tpu.matmul %9, %11, %cst_14 {dimension_numbers = #tpu.dot_dimension_numbers<[1], [0], [0], [1], [0, 0, 1, 1], [], []>} : vector<512x256xbf16>, vector<256x128xbf16>, vector<512x128xf32> -> vector<512x128xf32>
    %13 = arith.addf %7, %12 : vector<512x128xf32>
    %c32_15 = arith.constant 32 : index
    %c0_16 = arith.constant 0 : index
    %14 = vector.load %arg8[%c32_15, %c0_16] : memref<640x256xbf16, #tpu.memory_space<vmem>>, vector<512x256xbf16>
    %c2 = arith.constant 2 : index
    %c0_17 = arith.constant 0 : index
    %c0_18 = arith.constant 0 : index
    %15 = vector.load %arg2[%c2, %c0_17, %c0_18] : memref<9x256x128xbf16, #tpu.memory_space<vmem>>, vector<1x256x128xbf16>
    %16 = vector.shape_cast %15 : vector<1x256x128xbf16> to vector<256x128xbf16>
    %cst_19 = arith.constant dense<0.000000e+00> : vector<512x128xf32>
    %17 = tpu.matmul %14, %16, %cst_19 {dimension_numbers = #tpu.dot_dimension_numbers<[1], [0], [0], [1], [0, 0, 1, 1], [], []>} : vector<512x256xbf16>, vector<256x128xbf16>, vector<512x128xf32> -> vector<512x128xf32>
    %18 = arith.addf %13, %17 : vector<512x128xf32>
    %c62 = arith.constant 62 : index
    %c0_20 = arith.constant 0 : index
    %19 = vector.load %arg8[%c62, %c0_20] : memref<640x256xbf16, #tpu.memory_space<vmem>>, vector<512x256xbf16>
    %c3 = arith.constant 3 : index
    %c0_21 = arith.constant 0 : index
    %c0_22 = arith.constant 0 : index
    %20 = vector.load %arg2[%c3, %c0_21, %c0_22] : memref<9x256x128xbf16, #tpu.memory_space<vmem>>, vector<1x256x128xbf16>
    %21 = vector.shape_cast %20 : vector<1x256x128xbf16> to vector<256x128xbf16>
    %cst_23 = arith.constant dense<0.000000e+00> : vector<512x128xf32>
    %22 = tpu.matmul %19, %21, %cst_23 {dimension_numbers = #tpu.dot_dimension_numbers<[1], [0], [0], [1], [0, 0, 1, 1], [], []>} : vector<512x256xbf16>, vector<256x128xbf16>, vector<512x128xf32> -> vector<512x128xf32>
    %23 = arith.addf %18, %22 : vector<512x128xf32>
    %c0_24 = arith.constant 0 : index
    %c64 = arith.constant 64 : index
    %c0_25 = arith.constant 0 : index
    %24 = vector.load %arg1[%c0_24, %c64, %c0_25] : memref<1x640x256xbf16, #tpu.memory_space<vmem>>, vector<1x512x256xbf16>
    %25 = vector.shape_cast %24 : vector<1x512x256xbf16> to vector<512x256xbf16>
    %c4 = arith.constant 4 : index
    %c0_26 = arith.constant 0 : index
    %c0_27 = arith.constant 0 : index
    %26 = vector.load %arg2[%c4, %c0_26, %c0_27] : memref<9x256x128xbf16, #tpu.memory_space<vmem>>, vector<1x256x128xbf16>
    %27 = vector.shape_cast %26 : vector<1x256x128xbf16> to vector<256x128xbf16>
    %cst_28 = arith.constant dense<0.000000e+00> : vector<512x128xf32>
    %28 = tpu.matmul %25, %27, %cst_28 {dimension_numbers = #tpu.dot_dimension_numbers<[1], [0], [0], [1], [0, 0, 1, 1], [], []>} : vector<512x256xbf16>, vector<256x128xbf16>, vector<512x128xf32> -> vector<512x128xf32>
    %29 = arith.addf %23, %28 : vector<512x128xf32>
    %c64_29 = arith.constant 64 : index
    %c0_30 = arith.constant 0 : index
    %30 = vector.load %arg8[%c64_29, %c0_30] : memref<640x256xbf16, #tpu.memory_space<vmem>>, vector<512x256xbf16>
    %c5 = arith.constant 5 : index
    %c0_31 = arith.constant 0 : index
    %c0_32 = arith.constant 0 : index
    %31 = vector.load %arg2[%c5, %c0_31, %c0_32] : memref<9x256x128xbf16, #tpu.memory_space<vmem>>, vector<1x256x128xbf16>
    %32 = vector.shape_cast %31 : vector<1x256x128xbf16> to vector<256x128xbf16>
    %cst_33 = arith.constant dense<0.000000e+00> : vector<512x128xf32>
    %33 = tpu.matmul %30, %32, %cst_33 {dimension_numbers = #tpu.dot_dimension_numbers<[1], [0], [0], [1], [0, 0, 1, 1], [], []>} : vector<512x256xbf16>, vector<256x128xbf16>, vector<512x128xf32> -> vector<512x128xf32>
    %34 = arith.addf %29, %33 : vector<512x128xf32>
    %c94 = arith.constant 94 : index
    %c0_34 = arith.constant 0 : index
    %35 = vector.load %arg8[%c94, %c0_34] : memref<640x256xbf16, #tpu.memory_space<vmem>>, vector<512x256xbf16>
    %c6 = arith.constant 6 : index
    %c0_35 = arith.constant 0 : index
    %c0_36 = arith.constant 0 : index
    %36 = vector.load %arg2[%c6, %c0_35, %c0_36] : memref<9x256x128xbf16, #tpu.memory_space<vmem>>, vector<1x256x128xbf16>
    %37 = vector.shape_cast %36 : vector<1x256x128xbf16> to vector<256x128xbf16>
    %cst_37 = arith.constant dense<0.000000e+00> : vector<512x128xf32>
    %38 = tpu.matmul %35, %37, %cst_37 {dimension_numbers = #tpu.dot_dimension_numbers<[1], [0], [0], [1], [0, 0, 1, 1], [], []>} : vector<512x256xbf16>, vector<256x128xbf16>, vector<512x128xf32> -> vector<512x128xf32>
    %39 = arith.addf %34, %38 : vector<512x128xf32>
    %c0_38 = arith.constant 0 : index
    %c96 = arith.constant 96 : index
    %c0_39 = arith.constant 0 : index
    %40 = vector.load %arg1[%c0_38, %c96, %c0_39] : memref<1x640x256xbf16, #tpu.memory_space<vmem>>, vector<1x512x256xbf16>
    %41 = vector.shape_cast %40 : vector<1x512x256xbf16> to vector<512x256xbf16>
    %c7 = arith.constant 7 : index
    %c0_40 = arith.constant 0 : index
    %c0_41 = arith.constant 0 : index
    %42 = vector.load %arg2[%c7, %c0_40, %c0_41] : memref<9x256x128xbf16, #tpu.memory_space<vmem>>, vector<1x256x128xbf16>
    %43 = vector.shape_cast %42 : vector<1x256x128xbf16> to vector<256x128xbf16>
    %cst_42 = arith.constant dense<0.000000e+00> : vector<512x128xf32>
    %44 = tpu.matmul %41, %43, %cst_42 {dimension_numbers = #tpu.dot_dimension_numbers<[1], [0], [0], [1], [0, 0, 1, 1], [], []>} : vector<512x256xbf16>, vector<256x128xbf16>, vector<512x128xf32> -> vector<512x128xf32>
    %45 = arith.addf %39, %44 : vector<512x128xf32>
    %c96_43 = arith.constant 96 : index
    %c0_44 = arith.constant 0 : index
    %46 = vector.load %arg8[%c96_43, %c0_44] : memref<640x256xbf16, #tpu.memory_space<vmem>>, vector<512x256xbf16>
    %c8 = arith.constant 8 : index
    %c0_45 = arith.constant 0 : index
    %c0_46 = arith.constant 0 : index
    %47 = vector.load %arg2[%c8, %c0_45, %c0_46] : memref<9x256x128xbf16, #tpu.memory_space<vmem>>, vector<1x256x128xbf16>
    %48 = vector.shape_cast %47 : vector<1x256x128xbf16> to vector<256x128xbf16>
    %cst_47 = arith.constant dense<0.000000e+00> : vector<512x128xf32>
    %49 = tpu.matmul %46, %48, %cst_47 {dimension_numbers = #tpu.dot_dimension_numbers<[1], [0], [0], [1], [0, 0, 1, 1], [], []>} : vector<512x256xbf16>, vector<256x128xbf16>, vector<512x128xf32> -> vector<512x128xf32>
    %50 = arith.addf %45, %49 : vector<512x128xf32>
    %51 = vector.broadcast %0 : vector<512x1xf32> to vector<512x128xf32>
    %52 = arith.mulf %50, %51 : vector<512x128xf32>
    %cst_48 = arith.constant dense<0.000000e+00> : vector<128xf32>
    %53 = vector.multi_reduction <add>, %52, %cst_48 [0] : vector<512x128xf32> to vector<128xf32>
    %54 = vector.shape_cast %53 : vector<128xf32> to vector<1x128xf32>
    %cst_49 = arith.constant 3.906250e-03 : f32
    %55 = vector.broadcast %cst_49 : f32 to vector<1x128xf32>
    %56 = arith.mulf %54, %55 : vector<1x128xf32>
    %57 = arith.mulf %52, %50 : vector<512x128xf32>
    %cst_50 = arith.constant dense<0.000000e+00> : vector<128xf32>
    %58 = vector.multi_reduction <add>, %57, %cst_50 [0] : vector<512x128xf32> to vector<128xf32>
    %59 = vector.shape_cast %58 : vector<128xf32> to vector<1x128xf32>
    %cst_51 = arith.constant 3.906250e-03 : f32
    %60 = vector.broadcast %cst_51 : f32 to vector<1x128xf32>
    %61 = arith.mulf %59, %60 : vector<1x128xf32>
    %62 = arith.mulf %56, %56 : vector<1x128xf32>
    %63 = arith.subf %61, %62 : vector<1x128xf32>
    %cst_52 = arith.constant 0.000000e+00 : f32
    %64 = vector.broadcast %cst_52 : f32 to vector<1x128xf32>
    %65 = arith.maximumf %63, %64 : vector<1x128xf32>
    %66 = vector.broadcast %56 : vector<1x128xf32> to vector<512x128xf32>
    %67 = arith.subf %50, %66 : vector<512x128xf32>
    %cst_53 = arith.constant 9.99999974E-6 : f32
    %68 = vector.broadcast %cst_53 : f32 to vector<1x128xf32>
    %69 = arith.addf %65, %68 : vector<1x128xf32>
    %70 = math.rsqrt %69 : vector<1x128xf32>
    %71 = vector.broadcast %70 : vector<1x128xf32> to vector<512x128xf32>
    %72 = arith.mulf %67, %71 : vector<512x128xf32>
    %cst_54 = arith.constant 0.000000e+00 : f32
    %73 = vector.broadcast %cst_54 : f32 to vector<512x128xf32>
    %74 = arith.maximumf %72, %73 : vector<512x128xf32>
    %75 = vector.broadcast %0 : vector<512x1xf32> to vector<512x128xf32>
    %76 = arith.mulf %74, %75 : vector<512x128xf32>
    %77 = arith.truncf %76 : vector<512x128xf32> to vector<512x128xbf16>
    %cst_55 = arith.constant 0.000000e+00 : bf16
    %78 = vector.broadcast %cst_55 : bf16 to vector<64x128xbf16>
    %c0_56 = arith.constant 0 : index
    %c0_57 = arith.constant 0 : index
    %79 = vector.load %arg8[%c0_56, %c0_57] : memref<640x256xbf16, #tpu.memory_space<vmem>>, vector<64x128xbf16>
    tpu.vector_store %arg8[%c0_56, %c0_57], %78 {strides = array<i32>} : memref<640x256xbf16, #tpu.memory_space<vmem>>, vector<64x128xbf16>,
    %c64_58 = arith.constant 64 : index
    %c0_59 = arith.constant 0 : index
    %80 = vector.load %arg8[%c64_58, %c0_59] : memref<640x256xbf16, #tpu.memory_space<vmem>>, vector<512x128xbf16>
    tpu.vector_store %arg8[%c64_58, %c0_59], %77 {strides = array<i32>} : memref<640x256xbf16, #tpu.memory_space<vmem>>, vector<512x128xbf16>,
    %c576 = arith.constant 576 : index
    %c0_60 = arith.constant 0 : index
    %81 = vector.load %arg8[%c576, %c0_60] : memref<640x256xbf16, #tpu.memory_space<vmem>>, vector<64x128xbf16>
    tpu.vector_store %arg8[%c576, %c0_60], %78 {strides = array<i32>} : memref<640x256xbf16, #tpu.memory_space<vmem>>, vector<64x128xbf16>,
    %c1_61 = arith.constant 1 : index
    %c0_62 = arith.constant 0 : index
    %82 = vector.load %arg8[%c1_61, %c0_62] : memref<640x256xbf16, #tpu.memory_space<vmem>>, vector<608x128xbf16>
    %c0_63 = arith.constant 0 : index
    %c128 = arith.constant 128 : index
    %83 = vector.load %arg8[%c0_63, %c128] : memref<640x256xbf16, #tpu.memory_space<vmem>>, vector<608x128xbf16>
    tpu.vector_store %arg8[%c0_63, %c128], %82 {strides = array<i32>} : memref<640x256xbf16, #tpu.memory_space<vmem>>, vector<608x128xbf16>,
    %c32_64 = arith.constant 32 : index
    %c0_65 = arith.constant 0 : index
    %84 = vector.load %arg8[%c32_64, %c0_65] : memref<640x256xbf16, #tpu.memory_space<vmem>>, vector<512x256xbf16>
    %c0_66 = arith.constant 0 : index
    %c128_67 = arith.constant 128 : index
    %c0_68 = arith.constant 0 : index
    %85 = vector.load %arg3[%c0_66, %c128_67, %c0_68] : memref<3x384x128xbf16, #tpu.memory_space<vmem>>, vector<1x256x128xbf16>
    %86 = vector.shape_cast %85 : vector<1x256x128xbf16> to vector<256x128xbf16>
    %cst_69 = arith.constant dense<0.000000e+00> : vector<512x128xf32>
    %87 = tpu.matmul %84, %86, %cst_69 {dimension_numbers = #tpu.dot_dimension_numbers<[1], [0], [0], [1], [0, 0, 1, 1], [], []>} : vector<512x256xbf16>, vector<256x128xbf16>, vector<512x128xf32> -> vector<512x128xf32>
    %c30_70 = arith.constant 30 : index
    %c128_71 = arith.constant 128 : index
    %88 = vector.load %arg8[%c30_70, %c128_71] : memref<640x256xbf16, #tpu.memory_space<vmem>>, vector<512x128xbf16>
    %c0_72 = arith.constant 0 : index
    %c0_73 = arith.constant 0 : index
    %c0_74 = arith.constant 0 : index
    %89 = vector.load %arg3[%c0_72, %c0_73, %c0_74] : memref<3x384x128xbf16, #tpu.memory_space<vmem>>, vector<1x128x128xbf16>
    %90 = vector.shape_cast %89 : vector<1x128x128xbf16> to vector<128x128xbf16>
    %cst_75 = arith.constant dense<0.000000e+00> : vector<512x128xf32>
    %91 = tpu.matmul %88, %90, %cst_75 {dimension_numbers = #tpu.dot_dimension_numbers<[1], [0], [0], [1], [0, 0, 1, 1], [], []>} : vector<512x128xbf16>, vector<128x128xbf16>, vector<512x128xf32> -> vector<512x128xf32>
    %92 = arith.addf %87, %91 : vector<512x128xf32>
    %c64_76 = arith.constant 64 : index
    %c0_77 = arith.constant 0 : index
    %93 = vector.load %arg8[%c64_76, %c0_77] : memref<640x256xbf16, #tpu.memory_space<vmem>>, vector<512x256xbf16>
    %c1_78 = arith.constant 1 : index
    %c128_79 = arith.constant 128 : index
    %c0_80 = arith.constant 0 : index
    %94 = vector.load %arg3[%c1_78, %c128_79, %c0_80] : memref<3x384x128xbf16, #tpu.memory_space<vmem>>, vector<1x256x128xbf16>
    %95 = vector.shape_cast %94 : vector<1x256x128xbf16> to vector<256x128xbf16>
    %cst_81 = arith.constant dense<0.000000e+00> : vector<512x128xf32>
    %96 = tpu.matmul %93, %95, %cst_81 {dimension_numbers = #tpu.dot_dimension_numbers<[1], [0], [0], [1], [0, 0, 1, 1], [], []>} : vector<512x256xbf16>, vector<256x128xbf16>, vector<512x128xf32> -> vector<512x128xf32>
    %c62_82 = arith.constant 62 : index
    %c128_83 = arith.constant 128 : index
    %97 = vector.load %arg8[%c62_82, %c128_83] : memref<640x256xbf16, #tpu.memory_space<vmem>>, vector<512x128xbf16>
    %c1_84 = arith.constant 1 : index
    %c0_85 = arith.constant 0 : index
    %c0_86 = arith.constant 0 : index
    %98 = vector.load %arg3[%c1_84, %c0_85, %c0_86] : memref<3x384x128xbf16, #tpu.memory_space<vmem>>, vector<1x128x128xbf16>
    %99 = vector.shape_cast %98 : vector<1x128x128xbf16> to vector<128x128xbf16>
    %cst_87 = arith.constant dense<0.000000e+00> : vector<512x128xf32>
    %100 = tpu.matmul %97, %99, %cst_87 {dimension_numbers = #tpu.dot_dimension_numbers<[1], [0], [0], [1], [0, 0, 1, 1], [], []>} : vector<512x128xbf16>, vector<128x128xbf16>, vector<512x128xf32> -> vector<512x128xf32>
    %101 = arith.addf %96, %100 : vector<512x128xf32>
    %102 = arith.addf %92, %101 : vector<512x128xf32>
    %c96_88 = arith.constant 96 : index
    %c0_89 = arith.constant 0 : index
    %103 = vector.load %arg8[%c96_88, %c0_89] : memref<640x256xbf16, #tpu.memory_space<vmem>>, vector<512x256xbf16>
    %c2_90 = arith.constant 2 : index
    %c128_91 = arith.constant 128 : index
    %c0_92 = arith.constant 0 : index
    %104 = vector.load %arg3[%c2_90, %c128_91, %c0_92] : memref<3x384x128xbf16, #tpu.memory_space<vmem>>, vector<1x256x128xbf16>
    %105 = vector.shape_cast %104 : vector<1x256x128xbf16> to vector<256x128xbf16>
    %cst_93 = arith.constant dense<0.000000e+00> : vector<512x128xf32>
    %106 = tpu.matmul %103, %105, %cst_93 {dimension_numbers = #tpu.dot_dimension_numbers<[1], [0], [0], [1], [0, 0, 1, 1], [], []>} : vector<512x256xbf16>, vector<256x128xbf16>, vector<512x128xf32> -> vector<512x128xf32>
    %c94_94 = arith.constant 94 : index
    %c128_95 = arith.constant 128 : index
    %107 = vector.load %arg8[%c94_94, %c128_95] : memref<640x256xbf16, #tpu.memory_space<vmem>>, vector<512x128xbf16>
    %c2_96 = arith.constant 2 : index
    %c0_97 = arith.constant 0 : index
    %c0_98 = arith.constant 0 : index
    %108 = vector.load %arg3[%c2_96, %c0_97, %c0_98] : memref<3x384x128xbf16, #tpu.memory_space<vmem>>, vector<1x128x128xbf16>
    %109 = vector.shape_cast %108 : vector<1x128x128xbf16> to vector<128x128xbf16>
    %cst_99 = arith.constant dense<0.000000e+00> : vector<512x128xf32>
    %110 = tpu.matmul %107, %109, %cst_99 {dimension_numbers = #tpu.dot_dimension_numbers<[1], [0], [0], [1], [0, 0, 1, 1], [], []>} : vector<512x128xbf16>, vector<128x128xbf16>, vector<512x128xf32> -> vector<512x128xf32>
    %111 = arith.addf %106, %110 : vector<512x128xf32>
    %112 = arith.addf %102, %111 : vector<512x128xf32>
    %113 = vector.broadcast %0 : vector<512x1xf32> to vector<512x128xf32>
    %114 = arith.mulf %112, %113 : vector<512x128xf32>
    %cst_100 = arith.constant dense<0.000000e+00> : vector<128xf32>
    %115 = vector.multi_reduction <add>, %114, %cst_100 [0] : vector<512x128xf32> to vector<128xf32>
    %116 = vector.shape_cast %115 : vector<128xf32> to vector<1x128xf32>
    %cst_101 = arith.constant 3.906250e-03 : f32
    %117 = vector.broadcast %cst_101 : f32 to vector<1x128xf32>
    %118 = arith.mulf %116, %117 : vector<1x128xf32>
    %119 = arith.mulf %114, %112 : vector<512x128xf32>
    %cst_102 = arith.constant dense<0.000000e+00> : vector<128xf32>
    %120 = vector.multi_reduction <add>, %119, %cst_102 [0] : vector<512x128xf32> to vector<128xf32>
    %121 = vector.shape_cast %120 : vector<128xf32> to vector<1x128xf32>
    %cst_103 = arith.constant 3.906250e-03 : f32
    %122 = vector.broadcast %cst_103 : f32 to vector<1x128xf32>
    %123 = arith.mulf %121, %122 : vector<1x128xf32>
    %124 = arith.mulf %118, %118 : vector<1x128xf32>
    %125 = arith.subf %123, %124 : vector<1x128xf32>
    %cst_104 = arith.constant 0.000000e+00 : f32
    %126 = vector.broadcast %cst_104 : f32 to vector<1x128xf32>
    %127 = arith.maximumf %125, %126 : vector<1x128xf32>
    %128 = vector.broadcast %118 : vector<1x128xf32> to vector<512x128xf32>
    %129 = arith.subf %112, %128 : vector<512x128xf32>
    %cst_105 = arith.constant 9.99999974E-6 : f32
    %130 = vector.broadcast %cst_105 : f32 to vector<1x128xf32>
    %131 = arith.addf %127, %130 : vector<1x128xf32>
    %132 = math.rsqrt %131 : vector<1x128xf32>
    %133 = vector.broadcast %132 : vector<1x128xf32> to vector<512x128xf32>
    %134 = arith.mulf %129, %133 : vector<512x128xf32>
    %cst_106 = arith.constant 0.000000e+00 : f32
    %135 = vector.broadcast %cst_106 : f32 to vector<512x128xf32>
    %136 = arith.maximumf %134, %135 : vector<512x128xf32>
    %137 = arith.truncf %136 : vector<512x128xf32> to vector<512x128xbf16>
    %c0_107 = arith.constant 0 : index
    %c0_108 = arith.constant 0 : index
    %138 = vector.load %arg4[%c0_107, %c0_108] : memref<128x128xbf16, #tpu.memory_space<vmem>>, vector<128x128xbf16>
    %cst_109 = arith.constant dense<0.000000e+00> : vector<512x128xf32>
    %139 = tpu.matmul %137, %138, %cst_109 {dimension_numbers = #tpu.dot_dimension_numbers<[1], [0], [0], [1], [0, 0, 1, 1], [], []>} : vector<512x128xbf16>, vector<128x128xbf16>, vector<512x128xf32> -> vector<512x128xf32>
    %c0_110 = arith.constant 0 : index
    %c0_111 = arith.constant 0 : index
    %140 = vector.load %arg5[%c0_110, %c0_111] : memref<1x128xf32, #tpu.memory_space<vmem>>, vector<1x128xf32>
    %141 = vector.broadcast %140 : vector<1x128xf32> to vector<512x128xf32>
    %142 = arith.addf %139, %141 : vector<512x128xf32>
    %c0_112 = arith.constant 0 : index
    %c0_113 = arith.constant 0 : index
    %c0_114 = arith.constant 0 : index
    %143 = vector.load %arg7[%c0_112, %c0_113, %c0_114] : memref<1x512x128xf32, #tpu.memory_space<vmem>>, vector<1x512x128xf32>
    %144 = vector.shape_cast %143 : vector<1x512x128xf32> to vector<512x128xf32>
    %145 = vector.shape_cast %142 : vector<512x128xf32> to vector<1x512x128xf32>
    tpu.vector_store %arg7[%c0_112, %c0_113, %c0_114], %145 {strides = array<i32>} : memref<1x512x128xf32, #tpu.memory_space<vmem>>, vector<1x512x128xf32>,
    return
  }
  func.func @transform_0(%arg0: i32) -> (i32, i32, i32) {
    %c0_i32 = arith.constant 0 : i32
    %c0_i32_0 = arith.constant 0 : i32
    %c0_i32_1 = arith.constant 0 : i32
    return %arg0, %c0_i32, %c0_i32_0 : i32, i32, i32
  }
  func.func @transform_1(%arg0: i32) -> (i32, i32, i32) {
    %c0_i32 = arith.constant 0 : i32
    %c0_i32_0 = arith.constant 0 : i32
    %c0_i32_1 = arith.constant 0 : i32
    %c0_i32_2 = arith.constant 0 : i32
    return %c0_i32, %c0_i32_0, %c0_i32_1 : i32, i32, i32
  }
  func.func @transform_2(%arg0: i32) -> (i32, i32, i32) {
    %c0_i32 = arith.constant 0 : i32
    %c0_i32_0 = arith.constant 0 : i32
    %c0_i32_1 = arith.constant 0 : i32
    %c0_i32_2 = arith.constant 0 : i32
    return %c0_i32, %c0_i32_0, %c0_i32_1 : i32, i32, i32
  }
  func.func @transform_3(%arg0: i32) -> (i32, i32) {
    %c0_i32 = arith.constant 0 : i32
    %c0_i32_0 = arith.constant 0 : i32
    %c0_i32_1 = arith.constant 0 : i32
    return %c0_i32, %c0_i32_0 : i32, i32
  }
  func.func @transform_4(%arg0: i32) -> (i32, i32) {
    %c0_i32 = arith.constant 0 : i32
    %c0_i32_0 = arith.constant 0 : i32
    %c0_i32_1 = arith.constant 0 : i32
    return %c0_i32, %c0_i32_0 : i32, i32
  }
  func.func @transform_5(%arg0: i32) -> (i32, i32) {
    %c0_i32 = arith.constant 0 : i32
    %c0_i32_0 = arith.constant 0 : i32
    %c0_i32_1 = arith.constant 0 : i32
    return %c0_i32, %c0_i32_0 : i32, i32
  }
  func.func @transform_6(%arg0: i32) -> (i32, i32, i32) {
    %c0_i32 = arith.constant 0 : i32
    %c0_i32_0 = arith.constant 0 : i32
    %c0_i32_1 = arith.constant 0 : i32
    return %arg0, %c0_i32, %c0_i32_0 : i32, i32, i32
  }
}

</mosaic_0001>

<llo_original>
// kernel: encoder_eff_forward.1
$region0: #{encoder_eff_forward.1}
  #allocation0 [shape = 'u32[]', space=smem, size = 0x4, offset = 0x4, fixed_abs, tag = 'smem constant byte address 0x4 - core index']
  #allocation1 [shape = 'u32[144,128]{1,0:T(1,128)}', space=vmem, size = 0x12000, scoped, tag = 'internal scratch']
  #allocation2 [shape = 'bf16[640,256]{1,0:T(16,128)(2,1)}', space=vmem, size = 0x50000, scoped, tag = 'scratch operand']
  %s0 = inlined_call_operand.vmem [shape: bf16[2,640,256], index: 0, kind: input, shape index: {}]
  %s1 = inlined_call_operand.vmem [shape: bf16[9,256,128], index: 1, kind: input, shape index: {}]
  %s2 = inlined_call_operand.vmem [shape: bf16[3,384,128], index: 2, kind: input, shape index: {}]
  %s3 = inlined_call_operand.vmem [shape: bf16[128,128], index: 3, kind: input, shape index: {}]
  %s4 = inlined_call_operand.vmem [shape: f32[1,128], index: 4, kind: input, shape index: {}]
  %s5 = inlined_call_operand.vmem [shape: f32[512,1], index: 5, kind: input, shape index: {}]
  %s6 = inlined_call_operand.vmem [shape: f32[2,512,128], index: 6, kind: output, shape index: {}]
  %s7 = sld [smem:[#allocation0]]
  $region57: #{encoder_eff_forward.1} parent=0
    _
  %s9 = ssub.s32 1, %s7
  %s10 = scalar_select 0, %s9, %s7
  loop: start=0, step=1, limit=4
  $region2: #{encoder_eff_forward.1} parent=0 // loop_pre_header
    _
  $region3: #{encoder_eff_forward.1} parent=0 // loop_header
    %s12 = sphi 0, %s16
    %p13 = scmp.ge.s32.totalorder %s12, 4
    %s22 = sphi 0, %s24
    %s25 = sphi 0, %s22
    %s26 = sphi 0, %s25
    %s42 = sphi 0, %s26
    %s46 = sphi 0, %s46
    %s48 = sphi 0, %s46
    %s49 = sphi 0, %s48
    %s63 = sphi 0, %s49
    %s67 = sphi 0, %s67
    %s69 = sphi 0, %s67
    %s70 = sphi 0, %s69
    %s84 = sphi 0, %s70
    %s88 = sphi 0, %s88
    %s90 = sphi 0, %s88
    %s91 = sphi 0, %s90
    %s105 = sphi 0, %s91
    %s109 = sphi 0, %s109
    %s111 = sphi 0, %s109
    %s112 = sphi 0, %s111
    %s126 = sphi 0, %s112
    %s130 = sphi 0, %s130
    %s132 = sphi 0, %s130
    %s133 = sphi 0, %s132
    %s147 = sphi 0, %s133
    %s153 = sphi 0, %s155
    %s156 = sphi 0, %s153
    %s157 = sphi 0, %s156
    %s173 = sphi 0, %s157
  $region4: #{encoder_eff_forward.1} parent=0 // loop_header_branch
    %15 = sbr.rel (%p13) target = $region8
  $region5: #{encoder_eff_forward.1} parent=0 // loop_body
    %s17 = ssub.s32 %s12, 1
    %s18 = ssub.s32 %s12, 2
    %s19 = sadd.s32 %s12, 1
    %s20 = ssub.s32 %s12, %s19
    %p21 = scmp.eq.s32.totalorder %s20, 0
    %s23 = sadd.s32 %s22, 1
    %s24 = scalar_select %p21, %s22, %s23
    %p27 = pneg %p21
    %p28 = scmp.eq.s32.totalorder %s12, 1
    %p29 = por %p27, %p28
    %p30 = scmp.ne.s32.totalorder %s22, %s25
    %p31 = scmp.eq.s32.totalorder %s12, 0
    %p32 = por %p30, %p31
    %p33 = scmp.ne.s32.totalorder %s22, %s25
    %p34 = scmp.eq.s32.totalorder %s17, 1
    %p35 = por %p33, %p34
    %p36 = scmp.ne.s32.totalorder %s25, %s26
    %p37 = scmp.eq.s32.totalorder %s17, 0
    %p38 = por %p36, %p37
    %p39 = scmp.ne.s32.totalorder %s25, %s26
    %p40 = scmp.eq.s32.totalorder %s18, 1
    %p41 = por %p39, %p40
    %p43 = scmp.ne.s32.totalorder %s26, %s42
    %p44 = scmp.eq.s32.totalorder %s18, 0
    %p45 = por %p43, %p44
    %s47 = sadd.s32 %s46, 1
    %p50 = scmp.eq.s32.totalorder %s12, 1
    %p51 = scmp.ne.s32.totalorder %s46, %s48
    %p52 = scmp.eq.s32.totalorder %s12, 0
    %p53 = por %p51, %p52
    %p54 = scmp.ne.s32.totalorder %s46, %s48
    %p55 = scmp.eq.s32.totalorder %s17, 1
    %p56 = por %p54, %p55
    %p57 = scmp.ne.s32.totalorder %s48, %s49
    %p58 = scmp.eq.s32.totalorder %s17, 0
    %p59 = por %p57, %p58
    %p60 = scmp.ne.s32.totalorder %s48, %s49
    %p61 = scmp.eq.s32.totalorder %s18, 1
    %p62 = por %p60, %p61
    %p64 = scmp.ne.s32.totalorder %s49, %s63
    %p65 = scmp.eq.s32.totalorder %s18, 0
    %p66 = por %p64, %p65
    %s68 = sadd.s32 %s67, 1
    %p71 = scmp.eq.s32.totalorder %s12, 1
    %p72 = scmp.ne.s32.totalorder %s67, %s69
    %p73 = scmp.eq.s32.totalorder %s12, 0
    %p74 = por %p72, %p73
    %p75 = scmp.ne.s32.totalorder %s67, %s69
    %p76 = scmp.eq.s32.totalorder %s17, 1
    %p77 = por %p75, %p76
    %p78 = scmp.ne.s32.totalorder %s69, %s70
    %p79 = scmp.eq.s32.totalorder %s17, 0
    %p80 = por %p78, %p79
    %p81 = scmp.ne.s32.totalorder %s69, %s70
    %p82 = scmp.eq.s32.totalorder %s18, 1
    %p83 = por %p81, %p82
    %p85 = scmp.ne.s32.totalorder %s70, %s84
    %p86 = scmp.eq.s32.totalorder %s18, 0
    %p87 = por %p85, %p86
    %s89 = sadd.s32 %s88, 1
    %p92 = scmp.eq.s32.totalorder %s12, 1
    %p93 = scmp.ne.s32.totalorder %s88, %s90
    %p94 = scmp.eq.s32.totalorder %s12, 0
    %p95 = por %p93, %p94
    %p96 = scmp.ne.s32.totalorder %s88, %s90
    %p97 = scmp.eq.s32.totalorder %s17, 1
    %p98 = por %p96, %p97
    %p99 = scmp.ne.s32.totalorder %s90, %s91
    %p100 = scmp.eq.s32.totalorder %s17, 0
    %p101 = por %p99, %p100
    %p102 = scmp.ne.s32.totalorder %s90, %s91
    %p103 = scmp.eq.s32.totalorder %s18, 1
    %p104 = por %p102, %p103
    %p106 = scmp.ne.s32.totalorder %s91, %s105
    %p107 = scmp.eq.s32.totalorder %s18, 0
    %p108 = por %p106, %p107
    %s110 = sadd.s32 %s109, 1
    %p113 = scmp.eq.s32.totalorder %s12, 1
    %p114 = scmp.ne.s32.totalorder %s109, %s111
    %p115 = scmp.eq.s32.totalorder %s12, 0
    %p116 = por %p114, %p115
    %p117 = scmp.ne.s32.totalorder %s109, %s111
    %p118 = scmp.eq.s32.totalorder %s17, 1
    %p119 = por %p117, %p118
    %p120 = scmp.ne.s32.totalorder %s111, %s112
    %p121 = scmp.eq.s32.totalorder %s17, 0
    %p122 = por %p120, %p121
    %p123 = scmp.ne.s32.totalorder %s111, %s112
    %p124 = scmp.eq.s32.totalorder %s18, 1
    %p125 = por %p123, %p124
    %p127 = scmp.ne.s32.totalorder %s112, %s126
    %p128 = scmp.eq.s32.totalorder %s18, 0
    %p129 = por %p127, %p128
    %s131 = sadd.s32 %s130, 1
    %p134 = scmp.eq.s32.totalorder %s12, 1
    %p135 = scmp.ne.s32.totalorder %s130, %s132
    %p136 = scmp.eq.s32.totalorder %s12, 0
    %p137 = por %p135, %p136
    %p138 = scmp.ne.s32.totalorder %s130, %s132
    %p139 = scmp.eq.s32.totalorder %s17, 1
    %p140 = por %p138, %p139
    %p141 = scmp.ne.s32.totalorder %s132, %s133
    %p142 = scmp.eq.s32.totalorder %s17, 0
    %p143 = por %p141, %p142
    %p144 = scmp.ne.s32.totalorder %s132, %s133
    %p145 = scmp.eq.s32.totalorder %s18, 1
    %p146 = por %p144, %p145
    %p148 = scmp.ne.s32.totalorder %s133, %s147
    %p149 = scmp.eq.s32.totalorder %s18, 0
    %p150 = por %p148, %p149
    %s151 = ssub.s32 %s12, %s19
    %p152 = scmp.eq.s32.totalorder %s151, 0
    %s154 = sadd.s32 %s153, 1
    %s155 = scalar_select %p152, %s153, %s154
    %p158 = pneg %p152
    %p159 = scmp.eq.s32.totalorder %s12, 1
    %p160 = por %p158, %p159
    %p161 = scmp.ne.s32.totalorder %s153, %s156
    %p162 = scmp.eq.s32.totalorder %s12, 0
    %p163 = por %p161, %p162
    %p164 = scmp.ne.s32.totalorder %s153, %s156
    %p165 = scmp.eq.s32.totalorder %s17, 1
    %p166 = por %p164, %p165
    %p167 = scmp.ne.s32.totalorder %s156, %s157
    %p168 = scmp.eq.s32.totalorder %s17, 0
    %p169 = por %p167, %p168
    %p170 = scmp.ne.s32.totalorder %s156, %s157
    %p171 = scmp.eq.s32.totalorder %s18, 1
    %p172 = por %p170, %p171
    %p174 = scmp.ne.s32.totalorder %s157, %s173
    %p175 = scmp.eq.s32.totalorder %s18, 0
    %p176 = por %p174, %p175
    %p177 = scmp.le.s32.totalorder 1, %s12
    %p178 = scmp.lt.s32.totalorder %s12, 3
    %p179 = pnand %p177, %p178
    %p180 = pneg %p179
    // Predicated region
    $region9: #{encoder_eff_forward.1} parent=5 // pred_check
      _
    $region10: #{encoder_eff_forward.1} parent=5 // pred_check_branch
      %182 = sbr.rel (%p179) target = $region12
    $region11: #{encoder_eff_forward.1} parent=5 // pred_region
      %s183 = ssub.s32 %s12, 1
      // Predicated region
      $region13: #{encoder_eff_forward.1} parent=11 // pred_check
        %p184 = pneg %p59
      $region14: #{encoder_eff_forward.1} parent=11 // pred_check_branch
        %186 = sbr.rel (%p184) target = $region16
      $region15: #{encoder_eff_forward.1} parent=11 // pred_region
        _
      $region16: #{encoder_eff_forward.1} parent=11 // pred_fallthru
        _
      // Predicated region
      $region17: #{encoder_eff_forward.1} parent=11 // pred_check
        %p187 = pneg %p80
      $region18: #{encoder_eff_forward.1} parent=11 // pred_check_branch
        %189 = sbr.rel (%p187) target = $region20
      $region19: #{encoder_eff_forward.1} parent=11 // pred_region
        _
      $region20: #{encoder_eff_forward.1} parent=11 // pred_fallthru
        _
      // Predicated region
      $region21: #{encoder_eff_forward.1} parent=11 // pred_check
        %p190 = pneg %p101
      $region22: #{encoder_eff_forward.1} parent=11 // pred_check_branch
        %192 = sbr.rel (%p190) target = $region24
      $region23: #{encoder_eff_forward.1} parent=11 // pred_region
        _
      $region24: #{encoder_eff_forward.1} parent=11 // pred_fallthru
        _
      // Predicated region
      $region25: #{encoder_eff_forward.1} parent=11 // pred_check
        %p193 = pneg %p122
      $region26: #{encoder_eff_forward.1} parent=11 // pred_check_branch
        %195 = sbr.rel (%p193) target = $region28
      $region27: #{encoder_eff_forward.1} parent=11 // pred_region
        _
      $region28: #{encoder_eff_forward.1} parent=11 // pred_fallthru
        _
      // Predicated region
      $region29: #{encoder_eff_forward.1} parent=11 // pred_check
        %p196 = pneg %p143
      $region30: #{encoder_eff_forward.1} parent=11 // pred_check_branch
        %198 = sbr.rel (%p196) target = $region32
      $region31: #{encoder_eff_forward.1} parent=11 // pred_region
        _
      $region32: #{encoder_eff_forward.1} parent=11 // pred_fallthru
        _
    $region12: #{encoder_eff_forward.1} parent=5 // pred_fallthru
      _
    %p199 = scmp.lt.s32.totalorder %s12, 2
    // Predicated region
    $region33: #{encoder_eff_forward.1} parent=5 // pred_check
      %p200 = pneg %p199
    $region34: #{encoder_eff_forward.1} parent=5 // pred_check_branch
      %202 = sbr.rel (%p200) target = $region36
    $region35: #{encoder_eff_forward.1} parent=5 // pred_region
      // Predicated region
      $region37: #{encoder_eff_forward.1} parent=35 // pred_check
        %p203 = pneg %p32
      $region38: #{encoder_eff_forward.1} parent=35 // pred_check_branch
        %205 = sbr.rel (%p203) target = $region40
      $region39: #{encoder_eff_forward.1} parent=35 // pred_region
        %p206 = scmp.lt.s32.totalorder %s12, 1
        %s207 = scalar_select %p206, %s12, 1
        %s208 = smul.addr %s207, 160
        %s209 = smul.addr %s208, 4
        %s210 = scalar_lea.vmem %s0, %s209
      $region40: #{encoder_eff_forward.1} parent=35 // pred_fallthru
        _
    $region36: #{encoder_eff_forward.1} parent=5 // pred_fallthru
      _
    %p211 = scmp.le.s32.totalorder 1, %s12
    %p212 = scmp.lt.s32.totalorder %s12, 3
    %p213 = pnand %p211, %p212
    %p214 = pneg %p213
    // Predicated region
    $region41: #{encoder_eff_forward.1} parent=5 // pred_check
      _
    $region42: #{encoder_eff_forward.1} parent=5 // pred_check_branch
      %216 = sbr.rel (%p213) target = $region44
    $region43: #{encoder_eff_forward.1} parent=5 // pred_region
      %s217 = ssub.s32 %s12, 1
      %p218 = scmp.lt.s32.totalorder %s17, 1
      %s219 = scalar_select %p218, %s17, 1
      %s220 = smul.addr %s219, 160
      %s221 = smul.addr %s220, 4
      %s222 = scalar_lea.vmem %s0, %s221
      %p223 = pneg %p38
      %p224 = pneg %p35
      %p225 = pneg %p59
      %p226 = pneg %p56
      %p227 = pneg %p80
      %p228 = pneg %p77
      %p229 = pneg %p101
      %p230 = pneg %p98
      %p231 = pneg %p122
      %p232 = pneg %p119
      %p233 = pneg %p143
      %p234 = pneg %p140
      %p235 = pneg %p169
      %p236 = pneg %p166
      %p237 = scmp.lt.s32.totalorder %s17, 1
      %s238 = scalar_select %p237, %s17, 1
      %s239 = smul.addr %s238, 64
      %s240 = smul.addr %s239, 8
      %s241 = scalar_lea.vmem %s6, %s240
      %p242 = scmp.lt.s32.totalorder %s17, 1
      %s243 = scalar_select %p242, %s17, 1
      %s244 = smul.addr %s243, 160
      %s245 = smul.addr %s244, 4
      %s246 = scalar_lea.vmem %s0, %s245
      %p247 = scmp.lt.s32.totalorder %s17, 1
      %s248 = scalar_select %p247, %s17, 1
      %s249 = smul.addr %s248, 64
      %s250 = smul.addr %s249, 8
      %s251 = scalar_lea.vmem %s6, %s250
      %v253 = vld [vmem:[%s5] sm:$0xff]
      %v254 = vld [vmem:[%s5 + $0x8] sm:$0xff]
      %v255 = vld [vmem:[%s5 + $0x10] sm:$0xff]
      %v256 = vld [vmem:[%s5 + $0x18] sm:$0xff]
      %v257 = vld [vmem:[%s5 + $0x20] sm:$0xff]
      %v258 = vld [vmem:[%s5 + $0x28] sm:$0xff]
      %v259 = vld [vmem:[%s5 + $0x30] sm:$0xff]
      %v260 = vld [vmem:[%s5 + $0x38] sm:$0xff]
      %v261 = vld [vmem:[%s5 + $0x40] sm:$0xff]
      %v262 = vld [vmem:[%s5 + $0x48] sm:$0xff]
      %v263 = vld [vmem:[%s5 + $0x50] sm:$0xff]
      %v264 = vld [vmem:[%s5 + $0x58] sm:$0xff]
      %v265 = vld [vmem:[%s5 + $0x60] sm:$0xff]
      %v266 = vld [vmem:[%s5 + $0x68] sm:$0xff]
      %v267 = vld [vmem:[%s5 + $0x70] sm:$0xff]
      %v268 = vld [vmem:[%s5 + $0x78] sm:$0xff]
      %v269 = vld [vmem:[%s5 + $0x80] sm:$0xff]
      %v270 = vld [vmem:[%s5 + $0x88] sm:$0xff]
      %v271 = vld [vmem:[%s5 + $0x90] sm:$0xff]
      %v272 = vld [vmem:[%s5 + $0x98] sm:$0xff]
      %v273 = vld [vmem:[%s5 + $0xa0] sm:$0xff]
      %v274 = vld [vmem:[%s5 + $0xa8] sm:$0xff]
      %v275 = vld [vmem:[%s5 + $0xb0] sm:$0xff]
      %v276 = vld [vmem:[%s5 + $0xb8] sm:$0xff]
      %v277 = vld [vmem:[%s5 + $0xc0] sm:$0xff]
      %v278 = vld [vmem:[%s5 + $0xc8] sm:$0xff]
      %v279 = vld [vmem:[%s5 + $0xd0] sm:$0xff]
      %v280 = vld [vmem:[%s5 + $0xd8] sm:$0xff]
      %v281 = vld [vmem:[%s5 + $0xe0] sm:$0xff]
      %v282 = vld [vmem:[%s5 + $0xe8] sm:$0xff]
      %v283 = vld [vmem:[%s5 + $0xf0] sm:$0xff]
      %v284 = vld [vmem:[%s5 + $0xf8] sm:$0xff]
      %v285 = vld [vmem:[%s5 + $0x100] sm:$0xff]
      %v286 = vld [vmem:[%s5 + $0x108] sm:$0xff]
      %v287 = vld [vmem:[%s5 + $0x110] sm:$0xff]
      %v288 = vld [vmem:[%s5 + $0x118] sm:$0xff]
      %v289 = vld [vmem:[%s5 + $0x120] sm:$0xff]
      %v290 = vld [vmem:[%s5 + $0x128] sm:$0xff]
      %v291 = vld [vmem:[%s5 + $0x130] sm:$0xff]
      %v292 = vld [vmem:[%s5 + $0x138] sm:$0xff]
      %v293 = vld [vmem:[%s5 + $0x140] sm:$0xff]
      %v294 = vld [vmem:[%s5 + $0x148] sm:$0xff]
      %v295 = vld [vmem:[%s5 + $0x150] sm:$0xff]
      %v296 = vld [vmem:[%s5 + $0x158] sm:$0xff]
      %v297 = vld [vmem:[%s5 + $0x160] sm:$0xff]
      %v298 = vld [vmem:[%s5 + $0x168] sm:$0xff]
      %v299 = vld [vmem:[%s5 + $0x170] sm:$0xff]
      %v300 = vld [vmem:[%s5 + $0x178] sm:$0xff]
      %v301 = vld [vmem:[%s5 + $0x180] sm:$0xff]
      %v302 = vld [vmem:[%s5 + $0x188] sm:$0xff]
      %v303 = vld [vmem:[%s5 + $0x190] sm:$0xff]
      %v304 = vld [vmem:[%s5 + $0x198] sm:$0xff]
      %v305 = vld [vmem:[%s5 + $0x1a0] sm:$0xff]
      %v306 = vld [vmem:[%s5 + $0x1a8] sm:$0xff]
      %v307 = vld [vmem:[%s5 + $0x1b0] sm:$0xff]
      %v308 = vld [vmem:[%s5 + $0x1b8] sm:$0xff]
      %v309 = vld [vmem:[%s5 + $0x1c0] sm:$0xff]
      %v310 = vld [vmem:[%s5 + $0x1c8] sm:$0xff]
      %v311 = vld [vmem:[%s5 + $0x1d0] sm:$0xff]
      %v312 = vld [vmem:[%s5 + $0x1d8] sm:$0xff]
      %v313 = vld [vmem:[%s5 + $0x1e0] sm:$0xff]
      %v314 = vld [vmem:[%s5 + $0x1e8] sm:$0xff]
      %v315 = vld [vmem:[%s5 + $0x1f0] sm:$0xff]
      %v316 = vld [vmem:[%s5 + $0x1f8] sm:$0xff]
      %v317 = vld [vmem:[%s246] sm:$0xff]
      %v318 = vld [vmem:[%s246 + $0x8] sm:$0xff]
      %v319 = vld [vmem:[%s246 + $0x10] sm:$0xff]
      %v320 = vld [vmem:[%s246 + $0x18] sm:$0xff]
      %v321 = vld [vmem:[%s246 + $0x20] sm:$0xff]
      %v322 = vld [vmem:[%s246 + $0x28] sm:$0xff]
      %v323 = vld [vmem:[%s246 + $0x30] sm:$0xff]
      %v324 = vld [vmem:[%s246 + $0x38] sm:$0xff]
      %v325 = vld [vmem:[%s246 + $0x40] sm:$0xff]
      %v326 = vld [vmem:[%s246 + $0x48] sm:$0xff]
      %v327 = vld [vmem:[%s246 + $0x50] sm:$0xff]
      %v328 = vld [vmem:[%s246 + $0x58] sm:$0xff]
      %v329 = vld [vmem:[%s246 + $0x60] sm:$0xff]
      %v330 = vld [vmem:[%s246 + $0x68] sm:$0xff]
      %v331 = vld [vmem:[%s246 + $0x70] sm:$0xff]
      %v332 = vld [vmem:[%s246 + $0x78] sm:$0xff]
      %v333 = vld [vmem:[%s246 + $0x80] sm:$0xff]
      %v334 = vld [vmem:[%s246 + $0x88] sm:$0xff]
      %v335 = vld [vmem:[%s246 + $0x90] sm:$0xff]
      %v336 = vld [vmem:[%s246 + $0x98] sm:$0xff]
      %v337 = vld [vmem:[%s246 + $0xa0] sm:$0xff]
      %v338 = vld [vmem:[%s246 + $0xa8] sm:$0xff]
      %v339 = vld [vmem:[%s246 + $0xb0] sm:$0xff]
      %v340 = vld [vmem:[%s246 + $0xb8] sm:$0xff]
      %v341 = vld [vmem:[%s246 + $0xc0] sm:$0xff]
      %v342 = vld [vmem:[%s246 + $0xc8] sm:$0xff]
      %v343 = vld [vmem:[%s246 + $0xd0] sm:$0xff]
      %v344 = vld [vmem:[%s246 + $0xd8] sm:$0xff]
      %v345 = vld [vmem:[%s246 + $0xe0] sm:$0xff]
      %v346 = vld [vmem:[%s246 + $0xe8] sm:$0xff]
      %v347 = vld [vmem:[%s246 + $0xf0] sm:$0xff]
      %v348 = vld [vmem:[%s246 + $0xf8] sm:$0xff]
      %v349 = vld [vmem:[%s246 + $0x100] sm:$0xff]
      %v350 = vld [vmem:[%s246 + $0x108] sm:$0xff]
      %v351 = vld [vmem:[%s246 + $0x110] sm:$0xff]
      %v352 = vld [vmem:[%s246 + $0x118] sm:$0xff]
      %v353 = vld [vmem:[%s246 + $0x120] sm:$0xff]
      %v354 = vld [vmem:[%s246 + $0x128] sm:$0xff]
      %v355 = vld [vmem:[%s246 + $0x130] sm:$0xff]
      %v356 = vld [vmem:[%s246 + $0x138] sm:$0xff]
      %v357 = vld [vmem:[%s246 + $0x140] sm:$0xff]
      %v358 = vld [vmem:[%s246 + $0x148] sm:$0xff]
      %v359 = vld [vmem:[%s246 + $0x150] sm:$0xff]
      %v360 = vld [vmem:[%s246 + $0x158] sm:$0xff]
      %v361 = vld [vmem:[%s246 + $0x160] sm:$0xff]
      %v362 = vld [vmem:[%s246 + $0x168] sm:$0xff]
      %v363 = vld [vmem:[%s246 + $0x170] sm:$0xff]
      %v364 = vld [vmem:[%s246 + $0x178] sm:$0xff]
      %v365 = vld [vmem:[%s246 + $0x180] sm:$0xff]
      %v366 = vld [vmem:[%s246 + $0x188] sm:$0xff]
      %v367 = vld [vmem:[%s246 + $0x190] sm:$0xff]
      %v368 = vld [vmem:[%s246 + $0x198] sm:$0xff]
      %v369 = vld [vmem:[%s246 + $0x1a0] sm:$0xff]
      %v370 = vld [vmem:[%s246 + $0x1a8] sm:$0xff]
      %v371 = vld [vmem:[%s246 + $0x1b0] sm:$0xff]
      %v372 = vld [vmem:[%s246 + $0x1b8] sm:$0xff]
      %v373 = vld [vmem:[%s246 + $0x1c0] sm:$0xff]
      %v374 = vld [vmem:[%s246 + $0x1c8] sm:$0xff]
      %v375 = vld [vmem:[%s246 + $0x1d0] sm:$0xff]
      %v376 = vld [vmem:[%s246 + $0x1d8] sm:$0xff]
      %v377 = vld [vmem:[%s246 + $0x1e0] sm:$0xff]
      %v378 = vld [vmem:[%s246 + $0x1e8] sm:$0xff]
      %v379 = vld [vmem:[%s246 + $0x1f0] sm:$0xff]
      %v380 = vld [vmem:[%s246 + $0x1f8] sm:$0xff]
      %v381 = vld [vmem:[%s246 + $0x200] sm:$0xff]
      %v382 = vld [vmem:[%s246 + $0x208] sm:$0xff]
      %v383 = vld [vmem:[%s246 + $0x210] sm:$0xff]
      %v384 = vld [vmem:[%s246 + $0x218] sm:$0xff]
      %v385 = vld [vmem:[%s246 + $0x220] sm:$0xff]
      %v386 = vld [vmem:[%s246 + $0x228] sm:$0xff]
      %v387 = vld [vmem:[%s246 + $0x230] sm:$0xff]
      %v388 = vld [vmem:[%s246 + $0x238] sm:$0xff]
      %v389 = vld [vmem:[%s246 + $0x240] sm:$0xff]
      %v390 = vld [vmem:[%s246 + $0x248] sm:$0xff]
      %v391 = vld [vmem:[%s246 + $0x250] sm:$0xff]
      %v392 = vld [vmem:[%s246 + $0x258] sm:$0xff]
      %v393 = vld [vmem:[%s246 + $0x260] sm:$0x11]
      %v471 = vunpack.c.l.b16 %v317
      %v472 = vunpack.c.h.b16 %v317
      %v473 = vunpack.c.l.b16 %v318
      %v474 = vunpack.c.h.b16 %v318
      %v475 = vunpack.c.l.b16 %v319
      %v476 = vunpack.c.h.b16 %v319
      %v477 = vunpack.c.l.b16 %v320
      %v478 = vunpack.c.h.b16 %v320
      %v479 = vunpack.c.l.b16 %v321
      %v480 = vunpack.c.h.b16 %v321
      %v481 = vunpack.c.l.b16 %v322
      %v482 = vunpack.c.h.b16 %v322
      %v483 = vunpack.c.l.b16 %v323
      %v484 = vunpack.c.h.b16 %v323
      %v485 = vunpack.c.l.b16 %v324
      %v486 = vunpack.c.h.b16 %v324
      %v487 = vunpack.c.l.b16 %v325
      %v488 = vunpack.c.h.b16 %v325
      %v489 = vunpack.c.l.b16 %v326
      %v490 = vunpack.c.h.b16 %v326
      %v491 = vunpack.c.l.b16 %v327
      %v492 = vunpack.c.h.b16 %v327
      %v493 = vunpack.c.l.b16 %v328
      %v494 = vunpack.c.h.b16 %v328
      %v495 = vunpack.c.l.b16 %v329
      %v496 = vunpack.c.h.b16 %v329
      %v497 = vunpack.c.l.b16 %v330
      %v498 = vunpack.c.h.b16 %v330
      %v499 = vunpack.c.l.b16 %v331
      %v500 = vunpack.c.h.b16 %v331
      %v501 = vunpack.c.l.b16 %v332
      %v502 = vunpack.c.h.b16 %v332
      %v503 = vunpack.c.l.b16 %v333
      %v504 = vunpack.c.h.b16 %v333
      %v505 = vunpack.c.l.b16 %v334
      %v506 = vunpack.c.h.b16 %v334
      %v507 = vunpack.c.l.b16 %v335
      %v508 = vunpack.c.h.b16 %v335
      %v509 = vunpack.c.l.b16 %v336
      %v510 = vunpack.c.h.b16 %v336
      %v511 = vunpack.c.l.b16 %v337
      %v512 = vunpack.c.h.b16 %v337
      %v513 = vunpack.c.l.b16 %v338
      %v514 = vunpack.c.h.b16 %v338
      %v515 = vunpack.c.l.b16 %v339
      %v516 = vunpack.c.h.b16 %v339
      %v517 = vunpack.c.l.b16 %v340
      %v518 = vunpack.c.h.b16 %v340
      %v519 = vunpack.c.l.b16 %v341
      %v520 = vunpack.c.h.b16 %v341
      %v521 = vunpack.c.l.b16 %v342
      %v522 = vunpack.c.h.b16 %v342
      %v523 = vunpack.c.l.b16 %v343
      %v524 = vunpack.c.h.b16 %v343
      %v525 = vunpack.c.l.b16 %v344
      %v526 = vunpack.c.h.b16 %v344
      %v527 = vunpack.c.l.b16 %v345
      %v528 = vunpack.c.h.b16 %v345
      %v529 = vunpack.c.l.b16 %v346
      %v530 = vunpack.c.h.b16 %v346
      %v531 = vunpack.c.l.b16 %v347
      %v532 = vunpack.c.h.b16 %v347
      %v533 = vunpack.c.l.b16 %v348
      %v534 = vunpack.c.h.b16 %v348
      %v535 = vunpack.c.l.b16 %v349
      %v536 = vunpack.c.h.b16 %v349
      %v537 = vunpack.c.l.b16 %v350
      %v538 = vunpack.c.h.b16 %v350
      %v539 = vunpack.c.l.b16 %v351
      %v540 = vunpack.c.h.b16 %v351
      %v541 = vunpack.c.l.b16 %v352
      %v542 = vunpack.c.h.b16 %v352
      %v543 = vunpack.c.l.b16 %v353
      %v544 = vunpack.c.h.b16 %v353
      %v545 = vunpack.c.l.b16 %v354
      %v546 = vunpack.c.h.b16 %v354
      %v547 = vunpack.c.l.b16 %v355
      %v548 = vunpack.c.h.b16 %v355
      %v549 = vunpack.c.l.b16 %v356
      %v550 = vunpack.c.h.b16 %v356
      %v551 = vunpack.c.l.b16 %v357
      %v552 = vunpack.c.h.b16 %v357
      %v553 = vunpack.c.l.b16 %v358
      %v554 = vunpack.c.h.b16 %v358
      %v555 = vunpack.c.l.b16 %v359
      %v556 = vunpack.c.h.b16 %v359
      %v557 = vunpack.c.l.b16 %v360
      %v558 = vunpack.c.h.b16 %v360
      %v559 = vunpack.c.l.b16 %v361
      %v560 = vunpack.c.h.b16 %v361
      %v561 = vunpack.c.l.b16 %v362
      %v562 = vunpack.c.h.b16 %v362
      %v563 = vunpack.c.l.b16 %v363
      %v564 = vunpack.c.h.b16 %v363
      %v565 = vunpack.c.l.b16 %v364
      %v566 = vunpack.c.h.b16 %v364
      %v567 = vunpack.c.l.b16 %v365
      %v568 = vunpack.c.h.b16 %v365
      %v569 = vunpack.c.l.b16 %v366
      %v570 = vunpack.c.h.b16 %v366
      %v571 = vunpack.c.l.b16 %v367
      %v572 = vunpack.c.h.b16 %v367
      %v573 = vunpack.c.l.b16 %v368
      %v574 = vunpack.c.h.b16 %v368
      %v575 = vunpack.c.l.b16 %v369
      %v576 = vunpack.c.h.b16 %v369
      %v577 = vunpack.c.l.b16 %v370
      %v578 = vunpack.c.h.b16 %v370
      %v579 = vunpack.c.l.b16 %v371
      %v580 = vunpack.c.h.b16 %v371
      %v581 = vunpack.c.l.b16 %v372
      %v582 = vunpack.c.h.b16 %v372
      %v583 = vunpack.c.l.b16 %v373
      %v584 = vunpack.c.h.b16 %v373
      %v585 = vunpack.c.l.b16 %v374
      %v586 = vunpack.c.h.b16 %v374
      %v587 = vunpack.c.l.b16 %v375
      %v588 = vunpack.c.h.b16 %v375
      %v589 = vunpack.c.l.b16 %v376
      %v590 = vunpack.c.h.b16 %v376
      %v591 = vunpack.c.l.b16 %v377
      %v592 = vunpack.c.h.b16 %v377
      %v593 = vunpack.c.l.b16 %v378
      %v594 = vunpack.c.h.b16 %v378
      %v595 = vunpack.c.l.b16 %v379
      %v596 = vunpack.c.h.b16 %v379
      %v597 = vunpack.c.l.b16 %v380
      %v598 = vunpack.c.h.b16 %v380
      %v599 = vunpack.c.l.b16 %v381
      %v600 = vunpack.c.h.b16 %v381
      %v601 = vunpack.c.l.b16 %v382
      %v602 = vunpack.c.h.b16 %v382
      %v603 = vunpack.c.l.b16 %v383
      %v604 = vunpack.c.h.b16 %v383
      %v605 = vunpack.c.l.b16 %v384
      %v606 = vunpack.c.h.b16 %v384
      %v607 = vunpack.c.l.b16 %v385
      %v608 = vunpack.c.h.b16 %v385
      %v609 = vunpack.c.l.b16 %v386
      %v610 = vunpack.c.h.b16 %v386
      %v611 = vunpack.c.l.b16 %v387
      %v612 = vunpack.c.h.b16 %v387
      %v613 = vunpack.c.l.b16 %v388
      %v614 = vunpack.c.h.b16 %v388
      %v615 = vunpack.c.l.b16 %v389
      %v616 = vunpack.c.h.b16 %v389
      %v617 = vunpack.c.l.b16 %v390
      %v618 = vunpack.c.h.b16 %v390
      %v619 = vunpack.c.l.b16 %v391
      %v620 = vunpack.c.h.b16 %v391
      %v621 = vunpack.c.l.b16 %v392
      %v622 = vunpack.c.h.b16 %v392
      %v623 = vunpack.c.l.b16 %v393
      %v624 = vunpack.c.h.b16 %v393
      %v625 = vpack.c.b16 %v473, %v471
      %v626 = vpack.c.b16 %v474, %v472
      %v627 = vpack.c.b16 %v477, %v475
      %v628 = vpack.c.b16 %v478, %v476
      %v629 = vpack.c.b16 %v481, %v479
      %v630 = vpack.c.b16 %v482, %v480
      %v631 = vpack.c.b16 %v485, %v483
      %v632 = vpack.c.b16 %v486, %v484
      %v633 = vpack.c.b16 %v489, %v487
      %v634 = vpack.c.b16 %v490, %v488
      %v635 = vpack.c.b16 %v493, %v491
      %v636 = vpack.c.b16 %v494, %v492
      %v637 = vpack.c.b16 %v497, %v495
      %v638 = vpack.c.b16 %v498, %v496
      %v639 = vpack.c.b16 %v501, %v499
      %v640 = vpack.c.b16 %v502, %v500
      %v641 = vpack.c.b16 %v505, %v503
      %v642 = vpack.c.b16 %v506, %v504
      %v643 = vpack.c.b16 %v509, %v507
      %v644 = vpack.c.b16 %v510, %v508
      %v645 = vpack.c.b16 %v513, %v511
      %v646 = vpack.c.b16 %v514, %v512
      %v647 = vpack.c.b16 %v517, %v515
      %v648 = vpack.c.b16 %v518, %v516
      %v649 = vpack.c.b16 %v521, %v519
      %v650 = vpack.c.b16 %v522, %v520
      %v651 = vpack.c.b16 %v525, %v523
      %v652 = vpack.c.b16 %v526, %v524
      %v653 = vpack.c.b16 %v529, %v527
      %v654 = vpack.c.b16 %v530, %v528
      %v655 = vpack.c.b16 %v533, %v531
      %v656 = vpack.c.b16 %v534, %v532
      %v657 = vpack.c.b16 %v537, %v535
      %v658 = vpack.c.b16 %v538, %v536
      %v659 = vpack.c.b16 %v541, %v539
      %v660 = vpack.c.b16 %v542, %v540
      %v661 = vpack.c.b16 %v545, %v543
      %v662 = vpack.c.b16 %v546, %v544
      %v663 = vpack.c.b16 %v549, %v547
      %v664 = vpack.c.b16 %v550, %v548
      %v665 = vpack.c.b16 %v553, %v551
      %v666 = vpack.c.b16 %v554, %v552
      %v667 = vpack.c.b16 %v557, %v555
      %v668 = vpack.c.b16 %v558, %v556
      %v669 = vpack.c.b16 %v561, %v559
      %v670 = vpack.c.b16 %v562, %v560
      %v671 = vpack.c.b16 %v565, %v563
      %v672 = vpack.c.b16 %v566, %v564
      %v673 = vpack.c.b16 %v569, %v567
      %v674 = vpack.c.b16 %v570, %v568
      %v675 = vpack.c.b16 %v573, %v571
      %v676 = vpack.c.b16 %v574, %v572
      %v677 = vpack.c.b16 %v577, %v575
      %v678 = vpack.c.b16 %v578, %v576
      %v679 = vpack.c.b16 %v581, %v579
      %v680 = vpack.c.b16 %v582, %v580
      %v681 = vpack.c.b16 %v585, %v583
      %v682 = vpack.c.b16 %v586, %v584
      %v683 = vpack.c.b16 %v589, %v587
      %v684 = vpack.c.b16 %v590, %v588
      %v685 = vpack.c.b16 %v593, %v591
      %v686 = vpack.c.b16 %v594, %v592
      %v687 = vpack.c.b16 %v597, %v595
      %v688 = vpack.c.b16 %v598, %v596
      %v689 = vpack.c.b16 %v601, %v599
      %v690 = vpack.c.b16 %v602, %v600
      %v691 = vpack.c.b16 %v605, %v603
      %v692 = vpack.c.b16 %v606, %v604
      %v693 = vpack.c.b16 %v609, %v607
      %v694 = vpack.c.b16 %v610, %v608
      %v695 = vpack.c.b16 %v613, %v611
      %v696 = vpack.c.b16 %v614, %v612
      %v697 = vpack.c.b16 %v617, %v615
      %v698 = vpack.c.b16 %v618, %v616
      %v699 = vpack.c.b16 %v621, %v619
      %v700 = vpack.c.b16 %v622, %v620
      %v701 = vpack.c.b16 %v623, %v623
      %v702 = vpack.c.b16 %v624, %v624
      %vm703 = vsmask.f32 7424
      %v705 = vshrl.u32 %v625, 16
      %v707 = vshll.u32 %v625, 16
      %v709 = vrot.slane %v707, 1
      %v710 = vor.u32 %v705, %v709
      %v712 = vshll.u32 %v627, 16
      %v714 = vrot.slane %v712, 1
      %v715 = vsel %vm703, %v710, %v714
      %v717 = vshrl.u32 %v626, 16
      %v719 = vshll.u32 %v626, 16
      %v721 = vrot.slane %v719, 1
      %v722 = vor.u32 %v717, %v721
      %v724 = vshll.u32 %v628, 16
      %v726 = vrot.slane %v724, 1
      %v727 = vsel %vm703, %v722, %v726
      %v728 = vshrl.u32 %v627, 16
      %v730 = vor.u32 %v728, %v714
      %v732 = vshll.u32 %v629, 16
      %v734 = vrot.slane %v732, 1
      %v735 = vsel %vm703, %v730, %v734
      %v736 = vshrl.u32 %v628, 16
      %v738 = vor.u32 %v736, %v726
      %v740 = vshll.u32 %v630, 16
      %v742 = vrot.slane %v740, 1
      %v743 = vsel %vm703, %v738, %v742
      %v744 = vshrl.u32 %v629, 16
      %v746 = vor.u32 %v744, %v734
      %v748 = vshll.u32 %v631, 16
      %v750 = vrot.slane %v748, 1
      %v751 = vsel %vm703, %v746, %v750
      %v752 = vshrl.u32 %v630, 16
      %v754 = vor.u32 %v752, %v742
      %v756 = vshll.u32 %v632, 16
      %v758 = vrot.slane %v756, 1
      %v759 = vsel %vm703, %v754, %v758
      %v760 = vshrl.u32 %v631, 16
      %v762 = vor.u32 %v760, %v750
      %v764 = vshll.u32 %v633, 16
      %v766 = vrot.slane %v764, 1
      %v767 = vsel %vm703, %v762, %v766
      %v768 = vshrl.u32 %v632, 16
      %v770 = vor.u32 %v768, %v758
      %v772 = vshll.u32 %v634, 16
      %v774 = vrot.slane %v772, 1
      %v775 = vsel %vm703, %v770, %v774
      %v776 = vshrl.u32 %v633, 16
      %v778 = vor.u32 %v776, %v766
      %v780 = vshll.u32 %v635, 16
      %v782 = vrot.slane %v780, 1
      %v783 = vsel %vm703, %v778, %v782
      %v784 = vshrl.u32 %v634, 16
      %v786 = vor.u32 %v784, %v774
      %v788 = vshll.u32 %v636, 16
      %v790 = vrot.slane %v788, 1
      %v791 = vsel %vm703, %v786, %v790
      %v792 = vshrl.u32 %v635, 16
      %v794 = vor.u32 %v792, %v782
      %v796 = vshll.u32 %v637, 16
      %v798 = vrot.slane %v796, 1
      %v799 = vsel %vm703, %v794, %v798
      %v800 = vshrl.u32 %v636, 16
      %v802 = vor.u32 %v800, %v790
      %v804 = vshll.u32 %v638, 16
      %v806 = vrot.slane %v804, 1
      %v807 = vsel %vm703, %v802, %v806
      %v808 = vshrl.u32 %v637, 16
      %v810 = vor.u32 %v808, %v798
      %v812 = vshll.u32 %v639, 16
      %v814 = vrot.slane %v812, 1
      %v815 = vsel %vm703, %v810, %v814
      %v816 = vshrl.u32 %v638, 16
      %v818 = vor.u32 %v816, %v806
      %v820 = vshll.u32 %v640, 16
      %v822 = vrot.slane %v820, 1
      %v823 = vsel %vm703, %v818, %v822
      %v824 = vshrl.u32 %v639, 16
      %v826 = vor.u32 %v824, %v814
      %v828 = vshll.u32 %v641, 16
      %v830 = vrot.slane %v828, 1
      %v831 = vsel %vm703, %v826, %v830
      %v832 = vshrl.u32 %v640, 16
      %v834 = vor.u32 %v832, %v822
      %v836 = vshll.u32 %v642, 16
      %v838 = vrot.slane %v836, 1
      %v839 = vsel %vm703, %v834, %v838
      %v840 = vshrl.u32 %v641, 16
      %v842 = vor.u32 %v840, %v830
      %v844 = vshll.u32 %v643, 16
      %v846 = vrot.slane %v844, 1
      %v847 = vsel %vm703, %v842, %v846
      %v848 = vshrl.u32 %v642, 16
      %v850 = vor.u32 %v848, %v838
      %v852 = vshll.u32 %v644, 16
      %v854 = vrot.slane %v852, 1
      %v855 = vsel %vm703, %v850, %v854
      %v856 = vshrl.u32 %v643, 16
      %v858 = vor.u32 %v856, %v846
      %v860 = vshll.u32 %v645, 16
      %v862 = vrot.slane %v860, 1
      %v863 = vsel %vm703, %v858, %v862
      %v864 = vshrl.u32 %v644, 16
      %v866 = vor.u32 %v864, %v854
      %v868 = vshll.u32 %v646, 16
      %v870 = vrot.slane %v868, 1
      %v871 = vsel %vm703, %v866, %v870
      %v872 = vshrl.u32 %v645, 16
      %v874 = vor.u32 %v872, %v862
      %v876 = vshll.u32 %v647, 16
      %v878 = vrot.slane %v876, 1
      %v879 = vsel %vm703, %v874, %v878
      %v880 = vshrl.u32 %v646, 16
      %v882 = vor.u32 %v880, %v870
      %v884 = vshll.u32 %v648, 16
      %v886 = vrot.slane %v884, 1
      %v887 = vsel %vm703, %v882, %v886
      %v888 = vshrl.u32 %v647, 16
      %v890 = vor.u32 %v888, %v878
      %v892 = vshll.u32 %v649, 16
      %v894 = vrot.slane %v892, 1
      %v895 = vsel %vm703, %v890, %v894
      %v896 = vshrl.u32 %v648, 16
      %v898 = vor.u32 %v896, %v886
      %v900 = vshll.u32 %v650, 16
      %v902 = vrot.slane %v900, 1
      %v903 = vsel %vm703, %v898, %v902
      %v904 = vshrl.u32 %v649, 16
      %v906 = vor.u32 %v904, %v894
      %v908 = vshll.u32 %v651, 16
      %v910 = vrot.slane %v908, 1
      %v911 = vsel %vm703, %v906, %v910
      %v912 = vshrl.u32 %v650, 16
      %v914 = vor.u32 %v912, %v902
      %v916 = vshll.u32 %v652, 16
      %v918 = vrot.slane %v916, 1
      %v919 = vsel %vm703, %v914, %v918
      %v920 = vshrl.u32 %v651, 16
      %v922 = vor.u32 %v920, %v910
      %v924 = vshll.u32 %v653, 16
      %v926 = vrot.slane %v924, 1
      %v927 = vsel %vm703, %v922, %v926
      %v928 = vshrl.u32 %v652, 16
      %v930 = vor.u32 %v928, %v918
      %v932 = vshll.u32 %v654, 16
      %v934 = vrot.slane %v932, 1
      %v935 = vsel %vm703, %v930, %v934
      %v936 = vshrl.u32 %v653, 16
      %v938 = vor.u32 %v936, %v926
      %v940 = vshll.u32 %v655, 16
      %v942 = vrot.slane %v940, 1
      %v943 = vsel %vm703, %v938, %v942
      %v944 = vshrl.u32 %v654, 16
      %v946 = vor.u32 %v944, %v934
      %v948 = vshll.u32 %v656, 16
      %v950 = vrot.slane %v948, 1
      %v951 = vsel %vm703, %v946, %v950
      %v952 = vshrl.u32 %v655, 16
      %v954 = vor.u32 %v952, %v942
      %v956 = vshll.u32 %v657, 16
      %v958 = vrot.slane %v956, 1
      %v959 = vsel %vm703, %v954, %v958
      %v960 = vshrl.u32 %v656, 16
      %v962 = vor.u32 %v960, %v950
      %v964 = vshll.u32 %v658, 16
      %v966 = vrot.slane %v964, 1
      %v967 = vsel %vm703, %v962, %v966
      %v968 = vshrl.u32 %v657, 16
      %v970 = vor.u32 %v968, %v958
      %v972 = vshll.u32 %v659, 16
      %v974 = vrot.slane %v972, 1
      %v975 = vsel %vm703, %v970, %v974
      %v976 = vshrl.u32 %v658, 16
      %v978 = vor.u32 %v976, %v966
      %v980 = vshll.u32 %v660, 16
      %v982 = vrot.slane %v980, 1
      %v983 = vsel %vm703, %v978, %v982
      %v984 = vshrl.u32 %v659, 16
      %v986 = vor.u32 %v984, %v974
      %v988 = vshll.u32 %v661, 16
      %v990 = vrot.slane %v988, 1
      %v991 = vsel %vm703, %v986, %v990
      %v992 = vshrl.u32 %v660, 16
      %v994 = vor.u32 %v992, %v982
      %v996 = vshll.u32 %v662, 16
      %v998 = vrot.slane %v996, 1
      %v999 = vsel %vm703, %v994, %v998
      %v1000 = vshrl.u32 %v661, 16
      %v1002 = vor.u32 %v1000, %v990
      %v1004 = vshll.u32 %v663, 16
      %v1006 = vrot.slane %v1004, 1
      %v1007 = vsel %vm703, %v1002, %v1006
      %v1008 = vshrl.u32 %v662, 16
      %v1010 = vor.u32 %v1008, %v998
      %v1012 = vshll.u32 %v664, 16
      %v1014 = vrot.slane %v1012, 1
      %v1015 = vsel %vm703, %v1010, %v1014
      %v1016 = vshrl.u32 %v663, 16
      %v1018 = vor.u32 %v1016, %v1006
      %v1020 = vshll.u32 %v665, 16
      %v1022 = vrot.slane %v1020, 1
      %v1023 = vsel %vm703, %v1018, %v1022
      %v1024 = vshrl.u32 %v664, 16
      %v1026 = vor.u32 %v1024, %v1014
      %v1028 = vshll.u32 %v666, 16
      %v1030 = vrot.slane %v1028, 1
      %v1031 = vsel %vm703, %v1026, %v1030
      %v1032 = vshrl.u32 %v665, 16
      %v1034 = vor.u32 %v1032, %v1022
      %v1036 = vshll.u32 %v667, 16
      %v1038 = vrot.slane %v1036, 1
      %v1039 = vsel %vm703, %v1034, %v1038
      %v1040 = vshrl.u32 %v666, 16
      %v1042 = vor.u32 %v1040, %v1030
      %v1044 = vshll.u32 %v668, 16
      %v1046 = vrot.slane %v1044, 1
      %v1047 = vsel %vm703, %v1042, %v1046
      %v1048 = vshrl.u32 %v667, 16
      %v1050 = vor.u32 %v1048, %v1038
      %v1052 = vshll.u32 %v669, 16
      %v1054 = vrot.slane %v1052, 1
      %v1055 = vsel %vm703, %v1050, %v1054
      %v1056 = vshrl.u32 %v668, 16
      %v1058 = vor.u32 %v1056, %v1046
      %v1060 = vshll.u32 %v670, 16
      %v1062 = vrot.slane %v1060, 1
      %v1063 = vsel %vm703, %v1058, %v1062
      %v1064 = vshrl.u32 %v669, 16
      %v1066 = vor.u32 %v1064, %v1054
      %v1068 = vshll.u32 %v671, 16
      %v1070 = vrot.slane %v1068, 1
      %v1071 = vsel %vm703, %v1066, %v1070
      %v1072 = vshrl.u32 %v670, 16
      %v1074 = vor.u32 %v1072, %v1062
      %v1076 = vshll.u32 %v672, 16
      %v1078 = vrot.slane %v1076, 1
      %v1079 = vsel %vm703, %v1074, %v1078
      %v1080 = vshrl.u32 %v671, 16
      %v1082 = vor.u32 %v1080, %v1070
      %v1084 = vshll.u32 %v673, 16
      %v1086 = vrot.slane %v1084, 1
      %v1087 = vsel %vm703, %v1082, %v1086
      %v1088 = vshrl.u32 %v672, 16
      %v1090 = vor.u32 %v1088, %v1078
      %v1092 = vshll.u32 %v674, 16
      %v1094 = vrot.slane %v1092, 1
      %v1095 = vsel %vm703, %v1090, %v1094
      %v1096 = vshrl.u32 %v673, 16
      %v1098 = vor.u32 %v1096, %v1086
      %v1100 = vshll.u32 %v675, 16
      %v1102 = vrot.slane %v1100, 1
      %v1103 = vsel %vm703, %v1098, %v1102
      %v1104 = vshrl.u32 %v674, 16
      %v1106 = vor.u32 %v1104, %v1094
      %v1108 = vshll.u32 %v676, 16
      %v1110 = vrot.slane %v1108, 1
      %v1111 = vsel %vm703, %v1106, %v1110
      %v1112 = vshrl.u32 %v675, 16
      %v1114 = vor.u32 %v1112, %v1102
      %v1116 = vshll.u32 %v677, 16
      %v1118 = vrot.slane %v1116, 1
      %v1119 = vsel %vm703, %v1114, %v1118
      %v1120 = vshrl.u32 %v676, 16
      %v1122 = vor.u32 %v1120, %v1110
      %v1124 = vshll.u32 %v678, 16
      %v1126 = vrot.slane %v1124, 1
      %v1127 = vsel %vm703, %v1122, %v1126
      %v1128 = vshrl.u32 %v677, 16
      %v1130 = vor.u32 %v1128, %v1118
      %v1132 = vshll.u32 %v679, 16
      %v1134 = vrot.slane %v1132, 1
      %v1135 = vsel %vm703, %v1130, %v1134
      %v1136 = vshrl.u32 %v678, 16
      %v1138 = vor.u32 %v1136, %v1126
      %v1140 = vshll.u32 %v680, 16
      %v1142 = vrot.slane %v1140, 1
      %v1143 = vsel %vm703, %v1138, %v1142
      %v1144 = vshrl.u32 %v679, 16
      %v1146 = vor.u32 %v1144, %v1134
      %v1148 = vshll.u32 %v681, 16
      %v1150 = vrot.slane %v1148, 1
      %v1151 = vsel %vm703, %v1146, %v1150
      %v1152 = vshrl.u32 %v680, 16
      %v1154 = vor.u32 %v1152, %v1142
      %v1156 = vshll.u32 %v682, 16
      %v1158 = vrot.slane %v1156, 1
      %v1159 = vsel %vm703, %v1154, %v1158
      %v1160 = vshrl.u32 %v681, 16
      %v1162 = vor.u32 %v1160, %v1150
      %v1164 = vshll.u32 %v683, 16
      %v1166 = vrot.slane %v1164, 1
      %v1167 = vsel %vm703, %v1162, %v1166
      %v1168 = vshrl.u32 %v682, 16
      %v1170 = vor.u32 %v1168, %v1158
      %v1172 = vshll.u32 %v684, 16
      %v1174 = vrot.slane %v1172, 1
      %v1175 = vsel %vm703, %v1170, %v1174
      %v1176 = vshrl.u32 %v683, 16
      %v1178 = vor.u32 %v1176, %v1166
      %v1180 = vshll.u32 %v685, 16
      %v1182 = vrot.slane %v1180, 1
      %v1183 = vsel %vm703, %v1178, %v1182
      %v1184 = vshrl.u32 %v684, 16
      %v1186 = vor.u32 %v1184, %v1174
      %v1188 = vshll.u32 %v686, 16
      %v1190 = vrot.slane %v1188, 1
      %v1191 = vsel %vm703, %v1186, %v1190
      %v1192 = vshrl.u32 %v685, 16
      %v1194 = vor.u32 %v1192, %v1182
      %v1196 = vshll.u32 %v687, 16
      %v1198 = vrot.slane %v1196, 1
      %v1199 = vsel %vm703, %v1194, %v1198
      %v1200 = vshrl.u32 %v686, 16
      %v1202 = vor.u32 %v1200, %v1190
      %v1204 = vshll.u32 %v688, 16
      %v1206 = vrot.slane %v1204, 1
      %v1207 = vsel %vm703, %v1202, %v1206
      %v1208 = vshrl.u32 %v687, 16
      %v1210 = vor.u32 %v1208, %v1198
      %v1212 = vshll.u32 %v689, 16
      %v1214 = vrot.slane %v1212, 1
      %v1215 = vsel %vm703, %v1210, %v1214
      %v1216 = vshrl.u32 %v688, 16
      %v1218 = vor.u32 %v1216, %v1206
      %v1220 = vshll.u32 %v690, 16
      %v1222 = vrot.slane %v1220, 1
      %v1223 = vsel %vm703, %v1218, %v1222
      %v1224 = vshrl.u32 %v689, 16
      %v1226 = vor.u32 %v1224, %v1214
      %v1228 = vshll.u32 %v691, 16
      %v1230 = vrot.slane %v1228, 1
      %v1231 = vsel %vm703, %v1226, %v1230
      %v1232 = vshrl.u32 %v690, 16
      %v1234 = vor.u32 %v1232, %v1222
      %v1236 = vshll.u32 %v692, 16
      %v1238 = vrot.slane %v1236, 1
      %v1239 = vsel %vm703, %v1234, %v1238
      %v1240 = vshrl.u32 %v691, 16
      %v1242 = vor.u32 %v1240, %v1230
      %v1244 = vshll.u32 %v693, 16
      %v1246 = vrot.slane %v1244, 1
      %v1247 = vsel %vm703, %v1242, %v1246
      %v1248 = vshrl.u32 %v692, 16
      %v1250 = vor.u32 %v1248, %v1238
      %v1252 = vshll.u32 %v694, 16
      %v1254 = vrot.slane %v1252, 1
      %v1255 = vsel %vm703, %v1250, %v1254
      %v1256 = vshrl.u32 %v693, 16
      %v1258 = vor.u32 %v1256, %v1246
      %v1260 = vshll.u32 %v695, 16
      %v1262 = vrot.slane %v1260, 1
      %v1263 = vsel %vm703, %v1258, %v1262
      %v1264 = vshrl.u32 %v694, 16
      %v1266 = vor.u32 %v1264, %v1254
      %v1268 = vshll.u32 %v696, 16
      %v1270 = vrot.slane %v1268, 1
      %v1271 = vsel %vm703, %v1266, %v1270
      %v1272 = vshrl.u32 %v695, 16
      %v1274 = vor.u32 %v1272, %v1262
      %v1276 = vshll.u32 %v697, 16
      %v1278 = vrot.slane %v1276, 1
      %v1279 = vsel %vm703, %v1274, %v1278
      %v1280 = vshrl.u32 %v696, 16
      %v1282 = vor.u32 %v1280, %v1270
      %v1284 = vshll.u32 %v698, 16
      %v1286 = vrot.slane %v1284, 1
      %v1287 = vsel %vm703, %v1282, %v1286
      %v1288 = vshrl.u32 %v697, 16
      %v1290 = vor.u32 %v1288, %v1278
      %v1292 = vshll.u32 %v699, 16
      %v1294 = vrot.slane %v1292, 1
      %v1295 = vsel %vm703, %v1290, %v1294
      %v1296 = vshrl.u32 %v698, 16
      %v1298 = vor.u32 %v1296, %v1286
      %v1300 = vshll.u32 %v700, 16
      %v1302 = vrot.slane %v1300, 1
      %v1303 = vsel %vm703, %v1298, %v1302
      %v1304 = vshrl.u32 %v699, 16
      %v1306 = vor.u32 %v1304, %v1294
      %v1308 = vshll.u32 %v701, 16
      %v1310 = vrot.slane %v1308, 1
      %v1311 = vsel %vm703, %v1306, %v1310
      %v1312 = vshrl.u32 %v700, 16
      %v1314 = vor.u32 %v1312, %v1302
      %v1316 = vshll.u32 %v702, 16
      %v1318 = vrot.slane %v1316, 1
      %v1319 = vsel %vm703, %v1314, %v1318
      %1396 = vst [vmem:[#allocation2] sm:$0xff] %v715
      %1397 = vst [vmem:[#allocation2 + $0x8] sm:$0xff] %v727
      %1398 = vst [vmem:[#allocation2 + $0x10] sm:$0xff] %v735
      %1399 = vst [vmem:[#allocation2 + $0x18] sm:$0xff] %v743
      %1400 = vst [vmem:[#allocation2 + $0x20] sm:$0xff] %v751
      %1401 = vst [vmem:[#allocation2 + $0x28] sm:$0xff] %v759
      %1402 = vst [vmem:[#allocation2 + $0x30] sm:$0xff] %v767
      %1403 = vst [vmem:[#allocation2 + $0x38] sm:$0xff] %v775
      %1404 = vst [vmem:[#allocation2 + $0x40] sm:$0xff] %v783
      %1405 = vst [vmem:[#allocation2 + $0x48] sm:$0xff] %v791
      %1406 = vst [vmem:[#allocation2 + $0x50] sm:$0xff] %v799
      %1407 = vst [vmem:[#allocation2 + $0x58] sm:$0xff] %v807
      %1408 = vst [vmem:[#allocation2 + $0x60] sm:$0xff] %v815
      %1409 = vst [vmem:[#allocation2 + $0x68] sm:$0xff] %v823
      %1410 = vst [vmem:[#allocation2 + $0x70] sm:$0xff] %v831
      %1411 = vst [vmem:[#allocation2 + $0x78] sm:$0xff] %v839
      %1412 = vst [vmem:[#allocation2 + $0x80] sm:$0xff] %v847
      %1413 = vst [vmem:[#allocation2 + $0x88] sm:$0xff] %v855
      %1414 = vst [vmem:[#allocation2 + $0x90] sm:$0xff] %v863
      %1415 = vst [vmem:[#allocation2 + $0x98] sm:$0xff] %v871
      %1416 = vst [vmem:[#allocation2 + $0xa0] sm:$0xff] %v879
      %1417 = vst [vmem:[#allocation2 + $0xa8] sm:$0xff] %v887
      %1418 = vst [vmem:[#allocation2 + $0xb0] sm:$0xff] %v895
      %1419 = vst [vmem:[#allocation2 + $0xb8] sm:$0xff] %v903
      %1420 = vst [vmem:[#allocation2 + $0xc0] sm:$0xff] %v911
      %1421 = vst [vmem:[#allocation2 + $0xc8] sm:$0xff] %v919
      %1422 = vst [vmem:[#allocation2 + $0xd0] sm:$0xff] %v927
      %1423 = vst [vmem:[#allocation2 + $0xd8] sm:$0xff] %v935
      %1424 = vst [vmem:[#allocation2 + $0xe0] sm:$0xff] %v943
      %1425 = vst [vmem:[#allocation2 + $0xe8] sm:$0xff] %v951
      %1426 = vst [vmem:[#allocation2 + $0xf0] sm:$0xff] %v959
      %1427 = vst [vmem:[#allocation2 + $0xf8] sm:$0xff] %v967
      %1428 = vst [vmem:[#allocation2 + $0x100] sm:$0xff] %v975
      %1429 = vst [vmem:[#allocation2 + $0x108] sm:$0xff] %v983
      %1430 = vst [vmem:[#allocation2 + $0x110] sm:$0xff] %v991
      %1431 = vst [vmem:[#allocation2 + $0x118] sm:$0xff] %v999
      %1432 = vst [vmem:[#allocation2 + $0x120] sm:$0xff] %v1007
      %1433 = vst [vmem:[#allocation2 + $0x128] sm:$0xff] %v1015
      %1434 = vst [vmem:[#allocation2 + $0x130] sm:$0xff] %v1023
      %1435 = vst [vmem:[#allocation2 + $0x138] sm:$0xff] %v1031
      %1436 = vst [vmem:[#allocation2 + $0x140] sm:$0xff] %v1039
      %1437 = vst [vmem:[#allocation2 + $0x148] sm:$0xff] %v1047
      %1438 = vst [vmem:[#allocation2 + $0x150] sm:$0xff] %v1055
      %1439 = vst [vmem:[#allocation2 + $0x158] sm:$0xff] %v1063
      %1440 = vst [vmem:[#allocation2 + $0x160] sm:$0xff] %v1071
      %1441 = vst [vmem:[#allocation2 + $0x168] sm:$0xff] %v1079
      %1442 = vst [vmem:[#allocation2 + $0x170] sm:$0xff] %v1087
      %1443 = vst [vmem:[#allocation2 + $0x178] sm:$0xff] %v1095
      %1444 = vst [vmem:[#allocation2 + $0x180] sm:$0xff] %v1103
      %1445 = vst [vmem:[#allocation2 + $0x188] sm:$0xff] %v1111
      %1446 = vst [vmem:[#allocation2 + $0x190] sm:$0xff] %v1119
      %1447 = vst [vmem:[#allocation2 + $0x198] sm:$0xff] %v1127
      %1448 = vst [vmem:[#allocation2 + $0x1a0] sm:$0xff] %v1135
      %1449 = vst [vmem:[#allocation2 + $0x1a8] sm:$0xff] %v1143
      %1450 = vst [vmem:[#allocation2 + $0x1b0] sm:$0xff] %v1151
      %1451 = vst [vmem:[#allocation2 + $0x1b8] sm:$0xff] %v1159
      %1452 = vst [vmem:[#allocation2 + $0x1c0] sm:$0xff] %v1167
      %1453 = vst [vmem:[#allocation2 + $0x1c8] sm:$0xff] %v1175
      %1454 = vst [vmem:[#allocation2 + $0x1d0] sm:$0xff] %v1183
      %1455 = vst [vmem:[#allocation2 + $0x1d8] sm:$0xff] %v1191
      %1456 = vst [vmem:[#allocation2 + $0x1e0] sm:$0xff] %v1199
      %1457 = vst [vmem:[#allocation2 + $0x1e8] sm:$0xff] %v1207
      %1458 = vst [vmem:[#allocation2 + $0x1f0] sm:$0xff] %v1215
      %1459 = vst [vmem:[#allocation2 + $0x1f8] sm:$0xff] %v1223
      %1460 = vst [vmem:[#allocation2 + $0x200] sm:$0xff] %v1231
      %1461 = vst [vmem:[#allocation2 + $0x208] sm:$0xff] %v1239
      %1462 = vst [vmem:[#allocation2 + $0x210] sm:$0xff] %v1247
      %1463 = vst [vmem:[#allocation2 + $0x218] sm:$0xff] %v1255
      %1464 = vst [vmem:[#allocation2 + $0x220] sm:$0xff] %v1263
      %1465 = vst [vmem:[#allocation2 + $0x228] sm:$0xff] %v1271
      %1466 = vst [vmem:[#allocation2 + $0x230] sm:$0xff] %v1279
      %1467 = vst [vmem:[#allocation2 + $0x238] sm:$0xff] %v1287
      %1468 = vst [vmem:[#allocation2 + $0x240] sm:$0xff] %v1295
      %1469 = vst [vmem:[#allocation2 + $0x248] sm:$0xff] %v1303
      %1470 = vst [vmem:[#allocation2 + $0x250] sm:$0xff] %v1311
      %1471 = vst [vmem:[#allocation2 + $0x258] sm:$0xff] %v1319
      %v1472 = vld [vmem:[#allocation2 + $0x10] sm:$0x80]
      %v1473 = vld [vmem:[#allocation2 + $0x18] sm:$0x80]
      %v1474 = vld [vmem:[#allocation2 + $0x20] sm:$0xff]
      %v1475 = vld [vmem:[#allocation2 + $0x28] sm:$0xff]
      %v1476 = vld [vmem:[#allocation2 + $0x30] sm:$0xff]
      %v1477 = vld [vmem:[#allocation2 + $0x38] sm:$0xff]
      %v1478 = vld [vmem:[#allocation2 + $0x40] sm:$0xff]
      %v1479 = vld [vmem:[#allocation2 + $0x48] sm:$0xff]
      %v1480 = vld [vmem:[#allocation2 + $0x50] sm:$0xff]
      %v1481 = vld [vmem:[#allocation2 + $0x58] sm:$0xff]
      %v1482 = vld [vmem:[#allocation2 + $0x60] sm:$0xff]
      %v1483 = vld [vmem:[#allocation2 + $0x68] sm:$0xff]
      %v1484 = vld [vmem:[#allocation2 + $0x70] sm:$0xff]
      %v1485 = vld [vmem:[#allocation2 + $0x78] sm:$0xff]
      %v1486 = vld [vmem:[#allocation2 + $0x80] sm:$0xff]
      %v1487 = vld [vmem:[#allocation2 + $0x88] sm:$0xff]
      %v1488 = vld [vmem:[#allocation2 + $0x90] sm:$0xff]
      %v1489 = vld [vmem:[#allocation2 + $0x98] sm:$0xff]
      %v1490 = vld [vmem:[#allocation2 + $0xa0] sm:$0xff]
      %v1491 = vld [vmem:[#allocation2 + $0xa8] sm:$0xff]
      %v1492 = vld [vmem:[#allocation2 + $0xb0] sm:$0xff]
      %v1493 = vld [vmem:[#allocation2 + $0xb8] sm:$0xff]
      %v1494 = vld [vmem:[#allocation2 + $0xc0] sm:$0xff]
      %v1495 = vld [vmem:[#allocation2 + $0xc8] sm:$0xff]
      %v1496 = vld [vmem:[#allocation2 + $0xd0] sm:$0xff]
      %v1497 = vld [vmem:[#allocation2 + $0xd8] sm:$0xff]
      %v1498 = vld [vmem:[#allocation2 + $0xe0] sm:$0xff]
      %v1499 = vld [vmem:[#allocation2 + $0xe8] sm:$0xff]
      %v1500 = vld [vmem:[#allocation2 + $0xf0] sm:$0xff]
      %v1501 = vld [vmem:[#allocation2 + $0xf8] sm:$0xff]
      %v1502 = vld [vmem:[#allocation2 + $0x100] sm:$0xff]
      %v1503 = vld [vmem:[#allocation2 + $0x108] sm:$0xff]
      %v1504 = vld [vmem:[#allocation2 + $0x110] sm:$0xff]
      %v1505 = vld [vmem:[#allocation2 + $0x118] sm:$0xff]
      %v1506 = vld [vmem:[#allocation2 + $0x120] sm:$0xff]
      %v1507 = vld [vmem:[#allocation2 + $0x128] sm:$0xff]
      %v1508 = vld [vmem:[#allocation2 + $0x130] sm:$0xff]
      %v1509 = vld [vmem:[#allocation2 + $0x138] sm:$0xff]
      %v1510 = vld [vmem:[#allocation2 + $0x140] sm:$0xff]
      %v1511 = vld [vmem:[#allocation2 + $0x148] sm:$0xff]
      %v1512 = vld [vmem:[#allocation2 + $0x150] sm:$0xff]
      %v1513 = vld [vmem:[#allocation2 + $0x158] sm:$0xff]
      %v1514 = vld [vmem:[#allocation2 + $0x160] sm:$0xff]
      %v1515 = vld [vmem:[#allocation2 + $0x168] sm:$0xff]
      %v1516 = vld [vmem:[#allocation2 + $0x170] sm:$0xff]
      %v1517 = vld [vmem:[#allocation2 + $0x178] sm:$0xff]
      %v1518 = vld [vmem:[#allocation2 + $0x180] sm:$0xff]
      %v1519 = vld [vmem:[#allocation2 + $0x188] sm:$0xff]
      %v1520 = vld [vmem:[#allocation2 + $0x190] sm:$0xff]
      %v1521 = vld [vmem:[#allocation2 + $0x198] sm:$0xff]
      %v1522 = vld [vmem:[#allocation2 + $0x1a0] sm:$0xff]
      %v1523 = vld [vmem:[#allocation2 + $0x1a8] sm:$0xff]
      %v1524 = vld [vmem:[#allocation2 + $0x1b0] sm:$0xff]
      %v1525 = vld [vmem:[#allocation2 + $0x1b8] sm:$0xff]
      %v1526 = vld [vmem:[#allocation2 + $0x1c0] sm:$0xff]
      %v1527 = vld [vmem:[#allocation2 + $0x1c8] sm:$0xff]
      %v1528 = vld [vmem:[#allocation2 + $0x1d0] sm:$0xff]
      %v1529 = vld [vmem:[#allocation2 + $0x1d8] sm:$0xff]
      %v1530 = vld [vmem:[#allocation2 + $0x1e0] sm:$0xff]
      %v1531 = vld [vmem:[#allocation2 + $0x1e8] sm:$0xff]
      %v1532 = vld [vmem:[#allocation2 + $0x1f0] sm:$0xff]
      %v1533 = vld [vmem:[#allocation2 + $0x1f8] sm:$0xff]
      %v1534 = vld [vmem:[#allocation2 + $0x200] sm:$0xff]
      %v1535 = vld [vmem:[#allocation2 + $0x208] sm:$0xff]
      %v1536 = vld [vmem:[#allocation2 + $0x210] sm:$0x7f]
      %v1537 = vld [vmem:[#allocation2 + $0x218] sm:$0x7f]
      %v1538 = vld [vmem:[%s1] sm:$0xf]
      %v1539 = vld [vmem:[%s1 + $0x4] sm:$0xf]
      %v1540 = vld [vmem:[%s1 + $0x8] sm:$0xf]
      %v1541 = vld [vmem:[%s1 + $0xc] sm:$0xf]
      %v1542 = vld [vmem:[%s1 + $0x10] sm:$0xf]
      %v1543 = vld [vmem:[%s1 + $0x14] sm:$0xf]
      %v1544 = vld [vmem:[%s1 + $0x18] sm:$0xf]
      %v1545 = vld [vmem:[%s1 + $0x1c] sm:$0xf]
      %v1546 = vld [vmem:[%s1 + $0x20] sm:$0xf]
      %v1547 = vld [vmem:[%s1 + $0x24] sm:$0xf]
      %v1548 = vld [vmem:[%s1 + $0x28] sm:$0xf]
      %v1549 = vld [vmem:[%s1 + $0x2c] sm:$0xf]
      %v1550 = vld [vmem:[%s1 + $0x30] sm:$0xf]
      %v1551 = vld [vmem:[%s1 + $0x34] sm:$0xf]
      %v1552 = vld [vmem:[%s1 + $0x38] sm:$0xf]
      %v1553 = vld [vmem:[%s1 + $0x3c] sm:$0xf]
      %v1554 = vld [vmem:[%s1 + $0x40] sm:$0xf]
      %v1555 = vld [vmem:[%s1 + $0x44] sm:$0xf]
      %v1556 = vld [vmem:[%s1 + $0x48] sm:$0xf]
      %v1557 = vld [vmem:[%s1 + $0x4c] sm:$0xf]
      %v1558 = vld [vmem:[%s1 + $0x50] sm:$0xf]
      %v1559 = vld [vmem:[%s1 + $0x54] sm:$0xf]
      %v1560 = vld [vmem:[%s1 + $0x58] sm:$0xf]
      %v1561 = vld [vmem:[%s1 + $0x5c] sm:$0xf]
      %v1562 = vld [vmem:[%s1 + $0x60] sm:$0xf]
      %v1563 = vld [vmem:[%s1 + $0x64] sm:$0xf]
      %v1564 = vld [vmem:[%s1 + $0x68] sm:$0xf]
      %v1565 = vld [vmem:[%s1 + $0x6c] sm:$0xf]
      %v1566 = vld [vmem:[%s1 + $0x70] sm:$0xf]
      %v1567 = vld [vmem:[%s1 + $0x74] sm:$0xf]
      %v1568 = vld [vmem:[%s1 + $0x78] sm:$0xf]
      %v1569 = vld [vmem:[%s1 + $0x7c] sm:$0xf]
      %v1570 = vld [vmem:[%s246 + $0x20] sm:$0xff]
      %v1571 = vld [vmem:[%s246 + $0x28] sm:$0xff]
      %v1572 = vld [vmem:[%s246 + $0x30] sm:$0xff]
      %v1573 = vld [vmem:[%s246 + $0x38] sm:$0xff]
      %v1574 = vld [vmem:[%s246 + $0x40] sm:$0xff]
      %v1575 = vld [vmem:[%s246 + $0x48] sm:$0xff]
      %v1576 = vld [vmem:[%s246 + $0x50] sm:$0xff]
      %v1577 = vld [vmem:[%s246 + $0x58] sm:$0xff]
      %v1578 = vld [vmem:[%s246 + $0x60] sm:$0xff]
      %v1579 = vld [vmem:[%s246 + $0x68] sm:$0xff]
      %v1580 = vld [vmem:[%s246 + $0x70] sm:$0xff]
      %v1581 = vld [vmem:[%s246 + $0x78] sm:$0xff]
      %v1582 = vld [vmem:[%s246 + $0x80] sm:$0xff]
      %v1583 = vld [vmem:[%s246 + $0x88] sm:$0xff]
      %v1584 = vld [vmem:[%s246 + $0x90] sm:$0xff]
      %v1585 = vld [vmem:[%s246 + $0x98] sm:$0xff]
      %v1586 = vld [vmem:[%s246 + $0xa0] sm:$0xff]
      %v1587 = vld [vmem:[%s246 + $0xa8] sm:$0xff]
      %v1588 = vld [vmem:[%s246 + $0xb0] sm:$0xff]
      %v1589 = vld [vmem:[%s246 + $0xb8] sm:$0xff]
      %v1590 = vld [vmem:[%s246 + $0xc0] sm:$0xff]
      %v1591 = vld [vmem:[%s246 + $0xc8] sm:$0xff]
      %v1592 = vld [vmem:[%s246 + $0xd0] sm:$0xff]
      %v1593 = vld [vmem:[%s246 + $0xd8] sm:$0xff]
      %v1594 = vld [vmem:[%s246 + $0xe0] sm:$0xff]
      %v1595 = vld [vmem:[%s246 + $0xe8] sm:$0xff]
      %v1596 = vld [vmem:[%s246 + $0xf0] sm:$0xff]
      %v1597 = vld [vmem:[%s246 + $0xf8] sm:$0xff]
      %v1598 = vld [vmem:[%s246 + $0x100] sm:$0xff]
      %v1599 = vld [vmem:[%s246 + $0x108] sm:$0xff]
      %v1600 = vld [vmem:[%s246 + $0x110] sm:$0xff]
      %v1601 = vld [vmem:[%s246 + $0x118] sm:$0xff]
      %v1602 = vld [vmem:[%s246 + $0x120] sm:$0xff]
      %v1603 = vld [vmem:[%s246 + $0x128] sm:$0xff]
      %v1604 = vld [vmem:[%s246 + $0x130] sm:$0xff]
      %v1605 = vld [vmem:[%s246 + $0x138] sm:$0xff]
      %v1606 = vld [vmem:[%s246 + $0x140] sm:$0xff]
      %v1607 = vld [vmem:[%s246 + $0x148] sm:$0xff]
      %v1608 = vld [vmem:[%s246 + $0x150] sm:$0xff]
      %v1609 = vld [vmem:[%s246 + $0x158] sm:$0xff]
      %v1610 = vld [vmem:[%s246 + $0x160] sm:$0xff]
      %v1611 = vld [vmem:[%s246 + $0x168] sm:$0xff]
      %v1612 = vld [vmem:[%s246 + $0x170] sm:$0xff]
      %v1613 = vld [vmem:[%s246 + $0x178] sm:$0xff]
      %v1614 = vld [vmem:[%s246 + $0x180] sm:$0xff]
      %v1615 = vld [vmem:[%s246 + $0x188] sm:$0xff]
      %v1616 = vld [vmem:[%s246 + $0x190] sm:$0xff]
      %v1617 = vld [vmem:[%s246 + $0x198] sm:$0xff]
      %v1618 = vld [vmem:[%s246 + $0x1a0] sm:$0xff]
      %v1619 = vld [vmem:[%s246 + $0x1a8] sm:$0xff]
      %v1620 = vld [vmem:[%s246 + $0x1b0] sm:$0xff]
      %v1621 = vld [vmem:[%s246 + $0x1b8] sm:$0xff]
      %v1622 = vld [vmem:[%s246 + $0x1c0] sm:$0xff]
      %v1623 = vld [vmem:[%s246 + $0x1c8] sm:$0xff]
      %v1624 = vld [vmem:[%s246 + $0x1d0] sm:$0xff]
      %v1625 = vld [vmem:[%s246 + $0x1d8] sm:$0xff]
      %v1626 = vld [vmem:[%s246 + $0x1e0] sm:$0xff]
      %v1627 = vld [vmem:[%s246 + $0x1e8] sm:$0xff]
      %v1628 = vld [vmem:[%s246 + $0x1f0] sm:$0xff]
      %v1629 = vld [vmem:[%s246 + $0x1f8] sm:$0xff]
      %v1630 = vld [vmem:[%s246 + $0x200] sm:$0xff]
      %v1631 = vld [vmem:[%s246 + $0x208] sm:$0xff]
      %v1632 = vld [vmem:[%s246 + $0x210] sm:$0xff]
      %v1633 = vld [vmem:[%s246 + $0x218] sm:$0xff]
      %s1634 = scalar_lea.vmem %s1, 128
      %v1635 = vld [vmem:[%s1634] sm:$0xf]
      %v1636 = vld [vmem:[%s1634 + $0x4] sm:$0xf]
      %v1637 = vld [vmem:[%s1634 + $0x8] sm:$0xf]
      %v1638 = vld [vmem:[%s1634 + $0xc] sm:$0xf]
      %v1639 = vld [vmem:[%s1634 + $0x10] sm:$0xf]
      %v1640 = vld [vmem:[%s1634 + $0x14] sm:$0xf]
      %v1641 = vld [vmem:[%s1634 + $0x18] sm:$0xf]
      %v1642 = vld [vmem:[%s1634 + $0x1c] sm:$0xf]
      %v1643 = vld [vmem:[%s1634 + $0x20] sm:$0xf]
      %v1644 = vld [vmem:[%s1634 + $0x24] sm:$0xf]
      %v1645 = vld [vmem:[%s1634 + $0x28] sm:$0xf]
      %v1646 = vld [vmem:[%s1634 + $0x2c] sm:$0xf]
      %v1647 = vld [vmem:[%s1634 + $0x30] sm:$0xf]
      %v1648 = vld [vmem:[%s1634 + $0x34] sm:$0xf]
      %v1649 = vld [vmem:[%s1634 + $0x38] sm:$0xf]
      %v1650 = vld [vmem:[%s1634 + $0x3c] sm:$0xf]
      %v1651 = vld [vmem:[%s1634 + $0x40] sm:$0xf]
      %v1652 = vld [vmem:[%s1634 + $0x44] sm:$0xf]
      %v1653 = vld [vmem:[%s1634 + $0x48] sm:$0xf]
      %v1654 = vld [vmem:[%s1634 + $0x4c] sm:$0xf]
      %v1655 = vld [vmem:[%s1634 + $0x50] sm:$0xf]
      %v1656 = vld [vmem:[%s1634 + $0x54] sm:$0xf]
      %v1657 = vld [vmem:[%s1634 + $0x58] sm:$0xf]
      %v1658 = vld [vmem:[%s1634 + $0x5c] sm:$0xf]
      %v1659 = vld [vmem:[%s1634 + $0x60] sm:$0xf]
      %v1660 = vld [vmem:[%s1634 + $0x64] sm:$0xf]
      %v1661 = vld [vmem:[%s1634 + $0x68] sm:$0xf]
      %v1662 = vld [vmem:[%s1634 + $0x6c] sm:$0xf]
      %v1663 = vld [vmem:[%s1634 + $0x70] sm:$0xf]
      %v1664 = vld [vmem:[%s1634 + $0x74] sm:$0xf]
      %v1665 = vld [vmem:[%s1634 + $0x78] sm:$0xf]
      %v1666 = vld [vmem:[%s1634 + $0x7c] sm:$0xf]
      %v1731 = vunpack.c.l.b16 %v1570
      %v1732 = vunpack.c.h.b16 %v1570
      %v1733 = vunpack.c.l.b16 %v1571
      %v1734 = vunpack.c.h.b16 %v1571
      %v1735 = vunpack.c.l.b16 %v1572
      %v1736 = vunpack.c.h.b16 %v1572
      %v1737 = vunpack.c.l.b16 %v1573
      %v1738 = vunpack.c.h.b16 %v1573
      %v1739 = vunpack.c.l.b16 %v1574
      %v1740 = vunpack.c.h.b16 %v1574
      %v1741 = vunpack.c.l.b16 %v1575
      %v1742 = vunpack.c.h.b16 %v1575
      %v1743 = vunpack.c.l.b16 %v1576
      %v1744 = vunpack.c.h.b16 %v1576
      %v1745 = vunpack.c.l.b16 %v1577
      %v1746 = vunpack.c.h.b16 %v1577
      %v1747 = vunpack.c.l.b16 %v1578
      %v1748 = vunpack.c.h.b16 %v1578
      %v1749 = vunpack.c.l.b16 %v1579
      %v1750 = vunpack.c.h.b16 %v1579
      %v1751 = vunpack.c.l.b16 %v1580
      %v1752 = vunpack.c.h.b16 %v1580
      %v1753 = vunpack.c.l.b16 %v1581
      %v1754 = vunpack.c.h.b16 %v1581
      %v1755 = vunpack.c.l.b16 %v1582
      %v1756 = vunpack.c.h.b16 %v1582
      %v1757 = vunpack.c.l.b16 %v1583
      %v1758 = vunpack.c.h.b16 %v1583
      %v1759 = vunpack.c.l.b16 %v1584
      %v1760 = vunpack.c.h.b16 %v1584
      %v1761 = vunpack.c.l.b16 %v1585
      %v1762 = vunpack.c.h.b16 %v1585
      %v1763 = vunpack.c.l.b16 %v1586
      %v1764 = vunpack.c.h.b16 %v1586
      %v1765 = vunpack.c.l.b16 %v1587
      %v1766 = vunpack.c.h.b16 %v1587
      %v1767 = vunpack.c.l.b16 %v1588
      %v1768 = vunpack.c.h.b16 %v1588
      %v1769 = vunpack.c.l.b16 %v1589
      %v1770 = vunpack.c.h.b16 %v1589
      %v1771 = vunpack.c.l.b16 %v1590
      %v1772 = vunpack.c.h.b16 %v1590
      %v1773 = vunpack.c.l.b16 %v1591
      %v1774 = vunpack.c.h.b16 %v1591
      %v1775 = vunpack.c.l.b16 %v1592
      %v1776 = vunpack.c.h.b16 %v1592
      %v1777 = vunpack.c.l.b16 %v1593
      %v1778 = vunpack.c.h.b16 %v1593
      %v1779 = vunpack.c.l.b16 %v1594
      %v1780 = vunpack.c.h.b16 %v1594
      %v1781 = vunpack.c.l.b16 %v1595
      %v1782 = vunpack.c.h.b16 %v1595
      %v1783 = vunpack.c.l.b16 %v1596
      %v1784 = vunpack.c.h.b16 %v1596
      %v1785 = vunpack.c.l.b16 %v1597
      %v1786 = vunpack.c.h.b16 %v1597
      %v1787 = vunpack.c.l.b16 %v1598
      %v1788 = vunpack.c.h.b16 %v1598
      %v1789 = vunpack.c.l.b16 %v1599
      %v1790 = vunpack.c.h.b16 %v1599
      %v1791 = vunpack.c.l.b16 %v1600
      %v1792 = vunpack.c.h.b16 %v1600
      %v1793 = vunpack.c.l.b16 %v1601
      %v1794 = vunpack.c.h.b16 %v1601
      %v1795 = vunpack.c.l.b16 %v1602
      %v1796 = vunpack.c.h.b16 %v1602
      %v1797 = vunpack.c.l.b16 %v1603
      %v1798 = vunpack.c.h.b16 %v1603
      %v1799 = vunpack.c.l.b16 %v1604
      %v1800 = vunpack.c.h.b16 %v1604
      %v1801 = vunpack.c.l.b16 %v1605
      %v1802 = vunpack.c.h.b16 %v1605
      %v1803 = vunpack.c.l.b16 %v1606
      %v1804 = vunpack.c.h.b16 %v1606
      %v1805 = vunpack.c.l.b16 %v1607
      %v1806 = vunpack.c.h.b16 %v1607
      %v1807 = vunpack.c.l.b16 %v1608
      %v1808 = vunpack.c.h.b16 %v1608
      %v1809 = vunpack.c.l.b16 %v1609
      %v1810 = vunpack.c.h.b16 %v1609
      %v1811 = vunpack.c.l.b16 %v1610
      %v1812 = vunpack.c.h.b16 %v1610
      %v1813 = vunpack.c.l.b16 %v1611
      %v1814 = vunpack.c.h.b16 %v1611
      %v1815 = vunpack.c.l.b16 %v1612
      %v1816 = vunpack.c.h.b16 %v1612
      %v1817 = vunpack.c.l.b16 %v1613
      %v1818 = vunpack.c.h.b16 %v1613
      %v1819 = vunpack.c.l.b16 %v1614
      %v1820 = vunpack.c.h.b16 %v1614
      %v1821 = vunpack.c.l.b16 %v1615
      %v1822 = vunpack.c.h.b16 %v1615
      %v1823 = vunpack.c.l.b16 %v1616
      %v1824 = vunpack.c.h.b16 %v1616
      %v1825 = vunpack.c.l.b16 %v1617
      %v1826 = vunpack.c.h.b16 %v1617
      %v1827 = vunpack.c.l.b16 %v1618
      %v1828 = vunpack.c.h.b16 %v1618
      %v1829 = vunpack.c.l.b16 %v1619
      %v1830 = vunpack.c.h.b16 %v1619
      %v1831 = vunpack.c.l.b16 %v1620
      %v1832 = vunpack.c.h.b16 %v1620
      %v1833 = vunpack.c.l.b16 %v1621
      %v1834 = vunpack.c.h.b16 %v1621
      %v1835 = vunpack.c.l.b16 %v1622
      %v1836 = vunpack.c.h.b16 %v1622
      %v1837 = vunpack.c.l.b16 %v1623
      %v1838 = vunpack.c.h.b16 %v1623
      %v1839 = vunpack.c.l.b16 %v1624
      %v1840 = vunpack.c.h.b16 %v1624
      %v1841 = vunpack.c.l.b16 %v1625
      %v1842 = vunpack.c.h.b16 %v1625
      %v1843 = vunpack.c.l.b16 %v1626
      %v1844 = vunpack.c.h.b16 %v1626
      %v1845 = vunpack.c.l.b16 %v1627
      %v1846 = vunpack.c.h.b16 %v1627
      %v1847 = vunpack.c.l.b16 %v1628
      %v1848 = vunpack.c.h.b16 %v1628
      %v1849 = vunpack.c.l.b16 %v1629
      %v1850 = vunpack.c.h.b16 %v1629
      %v1851 = vunpack.c.l.b16 %v1630
      %v1852 = vunpack.c.h.b16 %v1630
      %v1853 = vunpack.c.l.b16 %v1631
      %v1854 = vunpack.c.h.b16 %v1631
      %v1855 = vunpack.c.l.b16 %v1632
      %v1856 = vunpack.c.h.b16 %v1632
      %v1857 = vunpack.c.l.b16 %v1633
      %v1858 = vunpack.c.h.b16 %v1633
      %v1859 = vpack.c.b16 %v1733, %v1731
      %v1860 = vpack.c.b16 %v1734, %v1732
      %v1861 = vpack.c.b16 %v1737, %v1735
      %v1862 = vpack.c.b16 %v1738, %v1736
      %v1863 = vpack.c.b16 %v1741, %v1739
      %v1864 = vpack.c.b16 %v1742, %v1740
      %v1865 = vpack.c.b16 %v1745, %v1743
      %v1866 = vpack.c.b16 %v1746, %v1744
      %v1867 = vpack.c.b16 %v1749, %v1747
      %v1868 = vpack.c.b16 %v1750, %v1748
      %v1869 = vpack.c.b16 %v1753, %v1751
      %v1870 = vpack.c.b16 %v1754, %v1752
      %v1871 = vpack.c.b16 %v1757, %v1755
      %v1872 = vpack.c.b16 %v1758, %v1756
      %v1873 = vpack.c.b16 %v1761, %v1759
      %v1874 = vpack.c.b16 %v1762, %v1760
      %v1875 = vpack.c.b16 %v1765, %v1763
      %v1876 = vpack.c.b16 %v1766, %v1764
      %v1877 = vpack.c.b16 %v1769, %v1767
      %v1878 = vpack.c.b16 %v1770, %v1768
      %v1879 = vpack.c.b16 %v1773, %v1771
      %v1880 = vpack.c.b16 %v1774, %v1772
      %v1881 = vpack.c.b16 %v1777, %v1775
      %v1882 = vpack.c.b16 %v1778, %v1776
      %v1883 = vpack.c.b16 %v1781, %v1779
      %v1884 = vpack.c.b16 %v1782, %v1780
      %v1885 = vpack.c.b16 %v1785, %v1783
      %v1886 = vpack.c.b16 %v1786, %v1784
      %v1887 = vpack.c.b16 %v1789, %v1787
      %v1888 = vpack.c.b16 %v1790, %v1788
      %v1889 = vpack.c.b16 %v1793, %v1791
      %v1890 = vpack.c.b16 %v1794, %v1792
      %v1891 = vpack.c.b16 %v1797, %v1795
      %v1892 = vpack.c.b16 %v1798, %v1796
      %v1893 = vpack.c.b16 %v1801, %v1799
      %v1894 = vpack.c.b16 %v1802, %v1800
      %v1895 = vpack.c.b16 %v1805, %v1803
      %v1896 = vpack.c.b16 %v1806, %v1804
      %v1897 = vpack.c.b16 %v1809, %v1807
      %v1898 = vpack.c.b16 %v1810, %v1808
      %v1899 = vpack.c.b16 %v1813, %v1811
      %v1900 = vpack.c.b16 %v1814, %v1812
      %v1901 = vpack.c.b16 %v1817, %v1815
      %v1902 = vpack.c.b16 %v1818, %v1816
      %v1903 = vpack.c.b16 %v1821, %v1819
      %v1904 = vpack.c.b16 %v1822, %v1820
      %v1905 = vpack.c.b16 %v1825, %v1823
      %v1906 = vpack.c.b16 %v1826, %v1824
      %v1907 = vpack.c.b16 %v1829, %v1827
      %v1908 = vpack.c.b16 %v1830, %v1828
      %v1909 = vpack.c.b16 %v1833, %v1831
      %v1910 = vpack.c.b16 %v1834, %v1832
      %v1911 = vpack.c.b16 %v1837, %v1835
      %v1912 = vpack.c.b16 %v1838, %v1836
      %v1913 = vpack.c.b16 %v1841, %v1839
      %v1914 = vpack.c.b16 %v1842, %v1840
      %v1915 = vpack.c.b16 %v1845, %v1843
      %v1916 = vpack.c.b16 %v1846, %v1844
      %v1917 = vpack.c.b16 %v1849, %v1847
      %v1918 = vpack.c.b16 %v1850, %v1848
      %v1919 = vpack.c.b16 %v1853, %v1851
      %v1920 = vpack.c.b16 %v1854, %v1852
      %v1921 = vpack.c.b16 %v1857, %v1855
      %v1922 = vpack.c.b16 %v1858, %v1856
      %v2019 = vunpack.c.l.b16 %v1635
      %v2020 = vunpack.c.l.b16 %v1636
      %v2021 = vunpack.c.l.b16 %v1637
      %v2022 = vunpack.c.l.b16 %v1638
      %v2023 = vunpack.c.l.b16 %v1639
      %v2024 = vunpack.c.l.b16 %v1640
      %v2025 = vunpack.c.l.b16 %v1641
      %v2026 = vunpack.c.l.b16 %v1642
      %v2027 = vunpack.c.l.b16 %v1643
      %v2028 = vunpack.c.l.b16 %v1644
      %v2029 = vunpack.c.l.b16 %v1645
      %v2030 = vunpack.c.l.b16 %v1646
      %v2031 = vunpack.c.l.b16 %v1647
      %v2032 = vunpack.c.l.b16 %v1648
      %v2033 = vunpack.c.l.b16 %v1649
      %v2034 = vunpack.c.l.b16 %v1650
      %v2035 = vunpack.c.l.b16 %v1651
      %v2036 = vunpack.c.l.b16 %v1652
      %v2037 = vunpack.c.l.b16 %v1653
      %v2038 = vunpack.c.l.b16 %v1654
      %v2039 = vunpack.c.l.b16 %v1655
      %v2040 = vunpack.c.l.b16 %v1656
      %v2041 = vunpack.c.l.b16 %v1657
      %v2042 = vunpack.c.l.b16 %v1658
      %v2043 = vunpack.c.l.b16 %v1659
      %v2044 = vunpack.c.l.b16 %v1660
      %v2045 = vunpack.c.l.b16 %v1661
      %v2046 = vunpack.c.l.b16 %v1662
      %v2047 = vunpack.c.l.b16 %v1663
      %v2048 = vunpack.c.l.b16 %v1664
      %v2049 = vunpack.c.l.b16 %v1665
      %v2050 = vunpack.c.l.b16 %v1666
      %v2051 = vpack.c.b16 %v2020, %v2019
      %v2052 = vpack.c.b16 %v2022, %v2021
      %v2053 = vpack.c.b16 %v2024, %v2023
      %v2054 = vpack.c.b16 %v2026, %v2025
      %v2055 = vpack.c.b16 %v2028, %v2027
      %v2056 = vpack.c.b16 %v2030, %v2029
      %v2057 = vpack.c.b16 %v2032, %v2031
      %v2058 = vpack.c.b16 %v2034, %v2033
      %v2059 = vpack.c.b16 %v2036, %v2035
      %v2060 = vpack.c.b16 %v2038, %v2037
      %v2061 = vpack.c.b16 %v2040, %v2039
      %v2062 = vpack.c.b16 %v2042, %v2041
      %v2063 = vpack.c.b16 %v2044, %v2043
      %v2064 = vpack.c.b16 %v2046, %v2045
      %v2065 = vpack.c.b16 %v2048, %v2047
      %v2066 = vpack.c.b16 %v2050, %v2049
      %2083 = vmatprep.subr.bf16.mxu0 0
      %2084 = vmatpush1.bf16.msra.mxu0 %v2051
      %2085 = vmatprep.subr.bf16.mxu0 0
      %2086 = vmatpush1.bf16.msra.mxu0 %v2052
      %2087 = vmatprep.subr.bf16.mxu0 0
      %2088 = vmatpush1.bf16.msra.mxu0 %v2053
      %2089 = vmatprep.subr.bf16.mxu0 0
      %2090 = vmatpush1.bf16.msra.mxu0 %v2054
      %2091 = vmatprep.subr.bf16.mxu0 0
      %2092 = vmatpush1.bf16.msra.mxu0 %v2055
      %2093 = vmatprep.subr.bf16.mxu0 0
      %2094 = vmatpush1.bf16.msra.mxu0 %v2056
      %2095 = vmatprep.subr.bf16.mxu0 0
      %2096 = vmatpush1.bf16.msra.mxu0 %v2057
      %2097 = vmatprep.subr.bf16.mxu0 0
      %2098 = vmatpush1.bf16.msra.mxu0 %v2058
      %2099 = vmatprep.subr.bf16.mxu0 0
      %2100 = vmatpush1.bf16.msra.mxu0 %v2059
      %2101 = vmatprep.subr.bf16.mxu0 0
      %2102 = vmatpush1.bf16.msra.mxu0 %v2060
      %2103 = vmatprep.subr.bf16.mxu0 0
      %2104 = vmatpush1.bf16.msra.mxu0 %v2061
      %2105 = vmatprep.subr.bf16.mxu0 0
      %2106 = vmatpush1.bf16.msra.mxu0 %v2062
      %2107 = vmatprep.subr.bf16.mxu0 0
      %2108 = vmatpush1.bf16.msra.mxu0 %v2063
      %2109 = vmatprep.subr.bf16.mxu0 0
      %2110 = vmatpush1.bf16.msra.mxu0 %v2064
      %2111 = vmatprep.subr.bf16.mxu0 0
      %2112 = vmatpush1.bf16.msra.mxu0 %v2065
      %2113 = vmatprep.subr.bf16.mxu0 0
      %2114 = vmatpush1.bf16.msra.mxu0 %v2066
      %2115 = vmatprep.mubr.bf16.mxu0 %v1860
      %2116 = vmatmul.mubr.bf16.gmra.mrb[0].mxu0 %v1859
      %v2117 = vpop.f32.mrb[0].mxu0
      %v2118 = vadd.f32 0.0, %v2117
      %v2119 = vpop.f32.mrb[0].mxu0
      %v2120 = vpop.f32.mrb[0].mxu0
      %v2121 = vadd.f32 0.0, %v2120
      %v2122 = vpop.f32.mrb[0].mxu0
      %2123 = vmatprep.mubr.bf16.mxu0 %v1862
      %2124 = vmatmul.mubr.bf16.gmra.mrb[0].mxu0 %v1861
      %v2125 = vpop.f32.mrb[0].mxu0
      %v2126 = vadd.f32 0.0, %v2125
      %v2127 = vpop.f32.mrb[0].mxu0
      %v2128 = vpop.f32.mrb[0].mxu0
      %v2129 = vadd.f32 0.0, %v2128
      %v2130 = vpop.f32.mrb[0].mxu0
      %2131 = vmatprep.mubr.bf16.mxu0 %v1864
      %2132 = vmatmul.mubr.bf16.gmra.mrb[0].mxu0 %v1863
      %v2133 = vpop.f32.mrb[0].mxu0
      %v2134 = vadd.f32 0.0, %v2133
      %v2135 = vpop.f32.mrb[0].mxu0
      %v2136 = vpop.f32.mrb[0].mxu0
      %v2137 = vadd.f32 0.0, %v2136
      %v2138 = vpop.f32.mrb[0].mxu0
      %2139 = vmatprep.mubr.bf16.mxu0 %v1866
      %2140 = vmatmul.mubr.bf16.gmra.mrb[0].mxu0 %v1865
      %v2141 = vpop.f32.mrb[0].mxu0
      %v2142 = vadd.f32 0.0, %v2141
      %v2143 = vpop.f32.mrb[0].mxu0
      %v2144 = vpop.f32.mrb[0].mxu0
      %v2145 = vadd.f32 0.0, %v2144
      %v2146 = vpop.f32.mrb[0].mxu0
      %2147 = vmatprep.mubr.bf16.mxu0 %v1868
      %2148 = vmatmul.mubr.bf16.gmra.mrb[0].mxu0 %v1867
      %v2149 = vpop.f32.mrb[0].mxu0
      %v2150 = vadd.f32 0.0, %v2149
      %v2151 = vpop.f32.mrb[0].mxu0
      %v2152 = vpop.f32.mrb[0].mxu0
      %v2153 = vadd.f32 0.0, %v2152
      %v2154 = vpop.f32.mrb[0].mxu0
      %2155 = vmatprep.mubr.bf16.mxu0 %v1870
      %2156 = vmatmul.mubr.bf16.gmra.mrb[0].mxu0 %v1869
      %v2157 = vpop.f32.mrb[0].mxu0
      %v2158 = vadd.f32 0.0, %v2157
      %v2159 = vpop.f32.mrb[0].mxu0
      %v2160 = vpop.f32.mrb[0].mxu0
      %v2161 = vadd.f32 0.0, %v2160
      %v2162 = vpop.f32.mrb[0].mxu0
      %2163 = vmatprep.mubr.bf16.mxu0 %v1872
      %2164 = vmatmul.mubr.bf16.gmra.mrb[0].mxu0 %v1871
      %v2165 = vpop.f32.mrb[0].mxu0
      %v2166 = vadd.f32 0.0, %v2165
      %v2167 = vpop.f32.mrb[0].mxu0
      %v2168 = vpop.f32.mrb[0].mxu0
      %v2169 = vadd.f32 0.0, %v2168
      %v2170 = vpop.f32.mrb[0].mxu0
      %2171 = vmatprep.mubr.bf16.mxu0 %v1874
      %2172 = vmatmul.mubr.bf16.gmra.mrb[0].mxu0 %v1873
      %v2173 = vpop.f32.mrb[0].mxu0
      %v2174 = vadd.f32 0.0, %v2173
      %v2175 = vpop.f32.mrb[0].mxu0
      %v2176 = vpop.f32.mrb[0].mxu0
      %v2177 = vadd.f32 0.0, %v2176
      %v2178 = vpop.f32.mrb[0].mxu0
      %2179 = vmatprep.mubr.bf16.mxu0 %v1876
      %2180 = vmatmul.mubr.bf16.gmra.mrb[0].mxu0 %v1875
      %v2181 = vpop.f32.mrb[0].mxu0
      %v2182 = vadd.f32 0.0, %v2181
      %v2183 = vpop.f32.mrb[0].mxu0
      %v2184 = vpop.f32.mrb[0].mxu0
      %v2185 = vadd.f32 0.0, %v2184
      %v2186 = vpop.f32.mrb[0].mxu0
      %2187 = vmatprep.mubr.bf16.mxu0 %v1878
      %2188 = vmatmul.mubr.bf16.gmra.mrb[0].mxu0 %v1877
      %v2189 = vpop.f32.mrb[0].mxu0
      %v2190 = vadd.f32 0.0, %v2189
      %v2191 = vpop.f32.mrb[0].mxu0
      %v2192 = vpop.f32.mrb[0].mxu0
      %v2193 = vadd.f32 0.0, %v2192
      %v2194 = vpop.f32.mrb[0].mxu0
      %2195 = vmatprep.mubr.bf16.mxu0 %v1880
      %2196 = vmatmul.mubr.bf16.gmra.mrb[0].mxu0 %v1879
      %v2197 = vpop.f32.mrb[0].mxu0
      %v2198 = vadd.f32 0.0, %v2197
      %v2199 = vpop.f32.mrb[0].mxu0
      %v2200 = vpop.f32.mrb[0].mxu0
      %v2201 = vadd.f32 0.0, %v2200
      %v2202 = vpop.f32.mrb[0].mxu0
      %2203 = vmatprep.mubr.bf16.mxu0 %v1882
      %2204 = vmatmul.mubr.bf16.gmra.mrb[0].mxu0 %v1881
      %v2205 = vpop.f32.mrb[0].mxu0
      %v2206 = vadd.f32 0.0, %v2205
      %v2207 = vpop.f32.mrb[0].mxu0
      %v2208 = vpop.f32.mrb[0].mxu0
      %v2209 = vadd.f32 0.0, %v2208
      %v2210 = vpop.f32.mrb[0].mxu0
      %2211 = vmatprep.mubr.bf16.mxu0 %v1884
      %2212 = vmatmul.mubr.bf16.gmra.mrb[0].mxu0 %v1883
      %v2213 = vpop.f32.mrb[0].mxu0
      %v2214 = vadd.f32 0.0, %v2213
      %v2215 = vpop.f32.mrb[0].mxu0
      %v2216 = vpop.f32.mrb[0].mxu0
      %v2217 = vadd.f32 0.0, %v2216
      %v2218 = vpop.f32.mrb[0].mxu0
      %2219 = vmatprep.mubr.bf16.mxu0 %v1886
      %2220 = vmatmul.mubr.bf16.gmra.mrb[0].mxu0 %v1885
      %v2221 = vpop.f32.mrb[0].mxu0
      %v2222 = vadd.f32 0.0, %v2221
      %v2223 = vpop.f32.mrb[0].mxu0
      %v2224 = vpop.f32.mrb[0].mxu0
      %v2225 = vadd.f32 0.0, %v2224
      %v2226 = vpop.f32.mrb[0].mxu0
      %2227 = vmatprep.mubr.bf16.mxu0 %v1888
      %2228 = vmatmul.mubr.bf16.gmra.mrb[0].mxu0 %v1887
      %v2229 = vpop.f32.mrb[0].mxu0
      %v2230 = vadd.f32 0.0, %v2229
      %v2231 = vpop.f32.mrb[0].mxu0
      %v2232 = vpop.f32.mrb[0].mxu0
      %v2233 = vadd.f32 0.0, %v2232
      %v2234 = vpop.f32.mrb[0].mxu0
      %2235 = vmatprep.mubr.bf16.mxu0 %v1890
      %2236 = vmatmul.mubr.bf16.gmra.mrb[0].mxu0 %v1889
      %v2237 = vpop.f32.mrb[0].mxu0
      %v2238 = vadd.f32 0.0, %v2237
      %v2239 = vpop.f32.mrb[0].mxu0
      %v2240 = vpop.f32.mrb[0].mxu0
      %v2241 = vadd.f32 0.0, %v2240
      %v2242 = vpop.f32.mrb[0].mxu0
      %2243 = vmatprep.mubr.bf16.mxu0 %v1892
      %2244 = vmatmul.mubr.bf16.gmra.mrb[0].mxu0 %v1891
      %v2245 = vpop.f32.mrb[0].mxu0
      %v2246 = vadd.f32 0.0, %v2245
      %v2247 = vpop.f32.mrb[0].mxu0
      %v2248 = vpop.f32.mrb[0].mxu0
      %v2249 = vadd.f32 0.0, %v2248
      %v2250 = vpop.f32.mrb[0].mxu0
      %2251 = vmatprep.mubr.bf16.mxu0 %v1894
      %2252 = vmatmul.mubr.bf16.gmra.mrb[0].mxu0 %v1893
      %v2253 = vpop.f32.mrb[0].mxu0
      %v2254 = vadd.f32 0.0, %v2253
      %v2255 = vpop.f32.mrb[0].mxu0
      %v2256 = vpop.f32.mrb[0].mxu0
      %v2257 = vadd.f32 0.0, %v2256
      %v2258 = vpop.f32.mrb[0].mxu0
      %2259 = vmatprep.mubr.bf16.mxu0 %v1896
      %2260 = vmatmul.mubr.bf16.gmra.mrb[0].mxu0 %v1895
      %v2261 = vpop.f32.mrb[0].mxu0
      %v2262 = vadd.f32 0.0, %v2261
      %v2263 = vpop.f32.mrb[0].mxu0
      %v2264 = vpop.f32.mrb[0].mxu0
      %v2265 = vadd.f32 0.0, %v2264
      %v2266 = vpop.f32.mrb[0].mxu0
      %2267 = vmatprep.mubr.bf16.mxu0 %v1898
      %2268 = vmatmul.mubr.bf16.gmra.mrb[0].mxu0 %v1897
      %v2269 = vpop.f32.mrb[0].mxu0
      %v2270 = vadd.f32 0.0, %v2269
      %v2271 = vpop.f32.mrb[0].mxu0
      %v2272 = vpop.f32.mrb[0].mxu0
      %v2273 = vadd.f32 0.0, %v2272
      %v2274 = vpop.f32.mrb[0].mxu0
      %2275 = vmatprep.mubr.bf16.mxu0 %v1900
      %2276 = vmatmul.mubr.bf16.gmra.mrb[0].mxu0 %v1899
      %v2277 = vpop.f32.mrb[0].mxu0
      %v2278 = vadd.f32 0.0, %v2277
      %v2279 = vpop.f32.mrb[0].mxu0
      %v2280 = vpop.f32.mrb[0].mxu0
      %v2281 = vadd.f32 0.0, %v2280
      %v2282 = vpop.f32.mrb[0].mxu0
      %2283 = vmatprep.mubr.bf16.mxu0 %v1902
      %2284 = vmatmul.mubr.bf16.gmra.mrb[0].mxu0 %v1901
      %v2285 = vpop.f32.mrb[0].mxu0
      %v2286 = vadd.f32 0.0, %v2285
      %v2287 = vpop.f32.mrb[0].mxu0
      %v2288 = vpop.f32.mrb[0].mxu0
      %v2289 = vadd.f32 0.0, %v2288
      %v2290 = vpop.f32.mrb[0].mxu0
      %2291 = vmatprep.mubr.bf16.mxu0 %v1904
      %2292 = vmatmul.mubr.bf16.gmra.mrb[0].mxu0 %v1903
      %v2293 = vpop.f32.mrb[0].mxu0
      %v2294 = vadd.f32 0.0, %v2293
      %v2295 = vpop.f32.mrb[0].mxu0
      %v2296 = vpop.f32.mrb[0].mxu0
      %v2297 = vadd.f32 0.0, %v2296
      %v2298 = vpop.f32.mrb[0].mxu0
      %2299 = vmatprep.mubr.bf16.mxu0 %v1906
      %2300 = vmatmul.mubr.bf16.gmra.mrb[0].mxu0 %v1905
      %v2301 = vpop.f32.mrb[0].mxu0
      %v2302 = vadd.f32 0.0, %v2301
      %v2303 = vpop.f32.mrb[0].mxu0
      %v2304 = vpop.f32.mrb[0].mxu0
      %v2305 = vadd.f32 0.0, %v2304
      %v2306 = vpop.f32.mrb[0].mxu0
      %2307 = vmatprep.mubr.bf16.mxu0 %v1908
      %2308 = vmatmul.mubr.bf16.gmra.mrb[0].mxu0 %v1907
      %v2309 = vpop.f32.mrb[0].mxu0
      %v2310 = vadd.f32 0.0, %v2309
      %v2311 = vpop.f32.mrb[0].mxu0
      %v2312 = vpop.f32.mrb[0].mxu0
      %v2313 = vadd.f32 0.0, %v2312
      %v2314 = vpop.f32.mrb[0].mxu0
      %2315 = vmatprep.mubr.bf16.mxu0 %v1910
      %2316 = vmatmul.mubr.bf16.gmra.mrb[0].mxu0 %v1909
      %v2317 = vpop.f32.mrb[0].mxu0
      %v2318 = vadd.f32 0.0, %v2317
      %v2319 = vpop.f32.mrb[0].mxu0
      %v2320 = vpop.f32.mrb[0].mxu0
      %v2321 = vadd.f32 0.0, %v2320
      %v2322 = vpop.f32.mrb[0].mxu0
      %2323 = vmatprep.mubr.bf16.mxu0 %v1912
      %2324 = vmatmul.mubr.bf16.gmra.mrb[0].mxu0 %v1911
      %v2325 = vpop.f32.mrb[0].mxu0
      %v2326 = vadd.f32 0.0, %v2325
      %v2327 = vpop.f32.mrb[0].mxu0
      %v2328 = vpop.f32.mrb[0].mxu0
      %v2329 = vadd.f32 0.0, %v2328
      %v2330 = vpop.f32.mrb[0].mxu0
      %2331 = vmatprep.mubr.bf16.mxu0 %v1914
      %2332 = vmatmul.mubr.bf16.gmra.mrb[0].mxu0 %v1913
      %v2333 = vpop.f32.mrb[0].mxu0
      %v2334 = vadd.f32 0.0, %v2333
      %v2335 = vpop.f32.mrb[0].mxu0
      %v2336 = vpop.f32.mrb[0].mxu0
      %v2337 = vadd.f32 0.0, %v2336
      %v2338 = vpop.f32.mrb[0].mxu0
      %2339 = vmatprep.mubr.bf16.mxu0 %v1916
      %2340 = vmatmul.mubr.bf16.gmra.mrb[0].mxu0 %v1915
      %v2341 = vpop.f32.mrb[0].mxu0
      %v2342 = vadd.f32 0.0, %v2341
      %v2343 = vpop.f32.mrb[0].mxu0
      %v2344 = vpop.f32.mrb[0].mxu0
      %v2345 = vadd.f32 0.0, %v2344
      %v2346 = vpop.f32.mrb[0].mxu0
      %2347 = vmatprep.mubr.bf16.mxu0 %v1918
      %2348 = vmatmul.mubr.bf16.gmra.mrb[0].mxu0 %v1917
      %v2349 = vpop.f32.mrb[0].mxu0
      %v2350 = vadd.f32 0.0, %v2349
      %v2351 = vpop.f32.mrb[0].mxu0
      %v2352 = vpop.f32.mrb[0].mxu0
      %v2353 = vadd.f32 0.0, %v2352
      %v2354 = vpop.f32.mrb[0].mxu0
      %2355 = vmatprep.mubr.bf16.mxu0 %v1920
      %2356 = vmatmul.mubr.bf16.gmra.mrb[0].mxu0 %v1919
      %v2357 = vpop.f32.mrb[0].mxu0
      %v2358 = vadd.f32 0.0, %v2357
      %v2359 = vpop.f32.mrb[0].mxu0
      %v2360 = vpop.f32.mrb[0].mxu0
      %v2361 = vadd.f32 0.0, %v2360
      %v2362 = vpop.f32.mrb[0].mxu0
      %2363 = vmatprep.mubr.bf16.mxu0 %v1922
      %2364 = vmatmul.mubr.bf16.gmra.mrb[0].mxu0 %v1921
      %v2365 = vpop.f32.mrb[0].mxu0
      %v2366 = vadd.f32 0.0, %v2365
      %v2367 = vpop.f32.mrb[0].mxu0
      %v2368 = vpop.f32.mrb[0].mxu0
      %v2369 = vadd.f32 0.0, %v2368
      %v2370 = vpop.f32.mrb[0].mxu0
      %2371 = vdwg.mxu0
      %vm2438 = vcmask 1040384
      %v2439 = vrot.slane %v1472, 7
      %v2440 = vrot.slane %v1474, 7
      %v2441 = vsel %vm2438, %v2439, %v2440
      %v2442 = vrot.slane %v1473, 7
      %v2443 = vrot.slane %v1475, 7
      %v2444 = vsel %vm2438, %v2442, %v2443
      %v2445 = vrot.slane %v1476, 7
      %v2446 = vsel %vm2438, %v2440, %v2445
      %v2447 = vrot.slane %v1477, 7
      %v2448 = vsel %vm2438, %v2443, %v2447
      %v2449 = vrot.slane %v1478, 7
      %v2450 = vsel %vm2438, %v2445, %v2449
      %v2451 = vrot.slane %v1479, 7
      %v2452 = vsel %vm2438, %v2447, %v2451
      %v2453 = vrot.slane %v1480, 7
      %v2454 = vsel %vm2438, %v2449, %v2453
      %v2455 = vrot.slane %v1481, 7
      %v2456 = vsel %vm2438, %v2451, %v2455
      %v2457 = vrot.slane %v1482, 7
      %v2458 = vsel %vm2438, %v2453, %v2457
      %v2459 = vrot.slane %v1483, 7
      %v2460 = vsel %vm2438, %v2455, %v2459
      %v2461 = vrot.slane %v1484, 7
      %v2462 = vsel %vm2438, %v2457, %v2461
      %v2463 = vrot.slane %v1485, 7
      %v2464 = vsel %vm2438, %v2459, %v2463
      %v2465 = vrot.slane %v1486, 7
      %v2466 = vsel %vm2438, %v2461, %v2465
      %v2467 = vrot.slane %v1487, 7
      %v2468 = vsel %vm2438, %v2463, %v2467
      %v2469 = vrot.slane %v1488, 7
      %v2470 = vsel %vm2438, %v2465, %v2469
      %v2471 = vrot.slane %v1489, 7
      %v2472 = vsel %vm2438, %v2467, %v2471
      %v2473 = vrot.slane %v1490, 7
      %v2474 = vsel %vm2438, %v2469, %v2473
      %v2475 = vrot.slane %v1491, 7
      %v2476 = vsel %vm2438, %v2471, %v2475
      %v2477 = vrot.slane %v1492, 7
      %v2478 = vsel %vm2438, %v2473, %v2477
      %v2479 = vrot.slane %v1493, 7
      %v2480 = vsel %vm2438, %v2475, %v2479
      %v2481 = vrot.slane %v1494, 7
      %v2482 = vsel %vm2438, %v2477, %v2481
      %v2483 = vrot.slane %v1495, 7
      %v2484 = vsel %vm2438, %v2479, %v2483
      %v2485 = vrot.slane %v1496, 7
      %v2486 = vsel %vm2438, %v2481, %v2485
      %v2487 = vrot.slane %v1497, 7
      %v2488 = vsel %vm2438, %v2483, %v2487
      %v2489 = vrot.slane %v1498, 7
      %v2490 = vsel %vm2438, %v2485, %v2489
      %v2491 = vrot.slane %v1499, 7
      %v2492 = vsel %vm2438, %v2487, %v2491
      %v2493 = vrot.slane %v1500, 7
      %v2494 = vsel %vm2438, %v2489, %v2493
      %v2495 = vrot.slane %v1501, 7
      %v2496 = vsel %vm2438, %v2491, %v2495
      %v2497 = vrot.slane %v1502, 7
      %v2498 = vsel %vm2438, %v2493, %v2497
      %v2499 = vrot.slane %v1503, 7
      %v2500 = vsel %vm2438, %v2495, %v2499
      %v2501 = vrot.slane %v1504, 7
      %v2502 = vsel %vm2438, %v2497, %v2501
      %v2503 = vrot.slane %v1505, 7
      %v2504 = vsel %vm2438, %v2499, %v2503
      %v2505 = vrot.slane %v1506, 7
      %v2506 = vsel %vm2438, %v2501, %v2505
      %v2507 = vrot.slane %v1507, 7
      %v2508 = vsel %vm2438, %v2503, %v2507
      %v2509 = vrot.slane %v1508, 7
      %v2510 = vsel %vm2438, %v2505, %v2509
      %v2511 = vrot.slane %v1509, 7
      %v2512 = vsel %vm2438, %v2507, %v2511
      %v2513 = vrot.slane %v1510, 7
      %v2514 = vsel %vm2438, %v2509, %v2513
      %v2515 = vrot.slane %v1511, 7
      %v2516 = vsel %vm2438, %v2511, %v2515
      %v2517 = vrot.slane %v1512, 7
      %v2518 = vsel %vm2438, %v2513, %v2517
      %v2519 = vrot.slane %v1513, 7
      %v2520 = vsel %vm2438, %v2515, %v2519
      %v2521 = vrot.slane %v1514, 7
      %v2522 = vsel %vm2438, %v2517, %v2521
      %v2523 = vrot.slane %v1515, 7
      %v2524 = vsel %vm2438, %v2519, %v2523
      %v2525 = vrot.slane %v1516, 7
      %v2526 = vsel %vm2438, %v2521, %v2525
      %v2527 = vrot.slane %v1517, 7
      %v2528 = vsel %vm2438, %v2523, %v2527
      %v2529 = vrot.slane %v1518, 7
      %v2530 = vsel %vm2438, %v2525, %v2529
      %v2531 = vrot.slane %v1519, 7
      %v2532 = vsel %vm2438, %v2527, %v2531
      %v2533 = vrot.slane %v1520, 7
      %v2534 = vsel %vm2438, %v2529, %v2533
      %v2535 = vrot.slane %v1521, 7
      %v2536 = vsel %vm2438, %v2531, %v2535
      %v2537 = vrot.slane %v1522, 7
      %v2538 = vsel %vm2438, %v2533, %v2537
      %v2539 = vrot.slane %v1523, 7
      %v2540 = vsel %vm2438, %v2535, %v2539
      %v2541 = vrot.slane %v1524, 7
      %v2542 = vsel %vm2438, %v2537, %v2541
      %v2543 = vrot.slane %v1525, 7
      %v2544 = vsel %vm2438, %v2539, %v2543
      %v2545 = vrot.slane %v1526, 7
      %v2546 = vsel %vm2438, %v2541, %v2545
      %v2547 = vrot.slane %v1527, 7
      %v2548 = vsel %vm2438, %v2543, %v2547
      %v2549 = vrot.slane %v1528, 7
      %v2550 = vsel %vm2438, %v2545, %v2549
      %v2551 = vrot.slane %v1529, 7
      %v2552 = vsel %vm2438, %v2547, %v2551
      %v2553 = vrot.slane %v1530, 7
      %v2554 = vsel %vm2438, %v2549, %v2553
      %v2555 = vrot.slane %v1531, 7
      %v2556 = vsel %vm2438, %v2551, %v2555
      %v2557 = vrot.slane %v1532, 7
      %v2558 = vsel %vm2438, %v2553, %v2557
      %v2559 = vrot.slane %v1533, 7
      %v2560 = vsel %vm2438, %v2555, %v2559
      %v2561 = vrot.slane %v1534, 7
      %v2562 = vsel %vm2438, %v2557, %v2561
      %v2563 = vrot.slane %v1535, 7
      %v2564 = vsel %vm2438, %v2559, %v2563
      %v2565 = vrot.slane %v1536, 7
      %v2566 = vsel %vm2438, %v2561, %v2565
      %v2567 = vrot.slane %v1537, 7
      %v2568 = vsel %vm2438, %v2563, %v2567
      %v2665 = vunpack.c.l.b16 %v1538
      %v2666 = vunpack.c.l.b16 %v1539
      %v2667 = vunpack.c.l.b16 %v1540
      %v2668 = vunpack.c.l.b16 %v1541
      %v2669 = vunpack.c.l.b16 %v1542
      %v2670 = vunpack.c.l.b16 %v1543
      %v2671 = vunpack.c.l.b16 %v1544
      %v2672 = vunpack.c.l.b16 %v1545
      %v2673 = vunpack.c.l.b16 %v1546
      %v2674 = vunpack.c.l.b16 %v1547
      %v2675 = vunpack.c.l.b16 %v1548
      %v2676 = vunpack.c.l.b16 %v1549
      %v2677 = vunpack.c.l.b16 %v1550
      %v2678 = vunpack.c.l.b16 %v1551
      %v2679 = vunpack.c.l.b16 %v1552
      %v2680 = vunpack.c.l.b16 %v1553
      %v2681 = vunpack.c.l.b16 %v1554
      %v2682 = vunpack.c.l.b16 %v1555
      %v2683 = vunpack.c.l.b16 %v1556
      %v2684 = vunpack.c.l.b16 %v1557
      %v2685 = vunpack.c.l.b16 %v1558
      %v2686 = vunpack.c.l.b16 %v1559
      %v2687 = vunpack.c.l.b16 %v1560
      %v2688 = vunpack.c.l.b16 %v1561
      %v2689 = vunpack.c.l.b16 %v1562
      %v2690 = vunpack.c.l.b16 %v1563
      %v2691 = vunpack.c.l.b16 %v1564
      %v2692 = vunpack.c.l.b16 %v1565
      %v2693 = vunpack.c.l.b16 %v1566
      %v2694 = vunpack.c.l.b16 %v1567
      %v2695 = vunpack.c.l.b16 %v1568
      %v2696 = vunpack.c.l.b16 %v1569
      %v2697 = vpack.c.b16 %v2666, %v2665
      %v2698 = vpack.c.b16 %v2668, %v2667
      %v2699 = vpack.c.b16 %v2670, %v2669
      %v2700 = vpack.c.b16 %v2672, %v2671
      %v2701 = vpack.c.b16 %v2674, %v2673
      %v2702 = vpack.c.b16 %v2676, %v2675
      %v2703 = vpack.c.b16 %v2678, %v2677
      %v2704 = vpack.c.b16 %v2680, %v2679
      %v2705 = vpack.c.b16 %v2682, %v2681
      %v2706 = vpack.c.b16 %v2684, %v2683
      %v2707 = vpack.c.b16 %v2686, %v2685
      %v2708 = vpack.c.b16 %v2688, %v2687
      %v2709 = vpack.c.b16 %v2690, %v2689
      %v2710 = vpack.c.b16 %v2692, %v2691
      %v2711 = vpack.c.b16 %v2694, %v2693
      %v2712 = vpack.c.b16 %v2696, %v2695
      %2729 = vmatprep.subr.bf16.mxu0 0
      %2730 = vmatpush1.bf16.msra.mxu0 %v2697
      %2731 = vmatprep.subr.bf16.mxu0 0
      %2732 = vmatpush1.bf16.msra.mxu0 %v2698
      %2733 = vmatprep.subr.bf16.mxu0 0
      %2734 = vmatpush1.bf16.msra.mxu0 %v2699
      %2735 = vmatprep.subr.bf16.mxu0 0
      %2736 = vmatpush1.bf16.msra.mxu0 %v2700
      %2737 = vmatprep.subr.bf16.mxu0 0
      %2738 = vmatpush1.bf16.msra.mxu0 %v2701
      %2739 = vmatprep.subr.bf16.mxu0 0
      %2740 = vmatpush1.bf16.msra.mxu0 %v2702
      %2741 = vmatprep.subr.bf16.mxu0 0
      %2742 = vmatpush1.bf16.msra.mxu0 %v2703
      %2743 = vmatprep.subr.bf16.mxu0 0
      %2744 = vmatpush1.bf16.msra.mxu0 %v2704
      %2745 = vmatprep.subr.bf16.mxu0 0
      %2746 = vmatpush1.bf16.msra.mxu0 %v2705
      %2747 = vmatprep.subr.bf16.mxu0 0
      %2748 = vmatpush1.bf16.msra.mxu0 %v2706
      %2749 = vmatprep.subr.bf16.mxu0 0
      %2750 = vmatpush1.bf16.msra.mxu0 %v2707
      %2751 = vmatprep.subr.bf16.mxu0 0
      %2752 = vmatpush1.bf16.msra.mxu0 %v2708
      %2753 = vmatprep.subr.bf16.mxu0 0
      %2754 = vmatpush1.bf16.msra.mxu0 %v2709
      %2755 = vmatprep.subr.bf16.mxu0 0
      %2756 = vmatpush1.bf16.msra.mxu0 %v2710
      %2757 = vmatprep.subr.bf16.mxu0 0
      %2758 = vmatpush1.bf16.msra.mxu0 %v2711
      %2759 = vmatprep.subr.bf16.mxu0 0
      %2760 = vmatpush1.bf16.msra.mxu0 %v2712
      %2761 = vmatprep.mubr.bf16.mxu0 %v2444
      %2762 = vmatmul.mubr.bf16.gmra.mrb[0].mxu0 %v2441
      %v2763 = vpop.f32.mrb[0].mxu0
      %v2764 = vadd.f32 %v2118, %v2763
      %v2765 = vpop.f32.mrb[0].mxu0
      %v2766 = vpop.f32.mrb[0].mxu0
      %v2767 = vadd.f32 %v2121, %v2766
      %v2768 = vpop.f32.mrb[0].mxu0
      %2769 = vmatprep.mubr.bf16.mxu0 %v2448
      %2770 = vmatmul.mubr.bf16.gmra.mrb[0].mxu0 %v2446
      %v2771 = vpop.f32.mrb[0].mxu0
      %v2772 = vadd.f32 %v2126, %v2771
      %v2773 = vpop.f32.mrb[0].mxu0
      %v2774 = vpop.f32.mrb[0].mxu0
      %v2775 = vadd.f32 %v2129, %v2774
      %v2776 = vpop.f32.mrb[0].mxu0
      %2777 = vmatprep.mubr.bf16.mxu0 %v2452
      %2778 = vmatmul.mubr.bf16.gmra.mrb[0].mxu0 %v2450
      %v2779 = vpop.f32.mrb[0].mxu0
      %v2780 = vadd.f32 %v2134, %v2779
      %v2781 = vpop.f32.mrb[0].mxu0
      %v2782 = vpop.f32.mrb[0].mxu0
      %v2783 = vadd.f32 %v2137, %v2782
      %v2784 = vpop.f32.mrb[0].mxu0
      %2785 = vmatprep.mubr.bf16.mxu0 %v2456
      %2786 = vmatmul.mubr.bf16.gmra.mrb[0].mxu0 %v2454
      %v2787 = vpop.f32.mrb[0].mxu0
      %v2788 = vadd.f32 %v2142, %v2787
      %v2789 = vpop.f32.mrb[0].mxu0
      %v2790 = vpop.f32.mrb[0].mxu0
      %v2791 = vadd.f32 %v2145, %v2790
      %v2792 = vpop.f32.mrb[0].mxu0
      %2793 = vmatprep.mubr.bf16.mxu0 %v2460
      %2794 = vmatmul.mubr.bf16.gmra.mrb[0].mxu0 %v2458
      %v2795 = vpop.f32.mrb[0].mxu0
      %v2796 = vadd.f32 %v2150, %v2795
      %v2797 = vpop.f32.mrb[0].mxu0
      %v2798 = vpop.f32.mrb[0].mxu0
      %v2799 = vadd.f32 %v2153, %v2798
      %v2800 = vpop.f32.mrb[0].mxu0
      %2801 = vmatprep.mubr.bf16.mxu0 %v2464
      %2802 = vmatmul.mubr.bf16.gmra.mrb[0].mxu0 %v2462
      %v2803 = vpop.f32.mrb[0].mxu0
      %v2804 = vadd.f32 %v2158, %v2803
      %v2805 = vpop.f32.mrb[0].mxu0
      %v2806 = vpop.f32.mrb[0].mxu0
      %v2807 = vadd.f32 %v2161, %v2806
      %v2808 = vpop.f32.mrb[0].mxu0
      %2809 = vmatprep.mubr.bf16.mxu0 %v2468
      %2810 = vmatmul.mubr.bf16.gmra.mrb[0].mxu0 %v2466
      %v2811 = vpop.f32.mrb[0].mxu0
      %v2812 = vadd.f32 %v2166, %v2811
      %v2813 = vpop.f32.mrb[0].mxu0
      %v2814 = vpop.f32.mrb[0].mxu0
      %v2815 = vadd.f32 %v2169, %v2814
      %v2816 = vpop.f32.mrb[0].mxu0
      %2817 = vmatprep.mubr.bf16.mxu0 %v2472
      %2818 = vmatmul.mubr.bf16.gmra.mrb[0].mxu0 %v2470
      %v2819 = vpop.f32.mrb[0].mxu0
      %v2820 = vadd.f32 %v2174, %v2819
      %v2821 = vpop.f32.mrb[0].mxu0
      %v2822 = vpop.f32.mrb[0].mxu0
      %v2823 = vadd.f32 %v2177, %v2822
      %v2824 = vpop.f32.mrb[0].mxu0
      %2825 = vmatprep.mubr.bf16.mxu0 %v2476
      %2826 = vmatmul.mubr.bf16.gmra.mrb[0].mxu0 %v2474
      %v2827 = vpop.f32.mrb[0].mxu0
      %v2828 = vadd.f32 %v2182, %v2827
      %v2829 = vpop.f32.mrb[0].mxu0
      %v2830 = vpop.f32.mrb[0].mxu0
      %v2831 = vadd.f32 %v2185, %v2830
      %v2832 = vpop.f32.mrb[0].mxu0
      %2833 = vmatprep.mubr.bf16.mxu0 %v2480
      %2834 = vmatmul.mubr.bf16.gmra.mrb[0].mxu0 %v2478
      %v2835 = vpop.f32.mrb[0].mxu0
      %v2836 = vadd.f32 %v2190, %v2835
      %v2837 = vpop.f32.mrb[0].mxu0
      %v2838 = vpop.f32.mrb[0].mxu0
      %v2839 = vadd.f32 %v2193, %v2838
      %v2840 = vpop.f32.mrb[0].mxu0
      %2841 = vmatprep.mubr.bf16.mxu0 %v2484
      %2842 = vmatmul.mubr.bf16.gmra.mrb[0].mxu0 %v2482
      %v2843 = vpop.f32.mrb[0].mxu0
      %v2844 = vadd.f32 %v2198, %v2843
      %v2845 = vpop.f32.mrb[0].mxu0
      %v2846 = vpop.f32.mrb[0].mxu0
      %v2847 = vadd.f32 %v2201, %v2846
      %v2848 = vpop.f32.mrb[0].mxu0
      %2849 = vmatprep.mubr.bf16.mxu0 %v2488
      %2850 = vmatmul.mubr.bf16.gmra.mrb[0].mxu0 %v2486
      %v2851 = vpop.f32.mrb[0].mxu0
      %v2852 = vadd.f32 %v2206, %v2851
      %v2853 = vpop.f32.mrb[0].mxu0
      %v2854 = vpop.f32.mrb[0].mxu0
      %v2855 = vadd.f32 %v2209, %v2854
      %v2856 = vpop.f32.mrb[0].mxu0
      %2857 = vmatprep.mubr.bf16.mxu0 %v2492
      %2858 = vmatmul.mubr.bf16.gmra.mrb[0].mxu0 %v2490
      %v2859 = vpop.f32.mrb[0].mxu0
      %v2860 = vadd.f32 %v2214, %v2859
      %v2861 = vpop.f32.mrb[0].mxu0
      %v2862 = vpop.f32.mrb[0].mxu0
      %v2863 = vadd.f32 %v2217, %v2862
      %v2864 = vpop.f32.mrb[0].mxu0
      %2865 = vmatprep.mubr.bf16.mxu0 %v2496
      %2866 = vmatmul.mubr.bf16.gmra.mrb[0].mxu0 %v2494
      %v2867 = vpop.f32.mrb[0].mxu0
      %v2868 = vadd.f32 %v2222, %v2867
      %v2869 = vpop.f32.mrb[0].mxu0
      %v2870 = vpop.f32.mrb[0].mxu0
      %v2871 = vadd.f32 %v2225, %v2870
      %v2872 = vpop.f32.mrb[0].mxu0
      %2873 = vmatprep.mubr.bf16.mxu0 %v2500
      %2874 = vmatmul.mubr.bf16.gmra.mrb[0].mxu0 %v2498
      %v2875 = vpop.f32.mrb[0].mxu0
      %v2876 = vadd.f32 %v2230, %v2875
      %v2877 = vpop.f32.mrb[0].mxu0
      %v2878 = vpop.f32.mrb[0].mxu0
      %v2879 = vadd.f32 %v2233, %v2878
      %v2880 = vpop.f32.mrb[0].mxu0
      %2881 = vmatprep.mubr.bf16.mxu0 %v2504
      %2882 = vmatmul.mubr.bf16.gmra.mrb[0].mxu0 %v2502
      %v2883 = vpop.f32.mrb[0].mxu0
      %v2884 = vadd.f32 %v2238, %v2883
      %v2885 = vpop.f32.mrb[0].mxu0
      %v2886 = vpop.f32.mrb[0].mxu0
      %v2887 = vadd.f32 %v2241, %v2886
      %v2888 = vpop.f32.mrb[0].mxu0
      %2889 = vmatprep.mubr.bf16.mxu0 %v2508
      %2890 = vmatmul.mubr.bf16.gmra.mrb[0].mxu0 %v2506
      %v2891 = vpop.f32.mrb[0].mxu0
      %v2892 = vadd.f32 %v2246, %v2891
      %v2893 = vpop.f32.mrb[0].mxu0
      %v2894 = vpop.f32.mrb[0].mxu0
      %v2895 = vadd.f32 %v2249, %v2894
      %v2896 = vpop.f32.mrb[0].mxu0
      %2897 = vmatprep.mubr.bf16.mxu0 %v2512
      %2898 = vmatmul.mubr.bf16.gmra.mrb[0].mxu0 %v2510
      %v2899 = vpop.f32.mrb[0].mxu0
      %v2900 = vadd.f32 %v2254, %v2899
      %v2901 = vpop.f32.mrb[0].mxu0
      %v2902 = vpop.f32.mrb[0].mxu0
      %v2903 = vadd.f32 %v2257, %v2902
      %v2904 = vpop.f32.mrb[0].mxu0
      %2905 = vmatprep.mubr.bf16.mxu0 %v2516
      %2906 = vmatmul.mubr.bf16.gmra.mrb[0].mxu0 %v2514
      %v2907 = vpop.f32.mrb[0].mxu0
      %v2908 = vadd.f32 %v2262, %v2907
      %v2909 = vpop.f32.mrb[0].mxu0
      %v2910 = vpop.f32.mrb[0].mxu0
      %v2911 = vadd.f32 %v2265, %v2910
      %v2912 = vpop.f32.mrb[0].mxu0
      %2913 = vmatprep.mubr.bf16.mxu0 %v2520
      %2914 = vmatmul.mubr.bf16.gmra.mrb[0].mxu0 %v2518
      %v2915 = vpop.f32.mrb[0].mxu0
      %v2916 = vadd.f32 %v2270, %v2915
      %v2917 = vpop.f32.mrb[0].mxu0
      %v2918 = vpop.f32.mrb[0].mxu0
      %v2919 = vadd.f32 %v2273, %v2918
      %v2920 = vpop.f32.mrb[0].mxu0
      %2921 = vmatprep.mubr.bf16.mxu0 %v2524
      %2922 = vmatmul.mubr.bf16.gmra.mrb[0].mxu0 %v2522
      %v2923 = vpop.f32.mrb[0].mxu0
      %v2924 = vadd.f32 %v2278, %v2923
      %v2925 = vpop.f32.mrb[0].mxu0
      %v2926 = vpop.f32.mrb[0].mxu0
      %v2927 = vadd.f32 %v2281, %v2926
      %v2928 = vpop.f32.mrb[0].mxu0
      %2929 = vmatprep.mubr.bf16.mxu0 %v2528
      %2930 = vmatmul.mubr.bf16.gmra.mrb[0].mxu0 %v2526
      %v2931 = vpop.f32.mrb[0].mxu0
      %v2932 = vadd.f32 %v2286, %v2931
      %v2933 = vpop.f32.mrb[0].mxu0
      %v2934 = vpop.f32.mrb[0].mxu0
      %v2935 = vadd.f32 %v2289, %v2934
      %v2936 = vpop.f32.mrb[0].mxu0
      %2937 = vmatprep.mubr.bf16.mxu0 %v2532
      %2938 = vmatmul.mubr.bf16.gmra.mrb[0].mxu0 %v2530
      %v2939 = vpop.f32.mrb[0].mxu0
      %v2940 = vadd.f32 %v2294, %v2939
      %v2941 = vpop.f32.mrb[0].mxu0
      %v2942 = vpop.f32.mrb[0].mxu0
      %v2943 = vadd.f32 %v2297, %v2942
      %v2944 = vpop.f32.mrb[0].mxu0
      %2945 = vmatprep.mubr.bf16.mxu0 %v2536
      %2946 = vmatmul.mubr.bf16.gmra.mrb[0].mxu0 %v2534
      %v2947 = vpop.f32.mrb[0].mxu0
      %v2948 = vadd.f32 %v2302, %v2947
      %v2949 = vpop.f32.mrb[0].mxu0
      %v2950 = vpop.f32.mrb[0].mxu0
      %v2951 = vadd.f32 %v2305, %v2950
      %v2952 = vpop.f32.mrb[0].mxu0
      %2953 = vmatprep.mubr.bf16.mxu0 %v2540
      %2954 = vmatmul.mubr.bf16.gmra.mrb[0].mxu0 %v2538
      %v2955 = vpop.f32.mrb[0].mxu0
      %v2956 = vadd.f32 %v2310, %v2955
      %v2957 = vpop.f32.mrb[0].mxu0
      %v2958 = vpop.f32.mrb[0].mxu0
      %v2959 = vadd.f32 %v2313, %v2958
      %v2960 = vpop.f32.mrb[0].mxu0
      %2961 = vmatprep.mubr.bf16.mxu0 %v2544
      %2962 = vmatmul.mubr.bf16.gmra.mrb[0].mxu0 %v2542
      %v2963 = vpop.f32.mrb[0].mxu0
      %v2964 = vadd.f32 %v2318, %v2963
      %v2965 = vpop.f32.mrb[0].mxu0
      %v2966 = vpop.f32.mrb[0].mxu0
      %v2967 = vadd.f32 %v2321, %v2966
      %v2968 = vpop.f32.mrb[0].mxu0
      %2969 = vmatprep.mubr.bf16.mxu0 %v2548
      %2970 = vmatmul.mubr.bf16.gmra.mrb[0].mxu0 %v2546
      %v2971 = vpop.f32.mrb[0].mxu0
      %v2972 = vadd.f32 %v2326, %v2971
      %v2973 = vpop.f32.mrb[0].mxu0
      %v2974 = vpop.f32.mrb[0].mxu0
      %v2975 = vadd.f32 %v2329, %v2974
      %v2976 = vpop.f32.mrb[0].mxu0
      %2977 = vmatprep.mubr.bf16.mxu0 %v2552
      %2978 = vmatmul.mubr.bf16.gmra.mrb[0].mxu0 %v2550
      %v2979 = vpop.f32.mrb[0].mxu0
      %v2980 = vadd.f32 %v2334, %v2979
      %v2981 = vpop.f32.mrb[0].mxu0
      %v2982 = vpop.f32.mrb[0].mxu0
      %v2983 = vadd.f32 %v2337, %v2982
      %v2984 = vpop.f32.mrb[0].mxu0
      %2985 = vmatprep.mubr.bf16.mxu0 %v2556
      %2986 = vmatmul.mubr.bf16.gmra.mrb[0].mxu0 %v2554
      %v2987 = vpop.f32.mrb[0].mxu0
      %v2988 = vadd.f32 %v2342, %v2987
      %v2989 = vpop.f32.mrb[0].mxu0
      %v2990 = vpop.f32.mrb[0].mxu0
      %v2991 = vadd.f32 %v2345, %v2990
      %v2992 = vpop.f32.mrb[0].mxu0
      %2993 = vmatprep.mubr.bf16.mxu0 %v2560
      %2994 = vmatmul.mubr.bf16.gmra.mrb[0].mxu0 %v2558
      %v2995 = vpop.f32.mrb[0].mxu0
      %v2996 = vadd.f32 %v2350, %v2995
      %v2997 = vpop.f32.mrb[0].mxu0
      %v2998 = vpop.f32.mrb[0].mxu0
      %v2999 = vadd.f32 %v2353, %v2998
      %v3000 = vpop.f32.mrb[0].mxu0
      %3001 = vmatprep.mubr.bf16.mxu0 %v2564
      %3002 = vmatmul.mubr.bf16.gmra.mrb[0].mxu0 %v2562
      %v3003 = vpop.f32.mrb[0].mxu0
      %v3004 = vadd.f32 %v2358, %v3003
      %v3005 = vpop.f32.mrb[0].mxu0
      %v3006 = vpop.f32.mrb[0].mxu0
      %v3007 = vadd.f32 %v2361, %v3006
      %v3008 = vpop.f32.mrb[0].mxu0
      %3009 = vmatprep.mubr.bf16.mxu0 %v2568
      %3010 = vmatmul.mubr.bf16.gmra.mrb[0].mxu0 %v2566
      %v3011 = vpop.f32.mrb[0].mxu0
      %v3012 = vadd.f32 %v2366, %v3011
      %v3013 = vpop.f32.mrb[0].mxu0
      %v3014 = vpop.f32.mrb[0].mxu0
      %v3015 = vadd.f32 %v2369, %v3014
      %v3016 = vpop.f32.mrb[0].mxu0
      %3017 = vdwg.mxu0
      %v3018 = vld [vmem:[#allocation2 + $0x210] sm:$0xff]
      %v3019 = vld [vmem:[#allocation2 + $0x218] sm:$0xff]
      %s3020 = scalar_lea.vmem %s1, 256
      %v3021 = vld [vmem:[%s3020] sm:$0xf]
      %v3022 = vld [vmem:[%s3020 + $0x4] sm:$0xf]
      %v3023 = vld [vmem:[%s3020 + $0x8] sm:$0xf]
      %v3024 = vld [vmem:[%s3020 + $0xc] sm:$0xf]
      %v3025 = vld [vmem:[%s3020 + $0x10] sm:$0xf]
      %v3026 = vld [vmem:[%s3020 + $0x14] sm:$0xf]
      %v3027 = vld [vmem:[%s3020 + $0x18] sm:$0xf]
      %v3028 = vld [vmem:[%s3020 + $0x1c] sm:$0xf]
      %v3029 = vld [vmem:[%s3020 + $0x20] sm:$0xf]
      %v3030 = vld [vmem:[%s3020 + $0x24] sm:$0xf]
      %v3031 = vld [vmem:[%s3020 + $0x28] sm:$0xf]
      %v3032 = vld [vmem:[%s3020 + $0x2c] sm:$0xf]
      %v3033 = vld [vmem:[%s3020 + $0x30] sm:$0xf]
      %v3034 = vld [vmem:[%s3020 + $0x34] sm:$0xf]
      %v3035 = vld [vmem:[%s3020 + $0x38] sm:$0xf]
      %v3036 = vld [vmem:[%s3020 + $0x3c] sm:$0xf]
      %v3037 = vld [vmem:[%s3020 + $0x40] sm:$0xf]
      %v3038 = vld [vmem:[%s3020 + $0x44] sm:$0xf]
      %v3039 = vld [vmem:[%s3020 + $0x48] sm:$0xf]
      %v3040 = vld [vmem:[%s3020 + $0x4c] sm:$0xf]
      %v3041 = vld [vmem:[%s3020 + $0x50] sm:$0xf]
      %v3042 = vld [vmem:[%s3020 + $0x54] sm:$0xf]
      %v3043 = vld [vmem:[%s3020 + $0x58] sm:$0xf]
      %v3044 = vld [vmem:[%s3020 + $0x5c] sm:$0xf]
      %v3045 = vld [vmem:[%s3020 + $0x60] sm:$0xf]
      %v3046 = vld [vmem:[%s3020 + $0x64] sm:$0xf]
      %v3047 = vld [vmem:[%s3020 + $0x68] sm:$0xf]
      %v3048 = vld [vmem:[%s3020 + $0x6c] sm:$0xf]
      %v3049 = vld [vmem:[%s3020 + $0x70] sm:$0xf]
      %v3050 = vld [vmem:[%s3020 + $0x74] sm:$0xf]
      %v3051 = vld [vmem:[%s3020 + $0x78] sm:$0xf]
      %v3052 = vld [vmem:[%s3020 + $0x7c] sm:$0xf]
      %v3085 = vunpack.c.l.b16 %v3021
      %v3086 = vunpack.c.l.b16 %v3022
      %v3087 = vunpack.c.l.b16 %v3023
      %v3088 = vunpack.c.l.b16 %v3024
      %v3089 = vunpack.c.l.b16 %v3025
      %v3090 = vunpack.c.l.b16 %v3026
      %v3091 = vunpack.c.l.b16 %v3027
      %v3092 = vunpack.c.l.b16 %v3028
      %v3093 = vunpack.c.l.b16 %v3029
      %v3094 = vunpack.c.l.b16 %v3030
      %v3095 = vunpack.c.l.b16 %v3031
      %v3096 = vunpack.c.l.b16 %v3032
      %v3097 = vunpack.c.l.b16 %v3033
      %v3098 = vunpack.c.l.b16 %v3034
      %v3099 = vunpack.c.l.b16 %v3035
      %v3100 = vunpack.c.l.b16 %v3036
      %v3101 = vunpack.c.l.b16 %v3037
      %v3102 = vunpack.c.l.b16 %v3038
      %v3103 = vunpack.c.l.b16 %v3039
      %v3104 = vunpack.c.l.b16 %v3040
      %v3105 = vunpack.c.l.b16 %v3041
      %v3106 = vunpack.c.l.b16 %v3042
      %v3107 = vunpack.c.l.b16 %v3043
      %v3108 = vunpack.c.l.b16 %v3044
      %v3109 = vunpack.c.l.b16 %v3045
      %v3110 = vunpack.c.l.b16 %v3046
      %v3111 = vunpack.c.l.b16 %v3047
      %v3112 = vunpack.c.l.b16 %v3048
      %v3113 = vunpack.c.l.b16 %v3049
      %v3114 = vunpack.c.l.b16 %v3050
      %v3115 = vunpack.c.l.b16 %v3051
      %v3116 = vunpack.c.l.b16 %v3052
      %v3117 = vpack.c.b16 %v3086, %v3085
      %v3118 = vpack.c.b16 %v3088, %v3087
      %v3119 = vpack.c.b16 %v3090, %v3089
      %v3120 = vpack.c.b16 %v3092, %v3091
      %v3121 = vpack.c.b16 %v3094, %v3093
      %v3122 = vpack.c.b16 %v3096, %v3095
      %v3123 = vpack.c.b16 %v3098, %v3097
      %v3124 = vpack.c.b16 %v3100, %v3099
      %v3125 = vpack.c.b16 %v3102, %v3101
      %v3126 = vpack.c.b16 %v3104, %v3103
      %v3127 = vpack.c.b16 %v3106, %v3105
      %v3128 = vpack.c.b16 %v3108, %v3107
      %v3129 = vpack.c.b16 %v3110, %v3109
      %v3130 = vpack.c.b16 %v3112, %v3111
      %v3131 = vpack.c.b16 %v3114, %v3113
      %v3132 = vpack.c.b16 %v3116, %v3115
      %3149 = vmatprep.subr.bf16.mxu0 0
      %3150 = vmatpush1.bf16.msra.mxu0 %v3117
      %3151 = vmatprep.subr.bf16.mxu0 0
      %3152 = vmatpush1.bf16.msra.mxu0 %v3118
      %3153 = vmatprep.subr.bf16.mxu0 0
      %3154 = vmatpush1.bf16.msra.mxu0 %v3119
      %3155 = vmatprep.subr.bf16.mxu0 0
      %3156 = vmatpush1.bf16.msra.mxu0 %v3120
      %3157 = vmatprep.subr.bf16.mxu0 0
      %3158 = vmatpush1.bf16.msra.mxu0 %v3121
      %3159 = vmatprep.subr.bf16.mxu0 0
      %3160 = vmatpush1.bf16.msra.mxu0 %v3122
      %3161 = vmatprep.subr.bf16.mxu0 0
      %3162 = vmatpush1.bf16.msra.mxu0 %v3123
      %3163 = vmatprep.subr.bf16.mxu0 0
      %3164 = vmatpush1.bf16.msra.mxu0 %v3124
      %3165 = vmatprep.subr.bf16.mxu0 0
      %3166 = vmatpush1.bf16.msra.mxu0 %v3125
      %3167 = vmatprep.subr.bf16.mxu0 0
      %3168 = vmatpush1.bf16.msra.mxu0 %v3126
      %3169 = vmatprep.subr.bf16.mxu0 0
      %3170 = vmatpush1.bf16.msra.mxu0 %v3127
      %3171 = vmatprep.subr.bf16.mxu0 0
      %3172 = vmatpush1.bf16.msra.mxu0 %v3128
      %3173 = vmatprep.subr.bf16.mxu0 0
      %3174 = vmatpush1.bf16.msra.mxu0 %v3129
      %3175 = vmatprep.subr.bf16.mxu0 0
      %3176 = vmatpush1.bf16.msra.mxu0 %v3130
      %3177 = vmatprep.subr.bf16.mxu0 0
      %3178 = vmatpush1.bf16.msra.mxu0 %v3131
      %3179 = vmatprep.subr.bf16.mxu0 0
      %3180 = vmatpush1.bf16.msra.mxu0 %v3132
      %3181 = vmatprep.mubr.bf16.mxu0 %v1475
      %3182 = vmatmul.mubr.bf16.gmra.mrb[0].mxu0 %v1474
      %v3183 = vpop.f32.mrb[0].mxu0
      %v3184 = vadd.f32 0.0, %v3183
      %v3185 = vpop.f32.mrb[0].mxu0
      %v3186 = vpop.f32.mrb[0].mxu0
      %v3187 = vadd.f32 0.0, %v3186
      %v3188 = vpop.f32.mrb[0].mxu0
      %3189 = vmatprep.mubr.bf16.mxu0 %v1477
      %3190 = vmatmul.mubr.bf16.gmra.mrb[0].mxu0 %v1476
      %v3191 = vpop.f32.mrb[0].mxu0
      %v3192 = vadd.f32 0.0, %v3191
      %v3193 = vpop.f32.mrb[0].mxu0
      %v3194 = vpop.f32.mrb[0].mxu0
      %v3195 = vadd.f32 0.0, %v3194
      %v3196 = vpop.f32.mrb[0].mxu0
      %3197 = vmatprep.mubr.bf16.mxu0 %v1479
      %3198 = vmatmul.mubr.bf16.gmra.mrb[0].mxu0 %v1478
      %v3199 = vpop.f32.mrb[0].mxu0
      %v3200 = vadd.f32 0.0, %v3199
      %v3201 = vpop.f32.mrb[0].mxu0
      %v3202 = vpop.f32.mrb[0].mxu0
      %v3203 = vadd.f32 0.0, %v3202
      %v3204 = vpop.f32.mrb[0].mxu0
      %3205 = vmatprep.mubr.bf16.mxu0 %v1481
      %3206 = vmatmul.mubr.bf16.gmra.mrb[0].mxu0 %v1480
      %v3207 = vpop.f32.mrb[0].mxu0
      %v3208 = vadd.f32 0.0, %v3207
      %v3209 = vpop.f32.mrb[0].mxu0
      %v3210 = vpop.f32.mrb[0].mxu0
      %v3211 = vadd.f32 0.0, %v3210
      %v3212 = vpop.f32.mrb[0].mxu0
      %3213 = vmatprep.mubr.bf16.mxu0 %v1483
      %3214 = vmatmul.mubr.bf16.gmra.mrb[0].mxu0 %v1482
      %v3215 = vpop.f32.mrb[0].mxu0
      %v3216 = vadd.f32 0.0, %v3215
      %v3217 = vpop.f32.mrb[0].mxu0
      %v3218 = vpop.f32.mrb[0].mxu0
      %v3219 = vadd.f32 0.0, %v3218
      %v3220 = vpop.f32.mrb[0].mxu0
      %3221 = vmatprep.mubr.bf16.mxu0 %v1485
      %3222 = vmatmul.mubr.bf16.gmra.mrb[0].mxu0 %v1484
      %v3223 = vpop.f32.mrb[0].mxu0
      %v3224 = vadd.f32 0.0, %v3223
      %v3225 = vpop.f32.mrb[0].mxu0
      %v3226 = vpop.f32.mrb[0].mxu0
      %v3227 = vadd.f32 0.0, %v3226
      %v3228 = vpop.f32.mrb[0].mxu0
      %3229 = vmatprep.mubr.bf16.mxu0 %v1487
      %3230 = vmatmul.mubr.bf16.gmra.mrb[0].mxu0 %v1486
      %v3231 = vpop.f32.mrb[0].mxu0
      %v3232 = vadd.f32 0.0, %v3231
      %v3233 = vpop.f32.mrb[0].mxu0
      %v3234 = vpop.f32.mrb[0].mxu0
      %v3235 = vadd.f32 0.0, %v3234
      %v3236 = vpop.f32.mrb[0].mxu0
      %3237 = vmatprep.mubr.bf16.mxu0 %v1489
      %3238 = vmatmul.mubr.bf16.gmra.mrb[0].mxu0 %v1488
      %v3239 = vpop.f32.mrb[0].mxu0
      %v3240 = vadd.f32 0.0, %v3239
      %v3241 = vpop.f32.mrb[0].mxu0
      %v3242 = vpop.f32.mrb[0].mxu0
      %v3243 = vadd.f32 0.0, %v3242
      %v3244 = vpop.f32.mrb[0].mxu0
      %3245 = vmatprep.mubr.bf16.mxu0 %v1491
      %3246 = vmatmul.mubr.bf16.gmra.mrb[0].mxu0 %v1490
      %v3247 = vpop.f32.mrb[0].mxu0
      %v3248 = vadd.f32 0.0, %v3247
      %v3249 = vpop.f32.mrb[0].mxu0
      %v3250 = vpop.f32.mrb[0].mxu0
      %v3251 = vadd.f32 0.0, %v3250
      %v3252 = vpop.f32.mrb[0].mxu0
      %3253 = vmatprep.mubr.bf16.mxu0 %v1493
      %3254 = vmatmul.mubr.bf16.gmra.mrb[0].mxu0 %v1492
      %v3255 = vpop.f32.mrb[0].mxu0
      %v3256 = vadd.f32 0.0, %v3255
      %v3257 = vpop.f32.mrb[0].mxu0
      %v3258 = vpop.f32.mrb[0].mxu0
      %v3259 = vadd.f32 0.0, %v3258
      %v3260 = vpop.f32.mrb[0].mxu0
      %3261 = vmatprep.mubr.bf16.mxu0 %v1495
      %3262 = vmatmul.mubr.bf16.gmra.mrb[0].mxu0 %v1494
      %v3263 = vpop.f32.mrb[0].mxu0
      %v3264 = vadd.f32 0.0, %v3263
      %v3265 = vpop.f32.mrb[0].mxu0
      %v3266 = vpop.f32.mrb[0].mxu0
      %v3267 = vadd.f32 0.0, %v3266
      %v3268 = vpop.f32.mrb[0].mxu0
      %3269 = vmatprep.mubr.bf16.mxu0 %v1497
      %3270 = vmatmul.mubr.bf16.gmra.mrb[0].mxu0 %v1496
      %v3271 = vpop.f32.mrb[0].mxu0
      %v3272 = vadd.f32 0.0, %v3271
      %v3273 = vpop.f32.mrb[0].mxu0
      %v3274 = vpop.f32.mrb[0].mxu0
      %v3275 = vadd.f32 0.0, %v3274
      %v3276 = vpop.f32.mrb[0].mxu0
      %3277 = vmatprep.mubr.bf16.mxu0 %v1499
      %3278 = vmatmul.mubr.bf16.gmra.mrb[0].mxu0 %v1498
      %v3279 = vpop.f32.mrb[0].mxu0
      %v3280 = vadd.f32 0.0, %v3279
      %v3281 = vpop.f32.mrb[0].mxu0
      %v3282 = vpop.f32.mrb[0].mxu0
      %v3283 = vadd.f32 0.0, %v3282
      %v3284 = vpop.f32.mrb[0].mxu0
      %3285 = vmatprep.mubr.bf16.mxu0 %v1501
      %3286 = vmatmul.mubr.bf16.gmra.mrb[0].mxu0 %v1500
      %v3287 = vpop.f32.mrb[0].mxu0
      %v3288 = vadd.f32 0.0, %v3287
      %v3289 = vpop.f32.mrb[0].mxu0
      %v3290 = vpop.f32.mrb[0].mxu0
      %v3291 = vadd.f32 0.0, %v3290
      %v3292 = vpop.f32.mrb[0].mxu0
      %3293 = vmatprep.mubr.bf16.mxu0 %v1503
      %3294 = vmatmul.mubr.bf16.gmra.mrb[0].mxu0 %v1502
      %v3295 = vpop.f32.mrb[0].mxu0
      %v3296 = vadd.f32 0.0, %v3295
      %v3297 = vpop.f32.mrb[0].mxu0
      %v3298 = vpop.f32.mrb[0].mxu0
      %v3299 = vadd.f32 0.0, %v3298
      %v3300 = vpop.f32.mrb[0].mxu0
      %3301 = vmatprep.mubr.bf16.mxu0 %v1505
      %3302 = vmatmul.mubr.bf16.gmra.mrb[0].mxu0 %v1504
      %v3303 = vpop.f32.mrb[0].mxu0
      %v3304 = vadd.f32 0.0, %v3303
      %v3305 = vpop.f32.mrb[0].mxu0
      %v3306 = vpop.f32.mrb[0].mxu0
      %v3307 = vadd.f32 0.0, %v3306
      %v3308 = vpop.f32.mrb[0].mxu0
      %3309 = vmatprep.mubr.bf16.mxu0 %v1507
      %3310 = vmatmul.mubr.bf16.gmra.mrb[0].mxu0 %v1506
      %v3311 = vpop.f32.mrb[0].mxu0
      %v3312 = vadd.f32 0.0, %v3311
      %v3313 = vpop.f32.mrb[0].mxu0
      %v3314 = vpop.f32.mrb[0].mxu0
      %v3315 = vadd.f32 0.0, %v3314
      %v3316 = vpop.f32.mrb[0].mxu0
      %3317 = vmatprep.mubr.bf16.mxu0 %v1509
      %3318 = vmatmul.mubr.bf16.gmra.mrb[0].mxu0 %v1508
      %v3319 = vpop.f32.mrb[0].mxu0
      %v3320 = vadd.f32 0.0, %v3319
      %v3321 = vpop.f32.mrb[0].mxu0
      %v3322 = vpop.f32.mrb[0].mxu0
      %v3323 = vadd.f32 0.0, %v3322
      %v3324 = vpop.f32.mrb[0].mxu0
      %3325 = vmatprep.mubr.bf16.mxu0 %v1511
      %3326 = vmatmul.mubr.bf16.gmra.mrb[0].mxu0 %v1510
      %v3327 = vpop.f32.mrb[0].mxu0
      %v3328 = vadd.f32 0.0, %v3327
      %v3329 = vpop.f32.mrb[0].mxu0
      %v3330 = vpop.f32.mrb[0].mxu0
      %v3331 = vadd.f32 0.0, %v3330
      %v3332 = vpop.f32.mrb[0].mxu0
      %3333 = vmatprep.mubr.bf16.mxu0 %v1513
      %3334 = vmatmul.mubr.bf16.gmra.mrb[0].mxu0 %v1512
      %v3335 = vpop.f32.mrb[0].mxu0
      %v3336 = vadd.f32 0.0, %v3335
      %v3337 = vpop.f32.mrb[0].mxu0
      %v3338 = vpop.f32.mrb[0].mxu0
      %v3339 = vadd.f32 0.0, %v3338
      %v3340 = vpop.f32.mrb[0].mxu0
      %3341 = vmatprep.mubr.bf16.mxu0 %v1515
      %3342 = vmatmul.mubr.bf16.gmra.mrb[0].mxu0 %v1514
      %v3343 = vpop.f32.mrb[0].mxu0
      %v3344 = vadd.f32 0.0, %v3343
      %v3345 = vpop.f32.mrb[0].mxu0
      %v3346 = vpop.f32.mrb[0].mxu0
      %v3347 = vadd.f32 0.0, %v3346
      %v3348 = vpop.f32.mrb[0].mxu0
      %3349 = vmatprep.mubr.bf16.mxu0 %v1517
      %3350 = vmatmul.mubr.bf16.gmra.mrb[0].mxu0 %v1516
      %v3351 = vpop.f32.mrb[0].mxu0
      %v3352 = vadd.f32 0.0, %v3351
      %v3353 = vpop.f32.mrb[0].mxu0
      %v3354 = vpop.f32.mrb[0].mxu0
      %v3355 = vadd.f32 0.0, %v3354
      %v3356 = vpop.f32.mrb[0].mxu0
      %3357 = vmatprep.mubr.bf16.mxu0 %v1519
      %3358 = vmatmul.mubr.bf16.gmra.mrb[0].mxu0 %v1518
      %v3359 = vpop.f32.mrb[0].mxu0
      %v3360 = vadd.f32 0.0, %v3359
      %v3361 = vpop.f32.mrb[0].mxu0
      %v3362 = vpop.f32.mrb[0].mxu0
      %v3363 = vadd.f32 0.0, %v3362
      %v3364 = vpop.f32.mrb[0].mxu0
      %3365 = vmatprep.mubr.bf16.mxu0 %v1521
      %3366 = vmatmul.mubr.bf16.gmra.mrb[0].mxu0 %v1520
      %v3367 = vpop.f32.mrb[0].mxu0
      %v3368 = vadd.f32 0.0, %v3367
      %v3369 = vpop.f32.mrb[0].mxu0
      %v3370 = vpop.f32.mrb[0].mxu0
      %v3371 = vadd.f32 0.0, %v3370
      %v3372 = vpop.f32.mrb[0].mxu0
      %3373 = vmatprep.mubr.bf16.mxu0 %v1523
      %3374 = vmatmul.mubr.bf16.gmra.mrb[0].mxu0 %v1522
      %v3375 = vpop.f32.mrb[0].mxu0
      %v3376 = vadd.f32 0.0, %v3375
      %v3377 = vpop.f32.mrb[0].mxu0
      %v3378 = vpop.f32.mrb[0].mxu0
      %v3379 = vadd.f32 0.0, %v3378
      %v3380 = vpop.f32.mrb[0].mxu0
      %3381 = vmatprep.mubr.bf16.mxu0 %v1525
      %3382 = vmatmul.mubr.bf16.gmra.mrb[0].mxu0 %v1524
      %v3383 = vpop.f32.mrb[0].mxu0
      %v3384 = vadd.f32 0.0, %v3383
      %v3385 = vpop.f32.mrb[0].mxu0
      %v3386 = vpop.f32.mrb[0].mxu0
      %v3387 = vadd.f32 0.0, %v3386
      %v3388 = vpop.f32.mrb[0].mxu0
      %3389 = vmatprep.mubr.bf16.mxu0 %v1527
      %3390 = vmatmul.mubr.bf16.gmra.mrb[0].mxu0 %v1526
      %v3391 = vpop.f32.mrb[0].mxu0
      %v3392 = vadd.f32 0.0, %v3391
      %v3393 = vpop.f32.mrb[0].mxu0
      %v3394 = vpop.f32.mrb[0].mxu0
      %v3395 = vadd.f32 0.0, %v3394
      %v3396 = vpop.f32.mrb[0].mxu0
      %3397 = vmatprep.mubr.bf16.mxu0 %v1529
      %3398 = vmatmul.mubr.bf16.gmra.mrb[0].mxu0 %v1528
      %v3399 = vpop.f32.mrb[0].mxu0
      %v3400 = vadd.f32 0.0, %v3399
      %v3401 = vpop.f32.mrb[0].mxu0
      %v3402 = vpop.f32.mrb[0].mxu0
      %v3403 = vadd.f32 0.0, %v3402
      %v3404 = vpop.f32.mrb[0].mxu0
      %3405 = vmatprep.mubr.bf16.mxu0 %v1531
      %3406 = vmatmul.mubr.bf16.gmra.mrb[0].mxu0 %v1530
      %v3407 = vpop.f32.mrb[0].mxu0
      %v3408 = vadd.f32 0.0, %v3407
      %v3409 = vpop.f32.mrb[0].mxu0
      %v3410 = vpop.f32.mrb[0].mxu0
      %v3411 = vadd.f32 0.0, %v3410
      %v3412 = vpop.f32.mrb[0].mxu0
      %3413 = vmatprep.mubr.bf16.mxu0 %v1533
      %3414 = vmatmul.mubr.bf16.gmra.mrb[0].mxu0 %v1532
      %v3415 = vpop.f32.mrb[0].mxu0
      %v3416 = vadd.f32 0.0, %v3415
      %v3417 = vpop.f32.mrb[0].mxu0
      %v3418 = vpop.f32.mrb[0].mxu0
      %v3419 = vadd.f32 0.0, %v3418
      %v3420 = vpop.f32.mrb[0].mxu0
      %3421 = vmatprep.mubr.bf16.mxu0 %v1535
      %3422 = vmatmul.mubr.bf16.gmra.mrb[0].mxu0 %v1534
      %v3423 = vpop.f32.mrb[0].mxu0
      %v3424 = vadd.f32 0.0, %v3423
      %v3425 = vpop.f32.mrb[0].mxu0
      %v3426 = vpop.f32.mrb[0].mxu0
      %v3427 = vadd.f32 0.0, %v3426
      %v3428 = vpop.f32.mrb[0].mxu0
      %3429 = vmatprep.mubr.bf16.mxu0 %v3019
      %3430 = vmatmul.mubr.bf16.gmra.mrb[0].mxu0 %v3018
      %v3431 = vpop.f32.mrb[0].mxu0
      %v3432 = vadd.f32 0.0, %v3431
      %v3433 = vpop.f32.mrb[0].mxu0
      %v3434 = vpop.f32.mrb[0].mxu0
      %v3435 = vadd.f32 0.0, %v3434
      %v3436 = vpop.f32.mrb[0].mxu0
      %3437 = vdwg.mxu0
      %v3438 = vadd.f32 %v2764, %v3184
      %v3439 = vadd.f32 %v2767, %v3187
      %v3440 = vadd.f32 %v2772, %v3192
      %v3441 = vadd.f32 %v2775, %v3195
      %v3442 = vadd.f32 %v2780, %v3200
      %v3443 = vadd.f32 %v2783, %v3203
      %v3444 = vadd.f32 %v2788, %v3208
      %v3445 = vadd.f32 %v2791, %v3211
      %v3446 = vadd.f32 %v2796, %v3216
      %v3447 = vadd.f32 %v2799, %v3219
      %v3448 = vadd.f32 %v2804, %v3224
      %v3449 = vadd.f32 %v2807, %v3227
      %v3450 = vadd.f32 %v2812, %v3232
      %v3451 = vadd.f32 %v2815, %v3235
      %v3452 = vadd.f32 %v2820, %v3240
      %v3453 = vadd.f32 %v2823, %v3243
      %v3454 = vadd.f32 %v2828, %v3248
      %v3455 = vadd.f32 %v2831, %v3251
      %v3456 = vadd.f32 %v2836, %v3256
      %v3457 = vadd.f32 %v2839, %v3259
      %v3458 = vadd.f32 %v2844, %v3264
      %v3459 = vadd.f32 %v2847, %v3267
      %v3460 = vadd.f32 %v2852, %v3272
      %v3461 = vadd.f32 %v2855, %v3275
      %v3462 = vadd.f32 %v2860, %v3280
      %v3463 = vadd.f32 %v2863, %v3283
      %v3464 = vadd.f32 %v2868, %v3288
      %v3465 = vadd.f32 %v2871, %v3291
      %v3466 = vadd.f32 %v2876, %v3296
      %v3467 = vadd.f32 %v2879, %v3299
      %v3468 = vadd.f32 %v2884, %v3304
      %v3469 = vadd.f32 %v2887, %v3307
      %v3470 = vadd.f32 %v2892, %v3312
      %v3471 = vadd.f32 %v2895, %v3315
      %v3472 = vadd.f32 %v2900, %v3320
      %v3473 = vadd.f32 %v2903, %v3323
      %v3474 = vadd.f32 %v2908, %v3328
      %v3475 = vadd.f32 %v2911, %v3331
      %v3476 = vadd.f32 %v2916, %v3336
      %v3477 = vadd.f32 %v2919, %v3339
      %v3478 = vadd.f32 %v2924, %v3344
      %v3479 = vadd.f32 %v2927, %v3347
      %v3480 = vadd.f32 %v2932, %v3352
      %v3481 = vadd.f32 %v2935, %v3355
      %v3482 = vadd.f32 %v2940, %v3360
      %v3483 = vadd.f32 %v2943, %v3363
      %v3484 = vadd.f32 %v2948, %v3368
      %v3485 = vadd.f32 %v2951, %v3371
      %v3486 = vadd.f32 %v2956, %v3376
      %v3487 = vadd.f32 %v2959, %v3379
      %v3488 = vadd.f32 %v2964, %v3384
      %v3489 = vadd.f32 %v2967, %v3387
      %v3490 = vadd.f32 %v2972, %v3392
      %v3491 = vadd.f32 %v2975, %v3395
      %v3492 = vadd.f32 %v2980, %v3400
      %v3493 = vadd.f32 %v2983, %v3403
      %v3494 = vadd.f32 %v2988, %v3408
      %v3495 = vadd.f32 %v2991, %v3411
      %v3496 = vadd.f32 %v2996, %v3416
      %v3497 = vadd.f32 %v2999, %v3419
      %v3498 = vadd.f32 %v3004, %v3424
      %v3499 = vadd.f32 %v3007, %v3427
      %v3500 = vadd.f32 %v3012, %v3432
      %v3501 = vadd.f32 %v3015, %v3435
      %v3502 = vld [vmem:[#allocation2 + $0x30] sm:$0x80]
      %v3503 = vld [vmem:[#allocation2 + $0x38] sm:$0x80]
      %v3504 = vld [vmem:[#allocation2 + $0x40] sm:$0xff]
      %v3505 = vld [vmem:[#allocation2 + $0x48] sm:$0xff]
      %v3506 = vld [vmem:[#allocation2 + $0x50] sm:$0xff]
      %v3507 = vld [vmem:[#allocation2 + $0x58] sm:$0xff]
      %v3508 = vld [vmem:[#allocation2 + $0x60] sm:$0xff]
      %v3509 = vld [vmem:[#allocation2 + $0x68] sm:$0xff]
      %v3510 = vld [vmem:[#allocation2 + $0x70] sm:$0xff]
      %v3511 = vld [vmem:[#allocation2 + $0x78] sm:$0xff]
      %v3512 = vld [vmem:[#allocation2 + $0x80] sm:$0xff]
      %v3513 = vld [vmem:[#allocation2 + $0x88] sm:$0xff]
      %v3514 = vld [vmem:[#allocation2 + $0x90] sm:$0xff]
      %v3515 = vld [vmem:[#allocation2 + $0x98] sm:$0xff]
      %v3516 = vld [vmem:[#allocation2 + $0xa0] sm:$0xff]
      %v3517 = vld [vmem:[#allocation2 + $0xa8] sm:$0xff]
      %v3518 = vld [vmem:[#allocation2 + $0xb0] sm:$0xff]
      %v3519 = vld [vmem:[#allocation2 + $0xb8] sm:$0xff]
      %v3520 = vld [vmem:[#allocation2 + $0xc0] sm:$0xff]
      %v3521 = vld [vmem:[#allocation2 + $0xc8] sm:$0xff]
      %v3522 = vld [vmem:[#allocation2 + $0xd0] sm:$0xff]
      %v3523 = vld [vmem:[#allocation2 + $0xd8] sm:$0xff]
      %v3524 = vld [vmem:[#allocation2 + $0xe0] sm:$0xff]
      %v3525 = vld [vmem:[#allocation2 + $0xe8] sm:$0xff]
      %v3526 = vld [vmem:[#allocation2 + $0xf0] sm:$0xff]
      %v3527 = vld [vmem:[#allocation2 + $0xf8] sm:$0xff]
      %v3528 = vld [vmem:[#allocation2 + $0x100] sm:$0xff]
      %v3529 = vld [vmem:[#allocation2 + $0x108] sm:$0xff]
      %v3530 = vld [vmem:[#allocation2 + $0x110] sm:$0xff]
      %v3531 = vld [vmem:[#allocation2 + $0x118] sm:$0xff]
      %v3532 = vld [vmem:[#allocation2 + $0x120] sm:$0xff]
      %v3533 = vld [vmem:[#allocation2 + $0x128] sm:$0xff]
      %v3534 = vld [vmem:[#allocation2 + $0x130] sm:$0xff]
      %v3535 = vld [vmem:[#allocation2 + $0x138] sm:$0xff]
      %v3536 = vld [vmem:[#allocation2 + $0x140] sm:$0xff]
      %v3537 = vld [vmem:[#allocation2 + $0x148] sm:$0xff]
      %v3538 = vld [vmem:[#allocation2 + $0x150] sm:$0xff]
      %v3539 = vld [vmem:[#allocation2 + $0x158] sm:$0xff]
      %v3540 = vld [vmem:[#allocation2 + $0x160] sm:$0xff]
      %v3541 = vld [vmem:[#allocation2 + $0x168] sm:$0xff]
      %v3542 = vld [vmem:[#allocation2 + $0x170] sm:$0xff]
      %v3543 = vld [vmem:[#allocation2 + $0x178] sm:$0xff]
      %v3544 = vld [vmem:[#allocation2 + $0x180] sm:$0xff]
      %v3545 = vld [vmem:[#allocation2 + $0x188] sm:$0xff]
      %v3546 = vld [vmem:[#allocation2 + $0x190] sm:$0xff]
      %v3547 = vld [vmem:[#allocation2 + $0x198] sm:$0xff]
      %v3548 = vld [vmem:[#allocation2 + $0x1a0] sm:$0xff]
      %v3549 = vld [vmem:[#allocation2 + $0x1a8] sm:$0xff]
      %v3550 = vld [vmem:[#allocation2 + $0x1b0] sm:$0xff]
      %v3551 = vld [vmem:[#allocation2 + $0x1b8] sm:$0xff]
      %v3552 = vld [vmem:[#allocation2 + $0x1c0] sm:$0xff]
      %v3553 = vld [vmem:[#allocation2 + $0x1c8] sm:$0xff]
      %v3554 = vld [vmem:[#allocation2 + $0x1d0] sm:$0xff]
      %v3555 = vld [vmem:[#allocation2 + $0x1d8] sm:$0xff]
      %v3556 = vld [vmem:[#allocation2 + $0x1e0] sm:$0xff]
      %v3557 = vld [vmem:[#allocation2 + $0x1e8] sm:$0xff]
      %v3558 = vld [vmem:[#allocation2 + $0x1f0] sm:$0xff]
      %v3559 = vld [vmem:[#allocation2 + $0x1f8] sm:$0xff]
      %v3560 = vld [vmem:[#allocation2 + $0x200] sm:$0xff]
      %v3561 = vld [vmem:[#allocation2 + $0x208] sm:$0xff]
      %v3562 = vld [vmem:[#allocation2 + $0x210] sm:$0xff]
      %v3563 = vld [vmem:[#allocation2 + $0x218] sm:$0xff]
      %v3564 = vld [vmem:[#allocation2 + $0x220] sm:$0xff]
      %v3565 = vld [vmem:[#allocation2 + $0x228] sm:$0xff]
      %v3566 = vld [vmem:[#allocation2 + $0x230] sm:$0x7f]
      %v3567 = vld [vmem:[#allocation2 + $0x238] sm:$0x7f]
      %s3568 = scalar_lea.vmem %s1, 384
      %v3569 = vld [vmem:[%s3568] sm:$0xf]
      %v3570 = vld [vmem:[%s3568 + $0x4] sm:$0xf]
      %v3571 = vld [vmem:[%s3568 + $0x8] sm:$0xf]
      %v3572 = vld [vmem:[%s3568 + $0xc] sm:$0xf]
      %v3573 = vld [vmem:[%s3568 + $0x10] sm:$0xf]
      %v3574 = vld [vmem:[%s3568 + $0x14] sm:$0xf]
      %v3575 = vld [vmem:[%s3568 + $0x18] sm:$0xf]
      %v3576 = vld [vmem:[%s3568 + $0x1c] sm:$0xf]
      %v3577 = vld [vmem:[%s3568 + $0x20] sm:$0xf]
      %v3578 = vld [vmem:[%s3568 + $0x24] sm:$0xf]
      %v3579 = vld [vmem:[%s3568 + $0x28] sm:$0xf]
      %v3580 = vld [vmem:[%s3568 + $0x2c] sm:$0xf]
      %v3581 = vld [vmem:[%s3568 + $0x30] sm:$0xf]
      %v3582 = vld [vmem:[%s3568 + $0x34] sm:$0xf]
      %v3583 = vld [vmem:[%s3568 + $0x38] sm:$0xf]
      %v3584 = vld [vmem:[%s3568 + $0x3c] sm:$0xf]
      %v3585 = vld [vmem:[%s3568 + $0x40] sm:$0xf]
      %v3586 = vld [vmem:[%s3568 + $0x44] sm:$0xf]
      %v3587 = vld [vmem:[%s3568 + $0x48] sm:$0xf]
      %v3588 = vld [vmem:[%s3568 + $0x4c] sm:$0xf]
      %v3589 = vld [vmem:[%s3568 + $0x50] sm:$0xf]
      %v3590 = vld [vmem:[%s3568 + $0x54] sm:$0xf]
      %v3591 = vld [vmem:[%s3568 + $0x58] sm:$0xf]
      %v3592 = vld [vmem:[%s3568 + $0x5c] sm:$0xf]
      %v3593 = vld [vmem:[%s3568 + $0x60] sm:$0xf]
      %v3594 = vld [vmem:[%s3568 + $0x64] sm:$0xf]
      %v3595 = vld [vmem:[%s3568 + $0x68] sm:$0xf]
      %v3596 = vld [vmem:[%s3568 + $0x6c] sm:$0xf]
      %v3597 = vld [vmem:[%s3568 + $0x70] sm:$0xf]
      %v3598 = vld [vmem:[%s3568 + $0x74] sm:$0xf]
      %v3599 = vld [vmem:[%s3568 + $0x78] sm:$0xf]
      %v3600 = vld [vmem:[%s3568 + $0x7c] sm:$0xf]
      %v3667 = vrot.slane %v3502, 7
      %v3668 = vrot.slane %v3504, 7
      %v3669 = vsel %vm2438, %v3667, %v3668
      %v3670 = vrot.slane %v3503, 7
      %v3671 = vrot.slane %v3505, 7
      %v3672 = vsel %vm2438, %v3670, %v3671
      %v3673 = vrot.slane %v3506, 7
      %v3674 = vsel %vm2438, %v3668, %v3673
      %v3675 = vrot.slane %v3507, 7
      %v3676 = vsel %vm2438, %v3671, %v3675
      %v3677 = vrot.slane %v3508, 7
      %v3678 = vsel %vm2438, %v3673, %v3677
      %v3679 = vrot.slane %v3509, 7
      %v3680 = vsel %vm2438, %v3675, %v3679
      %v3681 = vrot.slane %v3510, 7
      %v3682 = vsel %vm2438, %v3677, %v3681
      %v3683 = vrot.slane %v3511, 7
      %v3684 = vsel %vm2438, %v3679, %v3683
      %v3685 = vrot.slane %v3512, 7
      %v3686 = vsel %vm2438, %v3681, %v3685
      %v3687 = vrot.slane %v3513, 7
      %v3688 = vsel %vm2438, %v3683, %v3687
      %v3689 = vrot.slane %v3514, 7
      %v3690 = vsel %vm2438, %v3685, %v3689
      %v3691 = vrot.slane %v3515, 7
      %v3692 = vsel %vm2438, %v3687, %v3691
      %v3693 = vrot.slane %v3516, 7
      %v3694 = vsel %vm2438, %v3689, %v3693
      %v3695 = vrot.slane %v3517, 7
      %v3696 = vsel %vm2438, %v3691, %v3695
      %v3697 = vrot.slane %v3518, 7
      %v3698 = vsel %vm2438, %v3693, %v3697
      %v3699 = vrot.slane %v3519, 7
      %v3700 = vsel %vm2438, %v3695, %v3699
      %v3701 = vrot.slane %v3520, 7
      %v3702 = vsel %vm2438, %v3697, %v3701
      %v3703 = vrot.slane %v3521, 7
      %v3704 = vsel %vm2438, %v3699, %v3703
      %v3705 = vrot.slane %v3522, 7
      %v3706 = vsel %vm2438, %v3701, %v3705
      %v3707 = vrot.slane %v3523, 7
      %v3708 = vsel %vm2438, %v3703, %v3707
      %v3709 = vrot.slane %v3524, 7
      %v3710 = vsel %vm2438, %v3705, %v3709
      %v3711 = vrot.slane %v3525, 7
      %v3712 = vsel %vm2438, %v3707, %v3711
      %v3713 = vrot.slane %v3526, 7
      %v3714 = vsel %vm2438, %v3709, %v3713
      %v3715 = vrot.slane %v3527, 7
      %v3716 = vsel %vm2438, %v3711, %v3715
      %v3717 = vrot.slane %v3528, 7
      %v3718 = vsel %vm2438, %v3713, %v3717
      %v3719 = vrot.slane %v3529, 7
      %v3720 = vsel %vm2438, %v3715, %v3719
      %v3721 = vrot.slane %v3530, 7
      %v3722 = vsel %vm2438, %v3717, %v3721
      %v3723 = vrot.slane %v3531, 7
      %v3724 = vsel %vm2438, %v3719, %v3723
      %v3725 = vrot.slane %v3532, 7
      %v3726 = vsel %vm2438, %v3721, %v3725
      %v3727 = vrot.slane %v3533, 7
      %v3728 = vsel %vm2438, %v3723, %v3727
      %v3729 = vrot.slane %v3534, 7
      %v3730 = vsel %vm2438, %v3725, %v3729
      %v3731 = vrot.slane %v3535, 7
      %v3732 = vsel %vm2438, %v3727, %v3731
      %v3733 = vrot.slane %v3536, 7
      %v3734 = vsel %vm2438, %v3729, %v3733
      %v3735 = vrot.slane %v3537, 7
      %v3736 = vsel %vm2438, %v3731, %v3735
      %v3737 = vrot.slane %v3538, 7
      %v3738 = vsel %vm2438, %v3733, %v3737
      %v3739 = vrot.slane %v3539, 7
      %v3740 = vsel %vm2438, %v3735, %v3739
      %v3741 = vrot.slane %v3540, 7
      %v3742 = vsel %vm2438, %v3737, %v3741
      %v3743 = vrot.slane %v3541, 7
      %v3744 = vsel %vm2438, %v3739, %v3743
      %v3745 = vrot.slane %v3542, 7
      %v3746 = vsel %vm2438, %v3741, %v3745
      %v3747 = vrot.slane %v3543, 7
      %v3748 = vsel %vm2438, %v3743, %v3747
      %v3749 = vrot.slane %v3544, 7
      %v3750 = vsel %vm2438, %v3745, %v3749
      %v3751 = vrot.slane %v3545, 7
      %v3752 = vsel %vm2438, %v3747, %v3751
      %v3753 = vrot.slane %v3546, 7
      %v3754 = vsel %vm2438, %v3749, %v3753
      %v3755 = vrot.slane %v3547, 7
      %v3756 = vsel %vm2438, %v3751, %v3755
      %v3757 = vrot.slane %v3548, 7
      %v3758 = vsel %vm2438, %v3753, %v3757
      %v3759 = vrot.slane %v3549, 7
      %v3760 = vsel %vm2438, %v3755, %v3759
      %v3761 = vrot.slane %v3550, 7
      %v3762 = vsel %vm2438, %v3757, %v3761
      %v3763 = vrot.slane %v3551, 7
      %v3764 = vsel %vm2438, %v3759, %v3763
      %v3765 = vrot.slane %v3552, 7
      %v3766 = vsel %vm2438, %v3761, %v3765
      %v3767 = vrot.slane %v3553, 7
      %v3768 = vsel %vm2438, %v3763, %v3767
      %v3769 = vrot.slane %v3554, 7
      %v3770 = vsel %vm2438, %v3765, %v3769
      %v3771 = vrot.slane %v3555, 7
      %v3772 = vsel %vm2438, %v3767, %v3771
      %v3773 = vrot.slane %v3556, 7
      %v3774 = vsel %vm2438, %v3769, %v3773
      %v3775 = vrot.slane %v3557, 7
      %v3776 = vsel %vm2438, %v3771, %v3775
      %v3777 = vrot.slane %v3558, 7
      %v3778 = vsel %vm2438, %v3773, %v3777
      %v3779 = vrot.slane %v3559, 7
      %v3780 = vsel %vm2438, %v3775, %v3779
      %v3781 = vrot.slane %v3560, 7
      %v3782 = vsel %vm2438, %v3777, %v3781
      %v3783 = vrot.slane %v3561, 7
      %v3784 = vsel %vm2438, %v3779, %v3783
      %v3785 = vrot.slane %v3562, 7
      %v3786 = vsel %vm2438, %v3781, %v3785
      %v3787 = vrot.slane %v3563, 7
      %v3788 = vsel %vm2438, %v3783, %v3787
      %v3789 = vrot.slane %v3564, 7
      %v3790 = vsel %vm2438, %v3785, %v3789
      %v3791 = vrot.slane %v3565, 7
      %v3792 = vsel %vm2438, %v3787, %v3791
      %v3793 = vrot.slane %v3566, 7
      %v3794 = vsel %vm2438, %v3789, %v3793
      %v3795 = vrot.slane %v3567, 7
      %v3796 = vsel %vm2438, %v3791, %v3795
      %v3893 = vunpack.c.l.b16 %v3569
      %v3894 = vunpack.c.l.b16 %v3570
      %v3895 = vunpack.c.l.b16 %v3571
      %v3896 = vunpack.c.l.b16 %v3572
      %v3897 = vunpack.c.l.b16 %v3573
      %v3898 = vunpack.c.l.b16 %v3574
      %v3899 = vunpack.c.l.b16 %v3575
      %v3900 = vunpack.c.l.b16 %v3576
      %v3901 = vunpack.c.l.b16 %v3577
      %v3902 = vunpack.c.l.b16 %v3578
      %v3903 = vunpack.c.l.b16 %v3579
      %v3904 = vunpack.c.l.b16 %v3580
      %v3905 = vunpack.c.l.b16 %v3581
      %v3906 = vunpack.c.l.b16 %v3582
      %v3907 = vunpack.c.l.b16 %v3583
      %v3908 = vunpack.c.l.b16 %v3584
      %v3909 = vunpack.c.l.b16 %v3585
      %v3910 = vunpack.c.l.b16 %v3586
      %v3911 = vunpack.c.l.b16 %v3587
      %v3912 = vunpack.c.l.b16 %v3588
      %v3913 = vunpack.c.l.b16 %v3589
      %v3914 = vunpack.c.l.b16 %v3590
      %v3915 = vunpack.c.l.b16 %v3591
      %v3916 = vunpack.c.l.b16 %v3592
      %v3917 = vunpack.c.l.b16 %v3593
      %v3918 = vunpack.c.l.b16 %v3594
      %v3919 = vunpack.c.l.b16 %v3595
      %v3920 = vunpack.c.l.b16 %v3596
      %v3921 = vunpack.c.l.b16 %v3597
      %v3922 = vunpack.c.l.b16 %v3598
      %v3923 = vunpack.c.l.b16 %v3599
      %v3924 = vunpack.c.l.b16 %v3600
      %v3925 = vpack.c.b16 %v3894, %v3893
      %v3926 = vpack.c.b16 %v3896, %v3895
      %v3927 = vpack.c.b16 %v3898, %v3897
      %v3928 = vpack.c.b16 %v3900, %v3899
      %v3929 = vpack.c.b16 %v3902, %v3901
      %v3930 = vpack.c.b16 %v3904, %v3903
      %v3931 = vpack.c.b16 %v3906, %v3905
      %v3932 = vpack.c.b16 %v3908, %v3907
      %v3933 = vpack.c.b16 %v3910, %v3909
      %v3934 = vpack.c.b16 %v3912, %v3911
      %v3935 = vpack.c.b16 %v3914, %v3913
      %v3936 = vpack.c.b16 %v3916, %v3915
      %v3937 = vpack.c.b16 %v3918, %v3917
      %v3938 = vpack.c.b16 %v3920, %v3919
      %v3939 = vpack.c.b16 %v3922, %v3921
      %v3940 = vpack.c.b16 %v3924, %v3923
      %3957 = vmatprep.subr.bf16.mxu0 0
      %3958 = vmatpush1.bf16.msra.mxu0 %v3925
      %3959 = vmatprep.subr.bf16.mxu0 0
      %3960 = vmatpush1.bf16.msra.mxu0 %v3926
      %3961 = vmatprep.subr.bf16.mxu0 0
      %3962 = vmatpush1.bf16.msra.mxu0 %v3927
      %3963 = vmatprep.subr.bf16.mxu0 0
      %3964 = vmatpush1.bf16.msra.mxu0 %v3928
      %3965 = vmatprep.subr.bf16.mxu0 0
      %3966 = vmatpush1.bf16.msra.mxu0 %v3929
      %3967 = vmatprep.subr.bf16.mxu0 0
      %3968 = vmatpush1.bf16.msra.mxu0 %v3930
      %3969 = vmatprep.subr.bf16.mxu0 0
      %3970 = vmatpush1.bf16.msra.mxu0 %v3931
      %3971 = vmatprep.subr.bf16.mxu0 0
      %3972 = vmatpush1.bf16.msra.mxu0 %v3932
      %3973 = vmatprep.subr.bf16.mxu0 0
      %3974 = vmatpush1.bf16.msra.mxu0 %v3933
      %3975 = vmatprep.subr.bf16.mxu0 0
      %3976 = vmatpush1.bf16.msra.mxu0 %v3934
      %3977 = vmatprep.subr.bf16.mxu0 0
      %3978 = vmatpush1.bf16.msra.mxu0 %v3935
      %3979 = vmatprep.subr.bf16.mxu0 0
      %3980 = vmatpush1.bf16.msra.mxu0 %v3936
      %3981 = vmatprep.subr.bf16.mxu0 0
      %3982 = vmatpush1.bf16.msra.mxu0 %v3937
      %3983 = vmatprep.subr.bf16.mxu0 0
      %3984 = vmatpush1.bf16.msra.mxu0 %v3938
      %3985 = vmatprep.subr.bf16.mxu0 0
      %3986 = vmatpush1.bf16.msra.mxu0 %v3939
      %3987 = vmatprep.subr.bf16.mxu0 0
      %3988 = vmatpush1.bf16.msra.mxu0 %v3940
      %3989 = vmatprep.mubr.bf16.mxu0 %v3672
      %3990 = vmatmul.mubr.bf16.gmra.mrb[0].mxu0 %v3669
      %v3991 = vpop.f32.mrb[0].mxu0
      %v3992 = vadd.f32 0.0, %v3991
      %v3993 = vpop.f32.mrb[0].mxu0
      %v3994 = vpop.f32.mrb[0].mxu0
      %v3995 = vadd.f32 0.0, %v3994
      %v3996 = vpop.f32.mrb[0].mxu0
      %3997 = vmatprep.mubr.bf16.mxu0 %v3676
      %3998 = vmatmul.mubr.bf16.gmra.mrb[0].mxu0 %v3674
      %v3999 = vpop.f32.mrb[0].mxu0
      %v4000 = vadd.f32 0.0, %v3999
      %v4001 = vpop.f32.mrb[0].mxu0
      %v4002 = vpop.f32.mrb[0].mxu0
      %v4003 = vadd.f32 0.0, %v4002
      %v4004 = vpop.f32.mrb[0].mxu0
      %4005 = vmatprep.mubr.bf16.mxu0 %v3680
      %4006 = vmatmul.mubr.bf16.gmra.mrb[0].mxu0 %v3678
      %v4007 = vpop.f32.mrb[0].mxu0
      %v4008 = vadd.f32 0.0, %v4007
      %v4009 = vpop.f32.mrb[0].mxu0
      %v4010 = vpop.f32.mrb[0].mxu0
      %v4011 = vadd.f32 0.0, %v4010
      %v4012 = vpop.f32.mrb[0].mxu0
      %4013 = vmatprep.mubr.bf16.mxu0 %v3684
      %4014 = vmatmul.mubr.bf16.gmra.mrb[0].mxu0 %v3682
      %v4015 = vpop.f32.mrb[0].mxu0
      %v4016 = vadd.f32 0.0, %v4015
      %v4017 = vpop.f32.mrb[0].mxu0
      %v4018 = vpop.f32.mrb[0].mxu0
      %v4019 = vadd.f32 0.0, %v4018
      %v4020 = vpop.f32.mrb[0].mxu0
      %4021 = vmatprep.mubr.bf16.mxu0 %v3688
      %4022 = vmatmul.mubr.bf16.gmra.mrb[0].mxu0 %v3686
      %v4023 = vpop.f32.mrb[0].mxu0
      %v4024 = vadd.f32 0.0, %v4023
      %v4025 = vpop.f32.mrb[0].mxu0
      %v4026 = vpop.f32.mrb[0].mxu0
      %v4027 = vadd.f32 0.0, %v4026
      %v4028 = vpop.f32.mrb[0].mxu0
      %4029 = vmatprep.mubr.bf16.mxu0 %v3692
      %4030 = vmatmul.mubr.bf16.gmra.mrb[0].mxu0 %v3690
      %v4031 = vpop.f32.mrb[0].mxu0
      %v4032 = vadd.f32 0.0, %v4031
      %v4033 = vpop.f32.mrb[0].mxu0
      %v4034 = vpop.f32.mrb[0].mxu0
      %v4035 = vadd.f32 0.0, %v4034
      %v4036 = vpop.f32.mrb[0].mxu0
      %4037 = vmatprep.mubr.bf16.mxu0 %v3696
      %4038 = vmatmul.mubr.bf16.gmra.mrb[0].mxu0 %v3694
      %v4039 = vpop.f32.mrb[0].mxu0
      %v4040 = vadd.f32 0.0, %v4039
      %v4041 = vpop.f32.mrb[0].mxu0
      %v4042 = vpop.f32.mrb[0].mxu0
      %v4043 = vadd.f32 0.0, %v4042
      %v4044 = vpop.f32.mrb[0].mxu0
      %4045 = vmatprep.mubr.bf16.mxu0 %v3700
      %4046 = vmatmul.mubr.bf16.gmra.mrb[0].mxu0 %v3698
      %v4047 = vpop.f32.mrb[0].mxu0
      %v4048 = vadd.f32 0.0, %v4047
      %v4049 = vpop.f32.mrb[0].mxu0
      %v4050 = vpop.f32.mrb[0].mxu0
      %v4051 = vadd.f32 0.0, %v4050
      %v4052 = vpop.f32.mrb[0].mxu0
      %4053 = vmatprep.mubr.bf16.mxu0 %v3704
      %4054 = vmatmul.mubr.bf16.gmra.mrb[0].mxu0 %v3702
      %v4055 = vpop.f32.mrb[0].mxu0
      %v4056 = vadd.f32 0.0, %v4055
      %v4057 = vpop.f32.mrb[0].mxu0
      %v4058 = vpop.f32.mrb[0].mxu0
      %v4059 = vadd.f32 0.0, %v4058
      %v4060 = vpop.f32.mrb[0].mxu0
      %4061 = vmatprep.mubr.bf16.mxu0 %v3708
      %4062 = vmatmul.mubr.bf16.gmra.mrb[0].mxu0 %v3706
      %v4063 = vpop.f32.mrb[0].mxu0
      %v4064 = vadd.f32 0.0, %v4063
      %v4065 = vpop.f32.mrb[0].mxu0
      %v4066 = vpop.f32.mrb[0].mxu0
      %v4067 = vadd.f32 0.0, %v4066
      %v4068 = vpop.f32.mrb[0].mxu0
      %4069 = vmatprep.mubr.bf16.mxu0 %v3712
      %4070 = vmatmul.mubr.bf16.gmra.mrb[0].mxu0 %v3710
      %v4071 = vpop.f32.mrb[0].mxu0
      %v4072 = vadd.f32 0.0, %v4071
      %v4073 = vpop.f32.mrb[0].mxu0
      %v4074 = vpop.f32.mrb[0].mxu0
      %v4075 = vadd.f32 0.0, %v4074
      %v4076 = vpop.f32.mrb[0].mxu0
      %4077 = vmatprep.mubr.bf16.mxu0 %v3716
      %4078 = vmatmul.mubr.bf16.gmra.mrb[0].mxu0 %v3714
      %v4079 = vpop.f32.mrb[0].mxu0
      %v4080 = vadd.f32 0.0, %v4079
      %v4081 = vpop.f32.mrb[0].mxu0
      %v4082 = vpop.f32.mrb[0].mxu0
      %v4083 = vadd.f32 0.0, %v4082
      %v4084 = vpop.f32.mrb[0].mxu0
      %4085 = vmatprep.mubr.bf16.mxu0 %v3720
      %4086 = vmatmul.mubr.bf16.gmra.mrb[0].mxu0 %v3718
      %v4087 = vpop.f32.mrb[0].mxu0
      %v4088 = vadd.f32 0.0, %v4087
      %v4089 = vpop.f32.mrb[0].mxu0
      %v4090 = vpop.f32.mrb[0].mxu0
      %v4091 = vadd.f32 0.0, %v4090
      %v4092 = vpop.f32.mrb[0].mxu0
      %4093 = vmatprep.mubr.bf16.mxu0 %v3724
      %4094 = vmatmul.mubr.bf16.gmra.mrb[0].mxu0 %v3722
      %v4095 = vpop.f32.mrb[0].mxu0
      %v4096 = vadd.f32 0.0, %v4095
      %v4097 = vpop.f32.mrb[0].mxu0
      %v4098 = vpop.f32.mrb[0].mxu0
      %v4099 = vadd.f32 0.0, %v4098
      %v4100 = vpop.f32.mrb[0].mxu0
      %4101 = vmatprep.mubr.bf16.mxu0 %v3728
      %4102 = vmatmul.mubr.bf16.gmra.mrb[0].mxu0 %v3726
      %v4103 = vpop.f32.mrb[0].mxu0
      %v4104 = vadd.f32 0.0, %v4103
      %v4105 = vpop.f32.mrb[0].mxu0
      %v4106 = vpop.f32.mrb[0].mxu0
      %v4107 = vadd.f32 0.0, %v4106
      %v4108 = vpop.f32.mrb[0].mxu0
      %4109 = vmatprep.mubr.bf16.mxu0 %v3732
      %4110 = vmatmul.mubr.bf16.gmra.mrb[0].mxu0 %v3730
      %v4111 = vpop.f32.mrb[0].mxu0
      %v4112 = vadd.f32 0.0, %v4111
      %v4113 = vpop.f32.mrb[0].mxu0
      %v4114 = vpop.f32.mrb[0].mxu0
      %v4115 = vadd.f32 0.0, %v4114
      %v4116 = vpop.f32.mrb[0].mxu0
      %4117 = vmatprep.mubr.bf16.mxu0 %v3736
      %4118 = vmatmul.mubr.bf16.gmra.mrb[0].mxu0 %v3734
      %v4119 = vpop.f32.mrb[0].mxu0
      %v4120 = vadd.f32 0.0, %v4119
      %v4121 = vpop.f32.mrb[0].mxu0
      %v4122 = vpop.f32.mrb[0].mxu0
      %v4123 = vadd.f32 0.0, %v4122
      %v4124 = vpop.f32.mrb[0].mxu0
      %4125 = vmatprep.mubr.bf16.mxu0 %v3740
      %4126 = vmatmul.mubr.bf16.gmra.mrb[0].mxu0 %v3738
      %v4127 = vpop.f32.mrb[0].mxu0
      %v4128 = vadd.f32 0.0, %v4127
      %v4129 = vpop.f32.mrb[0].mxu0
      %v4130 = vpop.f32.mrb[0].mxu0
      %v4131 = vadd.f32 0.0, %v4130
      %v4132 = vpop.f32.mrb[0].mxu0
      %4133 = vmatprep.mubr.bf16.mxu0 %v3744
      %4134 = vmatmul.mubr.bf16.gmra.mrb[0].mxu0 %v3742
      %v4135 = vpop.f32.mrb[0].mxu0
      %v4136 = vadd.f32 0.0, %v4135
      %v4137 = vpop.f32.mrb[0].mxu0
      %v4138 = vpop.f32.mrb[0].mxu0
      %v4139 = vadd.f32 0.0, %v4138
      %v4140 = vpop.f32.mrb[0].mxu0
      %4141 = vmatprep.mubr.bf16.mxu0 %v3748
      %4142 = vmatmul.mubr.bf16.gmra.mrb[0].mxu0 %v3746
      %v4143 = vpop.f32.mrb[0].mxu0
      %v4144 = vadd.f32 0.0, %v4143
      %v4145 = vpop.f32.mrb[0].mxu0
      %v4146 = vpop.f32.mrb[0].mxu0
      %v4147 = vadd.f32 0.0, %v4146
      %v4148 = vpop.f32.mrb[0].mxu0
      %4149 = vmatprep.mubr.bf16.mxu0 %v3752
      %4150 = vmatmul.mubr.bf16.gmra.mrb[0].mxu0 %v3750
      %v4151 = vpop.f32.mrb[0].mxu0
      %v4152 = vadd.f32 0.0, %v4151
      %v4153 = vpop.f32.mrb[0].mxu0
      %v4154 = vpop.f32.mrb[0].mxu0
      %v4155 = vadd.f32 0.0, %v4154
      %v4156 = vpop.f32.mrb[0].mxu0
      %4157 = vmatprep.mubr.bf16.mxu0 %v3756
      %4158 = vmatmul.mubr.bf16.gmra.mrb[0].mxu0 %v3754
      %v4159 = vpop.f32.mrb[0].mxu0
      %v4160 = vadd.f32 0.0, %v4159
      %v4161 = vpop.f32.mrb[0].mxu0
      %v4162 = vpop.f32.mrb[0].mxu0
      %v4163 = vadd.f32 0.0, %v4162
      %v4164 = vpop.f32.mrb[0].mxu0
      %4165 = vmatprep.mubr.bf16.mxu0 %v3760
      %4166 = vmatmul.mubr.bf16.gmra.mrb[0].mxu0 %v3758
      %v4167 = vpop.f32.mrb[0].mxu0
      %v4168 = vadd.f32 0.0, %v4167
      %v4169 = vpop.f32.mrb[0].mxu0
      %v4170 = vpop.f32.mrb[0].mxu0
      %v4171 = vadd.f32 0.0, %v4170
      %v4172 = vpop.f32.mrb[0].mxu0
      %4173 = vmatprep.mubr.bf16.mxu0 %v3764
      %4174 = vmatmul.mubr.bf16.gmra.mrb[0].mxu0 %v3762
      %v4175 = vpop.f32.mrb[0].mxu0
      %v4176 = vadd.f32 0.0, %v4175
      %v4177 = vpop.f32.mrb[0].mxu0
      %v4178 = vpop.f32.mrb[0].mxu0
      %v4179 = vadd.f32 0.0, %v4178
      %v4180 = vpop.f32.mrb[0].mxu0
      %4181 = vmatprep.mubr.bf16.mxu0 %v3768
      %4182 = vmatmul.mubr.bf16.gmra.mrb[0].mxu0 %v3766
      %v4183 = vpop.f32.mrb[0].mxu0
      %v4184 = vadd.f32 0.0, %v4183
      %v4185 = vpop.f32.mrb[0].mxu0
      %v4186 = vpop.f32.mrb[0].mxu0
      %v4187 = vadd.f32 0.0, %v4186
      %v4188 = vpop.f32.mrb[0].mxu0
      %4189 = vmatprep.mubr.bf16.mxu0 %v3772
      %4190 = vmatmul.mubr.bf16.gmra.mrb[0].mxu0 %v3770
      %v4191 = vpop.f32.mrb[0].mxu0
      %v4192 = vadd.f32 0.0, %v4191
      %v4193 = vpop.f32.mrb[0].mxu0
      %v4194 = vpop.f32.mrb[0].mxu0
      %v4195 = vadd.f32 0.0, %v4194
      %v4196 = vpop.f32.mrb[0].mxu0
      %4197 = vmatprep.mubr.bf16.mxu0 %v3776
      %4198 = vmatmul.mubr.bf16.gmra.mrb[0].mxu0 %v3774
      %v4199 = vpop.f32.mrb[0].mxu0
      %v4200 = vadd.f32 0.0, %v4199
      %v4201 = vpop.f32.mrb[0].mxu0
      %v4202 = vpop.f32.mrb[0].mxu0
      %v4203 = vadd.f32 0.0, %v4202
      %v4204 = vpop.f32.mrb[0].mxu0
      %4205 = vmatprep.mubr.bf16.mxu0 %v3780
      %4206 = vmatmul.mubr.bf16.gmra.mrb[0].mxu0 %v3778
      %v4207 = vpop.f32.mrb[0].mxu0
      %v4208 = vadd.f32 0.0, %v4207
      %v4209 = vpop.f32.mrb[0].mxu0
      %v4210 = vpop.f32.mrb[0].mxu0
      %v4211 = vadd.f32 0.0, %v4210
      %v4212 = vpop.f32.mrb[0].mxu0
      %4213 = vmatprep.mubr.bf16.mxu0 %v3784
      %4214 = vmatmul.mubr.bf16.gmra.mrb[0].mxu0 %v3782
      %v4215 = vpop.f32.mrb[0].mxu0
      %v4216 = vadd.f32 0.0, %v4215
      %v4217 = vpop.f32.mrb[0].mxu0
      %v4218 = vpop.f32.mrb[0].mxu0
      %v4219 = vadd.f32 0.0, %v4218
      %v4220 = vpop.f32.mrb[0].mxu0
      %4221 = vmatprep.mubr.bf16.mxu0 %v3788
      %4222 = vmatmul.mubr.bf16.gmra.mrb[0].mxu0 %v3786
      %v4223 = vpop.f32.mrb[0].mxu0
      %v4224 = vadd.f32 0.0, %v4223
      %v4225 = vpop.f32.mrb[0].mxu0
      %v4226 = vpop.f32.mrb[0].mxu0
      %v4227 = vadd.f32 0.0, %v4226
      %v4228 = vpop.f32.mrb[0].mxu0
      %4229 = vmatprep.mubr.bf16.mxu0 %v3792
      %4230 = vmatmul.mubr.bf16.gmra.mrb[0].mxu0 %v3790
      %v4231 = vpop.f32.mrb[0].mxu0
      %v4232 = vadd.f32 0.0, %v4231
      %v4233 = vpop.f32.mrb[0].mxu0
      %v4234 = vpop.f32.mrb[0].mxu0
      %v4235 = vadd.f32 0.0, %v4234
      %v4236 = vpop.f32.mrb[0].mxu0
      %4237 = vmatprep.mubr.bf16.mxu0 %v3796
      %4238 = vmatmul.mubr.bf16.gmra.mrb[0].mxu0 %v3794
      %v4239 = vpop.f32.mrb[0].mxu0
      %v4240 = vadd.f32 0.0, %v4239
      %v4241 = vpop.f32.mrb[0].mxu0
      %v4242 = vpop.f32.mrb[0].mxu0
      %v4243 = vadd.f32 0.0, %v4242
      %v4244 = vpop.f32.mrb[0].mxu0
      %4245 = vdwg.mxu0
      %v4246 = vadd.f32 %v3438, %v3992
      %v4247 = vadd.f32 %v3439, %v3995
      %v4248 = vadd.f32 %v3440, %v4000
      %v4249 = vadd.f32 %v3441, %v4003
      %v4250 = vadd.f32 %v3442, %v4008
      %v4251 = vadd.f32 %v3443, %v4011
      %v4252 = vadd.f32 %v3444, %v4016
      %v4253 = vadd.f32 %v3445, %v4019
      %v4254 = vadd.f32 %v3446, %v4024
      %v4255 = vadd.f32 %v3447, %v4027
      %v4256 = vadd.f32 %v3448, %v4032
      %v4257 = vadd.f32 %v3449, %v4035
      %v4258 = vadd.f32 %v3450, %v4040
      %v4259 = vadd.f32 %v3451, %v4043
      %v4260 = vadd.f32 %v3452, %v4048
      %v4261 = vadd.f32 %v3453, %v4051
      %v4262 = vadd.f32 %v3454, %v4056
      %v4263 = vadd.f32 %v3455, %v4059
      %v4264 = vadd.f32 %v3456, %v4064
      %v4265 = vadd.f32 %v3457, %v4067
      %v4266 = vadd.f32 %v3458, %v4072
      %v4267 = vadd.f32 %v3459, %v4075
      %v4268 = vadd.f32 %v3460, %v4080
      %v4269 = vadd.f32 %v3461, %v4083
      %v4270 = vadd.f32 %v3462, %v4088
      %v4271 = vadd.f32 %v3463, %v4091
      %v4272 = vadd.f32 %v3464, %v4096
      %v4273 = vadd.f32 %v3465, %v4099
      %v4274 = vadd.f32 %v3466, %v4104
      %v4275 = vadd.f32 %v3467, %v4107
      %v4276 = vadd.f32 %v3468, %v4112
      %v4277 = vadd.f32 %v3469, %v4115
      %v4278 = vadd.f32 %v3470, %v4120
      %v4279 = vadd.f32 %v3471, %v4123
      %v4280 = vadd.f32 %v3472, %v4128
      %v4281 = vadd.f32 %v3473, %v4131
      %v4282 = vadd.f32 %v3474, %v4136
      %v4283 = vadd.f32 %v3475, %v4139
      %v4284 = vadd.f32 %v3476, %v4144
      %v4285 = vadd.f32 %v3477, %v4147
      %v4286 = vadd.f32 %v3478, %v4152
      %v4287 = vadd.f32 %v3479, %v4155
      %v4288 = vadd.f32 %v3480, %v4160
      %v4289 = vadd.f32 %v3481, %v4163
      %v4290 = vadd.f32 %v3482, %v4168
      %v4291 = vadd.f32 %v3483, %v4171
      %v4292 = vadd.f32 %v3484, %v4176
      %v4293 = vadd.f32 %v3485, %v4179
      %v4294 = vadd.f32 %v3486, %v4184
      %v4295 = vadd.f32 %v3487, %v4187
      %v4296 = vadd.f32 %v3488, %v4192
      %v4297 = vadd.f32 %v3489, %v4195
      %v4298 = vadd.f32 %v3490, %v4200
      %v4299 = vadd.f32 %v3491, %v4203
      %v4300 = vadd.f32 %v3492, %v4208
      %v4301 = vadd.f32 %v3493, %v4211
      %v4302 = vadd.f32 %v3494, %v4216
      %v4303 = vadd.f32 %v3495, %v4219
      %v4304 = vadd.f32 %v3496, %v4224
      %v4305 = vadd.f32 %v3497, %v4227
      %v4306 = vadd.f32 %v3498, %v4232
      %v4307 = vadd.f32 %v3499, %v4235
      %v4308 = vadd.f32 %v3500, %v4240
      %v4309 = vadd.f32 %v3501, %v4243
      %v4310 = vld [vmem:[%s246 + $0x40] sm:$0xff]
      %v4311 = vld [vmem:[%s246 + $0x48] sm:$0xff]
      %v4312 = vld [vmem:[%s246 + $0x50] sm:$0xff]
      %v4313 = vld [vmem:[%s246 + $0x58] sm:$0xff]
      %v4314 = vld [vmem:[%s246 + $0x60] sm:$0xff]
      %v4315 = vld [vmem:[%s246 + $0x68] sm:$0xff]
      %v4316 = vld [vmem:[%s246 + $0x70] sm:$0xff]
      %v4317 = vld [vmem:[%s246 + $0x78] sm:$0xff]
      %v4318 = vld [vmem:[%s246 + $0x80] sm:$0xff]
      %v4319 = vld [vmem:[%s246 + $0x88] sm:$0xff]
      %v4320 = vld [vmem:[%s246 + $0x90] sm:$0xff]
      %v4321 = vld [vmem:[%s246 + $0x98] sm:$0xff]
      %v4322 = vld [vmem:[%s246 + $0xa0] sm:$0xff]
      %v4323 = vld [vmem:[%s246 + $0xa8] sm:$0xff]
      %v4324 = vld [vmem:[%s246 + $0xb0] sm:$0xff]
      %v4325 = vld [vmem:[%s246 + $0xb8] sm:$0xff]
      %v4326 = vld [vmem:[%s246 + $0xc0] sm:$0xff]
      %v4327 = vld [vmem:[%s246 + $0xc8] sm:$0xff]
      %v4328 = vld [vmem:[%s246 + $0xd0] sm:$0xff]
      %v4329 = vld [vmem:[%s246 + $0xd8] sm:$0xff]
      %v4330 = vld [vmem:[%s246 + $0xe0] sm:$0xff]
      %v4331 = vld [vmem:[%s246 + $0xe8] sm:$0xff]
      %v4332 = vld [vmem:[%s246 + $0xf0] sm:$0xff]
      %v4333 = vld [vmem:[%s246 + $0xf8] sm:$0xff]
      %v4334 = vld [vmem:[%s246 + $0x100] sm:$0xff]
      %v4335 = vld [vmem:[%s246 + $0x108] sm:$0xff]
      %v4336 = vld [vmem:[%s246 + $0x110] sm:$0xff]
      %v4337 = vld [vmem:[%s246 + $0x118] sm:$0xff]
      %v4338 = vld [vmem:[%s246 + $0x120] sm:$0xff]
      %v4339 = vld [vmem:[%s246 + $0x128] sm:$0xff]
      %v4340 = vld [vmem:[%s246 + $0x130] sm:$0xff]
      %v4341 = vld [vmem:[%s246 + $0x138] sm:$0xff]
      %v4342 = vld [vmem:[%s246 + $0x140] sm:$0xff]
      %v4343 = vld [vmem:[%s246 + $0x148] sm:$0xff]
      %v4344 = vld [vmem:[%s246 + $0x150] sm:$0xff]
      %v4345 = vld [vmem:[%s246 + $0x158] sm:$0xff]
      %v4346 = vld [vmem:[%s246 + $0x160] sm:$0xff]
      %v4347 = vld [vmem:[%s246 + $0x168] sm:$0xff]
      %v4348 = vld [vmem:[%s246 + $0x170] sm:$0xff]
      %v4349 = vld [vmem:[%s246 + $0x178] sm:$0xff]
      %v4350 = vld [vmem:[%s246 + $0x180] sm:$0xff]
      %v4351 = vld [vmem:[%s246 + $0x188] sm:$0xff]
      %v4352 = vld [vmem:[%s246 + $0x190] sm:$0xff]
      %v4353 = vld [vmem:[%s246 + $0x198] sm:$0xff]
      %v4354 = vld [vmem:[%s246 + $0x1a0] sm:$0xff]
      %v4355 = vld [vmem:[%s246 + $0x1a8] sm:$0xff]
      %v4356 = vld [vmem:[%s246 + $0x1b0] sm:$0xff]
      %v4357 = vld [vmem:[%s246 + $0x1b8] sm:$0xff]
      %v4358 = vld [vmem:[%s246 + $0x1c0] sm:$0xff]
      %v4359 = vld [vmem:[%s246 + $0x1c8] sm:$0xff]
      %v4360 = vld [vmem:[%s246 + $0x1d0] sm:$0xff]
      %v4361 = vld [vmem:[%s246 + $0x1d8] sm:$0xff]
      %v4362 = vld [vmem:[%s246 + $0x1e0] sm:$0xff]
      %v4363 = vld [vmem:[%s246 + $0x1e8] sm:$0xff]
      %v4364 = vld [vmem:[%s246 + $0x1f0] sm:$0xff]
      %v4365 = vld [vmem:[%s246 + $0x1f8] sm:$0xff]
      %v4366 = vld [vmem:[%s246 + $0x200] sm:$0xff]
      %v4367 = vld [vmem:[%s246 + $0x208] sm:$0xff]
      %v4368 = vld [vmem:[%s246 + $0x210] sm:$0xff]
      %v4369 = vld [vmem:[%s246 + $0x218] sm:$0xff]
      %v4370 = vld [vmem:[%s246 + $0x220] sm:$0xff]
      %v4371 = vld [vmem:[%s246 + $0x228] sm:$0xff]
      %v4372 = vld [vmem:[%s246 + $0x230] sm:$0xff]
      %v4373 = vld [vmem:[%s246 + $0x238] sm:$0xff]
      %s4374 = scalar_lea.vmem %s1, 512
      %v4375 = vld [vmem:[%s4374] sm:$0xf]
      %v4376 = vld [vmem:[%s4374 + $0x4] sm:$0xf]
      %v4377 = vld [vmem:[%s4374 + $0x8] sm:$0xf]
      %v4378 = vld [vmem:[%s4374 + $0xc] sm:$0xf]
      %v4379 = vld [vmem:[%s4374 + $0x10] sm:$0xf]
      %v4380 = vld [vmem:[%s4374 + $0x14] sm:$0xf]
      %v4381 = vld [vmem:[%s4374 + $0x18] sm:$0xf]
      %v4382 = vld [vmem:[%s4374 + $0x1c] sm:$0xf]
      %v4383 = vld [vmem:[%s4374 + $0x20] sm:$0xf]
      %v4384 = vld [vmem:[%s4374 + $0x24] sm:$0xf]
      %v4385 = vld [vmem:[%s4374 + $0x28] sm:$0xf]
      %v4386 = vld [vmem:[%s4374 + $0x2c] sm:$0xf]
      %v4387 = vld [vmem:[%s4374 + $0x30] sm:$0xf]
      %v4388 = vld [vmem:[%s4374 + $0x34] sm:$0xf]
      %v4389 = vld [vmem:[%s4374 + $0x38] sm:$0xf]
      %v4390 = vld [vmem:[%s4374 + $0x3c] sm:$0xf]
      %v4391 = vld [vmem:[%s4374 + $0x40] sm:$0xf]
      %v4392 = vld [vmem:[%s4374 + $0x44] sm:$0xf]
      %v4393 = vld [vmem:[%s4374 + $0x48] sm:$0xf]
      %v4394 = vld [vmem:[%s4374 + $0x4c] sm:$0xf]
      %v4395 = vld [vmem:[%s4374 + $0x50] sm:$0xf]
      %v4396 = vld [vmem:[%s4374 + $0x54] sm:$0xf]
      %v4397 = vld [vmem:[%s4374 + $0x58] sm:$0xf]
      %v4398 = vld [vmem:[%s4374 + $0x5c] sm:$0xf]
      %v4399 = vld [vmem:[%s4374 + $0x60] sm:$0xf]
      %v4400 = vld [vmem:[%s4374 + $0x64] sm:$0xf]
      %v4401 = vld [vmem:[%s4374 + $0x68] sm:$0xf]
      %v4402 = vld [vmem:[%s4374 + $0x6c] sm:$0xf]
      %v4403 = vld [vmem:[%s4374 + $0x70] sm:$0xf]
      %v4404 = vld [vmem:[%s4374 + $0x74] sm:$0xf]
      %v4405 = vld [vmem:[%s4374 + $0x78] sm:$0xf]
      %v4406 = vld [vmem:[%s4374 + $0x7c] sm:$0xf]
      %v4471 = vunpack.c.l.b16 %v4310
      %v4472 = vunpack.c.h.b16 %v4310
      %v4473 = vunpack.c.l.b16 %v4311
      %v4474 = vunpack.c.h.b16 %v4311
      %v4475 = vunpack.c.l.b16 %v4312
      %v4476 = vunpack.c.h.b16 %v4312
      %v4477 = vunpack.c.l.b16 %v4313
      %v4478 = vunpack.c.h.b16 %v4313
      %v4479 = vunpack.c.l.b16 %v4314
      %v4480 = vunpack.c.h.b16 %v4314
      %v4481 = vunpack.c.l.b16 %v4315
      %v4482 = vunpack.c.h.b16 %v4315
      %v4483 = vunpack.c.l.b16 %v4316
      %v4484 = vunpack.c.h.b16 %v4316
      %v4485 = vunpack.c.l.b16 %v4317
      %v4486 = vunpack.c.h.b16 %v4317
      %v4487 = vunpack.c.l.b16 %v4318
      %v4488 = vunpack.c.h.b16 %v4318
      %v4489 = vunpack.c.l.b16 %v4319
      %v4490 = vunpack.c.h.b16 %v4319
      %v4491 = vunpack.c.l.b16 %v4320
      %v4492 = vunpack.c.h.b16 %v4320
      %v4493 = vunpack.c.l.b16 %v4321
      %v4494 = vunpack.c.h.b16 %v4321
      %v4495 = vunpack.c.l.b16 %v4322
      %v4496 = vunpack.c.h.b16 %v4322
      %v4497 = vunpack.c.l.b16 %v4323
      %v4498 = vunpack.c.h.b16 %v4323
      %v4499 = vunpack.c.l.b16 %v4324
      %v4500 = vunpack.c.h.b16 %v4324
      %v4501 = vunpack.c.l.b16 %v4325
      %v4502 = vunpack.c.h.b16 %v4325
      %v4503 = vunpack.c.l.b16 %v4326
      %v4504 = vunpack.c.h.b16 %v4326
      %v4505 = vunpack.c.l.b16 %v4327
      %v4506 = vunpack.c.h.b16 %v4327
      %v4507 = vunpack.c.l.b16 %v4328
      %v4508 = vunpack.c.h.b16 %v4328
      %v4509 = vunpack.c.l.b16 %v4329
      %v4510 = vunpack.c.h.b16 %v4329
      %v4511 = vunpack.c.l.b16 %v4330
      %v4512 = vunpack.c.h.b16 %v4330
      %v4513 = vunpack.c.l.b16 %v4331
      %v4514 = vunpack.c.h.b16 %v4331
      %v4515 = vunpack.c.l.b16 %v4332
      %v4516 = vunpack.c.h.b16 %v4332
      %v4517 = vunpack.c.l.b16 %v4333
      %v4518 = vunpack.c.h.b16 %v4333
      %v4519 = vunpack.c.l.b16 %v4334
      %v4520 = vunpack.c.h.b16 %v4334
      %v4521 = vunpack.c.l.b16 %v4335
      %v4522 = vunpack.c.h.b16 %v4335
      %v4523 = vunpack.c.l.b16 %v4336
      %v4524 = vunpack.c.h.b16 %v4336
      %v4525 = vunpack.c.l.b16 %v4337
      %v4526 = vunpack.c.h.b16 %v4337
      %v4527 = vunpack.c.l.b16 %v4338
      %v4528 = vunpack.c.h.b16 %v4338
      %v4529 = vunpack.c.l.b16 %v4339
      %v4530 = vunpack.c.h.b16 %v4339
      %v4531 = vunpack.c.l.b16 %v4340
      %v4532 = vunpack.c.h.b16 %v4340
      %v4533 = vunpack.c.l.b16 %v4341
      %v4534 = vunpack.c.h.b16 %v4341
      %v4535 = vunpack.c.l.b16 %v4342
      %v4536 = vunpack.c.h.b16 %v4342
      %v4537 = vunpack.c.l.b16 %v4343
      %v4538 = vunpack.c.h.b16 %v4343
      %v4539 = vunpack.c.l.b16 %v4344
      %v4540 = vunpack.c.h.b16 %v4344
      %v4541 = vunpack.c.l.b16 %v4345
      %v4542 = vunpack.c.h.b16 %v4345
      %v4543 = vunpack.c.l.b16 %v4346
      %v4544 = vunpack.c.h.b16 %v4346
      %v4545 = vunpack.c.l.b16 %v4347
      %v4546 = vunpack.c.h.b16 %v4347
      %v4547 = vunpack.c.l.b16 %v4348
      %v4548 = vunpack.c.h.b16 %v4348
      %v4549 = vunpack.c.l.b16 %v4349
      %v4550 = vunpack.c.h.b16 %v4349
      %v4551 = vunpack.c.l.b16 %v4350
      %v4552 = vunpack.c.h.b16 %v4350
      %v4553 = vunpack.c.l.b16 %v4351
      %v4554 = vunpack.c.h.b16 %v4351
      %v4555 = vunpack.c.l.b16 %v4352
      %v4556 = vunpack.c.h.b16 %v4352
      %v4557 = vunpack.c.l.b16 %v4353
      %v4558 = vunpack.c.h.b16 %v4353
      %v4559 = vunpack.c.l.b16 %v4354
      %v4560 = vunpack.c.h.b16 %v4354
      %v4561 = vunpack.c.l.b16 %v4355
      %v4562 = vunpack.c.h.b16 %v4355
      %v4563 = vunpack.c.l.b16 %v4356
      %v4564 = vunpack.c.h.b16 %v4356
      %v4565 = vunpack.c.l.b16 %v4357
      %v4566 = vunpack.c.h.b16 %v4357
      %v4567 = vunpack.c.l.b16 %v4358
      %v4568 = vunpack.c.h.b16 %v4358
      %v4569 = vunpack.c.l.b16 %v4359
      %v4570 = vunpack.c.h.b16 %v4359
      %v4571 = vunpack.c.l.b16 %v4360
      %v4572 = vunpack.c.h.b16 %v4360
      %v4573 = vunpack.c.l.b16 %v4361
      %v4574 = vunpack.c.h.b16 %v4361
      %v4575 = vunpack.c.l.b16 %v4362
      %v4576 = vunpack.c.h.b16 %v4362
      %v4577 = vunpack.c.l.b16 %v4363
      %v4578 = vunpack.c.h.b16 %v4363
      %v4579 = vunpack.c.l.b16 %v4364
      %v4580 = vunpack.c.h.b16 %v4364
      %v4581 = vunpack.c.l.b16 %v4365
      %v4582 = vunpack.c.h.b16 %v4365
      %v4583 = vunpack.c.l.b16 %v4366
      %v4584 = vunpack.c.h.b16 %v4366
      %v4585 = vunpack.c.l.b16 %v4367
      %v4586 = vunpack.c.h.b16 %v4367
      %v4587 = vunpack.c.l.b16 %v4368
      %v4588 = vunpack.c.h.b16 %v4368
      %v4589 = vunpack.c.l.b16 %v4369
      %v4590 = vunpack.c.h.b16 %v4369
      %v4591 = vunpack.c.l.b16 %v4370
      %v4592 = vunpack.c.h.b16 %v4370
      %v4593 = vunpack.c.l.b16 %v4371
      %v4594 = vunpack.c.h.b16 %v4371
      %v4595 = vunpack.c.l.b16 %v4372
      %v4596 = vunpack.c.h.b16 %v4372
      %v4597 = vunpack.c.l.b16 %v4373
      %v4598 = vunpack.c.h.b16 %v4373
      %v4599 = vpack.c.b16 %v4473, %v4471
      %v4600 = vpack.c.b16 %v4474, %v4472
      %v4601 = vpack.c.b16 %v4477, %v4475
      %v4602 = vpack.c.b16 %v4478, %v4476
      %v4603 = vpack.c.b16 %v4481, %v4479
      %v4604 = vpack.c.b16 %v4482, %v4480
      %v4605 = vpack.c.b16 %v4485, %v4483
      %v4606 = vpack.c.b16 %v4486, %v4484
      %v4607 = vpack.c.b16 %v4489, %v4487
      %v4608 = vpack.c.b16 %v4490, %v4488
      %v4609 = vpack.c.b16 %v4493, %v4491
      %v4610 = vpack.c.b16 %v4494, %v4492
      %v4611 = vpack.c.b16 %v4497, %v4495
      %v4612 = vpack.c.b16 %v4498, %v4496
      %v4613 = vpack.c.b16 %v4501, %v4499
      %v4614 = vpack.c.b16 %v4502, %v4500
      %v4615 = vpack.c.b16 %v4505, %v4503
      %v4616 = vpack.c.b16 %v4506, %v4504
      %v4617 = vpack.c.b16 %v4509, %v4507
      %v4618 = vpack.c.b16 %v4510, %v4508
      %v4619 = vpack.c.b16 %v4513, %v4511
      %v4620 = vpack.c.b16 %v4514, %v4512
      %v4621 = vpack.c.b16 %v4517, %v4515
      %v4622 = vpack.c.b16 %v4518, %v4516
      %v4623 = vpack.c.b16 %v4521, %v4519
      %v4624 = vpack.c.b16 %v4522, %v4520
      %v4625 = vpack.c.b16 %v4525, %v4523
      %v4626 = vpack.c.b16 %v4526, %v4524
      %v4627 = vpack.c.b16 %v4529, %v4527
      %v4628 = vpack.c.b16 %v4530, %v4528
      %v4629 = vpack.c.b16 %v4533, %v4531
      %v4630 = vpack.c.b16 %v4534, %v4532
      %v4631 = vpack.c.b16 %v4537, %v4535
      %v4632 = vpack.c.b16 %v4538, %v4536
      %v4633 = vpack.c.b16 %v4541, %v4539
      %v4634 = vpack.c.b16 %v4542, %v4540
      %v4635 = vpack.c.b16 %v4545, %v4543
      %v4636 = vpack.c.b16 %v4546, %v4544
      %v4637 = vpack.c.b16 %v4549, %v4547
      %v4638 = vpack.c.b16 %v4550, %v4548
      %v4639 = vpack.c.b16 %v4553, %v4551
      %v4640 = vpack.c.b16 %v4554, %v4552
      %v4641 = vpack.c.b16 %v4557, %v4555
      %v4642 = vpack.c.b16 %v4558, %v4556
      %v4643 = vpack.c.b16 %v4561, %v4559
      %v4644 = vpack.c.b16 %v4562, %v4560
      %v4645 = vpack.c.b16 %v4565, %v4563
      %v4646 = vpack.c.b16 %v4566, %v4564
      %v4647 = vpack.c.b16 %v4569, %v4567
      %v4648 = vpack.c.b16 %v4570, %v4568
      %v4649 = vpack.c.b16 %v4573, %v4571
      %v4650 = vpack.c.b16 %v4574, %v4572
      %v4651 = vpack.c.b16 %v4577, %v4575
      %v4652 = vpack.c.b16 %v4578, %v4576
      %v4653 = vpack.c.b16 %v4581, %v4579
      %v4654 = vpack.c.b16 %v4582, %v4580
      %v4655 = vpack.c.b16 %v4585, %v4583
      %v4656 = vpack.c.b16 %v4586, %v4584
      %v4657 = vpack.c.b16 %v4589, %v4587
      %v4658 = vpack.c.b16 %v4590, %v4588
      %v4659 = vpack.c.b16 %v4593, %v4591
      %v4660 = vpack.c.b16 %v4594, %v4592
      %v4661 = vpack.c.b16 %v4597, %v4595
      %v4662 = vpack.c.b16 %v4598, %v4596
      %v4759 = vunpack.c.l.b16 %v4375
      %v4760 = vunpack.c.l.b16 %v4376
      %v4761 = vunpack.c.l.b16 %v4377
      %v4762 = vunpack.c.l.b16 %v4378
      %v4763 = vunpack.c.l.b16 %v4379
      %v4764 = vunpack.c.l.b16 %v4380
      %v4765 = vunpack.c.l.b16 %v4381
      %v4766 = vunpack.c.l.b16 %v4382
      %v4767 = vunpack.c.l.b16 %v4383
      %v4768 = vunpack.c.l.b16 %v4384
      %v4769 = vunpack.c.l.b16 %v4385
      %v4770 = vunpack.c.l.b16 %v4386
      %v4771 = vunpack.c.l.b16 %v4387
      %v4772 = vunpack.c.l.b16 %v4388
      %v4773 = vunpack.c.l.b16 %v4389
      %v4774 = vunpack.c.l.b16 %v4390
      %v4775 = vunpack.c.l.b16 %v4391
      %v4776 = vunpack.c.l.b16 %v4392
      %v4777 = vunpack.c.l.b16 %v4393
      %v4778 = vunpack.c.l.b16 %v4394
      %v4779 = vunpack.c.l.b16 %v4395
      %v4780 = vunpack.c.l.b16 %v4396
      %v4781 = vunpack.c.l.b16 %v4397
      %v4782 = vunpack.c.l.b16 %v4398
      %v4783 = vunpack.c.l.b16 %v4399
      %v4784 = vunpack.c.l.b16 %v4400
      %v4785 = vunpack.c.l.b16 %v4401
      %v4786 = vunpack.c.l.b16 %v4402
      %v4787 = vunpack.c.l.b16 %v4403
      %v4788 = vunpack.c.l.b16 %v4404
      %v4789 = vunpack.c.l.b16 %v4405
      %v4790 = vunpack.c.l.b16 %v4406
      %v4791 = vpack.c.b16 %v4760, %v4759
      %v4792 = vpack.c.b16 %v4762, %v4761
      %v4793 = vpack.c.b16 %v4764, %v4763
      %v4794 = vpack.c.b16 %v4766, %v4765
      %v4795 = vpack.c.b16 %v4768, %v4767
      %v4796 = vpack.c.b16 %v4770, %v4769
      %v4797 = vpack.c.b16 %v4772, %v4771
      %v4798 = vpack.c.b16 %v4774, %v4773
      %v4799 = vpack.c.b16 %v4776, %v4775
      %v4800 = vpack.c.b16 %v4778, %v4777
      %v4801 = vpack.c.b16 %v4780, %v4779
      %v4802 = vpack.c.b16 %v4782, %v4781
      %v4803 = vpack.c.b16 %v4784, %v4783
      %v4804 = vpack.c.b16 %v4786, %v4785
      %v4805 = vpack.c.b16 %v4788, %v4787
      %v4806 = vpack.c.b16 %v4790, %v4789
      %4823 = vmatprep.subr.bf16.mxu0 0
      %4824 = vmatpush1.bf16.msra.mxu0 %v4791
      %4825 = vmatprep.subr.bf16.mxu0 0
      %4826 = vmatpush1.bf16.msra.mxu0 %v4792
      %4827 = vmatprep.subr.bf16.mxu0 0
      %4828 = vmatpush1.bf16.msra.mxu0 %v4793
      %4829 = vmatprep.subr.bf16.mxu0 0
      %4830 = vmatpush1.bf16.msra.mxu0 %v4794
      %4831 = vmatprep.subr.bf16.mxu0 0
      %4832 = vmatpush1.bf16.msra.mxu0 %v4795
      %4833 = vmatprep.subr.bf16.mxu0 0
      %4834 = vmatpush1.bf16.msra.mxu0 %v4796
      %4835 = vmatprep.subr.bf16.mxu0 0
      %4836 = vmatpush1.bf16.msra.mxu0 %v4797
      %4837 = vmatprep.subr.bf16.mxu0 0
      %4838 = vmatpush1.bf16.msra.mxu0 %v4798
      %4839 = vmatprep.subr.bf16.mxu0 0
      %4840 = vmatpush1.bf16.msra.mxu0 %v4799
      %4841 = vmatprep.subr.bf16.mxu0 0
      %4842 = vmatpush1.bf16.msra.mxu0 %v4800
      %4843 = vmatprep.subr.bf16.mxu0 0
      %4844 = vmatpush1.bf16.msra.mxu0 %v4801
      %4845 = vmatprep.subr.bf16.mxu0 0
      %4846 = vmatpush1.bf16.msra.mxu0 %v4802
      %4847 = vmatprep.subr.bf16.mxu0 0
      %4848 = vmatpush1.bf16.msra.mxu0 %v4803
      %4849 = vmatprep.subr.bf16.mxu0 0
      %4850 = vmatpush1.bf16.msra.mxu0 %v4804
      %4851 = vmatprep.subr.bf16.mxu0 0
      %4852 = vmatpush1.bf16.msra.mxu0 %v4805
      %4853 = vmatprep.subr.bf16.mxu0 0
      %4854 = vmatpush1.bf16.msra.mxu0 %v4806
      %4855 = vmatprep.mubr.bf16.mxu0 %v4600
      %4856 = vmatmul.mubr.bf16.gmra.mrb[0].mxu0 %v4599
      %v4857 = vpop.f32.mrb[0].mxu0
      %v4858 = vadd.f32 0.0, %v4857
      %v4859 = vpop.f32.mrb[0].mxu0
      %v4860 = vpop.f32.mrb[0].mxu0
      %v4861 = vadd.f32 0.0, %v4860
      %v4862 = vpop.f32.mrb[0].mxu0
      %4863 = vmatprep.mubr.bf16.mxu0 %v4602
      %4864 = vmatmul.mubr.bf16.gmra.mrb[0].mxu0 %v4601
      %v4865 = vpop.f32.mrb[0].mxu0
      %v4866 = vadd.f32 0.0, %v4865
      %v4867 = vpop.f32.mrb[0].mxu0
      %v4868 = vpop.f32.mrb[0].mxu0
      %v4869 = vadd.f32 0.0, %v4868
      %v4870 = vpop.f32.mrb[0].mxu0
      %4871 = vmatprep.mubr.bf16.mxu0 %v4604
      %4872 = vmatmul.mubr.bf16.gmra.mrb[0].mxu0 %v4603
      %v4873 = vpop.f32.mrb[0].mxu0
      %v4874 = vadd.f32 0.0, %v4873
      %v4875 = vpop.f32.mrb[0].mxu0
      %v4876 = vpop.f32.mrb[0].mxu0
      %v4877 = vadd.f32 0.0, %v4876
      %v4878 = vpop.f32.mrb[0].mxu0
      %4879 = vmatprep.mubr.bf16.mxu0 %v4606
      %4880 = vmatmul.mubr.bf16.gmra.mrb[0].mxu0 %v4605
      %v4881 = vpop.f32.mrb[0].mxu0
      %v4882 = vadd.f32 0.0, %v4881
      %v4883 = vpop.f32.mrb[0].mxu0
      %v4884 = vpop.f32.mrb[0].mxu0
      %v4885 = vadd.f32 0.0, %v4884
      %v4886 = vpop.f32.mrb[0].mxu0
      %4887 = vmatprep.mubr.bf16.mxu0 %v4608
      %4888 = vmatmul.mubr.bf16.gmra.mrb[0].mxu0 %v4607
      %v4889 = vpop.f32.mrb[0].mxu0
      %v4890 = vadd.f32 0.0, %v4889
      %v4891 = vpop.f32.mrb[0].mxu0
      %v4892 = vpop.f32.mrb[0].mxu0
      %v4893 = vadd.f32 0.0, %v4892
      %v4894 = vpop.f32.mrb[0].mxu0
      %4895 = vmatprep.mubr.bf16.mxu0 %v4610
      %4896 = vmatmul.mubr.bf16.gmra.mrb[0].mxu0 %v4609
      %v4897 = vpop.f32.mrb[0].mxu0
      %v4898 = vadd.f32 0.0, %v4897
      %v4899 = vpop.f32.mrb[0].mxu0
      %v4900 = vpop.f32.mrb[0].mxu0
      %v4901 = vadd.f32 0.0, %v4900
      %v4902 = vpop.f32.mrb[0].mxu0
      %4903 = vmatprep.mubr.bf16.mxu0 %v4612
      %4904 = vmatmul.mubr.bf16.gmra.mrb[0].mxu0 %v4611
      %v4905 = vpop.f32.mrb[0].mxu0
      %v4906 = vadd.f32 0.0, %v4905
      %v4907 = vpop.f32.mrb[0].mxu0
      %v4908 = vpop.f32.mrb[0].mxu0
      %v4909 = vadd.f32 0.0, %v4908
      %v4910 = vpop.f32.mrb[0].mxu0
      %4911 = vmatprep.mubr.bf16.mxu0 %v4614
      %4912 = vmatmul.mubr.bf16.gmra.mrb[0].mxu0 %v4613
      %v4913 = vpop.f32.mrb[0].mxu0
      %v4914 = vadd.f32 0.0, %v4913
      %v4915 = vpop.f32.mrb[0].mxu0
      %v4916 = vpop.f32.mrb[0].mxu0
      %v4917 = vadd.f32 0.0, %v4916
      %v4918 = vpop.f32.mrb[0].mxu0
      %4919 = vmatprep.mubr.bf16.mxu0 %v4616
      %4920 = vmatmul.mubr.bf16.gmra.mrb[0].mxu0 %v4615
      %v4921 = vpop.f32.mrb[0].mxu0
      %v4922 = vadd.f32 0.0, %v4921
      %v4923 = vpop.f32.mrb[0].mxu0
      %v4924 = vpop.f32.mrb[0].mxu0
      %v4925 = vadd.f32 0.0, %v4924
      %v4926 = vpop.f32.mrb[0].mxu0
      %4927 = vmatprep.mubr.bf16.mxu0 %v4618
      %4928 = vmatmul.mubr.bf16.gmra.mrb[0].mxu0 %v4617
      %v4929 = vpop.f32.mrb[0].mxu0
      %v4930 = vadd.f32 0.0, %v4929
      %v4931 = vpop.f32.mrb[0].mxu0
      %v4932 = vpop.f32.mrb[0].mxu0
      %v4933 = vadd.f32 0.0, %v4932
      %v4934 = vpop.f32.mrb[0].mxu0
      %4935 = vmatprep.mubr.bf16.mxu0 %v4620
      %4936 = vmatmul.mubr.bf16.gmra.mrb[0].mxu0 %v4619
      %v4937 = vpop.f32.mrb[0].mxu0
      %v4938 = vadd.f32 0.0, %v4937
      %v4939 = vpop.f32.mrb[0].mxu0
      %v4940 = vpop.f32.mrb[0].mxu0
      %v4941 = vadd.f32 0.0, %v4940
      %v4942 = vpop.f32.mrb[0].mxu0
      %4943 = vmatprep.mubr.bf16.mxu0 %v4622
      %4944 = vmatmul.mubr.bf16.gmra.mrb[0].mxu0 %v4621
      %v4945 = vpop.f32.mrb[0].mxu0
      %v4946 = vadd.f32 0.0, %v4945
      %v4947 = vpop.f32.mrb[0].mxu0
      %v4948 = vpop.f32.mrb[0].mxu0
      %v4949 = vadd.f32 0.0, %v4948
      %v4950 = vpop.f32.mrb[0].mxu0
      %4951 = vmatprep.mubr.bf16.mxu0 %v4624
      %4952 = vmatmul.mubr.bf16.gmra.mrb[0].mxu0 %v4623
      %v4953 = vpop.f32.mrb[0].mxu0
      %v4954 = vadd.f32 0.0, %v4953
      %v4955 = vpop.f32.mrb[0].mxu0
      %v4956 = vpop.f32.mrb[0].mxu0
      %v4957 = vadd.f32 0.0, %v4956
      %v4958 = vpop.f32.mrb[0].mxu0
      %4959 = vmatprep.mubr.bf16.mxu0 %v4626
      %4960 = vmatmul.mubr.bf16.gmra.mrb[0].mxu0 %v4625
      %v4961 = vpop.f32.mrb[0].mxu0
      %v4962 = vadd.f32 0.0, %v4961
      %v4963 = vpop.f32.mrb[0].mxu0
      %v4964 = vpop.f32.mrb[0].mxu0
      %v4965 = vadd.f32 0.0, %v4964
      %v4966 = vpop.f32.mrb[0].mxu0
      %4967 = vmatprep.mubr.bf16.mxu0 %v4628
      %4968 = vmatmul.mubr.bf16.gmra.mrb[0].mxu0 %v4627
      %v4969 = vpop.f32.mrb[0].mxu0
      %v4970 = vadd.f32 0.0, %v4969
      %v4971 = vpop.f32.mrb[0].mxu0
      %v4972 = vpop.f32.mrb[0].mxu0
      %v4973 = vadd.f32 0.0, %v4972
      %v4974 = vpop.f32.mrb[0].mxu0
      %4975 = vmatprep.mubr.bf16.mxu0 %v4630
      %4976 = vmatmul.mubr.bf16.gmra.mrb[0].mxu0 %v4629
      %v4977 = vpop.f32.mrb[0].mxu0
      %v4978 = vadd.f32 0.0, %v4977
      %v4979 = vpop.f32.mrb[0].mxu0
      %v4980 = vpop.f32.mrb[0].mxu0
      %v4981 = vadd.f32 0.0, %v4980
      %v4982 = vpop.f32.mrb[0].mxu0
      %4983 = vmatprep.mubr.bf16.mxu0 %v4632
      %4984 = vmatmul.mubr.bf16.gmra.mrb[0].mxu0 %v4631
      %v4985 = vpop.f32.mrb[0].mxu0
      %v4986 = vadd.f32 0.0, %v4985
      %v4987 = vpop.f32.mrb[0].mxu0
      %v4988 = vpop.f32.mrb[0].mxu0
      %v4989 = vadd.f32 0.0, %v4988
      %v4990 = vpop.f32.mrb[0].mxu0
      %4991 = vmatprep.mubr.bf16.mxu0 %v4634
      %4992 = vmatmul.mubr.bf16.gmra.mrb[0].mxu0 %v4633
      %v4993 = vpop.f32.mrb[0].mxu0
      %v4994 = vadd.f32 0.0, %v4993
      %v4995 = vpop.f32.mrb[0].mxu0
      %v4996 = vpop.f32.mrb[0].mxu0
      %v4997 = vadd.f32 0.0, %v4996
      %v4998 = vpop.f32.mrb[0].mxu0
      %4999 = vmatprep.mubr.bf16.mxu0 %v4636
      %5000 = vmatmul.mubr.bf16.gmra.mrb[0].mxu0 %v4635
      %v5001 = vpop.f32.mrb[0].mxu0
      %v5002 = vadd.f32 0.0, %v5001
      %v5003 = vpop.f32.mrb[0].mxu0
      %v5004 = vpop.f32.mrb[0].mxu0
      %v5005 = vadd.f32 0.0, %v5004
      %v5006 = vpop.f32.mrb[0].mxu0
      %5007 = vmatprep.mubr.bf16.mxu0 %v4638
      %5008 = vmatmul.mubr.bf16.gmra.mrb[0].mxu0 %v4637
      %v5009 = vpop.f32.mrb[0].mxu0
      %v5010 = vadd.f32 0.0, %v5009
      %v5011 = vpop.f32.mrb[0].mxu0
      %v5012 = vpop.f32.mrb[0].mxu0
      %v5013 = vadd.f32 0.0, %v5012
      %v5014 = vpop.f32.mrb[0].mxu0
      %5015 = vmatprep.mubr.bf16.mxu0 %v4640
      %5016 = vmatmul.mubr.bf16.gmra.mrb[0].mxu0 %v4639
      %v5017 = vpop.f32.mrb[0].mxu0
      %v5018 = vadd.f32 0.0, %v5017
      %v5019 = vpop.f32.mrb[0].mxu0
      %v5020 = vpop.f32.mrb[0].mxu0
      %v5021 = vadd.f32 0.0, %v5020
      %v5022 = vpop.f32.mrb[0].mxu0
      %5023 = vmatprep.mubr.bf16.mxu0 %v4642
      %5024 = vmatmul.mubr.bf16.gmra.mrb[0].mxu0 %v4641
      %v5025 = vpop.f32.mrb[0].mxu0
      %v5026 = vadd.f32 0.0, %v5025
      %v5027 = vpop.f32.mrb[0].mxu0
      %v5028 = vpop.f32.mrb[0].mxu0
      %v5029 = vadd.f32 0.0, %v5028
      %v5030 = vpop.f32.mrb[0].mxu0
      %5031 = vmatprep.mubr.bf16.mxu0 %v4644
      %5032 = vmatmul.mubr.bf16.gmra.mrb[0].mxu0 %v4643
      %v5033 = vpop.f32.mrb[0].mxu0
      %v5034 = vadd.f32 0.0, %v5033
      %v5035 = vpop.f32.mrb[0].mxu0
      %v5036 = vpop.f32.mrb[0].mxu0
      %v5037 = vadd.f32 0.0, %v5036
      %v5038 = vpop.f32.mrb[0].mxu0
      %5039 = vmatprep.mubr.bf16.mxu0 %v4646
      %5040 = vmatmul.mubr.bf16.gmra.mrb[0].mxu0 %v4645
      %v5041 = vpop.f32.mrb[0].mxu0
      %v5042 = vadd.f32 0.0, %v5041
      %v5043 = vpop.f32.mrb[0].mxu0
      %v5044 = vpop.f32.mrb[0].mxu0
      %v5045 = vadd.f32 0.0, %v5044
      %v5046 = vpop.f32.mrb[0].mxu0
      %5047 = vmatprep.mubr.bf16.mxu0 %v4648
      %5048 = vmatmul.mubr.bf16.gmra.mrb[0].mxu0 %v4647
      %v5049 = vpop.f32.mrb[0].mxu0
      %v5050 = vadd.f32 0.0, %v5049
      %v5051 = vpop.f32.mrb[0].mxu0
      %v5052 = vpop.f32.mrb[0].mxu0
      %v5053 = vadd.f32 0.0, %v5052
      %v5054 = vpop.f32.mrb[0].mxu0
      %5055 = vmatprep.mubr.bf16.mxu0 %v4650
      %5056 = vmatmul.mubr.bf16.gmra.mrb[0].mxu0 %v4649
      %v5057 = vpop.f32.mrb[0].mxu0
      %v5058 = vadd.f32 0.0, %v5057
      %v5059 = vpop.f32.mrb[0].mxu0
      %v5060 = vpop.f32.mrb[0].mxu0
      %v5061 = vadd.f32 0.0, %v5060
      %v5062 = vpop.f32.mrb[0].mxu0
      %5063 = vmatprep.mubr.bf16.mxu0 %v4652
      %5064 = vmatmul.mubr.bf16.gmra.mrb[0].mxu0 %v4651
      %v5065 = vpop.f32.mrb[0].mxu0
      %v5066 = vadd.f32 0.0, %v5065
      %v5067 = vpop.f32.mrb[0].mxu0
      %v5068 = vpop.f32.mrb[0].mxu0
      %v5069 = vadd.f32 0.0, %v5068
      %v5070 = vpop.f32.mrb[0].mxu0
      %5071 = vmatprep.mubr.bf16.mxu0 %v4654
      %5072 = vmatmul.mubr.bf16.gmra.mrb[0].mxu0 %v4653
      %v5073 = vpop.f32.mrb[0].mxu0
      %v5074 = vadd.f32 0.0, %v5073
      %v5075 = vpop.f32.mrb[0].mxu0
      %v5076 = vpop.f32.mrb[0].mxu0
      %v5077 = vadd.f32 0.0, %v5076
      %v5078 = vpop.f32.mrb[0].mxu0
      %5079 = vmatprep.mubr.bf16.mxu0 %v4656
      %5080 = vmatmul.mubr.bf16.gmra.mrb[0].mxu0 %v4655
      %v5081 = vpop.f32.mrb[0].mxu0
      %v5082 = vadd.f32 0.0, %v5081
      %v5083 = vpop.f32.mrb[0].mxu0
      %v5084 = vpop.f32.mrb[0].mxu0
      %v5085 = vadd.f32 0.0, %v5084
      %v5086 = vpop.f32.mrb[0].mxu0
      %5087 = vmatprep.mubr.bf16.mxu0 %v4658
      %5088 = vmatmul.mubr.bf16.gmra.mrb[0].mxu0 %v4657
      %v5089 = vpop.f32.mrb[0].mxu0
      %v5090 = vadd.f32 0.0, %v5089
      %v5091 = vpop.f32.mrb[0].mxu0
      %v5092 = vpop.f32.mrb[0].mxu0
      %v5093 = vadd.f32 0.0, %v5092
      %v5094 = vpop.f32.mrb[0].mxu0
      %5095 = vmatprep.mubr.bf16.mxu0 %v4660
      %5096 = vmatmul.mubr.bf16.gmra.mrb[0].mxu0 %v4659
      %v5097 = vpop.f32.mrb[0].mxu0
      %v5098 = vadd.f32 0.0, %v5097
      %v5099 = vpop.f32.mrb[0].mxu0
      %v5100 = vpop.f32.mrb[0].mxu0
      %v5101 = vadd.f32 0.0, %v5100
      %v5102 = vpop.f32.mrb[0].mxu0
      %5103 = vmatprep.mubr.bf16.mxu0 %v4662
      %5104 = vmatmul.mubr.bf16.gmra.mrb[0].mxu0 %v4661
      %v5105 = vpop.f32.mrb[0].mxu0
      %v5106 = vadd.f32 0.0, %v5105
      %v5107 = vpop.f32.mrb[0].mxu0
      %v5108 = vpop.f32.mrb[0].mxu0
      %v5109 = vadd.f32 0.0, %v5108
      %v5110 = vpop.f32.mrb[0].mxu0
      %5111 = vdwg.mxu0
      %v5112 = vadd.f32 %v4246, %v4858
      %v5113 = vadd.f32 %v4247, %v4861
      %v5114 = vadd.f32 %v4248, %v4866
      %v5115 = vadd.f32 %v4249, %v4869
      %v5116 = vadd.f32 %v4250, %v4874
      %v5117 = vadd.f32 %v4251, %v4877
      %v5118 = vadd.f32 %v4252, %v4882
      %v5119 = vadd.f32 %v4253, %v4885
      %v5120 = vadd.f32 %v4254, %v4890
      %v5121 = vadd.f32 %v4255, %v4893
      %v5122 = vadd.f32 %v4256, %v4898
      %v5123 = vadd.f32 %v4257, %v4901
      %v5124 = vadd.f32 %v4258, %v4906
      %v5125 = vadd.f32 %v4259, %v4909
      %v5126 = vadd.f32 %v4260, %v4914
      %v5127 = vadd.f32 %v4261, %v4917
      %v5128 = vadd.f32 %v4262, %v4922
      %v5129 = vadd.f32 %v4263, %v4925
      %v5130 = vadd.f32 %v4264, %v4930
      %v5131 = vadd.f32 %v4265, %v4933
      %v5132 = vadd.f32 %v4266, %v4938
      %v5133 = vadd.f32 %v4267, %v4941
      %v5134 = vadd.f32 %v4268, %v4946
      %v5135 = vadd.f32 %v4269, %v4949
      %v5136 = vadd.f32 %v4270, %v4954
      %v5137 = vadd.f32 %v4271, %v4957
      %v5138 = vadd.f32 %v4272, %v4962
      %v5139 = vadd.f32 %v4273, %v4965
      %v5140 = vadd.f32 %v4274, %v4970
      %v5141 = vadd.f32 %v4275, %v4973
      %v5142 = vadd.f32 %v4276, %v4978
      %v5143 = vadd.f32 %v4277, %v4981
      %v5144 = vadd.f32 %v4278, %v4986
      %v5145 = vadd.f32 %v4279, %v4989
      %v5146 = vadd.f32 %v4280, %v4994
      %v5147 = vadd.f32 %v4281, %v4997
      %v5148 = vadd.f32 %v4282, %v5002
      %v5149 = vadd.f32 %v4283, %v5005
      %v5150 = vadd.f32 %v4284, %v5010
      %v5151 = vadd.f32 %v4285, %v5013
      %v5152 = vadd.f32 %v4286, %v5018
      %v5153 = vadd.f32 %v4287, %v5021
      %v5154 = vadd.f32 %v4288, %v5026
      %v5155 = vadd.f32 %v4289, %v5029
      %v5156 = vadd.f32 %v4290, %v5034
      %v5157 = vadd.f32 %v4291, %v5037
      %v5158 = vadd.f32 %v4292, %v5042
      %v5159 = vadd.f32 %v4293, %v5045
      %v5160 = vadd.f32 %v4294, %v5050
      %v5161 = vadd.f32 %v4295, %v5053
      %v5162 = vadd.f32 %v4296, %v5058
      %v5163 = vadd.f32 %v4297, %v5061
      %v5164 = vadd.f32 %v4298, %v5066
      %v5165 = vadd.f32 %v4299, %v5069
      %v5166 = vadd.f32 %v4300, %v5074
      %v5167 = vadd.f32 %v4301, %v5077
      %v5168 = vadd.f32 %v4302, %v5082
      %v5169 = vadd.f32 %v4303, %v5085
      %v5170 = vadd.f32 %v4304, %v5090
      %v5171 = vadd.f32 %v4305, %v5093
      %v5172 = vadd.f32 %v4306, %v5098
      %v5173 = vadd.f32 %v4307, %v5101
      %v5174 = vadd.f32 %v4308, %v5106
      %v5175 = vadd.f32 %v4309, %v5109
      %v5176 = vld [vmem:[#allocation2 + $0x230] sm:$0xff]
      %v5177 = vld [vmem:[#allocation2 + $0x238] sm:$0xff]
      %s5178 = scalar_lea.vmem %s1, 640
      %v5179 = vld [vmem:[%s5178] sm:$0xf]
      %v5180 = vld [vmem:[%s5178 + $0x4] sm:$0xf]
      %v5181 = vld [vmem:[%s5178 + $0x8] sm:$0xf]
      %v5182 = vld [vmem:[%s5178 + $0xc] sm:$0xf]
      %v5183 = vld [vmem:[%s5178 + $0x10] sm:$0xf]
      %v5184 = vld [vmem:[%s5178 + $0x14] sm:$0xf]
      %v5185 = vld [vmem:[%s5178 + $0x18] sm:$0xf]
      %v5186 = vld [vmem:[%s5178 + $0x1c] sm:$0xf]
      %v5187 = vld [vmem:[%s5178 + $0x20] sm:$0xf]
      %v5188 = vld [vmem:[%s5178 + $0x24] sm:$0xf]
      %v5189 = vld [vmem:[%s5178 + $0x28] sm:$0xf]
      %v5190 = vld [vmem:[%s5178 + $0x2c] sm:$0xf]
      %v5191 = vld [vmem:[%s5178 + $0x30] sm:$0xf]
      %v5192 = vld [vmem:[%s5178 + $0x34] sm:$0xf]
      %v5193 = vld [vmem:[%s5178 + $0x38] sm:$0xf]
      %v5194 = vld [vmem:[%s5178 + $0x3c] sm:$0xf]
      %v5195 = vld [vmem:[%s5178 + $0x40] sm:$0xf]
      %v5196 = vld [vmem:[%s5178 + $0x44] sm:$0xf]
      %v5197 = vld [vmem:[%s5178 + $0x48] sm:$0xf]
      %v5198 = vld [vmem:[%s5178 + $0x4c] sm:$0xf]
      %v5199 = vld [vmem:[%s5178 + $0x50] sm:$0xf]
      %v5200 = vld [vmem:[%s5178 + $0x54] sm:$0xf]
      %v5201 = vld [vmem:[%s5178 + $0x58] sm:$0xf]
      %v5202 = vld [vmem:[%s5178 + $0x5c] sm:$0xf]
      %v5203 = vld [vmem:[%s5178 + $0x60] sm:$0xf]
      %v5204 = vld [vmem:[%s5178 + $0x64] sm:$0xf]
      %v5205 = vld [vmem:[%s5178 + $0x68] sm:$0xf]
      %v5206 = vld [vmem:[%s5178 + $0x6c] sm:$0xf]
      %v5207 = vld [vmem:[%s5178 + $0x70] sm:$0xf]
      %v5208 = vld [vmem:[%s5178 + $0x74] sm:$0xf]
      %v5209 = vld [vmem:[%s5178 + $0x78] sm:$0xf]
      %v5210 = vld [vmem:[%s5178 + $0x7c] sm:$0xf]
      %v5243 = vunpack.c.l.b16 %v5179
      %v5244 = vunpack.c.l.b16 %v5180
      %v5245 = vunpack.c.l.b16 %v5181
      %v5246 = vunpack.c.l.b16 %v5182
      %v5247 = vunpack.c.l.b16 %v5183
      %v5248 = vunpack.c.l.b16 %v5184
      %v5249 = vunpack.c.l.b16 %v5185
      %v5250 = vunpack.c.l.b16 %v5186
      %v5251 = vunpack.c.l.b16 %v5187
      %v5252 = vunpack.c.l.b16 %v5188
      %v5253 = vunpack.c.l.b16 %v5189
      %v5254 = vunpack.c.l.b16 %v5190
      %v5255 = vunpack.c.l.b16 %v5191
      %v5256 = vunpack.c.l.b16 %v5192
      %v5257 = vunpack.c.l.b16 %v5193
      %v5258 = vunpack.c.l.b16 %v5194
      %v5259 = vunpack.c.l.b16 %v5195
      %v5260 = vunpack.c.l.b16 %v5196
      %v5261 = vunpack.c.l.b16 %v5197
      %v5262 = vunpack.c.l.b16 %v5198
      %v5263 = vunpack.c.l.b16 %v5199
      %v5264 = vunpack.c.l.b16 %v5200
      %v5265 = vunpack.c.l.b16 %v5201
      %v5266 = vunpack.c.l.b16 %v5202
      %v5267 = vunpack.c.l.b16 %v5203
      %v5268 = vunpack.c.l.b16 %v5204
      %v5269 = vunpack.c.l.b16 %v5205
      %v5270 = vunpack.c.l.b16 %v5206
      %v5271 = vunpack.c.l.b16 %v5207
      %v5272 = vunpack.c.l.b16 %v5208
      %v5273 = vunpack.c.l.b16 %v5209
      %v5274 = vunpack.c.l.b16 %v5210
      %v5275 = vpack.c.b16 %v5244, %v5243
      %v5276 = vpack.c.b16 %v5246, %v5245
      %v5277 = vpack.c.b16 %v5248, %v5247
      %v5278 = vpack.c.b16 %v5250, %v5249
      %v5279 = vpack.c.b16 %v5252, %v5251
      %v5280 = vpack.c.b16 %v5254, %v5253
      %v5281 = vpack.c.b16 %v5256, %v5255
      %v5282 = vpack.c.b16 %v5258, %v5257
      %v5283 = vpack.c.b16 %v5260, %v5259
      %v5284 = vpack.c.b16 %v5262, %v5261
      %v5285 = vpack.c.b16 %v5264, %v5263
      %v5286 = vpack.c.b16 %v5266, %v5265
      %v5287 = vpack.c.b16 %v5268, %v5267
      %v5288 = vpack.c.b16 %v5270, %v5269
      %v5289 = vpack.c.b16 %v5272, %v5271
      %v5290 = vpack.c.b16 %v5274, %v5273
      %5307 = vmatprep.subr.bf16.mxu0 0
      %5308 = vmatpush1.bf16.msra.mxu0 %v5275
      %5309 = vmatprep.subr.bf16.mxu0 0
      %5310 = vmatpush1.bf16.msra.mxu0 %v5276
      %5311 = vmatprep.subr.bf16.mxu0 0
      %5312 = vmatpush1.bf16.msra.mxu0 %v5277
      %5313 = vmatprep.subr.bf16.mxu0 0
      %5314 = vmatpush1.bf16.msra.mxu0 %v5278
      %5315 = vmatprep.subr.bf16.mxu0 0
      %5316 = vmatpush1.bf16.msra.mxu0 %v5279
      %5317 = vmatprep.subr.bf16.mxu0 0
      %5318 = vmatpush1.bf16.msra.mxu0 %v5280
      %5319 = vmatprep.subr.bf16.mxu0 0
      %5320 = vmatpush1.bf16.msra.mxu0 %v5281
      %5321 = vmatprep.subr.bf16.mxu0 0
      %5322 = vmatpush1.bf16.msra.mxu0 %v5282
      %5323 = vmatprep.subr.bf16.mxu0 0
      %5324 = vmatpush1.bf16.msra.mxu0 %v5283
      %5325 = vmatprep.subr.bf16.mxu0 0
      %5326 = vmatpush1.bf16.msra.mxu0 %v5284
      %5327 = vmatprep.subr.bf16.mxu0 0
      %5328 = vmatpush1.bf16.msra.mxu0 %v5285
      %5329 = vmatprep.subr.bf16.mxu0 0
      %5330 = vmatpush1.bf16.msra.mxu0 %v5286
      %5331 = vmatprep.subr.bf16.mxu0 0
      %5332 = vmatpush1.bf16.msra.mxu0 %v5287
      %5333 = vmatprep.subr.bf16.mxu0 0
      %5334 = vmatpush1.bf16.msra.mxu0 %v5288
      %5335 = vmatprep.subr.bf16.mxu0 0
      %5336 = vmatpush1.bf16.msra.mxu0 %v5289
      %5337 = vmatprep.subr.bf16.mxu0 0
      %5338 = vmatpush1.bf16.msra.mxu0 %v5290
      %5339 = vmatprep.mubr.bf16.mxu0 %v3505
      %5340 = vmatmul.mubr.bf16.gmra.mrb[0].mxu0 %v3504
      %v5341 = vpop.f32.mrb[0].mxu0
      %v5342 = vadd.f32 0.0, %v5341
      %v5343 = vpop.f32.mrb[0].mxu0
      %v5344 = vpop.f32.mrb[0].mxu0
      %v5345 = vadd.f32 0.0, %v5344
      %v5346 = vpop.f32.mrb[0].mxu0
      %5347 = vmatprep.mubr.bf16.mxu0 %v3507
      %5348 = vmatmul.mubr.bf16.gmra.mrb[0].mxu0 %v3506
      %v5349 = vpop.f32.mrb[0].mxu0
      %v5350 = vadd.f32 0.0, %v5349
      %v5351 = vpop.f32.mrb[0].mxu0
      %v5352 = vpop.f32.mrb[0].mxu0
      %v5353 = vadd.f32 0.0, %v5352
      %v5354 = vpop.f32.mrb[0].mxu0
      %5355 = vmatprep.mubr.bf16.mxu0 %v3509
      %5356 = vmatmul.mubr.bf16.gmra.mrb[0].mxu0 %v3508
      %v5357 = vpop.f32.mrb[0].mxu0
      %v5358 = vadd.f32 0.0, %v5357
      %v5359 = vpop.f32.mrb[0].mxu0
      %v5360 = vpop.f32.mrb[0].mxu0
      %v5361 = vadd.f32 0.0, %v5360
      %v5362 = vpop.f32.mrb[0].mxu0
      %5363 = vmatprep.mubr.bf16.mxu0 %v3511
      %5364 = vmatmul.mubr.bf16.gmra.mrb[0].mxu0 %v3510
      %v5365 = vpop.f32.mrb[0].mxu0
      %v5366 = vadd.f32 0.0, %v5365
      %v5367 = vpop.f32.mrb[0].mxu0
      %v5368 = vpop.f32.mrb[0].mxu0
      %v5369 = vadd.f32 0.0, %v5368
      %v5370 = vpop.f32.mrb[0].mxu0
      %5371 = vmatprep.mubr.bf16.mxu0 %v3513
      %5372 = vmatmul.mubr.bf16.gmra.mrb[0].mxu0 %v3512
      %v5373 = vpop.f32.mrb[0].mxu0
      %v5374 = vadd.f32 0.0, %v5373
      %v5375 = vpop.f32.mrb[0].mxu0
      %v5376 = vpop.f32.mrb[0].mxu0
      %v5377 = vadd.f32 0.0, %v5376
      %v5378 = vpop.f32.mrb[0].mxu0
      %5379 = vmatprep.mubr.bf16.mxu0 %v3515
      %5380 = vmatmul.mubr.bf16.gmra.mrb[0].mxu0 %v3514
      %v5381 = vpop.f32.mrb[0].mxu0
      %v5382 = vadd.f32 0.0, %v5381
      %v5383 = vpop.f32.mrb[0].mxu0
      %v5384 = vpop.f32.mrb[0].mxu0
      %v5385 = vadd.f32 0.0, %v5384
      %v5386 = vpop.f32.mrb[0].mxu0
      %5387 = vmatprep.mubr.bf16.mxu0 %v3517
      %5388 = vmatmul.mubr.bf16.gmra.mrb[0].mxu0 %v3516
      %v5389 = vpop.f32.mrb[0].mxu0
      %v5390 = vadd.f32 0.0, %v5389
      %v5391 = vpop.f32.mrb[0].mxu0
      %v5392 = vpop.f32.mrb[0].mxu0
      %v5393 = vadd.f32 0.0, %v5392
      %v5394 = vpop.f32.mrb[0].mxu0
      %5395 = vmatprep.mubr.bf16.mxu0 %v3519
      %5396 = vmatmul.mubr.bf16.gmra.mrb[0].mxu0 %v3518
      %v5397 = vpop.f32.mrb[0].mxu0
      %v5398 = vadd.f32 0.0, %v5397
      %v5399 = vpop.f32.mrb[0].mxu0
      %v5400 = vpop.f32.mrb[0].mxu0
      %v5401 = vadd.f32 0.0, %v5400
      %v5402 = vpop.f32.mrb[0].mxu0
      %5403 = vmatprep.mubr.bf16.mxu0 %v3521
      %5404 = vmatmul.mubr.bf16.gmra.mrb[0].mxu0 %v3520
      %v5405 = vpop.f32.mrb[0].mxu0
      %v5406 = vadd.f32 0.0, %v5405
      %v5407 = vpop.f32.mrb[0].mxu0
      %v5408 = vpop.f32.mrb[0].mxu0
      %v5409 = vadd.f32 0.0, %v5408
      %v5410 = vpop.f32.mrb[0].mxu0
      %5411 = vmatprep.mubr.bf16.mxu0 %v3523
      %5412 = vmatmul.mubr.bf16.gmra.mrb[0].mxu0 %v3522
      %v5413 = vpop.f32.mrb[0].mxu0
      %v5414 = vadd.f32 0.0, %v5413
      %v5415 = vpop.f32.mrb[0].mxu0
      %v5416 = vpop.f32.mrb[0].mxu0
      %v5417 = vadd.f32 0.0, %v5416
      %v5418 = vpop.f32.mrb[0].mxu0
      %5419 = vmatprep.mubr.bf16.mxu0 %v3525
      %5420 = vmatmul.mubr.bf16.gmra.mrb[0].mxu0 %v3524
      %v5421 = vpop.f32.mrb[0].mxu0
      %v5422 = vadd.f32 0.0, %v5421
      %v5423 = vpop.f32.mrb[0].mxu0
      %v5424 = vpop.f32.mrb[0].mxu0
      %v5425 = vadd.f32 0.0, %v5424
      %v5426 = vpop.f32.mrb[0].mxu0
      %5427 = vmatprep.mubr.bf16.mxu0 %v3527
      %5428 = vmatmul.mubr.bf16.gmra.mrb[0].mxu0 %v3526
      %v5429 = vpop.f32.mrb[0].mxu0
      %v5430 = vadd.f32 0.0, %v5429
      %v5431 = vpop.f32.mrb[0].mxu0
      %v5432 = vpop.f32.mrb[0].mxu0
      %v5433 = vadd.f32 0.0, %v5432
      %v5434 = vpop.f32.mrb[0].mxu0
      %5435 = vmatprep.mubr.bf16.mxu0 %v3529
      %5436 = vmatmul.mubr.bf16.gmra.mrb[0].mxu0 %v3528
      %v5437 = vpop.f32.mrb[0].mxu0
      %v5438 = vadd.f32 0.0, %v5437
      %v5439 = vpop.f32.mrb[0].mxu0
      %v5440 = vpop.f32.mrb[0].mxu0
      %v5441 = vadd.f32 0.0, %v5440
      %v5442 = vpop.f32.mrb[0].mxu0
      %5443 = vmatprep.mubr.bf16.mxu0 %v3531
      %5444 = vmatmul.mubr.bf16.gmra.mrb[0].mxu0 %v3530
      %v5445 = vpop.f32.mrb[0].mxu0
      %v5446 = vadd.f32 0.0, %v5445
      %v5447 = vpop.f32.mrb[0].mxu0
      %v5448 = vpop.f32.mrb[0].mxu0
      %v5449 = vadd.f32 0.0, %v5448
      %v5450 = vpop.f32.mrb[0].mxu0
      %5451 = vmatprep.mubr.bf16.mxu0 %v3533
      %5452 = vmatmul.mubr.bf16.gmra.mrb[0].mxu0 %v3532
      %v5453 = vpop.f32.mrb[0].mxu0
      %v5454 = vadd.f32 0.0, %v5453
      %v5455 = vpop.f32.mrb[0].mxu0
      %v5456 = vpop.f32.mrb[0].mxu0
      %v5457 = vadd.f32 0.0, %v5456
      %v5458 = vpop.f32.mrb[0].mxu0
      %5459 = vmatprep.mubr.bf16.mxu0 %v3535
      %5460 = vmatmul.mubr.bf16.gmra.mrb[0].mxu0 %v3534
      %v5461 = vpop.f32.mrb[0].mxu0
      %v5462 = vadd.f32 0.0, %v5461
      %v5463 = vpop.f32.mrb[0].mxu0
      %v5464 = vpop.f32.mrb[0].mxu0
      %v5465 = vadd.f32 0.0, %v5464
      %v5466 = vpop.f32.mrb[0].mxu0
      %5467 = vmatprep.mubr.bf16.mxu0 %v3537
      %5468 = vmatmul.mubr.bf16.gmra.mrb[0].mxu0 %v3536
      %v5469 = vpop.f32.mrb[0].mxu0
      %v5470 = vadd.f32 0.0, %v5469
      %v5471 = vpop.f32.mrb[0].mxu0
      %v5472 = vpop.f32.mrb[0].mxu0
      %v5473 = vadd.f32 0.0, %v5472
      %v5474 = vpop.f32.mrb[0].mxu0
      %5475 = vmatprep.mubr.bf16.mxu0 %v3539
      %5476 = vmatmul.mubr.bf16.gmra.mrb[0].mxu0 %v3538
      %v5477 = vpop.f32.mrb[0].mxu0
      %v5478 = vadd.f32 0.0, %v5477
      %v5479 = vpop.f32.mrb[0].mxu0
      %v5480 = vpop.f32.mrb[0].mxu0
      %v5481 = vadd.f32 0.0, %v5480
      %v5482 = vpop.f32.mrb[0].mxu0
      %5483 = vmatprep.mubr.bf16.mxu0 %v3541
      %5484 = vmatmul.mubr.bf16.gmra.mrb[0].mxu0 %v3540
      %v5485 = vpop.f32.mrb[0].mxu0
      %v5486 = vadd.f32 0.0, %v5485
      %v5487 = vpop.f32.mrb[0].mxu0
      %v5488 = vpop.f32.mrb[0].mxu0
      %v5489 = vadd.f32 0.0, %v5488
      %v5490 = vpop.f32.mrb[0].mxu0
      %5491 = vmatprep.mubr.bf16.mxu0 %v3543
      %5492 = vmatmul.mubr.bf16.gmra.mrb[0].mxu0 %v3542
      %v5493 = vpop.f32.mrb[0].mxu0
      %v5494 = vadd.f32 0.0, %v5493
      %v5495 = vpop.f32.mrb[0].mxu0
      %v5496 = vpop.f32.mrb[0].mxu0
      %v5497 = vadd.f32 0.0, %v5496
      %v5498 = vpop.f32.mrb[0].mxu0
      %5499 = vmatprep.mubr.bf16.mxu0 %v3545
      %5500 = vmatmul.mubr.bf16.gmra.mrb[0].mxu0 %v3544
      %v5501 = vpop.f32.mrb[0].mxu0
      %v5502 = vadd.f32 0.0, %v5501
      %v5503 = vpop.f32.mrb[0].mxu0
      %v5504 = vpop.f32.mrb[0].mxu0
      %v5505 = vadd.f32 0.0, %v5504
      %v5506 = vpop.f32.mrb[0].mxu0
      %5507 = vmatprep.mubr.bf16.mxu0 %v3547
      %5508 = vmatmul.mubr.bf16.gmra.mrb[0].mxu0 %v3546
      %v5509 = vpop.f32.mrb[0].mxu0
      %v5510 = vadd.f32 0.0, %v5509
      %v5511 = vpop.f32.mrb[0].mxu0
      %v5512 = vpop.f32.mrb[0].mxu0
      %v5513 = vadd.f32 0.0, %v5512
      %v5514 = vpop.f32.mrb[0].mxu0
      %5515 = vmatprep.mubr.bf16.mxu0 %v3549
      %5516 = vmatmul.mubr.bf16.gmra.mrb[0].mxu0 %v3548
      %v5517 = vpop.f32.mrb[0].mxu0
      %v5518 = vadd.f32 0.0, %v5517
      %v5519 = vpop.f32.mrb[0].mxu0
      %v5520 = vpop.f32.mrb[0].mxu0
      %v5521 = vadd.f32 0.0, %v5520
      %v5522 = vpop.f32.mrb[0].mxu0
      %5523 = vmatprep.mubr.bf16.mxu0 %v3551
      %5524 = vmatmul.mubr.bf16.gmra.mrb[0].mxu0 %v3550
      %v5525 = vpop.f32.mrb[0].mxu0
      %v5526 = vadd.f32 0.0, %v5525
      %v5527 = vpop.f32.mrb[0].mxu0
      %v5528 = vpop.f32.mrb[0].mxu0
      %v5529 = vadd.f32 0.0, %v5528
      %v5530 = vpop.f32.mrb[0].mxu0
      %5531 = vmatprep.mubr.bf16.mxu0 %v3553
      %5532 = vmatmul.mubr.bf16.gmra.mrb[0].mxu0 %v3552
      %v5533 = vpop.f32.mrb[0].mxu0
      %v5534 = vadd.f32 0.0, %v5533
      %v5535 = vpop.f32.mrb[0].mxu0
      %v5536 = vpop.f32.mrb[0].mxu0
      %v5537 = vadd.f32 0.0, %v5536
      %v5538 = vpop.f32.mrb[0].mxu0
      %5539 = vmatprep.mubr.bf16.mxu0 %v3555
      %5540 = vmatmul.mubr.bf16.gmra.mrb[0].mxu0 %v3554
      %v5541 = vpop.f32.mrb[0].mxu0
      %v5542 = vadd.f32 0.0, %v5541
      %v5543 = vpop.f32.mrb[0].mxu0
      %v5544 = vpop.f32.mrb[0].mxu0
      %v5545 = vadd.f32 0.0, %v5544
      %v5546 = vpop.f32.mrb[0].mxu0
      %5547 = vmatprep.mubr.bf16.mxu0 %v3557
      %5548 = vmatmul.mubr.bf16.gmra.mrb[0].mxu0 %v3556
      %v5549 = vpop.f32.mrb[0].mxu0
      %v5550 = vadd.f32 0.0, %v5549
      %v5551 = vpop.f32.mrb[0].mxu0
      %v5552 = vpop.f32.mrb[0].mxu0
      %v5553 = vadd.f32 0.0, %v5552
      %v5554 = vpop.f32.mrb[0].mxu0
      %5555 = vmatprep.mubr.bf16.mxu0 %v3559
      %5556 = vmatmul.mubr.bf16.gmra.mrb[0].mxu0 %v3558
      %v5557 = vpop.f32.mrb[0].mxu0
      %v5558 = vadd.f32 0.0, %v5557
      %v5559 = vpop.f32.mrb[0].mxu0
      %v5560 = vpop.f32.mrb[0].mxu0
      %v5561 = vadd.f32 0.0, %v5560
      %v5562 = vpop.f32.mrb[0].mxu0
      %5563 = vmatprep.mubr.bf16.mxu0 %v3561
      %5564 = vmatmul.mubr.bf16.gmra.mrb[0].mxu0 %v3560
      %v5565 = vpop.f32.mrb[0].mxu0
      %v5566 = vadd.f32 0.0, %v5565
      %v5567 = vpop.f32.mrb[0].mxu0
      %v5568 = vpop.f32.mrb[0].mxu0
      %v5569 = vadd.f32 0.0, %v5568
      %v5570 = vpop.f32.mrb[0].mxu0
      %5571 = vmatprep.mubr.bf16.mxu0 %v3563
      %5572 = vmatmul.mubr.bf16.gmra.mrb[0].mxu0 %v3562
      %v5573 = vpop.f32.mrb[0].mxu0
      %v5574 = vadd.f32 0.0, %v5573
      %v5575 = vpop.f32.mrb[0].mxu0
      %v5576 = vpop.f32.mrb[0].mxu0
      %v5577 = vadd.f32 0.0, %v5576
      %v5578 = vpop.f32.mrb[0].mxu0
      %5579 = vmatprep.mubr.bf16.mxu0 %v3565
      %5580 = vmatmul.mubr.bf16.gmra.mrb[0].mxu0 %v3564
      %v5581 = vpop.f32.mrb[0].mxu0
      %v5582 = vadd.f32 0.0, %v5581
      %v5583 = vpop.f32.mrb[0].mxu0
      %v5584 = vpop.f32.mrb[0].mxu0
      %v5585 = vadd.f32 0.0, %v5584
      %v5586 = vpop.f32.mrb[0].mxu0
      %5587 = vmatprep.mubr.bf16.mxu0 %v5177
      %5588 = vmatmul.mubr.bf16.gmra.mrb[0].mxu0 %v5176
      %v5589 = vpop.f32.mrb[0].mxu0
      %v5590 = vadd.f32 0.0, %v5589
      %v5591 = vpop.f32.mrb[0].mxu0
      %v5592 = vpop.f32.mrb[0].mxu0
      %v5593 = vadd.f32 0.0, %v5592
      %v5594 = vpop.f32.mrb[0].mxu0
      %5595 = vdwg.mxu0
      %v5596 = vadd.f32 %v5112, %v5342
      %v5597 = vadd.f32 %v5113, %v5345
      %v5598 = vadd.f32 %v5114, %v5350
      %v5599 = vadd.f32 %v5115, %v5353
      %v5600 = vadd.f32 %v5116, %v5358
      %v5601 = vadd.f32 %v5117, %v5361
      %v5602 = vadd.f32 %v5118, %v5366
      %v5603 = vadd.f32 %v5119, %v5369
      %v5604 = vadd.f32 %v5120, %v5374
      %v5605 = vadd.f32 %v5121, %v5377
      %v5606 = vadd.f32 %v5122, %v5382
      %v5607 = vadd.f32 %v5123, %v5385
      %v5608 = vadd.f32 %v5124, %v5390
      %v5609 = vadd.f32 %v5125, %v5393
      %v5610 = vadd.f32 %v5126, %v5398
      %v5611 = vadd.f32 %v5127, %v5401
      %v5612 = vadd.f32 %v5128, %v5406
      %v5613 = vadd.f32 %v5129, %v5409
      %v5614 = vadd.f32 %v5130, %v5414
      %v5615 = vadd.f32 %v5131, %v5417
      %v5616 = vadd.f32 %v5132, %v5422
      %v5617 = vadd.f32 %v5133, %v5425
      %v5618 = vadd.f32 %v5134, %v5430
      %v5619 = vadd.f32 %v5135, %v5433
      %v5620 = vadd.f32 %v5136, %v5438
      %v5621 = vadd.f32 %v5137, %v5441
      %v5622 = vadd.f32 %v5138, %v5446
      %v5623 = vadd.f32 %v5139, %v5449
      %v5624 = vadd.f32 %v5140, %v5454
      %v5625 = vadd.f32 %v5141, %v5457
      %v5626 = vadd.f32 %v5142, %v5462
      %v5627 = vadd.f32 %v5143, %v5465
      %v5628 = vadd.f32 %v5144, %v5470
      %v5629 = vadd.f32 %v5145, %v5473
      %v5630 = vadd.f32 %v5146, %v5478
      %v5631 = vadd.f32 %v5147, %v5481
      %v5632 = vadd.f32 %v5148, %v5486
      %v5633 = vadd.f32 %v5149, %v5489
      %v5634 = vadd.f32 %v5150, %v5494
      %v5635 = vadd.f32 %v5151, %v5497
      %v5636 = vadd.f32 %v5152, %v5502
      %v5637 = vadd.f32 %v5153, %v5505
      %v5638 = vadd.f32 %v5154, %v5510
      %v5639 = vadd.f32 %v5155, %v5513
      %v5640 = vadd.f32 %v5156, %v5518
      %v5641 = vadd.f32 %v5157, %v5521
      %v5642 = vadd.f32 %v5158, %v5526
      %v5643 = vadd.f32 %v5159, %v5529
      %v5644 = vadd.f32 %v5160, %v5534
      %v5645 = vadd.f32 %v5161, %v5537
      %v5646 = vadd.f32 %v5162, %v5542
      %v5647 = vadd.f32 %v5163, %v5545
      %v5648 = vadd.f32 %v5164, %v5550
      %v5649 = vadd.f32 %v5165, %v5553
      %v5650 = vadd.f32 %v5166, %v5558
      %v5651 = vadd.f32 %v5167, %v5561
      %v5652 = vadd.f32 %v5168, %v5566
      %v5653 = vadd.f32 %v5169, %v5569
      %v5654 = vadd.f32 %v5170, %v5574
      %v5655 = vadd.f32 %v5171, %v5577
      %v5656 = vadd.f32 %v5172, %v5582
      %v5657 = vadd.f32 %v5173, %v5585
      %v5658 = vadd.f32 %v5174, %v5590
      %v5659 = vadd.f32 %v5175, %v5593
      %v5660 = vld [vmem:[#allocation2 + $0x50] sm:$0x80]
      %v5661 = vld [vmem:[#allocation2 + $0x58] sm:$0x80]
      %v5662 = vld [vmem:[#allocation2 + $0x60] sm:$0xff]
      %v5663 = vld [vmem:[#allocation2 + $0x68] sm:$0xff]
      %v5664 = vld [vmem:[#allocation2 + $0x70] sm:$0xff]
      %v5665 = vld [vmem:[#allocation2 + $0x78] sm:$0xff]
      %v5666 = vld [vmem:[#allocation2 + $0x80] sm:$0xff]
      %v5667 = vld [vmem:[#allocation2 + $0x88] sm:$0xff]
      %v5668 = vld [vmem:[#allocation2 + $0x90] sm:$0xff]
      %v5669 = vld [vmem:[#allocation2 + $0x98] sm:$0xff]
      %v5670 = vld [vmem:[#allocation2 + $0xa0] sm:$0xff]
      %v5671 = vld [vmem:[#allocation2 + $0xa8] sm:$0xff]
      %v5672 = vld [vmem:[#allocation2 + $0xb0] sm:$0xff]
      %v5673 = vld [vmem:[#allocation2 + $0xb8] sm:$0xff]
      %v5674 = vld [vmem:[#allocation2 + $0xc0] sm:$0xff]
      %v5675 = vld [vmem:[#allocation2 + $0xc8] sm:$0xff]
      %v5676 = vld [vmem:[#allocation2 + $0xd0] sm:$0xff]
      %v5677 = vld [vmem:[#allocation2 + $0xd8] sm:$0xff]
      %v5678 = vld [vmem:[#allocation2 + $0xe0] sm:$0xff]
      %v5679 = vld [vmem:[#allocation2 + $0xe8] sm:$0xff]
      %v5680 = vld [vmem:[#allocation2 + $0xf0] sm:$0xff]
      %v5681 = vld [vmem:[#allocation2 + $0xf8] sm:$0xff]
      %v5682 = vld [vmem:[#allocation2 + $0x100] sm:$0xff]
      %v5683 = vld [vmem:[#allocation2 + $0x108] sm:$0xff]
      %v5684 = vld [vmem:[#allocation2 + $0x110] sm:$0xff]
      %v5685 = vld [vmem:[#allocation2 + $0x118] sm:$0xff]
      %v5686 = vld [vmem:[#allocation2 + $0x120] sm:$0xff]
      %v5687 = vld [vmem:[#allocation2 + $0x128] sm:$0xff]
      %v5688 = vld [vmem:[#allocation2 + $0x130] sm:$0xff]
      %v5689 = vld [vmem:[#allocation2 + $0x138] sm:$0xff]
      %v5690 = vld [vmem:[#allocation2 + $0x140] sm:$0xff]
      %v5691 = vld [vmem:[#allocation2 + $0x148] sm:$0xff]
      %v5692 = vld [vmem:[#allocation2 + $0x150] sm:$0xff]
      %v5693 = vld [vmem:[#allocation2 + $0x158] sm:$0xff]
      %v5694 = vld [vmem:[#allocation2 + $0x160] sm:$0xff]
      %v5695 = vld [vmem:[#allocation2 + $0x168] sm:$0xff]
      %v5696 = vld [vmem:[#allocation2 + $0x170] sm:$0xff]
      %v5697 = vld [vmem:[#allocation2 + $0x178] sm:$0xff]
      %v5698 = vld [vmem:[#allocation2 + $0x180] sm:$0xff]
      %v5699 = vld [vmem:[#allocation2 + $0x188] sm:$0xff]
      %v5700 = vld [vmem:[#allocation2 + $0x190] sm:$0xff]
      %v5701 = vld [vmem:[#allocation2 + $0x198] sm:$0xff]
      %v5702 = vld [vmem:[#allocation2 + $0x1a0] sm:$0xff]
      %v5703 = vld [vmem:[#allocation2 + $0x1a8] sm:$0xff]
      %v5704 = vld [vmem:[#allocation2 + $0x1b0] sm:$0xff]
      %v5705 = vld [vmem:[#allocation2 + $0x1b8] sm:$0xff]
      %v5706 = vld [vmem:[#allocation2 + $0x1c0] sm:$0xff]
      %v5707 = vld [vmem:[#allocation2 + $0x1c8] sm:$0xff]
      %v5708 = vld [vmem:[#allocation2 + $0x1d0] sm:$0xff]
      %v5709 = vld [vmem:[#allocation2 + $0x1d8] sm:$0xff]
      %v5710 = vld [vmem:[#allocation2 + $0x1e0] sm:$0xff]
      %v5711 = vld [vmem:[#allocation2 + $0x1e8] sm:$0xff]
      %v5712 = vld [vmem:[#allocation2 + $0x1f0] sm:$0xff]
      %v5713 = vld [vmem:[#allocation2 + $0x1f8] sm:$0xff]
      %v5714 = vld [vmem:[#allocation2 + $0x200] sm:$0xff]
      %v5715 = vld [vmem:[#allocation2 + $0x208] sm:$0xff]
      %v5716 = vld [vmem:[#allocation2 + $0x210] sm:$0xff]
      %v5717 = vld [vmem:[#allocation2 + $0x218] sm:$0xff]
      %v5718 = vld [vmem:[#allocation2 + $0x220] sm:$0xff]
      %v5719 = vld [vmem:[#allocation2 + $0x228] sm:$0xff]
      %v5720 = vld [vmem:[#allocation2 + $0x230] sm:$0xff]
      %v5721 = vld [vmem:[#allocation2 + $0x238] sm:$0xff]
      %v5722 = vld [vmem:[#allocation2 + $0x240] sm:$0xff]
      %v5723 = vld [vmem:[#allocation2 + $0x248] sm:$0xff]
      %v5724 = vld [vmem:[#allocation2 + $0x250] sm:$0x7f]
      %v5725 = vld [vmem:[#allocation2 + $0x258] sm:$0x7f]
      %s5726 = scalar_lea.vmem %s1, 768
      %v5727 = vld [vmem:[%s5726] sm:$0xf]
      %v5728 = vld [vmem:[%s5726 + $0x4] sm:$0xf]
      %v5729 = vld [vmem:[%s5726 + $0x8] sm:$0xf]
      %v5730 = vld [vmem:[%s5726 + $0xc] sm:$0xf]
      %v5731 = vld [vmem:[%s5726 + $0x10] sm:$0xf]
      %v5732 = vld [vmem:[%s5726 + $0x14] sm:$0xf]
      %v5733 = vld [vmem:[%s5726 + $0x18] sm:$0xf]
      %v5734 = vld [vmem:[%s5726 + $0x1c] sm:$0xf]
      %v5735 = vld [vmem:[%s5726 + $0x20] sm:$0xf]
      %v5736 = vld [vmem:[%s5726 + $0x24] sm:$0xf]
      %v5737 = vld [vmem:[%s5726 + $0x28] sm:$0xf]
      %v5738 = vld [vmem:[%s5726 + $0x2c] sm:$0xf]
      %v5739 = vld [vmem:[%s5726 + $0x30] sm:$0xf]
      %v5740 = vld [vmem:[%s5726 + $0x34] sm:$0xf]
      %v5741 = vld [vmem:[%s5726 + $0x38] sm:$0xf]
      %v5742 = vld [vmem:[%s5726 + $0x3c] sm:$0xf]
      %v5743 = vld [vmem:[%s5726 + $0x40] sm:$0xf]
      %v5744 = vld [vmem:[%s5726 + $0x44] sm:$0xf]
      %v5745 = vld [vmem:[%s5726 + $0x48] sm:$0xf]
      %v5746 = vld [vmem:[%s5726 + $0x4c] sm:$0xf]
      %v5747 = vld [vmem:[%s5726 + $0x50] sm:$0xf]
      %v5748 = vld [vmem:[%s5726 + $0x54] sm:$0xf]
      %v5749 = vld [vmem:[%s5726 + $0x58] sm:$0xf]
      %v5750 = vld [vmem:[%s5726 + $0x5c] sm:$0xf]
      %v5751 = vld [vmem:[%s5726 + $0x60] sm:$0xf]
      %v5752 = vld [vmem:[%s5726 + $0x64] sm:$0xf]
      %v5753 = vld [vmem:[%s5726 + $0x68] sm:$0xf]
      %v5754 = vld [vmem:[%s5726 + $0x6c] sm:$0xf]
      %v5755 = vld [vmem:[%s5726 + $0x70] sm:$0xf]
      %v5756 = vld [vmem:[%s5726 + $0x74] sm:$0xf]
      %v5757 = vld [vmem:[%s5726 + $0x78] sm:$0xf]
      %v5758 = vld [vmem:[%s5726 + $0x7c] sm:$0xf]
      %v5825 = vrot.slane %v5660, 7
      %v5826 = vrot.slane %v5662, 7
      %v5827 = vsel %vm2438, %v5825, %v5826
      %v5828 = vrot.slane %v5661, 7
      %v5829 = vrot.slane %v5663, 7
      %v5830 = vsel %vm2438, %v5828, %v5829
      %v5831 = vrot.slane %v5664, 7
      %v5832 = vsel %vm2438, %v5826, %v5831
      %v5833 = vrot.slane %v5665, 7
      %v5834 = vsel %vm2438, %v5829, %v5833
      %v5835 = vrot.slane %v5666, 7
      %v5836 = vsel %vm2438, %v5831, %v5835
      %v5837 = vrot.slane %v5667, 7
      %v5838 = vsel %vm2438, %v5833, %v5837
      %v5839 = vrot.slane %v5668, 7
      %v5840 = vsel %vm2438, %v5835, %v5839
      %v5841 = vrot.slane %v5669, 7
      %v5842 = vsel %vm2438, %v5837, %v5841
      %v5843 = vrot.slane %v5670, 7
      %v5844 = vsel %vm2438, %v5839, %v5843
      %v5845 = vrot.slane %v5671, 7
      %v5846 = vsel %vm2438, %v5841, %v5845
      %v5847 = vrot.slane %v5672, 7
      %v5848 = vsel %vm2438, %v5843, %v5847
      %v5849 = vrot.slane %v5673, 7
      %v5850 = vsel %vm2438, %v5845, %v5849
      %v5851 = vrot.slane %v5674, 7
      %v5852 = vsel %vm2438, %v5847, %v5851
      %v5853 = vrot.slane %v5675, 7
      %v5854 = vsel %vm2438, %v5849, %v5853
      %v5855 = vrot.slane %v5676, 7
      %v5856 = vsel %vm2438, %v5851, %v5855
      %v5857 = vrot.slane %v5677, 7
      %v5858 = vsel %vm2438, %v5853, %v5857
      %v5859 = vrot.slane %v5678, 7
      %v5860 = vsel %vm2438, %v5855, %v5859
      %v5861 = vrot.slane %v5679, 7
      %v5862 = vsel %vm2438, %v5857, %v5861
      %v5863 = vrot.slane %v5680, 7
      %v5864 = vsel %vm2438, %v5859, %v5863
      %v5865 = vrot.slane %v5681, 7
      %v5866 = vsel %vm2438, %v5861, %v5865
      %v5867 = vrot.slane %v5682, 7
      %v5868 = vsel %vm2438, %v5863, %v5867
      %v5869 = vrot.slane %v5683, 7
      %v5870 = vsel %vm2438, %v5865, %v5869
      %v5871 = vrot.slane %v5684, 7
      %v5872 = vsel %vm2438, %v5867, %v5871
      %v5873 = vrot.slane %v5685, 7
      %v5874 = vsel %vm2438, %v5869, %v5873
      %v5875 = vrot.slane %v5686, 7
      %v5876 = vsel %vm2438, %v5871, %v5875
      %v5877 = vrot.slane %v5687, 7
      %v5878 = vsel %vm2438, %v5873, %v5877
      %v5879 = vrot.slane %v5688, 7
      %v5880 = vsel %vm2438, %v5875, %v5879
      %v5881 = vrot.slane %v5689, 7
      %v5882 = vsel %vm2438, %v5877, %v5881
      %v5883 = vrot.slane %v5690, 7
      %v5884 = vsel %vm2438, %v5879, %v5883
      %v5885 = vrot.slane %v5691, 7
      %v5886 = vsel %vm2438, %v5881, %v5885
      %v5887 = vrot.slane %v5692, 7
      %v5888 = vsel %vm2438, %v5883, %v5887
      %v5889 = vrot.slane %v5693, 7
      %v5890 = vsel %vm2438, %v5885, %v5889
      %v5891 = vrot.slane %v5694, 7
      %v5892 = vsel %vm2438, %v5887, %v5891
      %v5893 = vrot.slane %v5695, 7
      %v5894 = vsel %vm2438, %v5889, %v5893
      %v5895 = vrot.slane %v5696, 7
      %v5896 = vsel %vm2438, %v5891, %v5895
      %v5897 = vrot.slane %v5697, 7
      %v5898 = vsel %vm2438, %v5893, %v5897
      %v5899 = vrot.slane %v5698, 7
      %v5900 = vsel %vm2438, %v5895, %v5899
      %v5901 = vrot.slane %v5699, 7
      %v5902 = vsel %vm2438, %v5897, %v5901
      %v5903 = vrot.slane %v5700, 7
      %v5904 = vsel %vm2438, %v5899, %v5903
      %v5905 = vrot.slane %v5701, 7
      %v5906 = vsel %vm2438, %v5901, %v5905
      %v5907 = vrot.slane %v5702, 7
      %v5908 = vsel %vm2438, %v5903, %v5907
      %v5909 = vrot.slane %v5703, 7
      %v5910 = vsel %vm2438, %v5905, %v5909
      %v5911 = vrot.slane %v5704, 7
      %v5912 = vsel %vm2438, %v5907, %v5911
      %v5913 = vrot.slane %v5705, 7
      %v5914 = vsel %vm2438, %v5909, %v5913
      %v5915 = vrot.slane %v5706, 7
      %v5916 = vsel %vm2438, %v5911, %v5915
      %v5917 = vrot.slane %v5707, 7
      %v5918 = vsel %vm2438, %v5913, %v5917
      %v5919 = vrot.slane %v5708, 7
      %v5920 = vsel %vm2438, %v5915, %v5919
      %v5921 = vrot.slane %v5709, 7
      %v5922 = vsel %vm2438, %v5917, %v5921
      %v5923 = vrot.slane %v5710, 7
      %v5924 = vsel %vm2438, %v5919, %v5923
      %v5925 = vrot.slane %v5711, 7
      %v5926 = vsel %vm2438, %v5921, %v5925
      %v5927 = vrot.slane %v5712, 7
      %v5928 = vsel %vm2438, %v5923, %v5927
      %v5929 = vrot.slane %v5713, 7
      %v5930 = vsel %vm2438, %v5925, %v5929
      %v5931 = vrot.slane %v5714, 7
      %v5932 = vsel %vm2438, %v5927, %v5931
      %v5933 = vrot.slane %v5715, 7
      %v5934 = vsel %vm2438, %v5929, %v5933
      %v5935 = vrot.slane %v5716, 7
      %v5936 = vsel %vm2438, %v5931, %v5935
      %v5937 = vrot.slane %v5717, 7
      %v5938 = vsel %vm2438, %v5933, %v5937
      %v5939 = vrot.slane %v5718, 7
      %v5940 = vsel %vm2438, %v5935, %v5939
      %v5941 = vrot.slane %v5719, 7
      %v5942 = vsel %vm2438, %v5937, %v5941
      %v5943 = vrot.slane %v5720, 7
      %v5944 = vsel %vm2438, %v5939, %v5943
      %v5945 = vrot.slane %v5721, 7
      %v5946 = vsel %vm2438, %v5941, %v5945
      %v5947 = vrot.slane %v5722, 7
      %v5948 = vsel %vm2438, %v5943, %v5947
      %v5949 = vrot.slane %v5723, 7
      %v5950 = vsel %vm2438, %v5945, %v5949
      %v5951 = vrot.slane %v5724, 7
      %v5952 = vsel %vm2438, %v5947, %v5951
      %v5953 = vrot.slane %v5725, 7
      %v5954 = vsel %vm2438, %v5949, %v5953
      %v6051 = vunpack.c.l.b16 %v5727
      %v6052 = vunpack.c.l.b16 %v5728
      %v6053 = vunpack.c.l.b16 %v5729
      %v6054 = vunpack.c.l.b16 %v5730
      %v6055 = vunpack.c.l.b16 %v5731
      %v6056 = vunpack.c.l.b16 %v5732
      %v6057 = vunpack.c.l.b16 %v5733
      %v6058 = vunpack.c.l.b16 %v5734
      %v6059 = vunpack.c.l.b16 %v5735
      %v6060 = vunpack.c.l.b16 %v5736
      %v6061 = vunpack.c.l.b16 %v5737
      %v6062 = vunpack.c.l.b16 %v5738
      %v6063 = vunpack.c.l.b16 %v5739
      %v6064 = vunpack.c.l.b16 %v5740
      %v6065 = vunpack.c.l.b16 %v5741
      %v6066 = vunpack.c.l.b16 %v5742
      %v6067 = vunpack.c.l.b16 %v5743
      %v6068 = vunpack.c.l.b16 %v5744
      %v6069 = vunpack.c.l.b16 %v5745
      %v6070 = vunpack.c.l.b16 %v5746
      %v6071 = vunpack.c.l.b16 %v5747
      %v6072 = vunpack.c.l.b16 %v5748
      %v6073 = vunpack.c.l.b16 %v5749
      %v6074 = vunpack.c.l.b16 %v5750
      %v6075 = vunpack.c.l.b16 %v5751
      %v6076 = vunpack.c.l.b16 %v5752
      %v6077 = vunpack.c.l.b16 %v5753
      %v6078 = vunpack.c.l.b16 %v5754
      %v6079 = vunpack.c.l.b16 %v5755
      %v6080 = vunpack.c.l.b16 %v5756
      %v6081 = vunpack.c.l.b16 %v5757
      %v6082 = vunpack.c.l.b16 %v5758
      %v6083 = vpack.c.b16 %v6052, %v6051
      %v6084 = vpack.c.b16 %v6054, %v6053
      %v6085 = vpack.c.b16 %v6056, %v6055
      %v6086 = vpack.c.b16 %v6058, %v6057
      %v6087 = vpack.c.b16 %v6060, %v6059
      %v6088 = vpack.c.b16 %v6062, %v6061
      %v6089 = vpack.c.b16 %v6064, %v6063
      %v6090 = vpack.c.b16 %v6066, %v6065
      %v6091 = vpack.c.b16 %v6068, %v6067
      %v6092 = vpack.c.b16 %v6070, %v6069
      %v6093 = vpack.c.b16 %v6072, %v6071
      %v6094 = vpack.c.b16 %v6074, %v6073
      %v6095 = vpack.c.b16 %v6076, %v6075
      %v6096 = vpack.c.b16 %v6078, %v6077
      %v6097 = vpack.c.b16 %v6080, %v6079
      %v6098 = vpack.c.b16 %v6082, %v6081
      %6115 = vmatprep.subr.bf16.mxu0 0
      %6116 = vmatpush1.bf16.msra.mxu0 %v6083
      %6117 = vmatprep.subr.bf16.mxu0 0
      %6118 = vmatpush1.bf16.msra.mxu0 %v6084
      %6119 = vmatprep.subr.bf16.mxu0 0
      %6120 = vmatpush1.bf16.msra.mxu0 %v6085
      %6121 = vmatprep.subr.bf16.mxu0 0
      %6122 = vmatpush1.bf16.msra.mxu0 %v6086
      %6123 = vmatprep.subr.bf16.mxu0 0
      %6124 = vmatpush1.bf16.msra.mxu0 %v6087
      %6125 = vmatprep.subr.bf16.mxu0 0
      %6126 = vmatpush1.bf16.msra.mxu0 %v6088
      %6127 = vmatprep.subr.bf16.mxu0 0
      %6128 = vmatpush1.bf16.msra.mxu0 %v6089
      %6129 = vmatprep.subr.bf16.mxu0 0
      %6130 = vmatpush1.bf16.msra.mxu0 %v6090
      %6131 = vmatprep.subr.bf16.mxu0 0
      %6132 = vmatpush1.bf16.msra.mxu0 %v6091
      %6133 = vmatprep.subr.bf16.mxu0 0
      %6134 = vmatpush1.bf16.msra.mxu0 %v6092
      %6135 = vmatprep.subr.bf16.mxu0 0
      %6136 = vmatpush1.bf16.msra.mxu0 %v6093
      %6137 = vmatprep.subr.bf16.mxu0 0
      %6138 = vmatpush1.bf16.msra.mxu0 %v6094
      %6139 = vmatprep.subr.bf16.mxu0 0
      %6140 = vmatpush1.bf16.msra.mxu0 %v6095
      %6141 = vmatprep.subr.bf16.mxu0 0
      %6142 = vmatpush1.bf16.msra.mxu0 %v6096
      %6143 = vmatprep.subr.bf16.mxu0 0
      %6144 = vmatpush1.bf16.msra.mxu0 %v6097
      %6145 = vmatprep.subr.bf16.mxu0 0
      %6146 = vmatpush1.bf16.msra.mxu0 %v6098
      %6147 = vmatprep.mubr.bf16.mxu0 %v5830
      %6148 = vmatmul.mubr.bf16.gmra.mrb[0].mxu0 %v5827
      %v6149 = vpop.f32.mrb[0].mxu0
      %v6150 = vadd.f32 0.0, %v6149
      %v6151 = vpop.f32.mrb[0].mxu0
      %v6152 = vpop.f32.mrb[0].mxu0
      %v6153 = vadd.f32 0.0, %v6152
      %v6154 = vpop.f32.mrb[0].mxu0
      %6155 = vmatprep.mubr.bf16.mxu0 %v5834
      %6156 = vmatmul.mubr.bf16.gmra.mrb[0].mxu0 %v5832
      %v6157 = vpop.f32.mrb[0].mxu0
      %v6158 = vadd.f32 0.0, %v6157
      %v6159 = vpop.f32.mrb[0].mxu0
      %v6160 = vpop.f32.mrb[0].mxu0
      %v6161 = vadd.f32 0.0, %v6160
      %v6162 = vpop.f32.mrb[0].mxu0
      %6163 = vmatprep.mubr.bf16.mxu0 %v5838
      %6164 = vmatmul.mubr.bf16.gmra.mrb[0].mxu0 %v5836
      %v6165 = vpop.f32.mrb[0].mxu0
      %v6166 = vadd.f32 0.0, %v6165
      %v6167 = vpop.f32.mrb[0].mxu0
      %v6168 = vpop.f32.mrb[0].mxu0
      %v6169 = vadd.f32 0.0, %v6168
      %v6170 = vpop.f32.mrb[0].mxu0
      %6171 = vmatprep.mubr.bf16.mxu0 %v5842
      %6172 = vmatmul.mubr.bf16.gmra.mrb[0].mxu0 %v5840
      %v6173 = vpop.f32.mrb[0].mxu0
      %v6174 = vadd.f32 0.0, %v6173
      %v6175 = vpop.f32.mrb[0].mxu0
      %v6176 = vpop.f32.mrb[0].mxu0
      %v6177 = vadd.f32 0.0, %v6176
      %v6178 = vpop.f32.mrb[0].mxu0
      %6179 = vmatprep.mubr.bf16.mxu0 %v5846
      %6180 = vmatmul.mubr.bf16.gmra.mrb[0].mxu0 %v5844
      %v6181 = vpop.f32.mrb[0].mxu0
      %v6182 = vadd.f32 0.0, %v6181
      %v6183 = vpop.f32.mrb[0].mxu0
      %v6184 = vpop.f32.mrb[0].mxu0
      %v6185 = vadd.f32 0.0, %v6184
      %v6186 = vpop.f32.mrb[0].mxu0
      %6187 = vmatprep.mubr.bf16.mxu0 %v5850
      %6188 = vmatmul.mubr.bf16.gmra.mrb[0].mxu0 %v5848
      %v6189 = vpop.f32.mrb[0].mxu0
      %v6190 = vadd.f32 0.0, %v6189
      %v6191 = vpop.f32.mrb[0].mxu0
      %v6192 = vpop.f32.mrb[0].mxu0
      %v6193 = vadd.f32 0.0, %v6192
      %v6194 = vpop.f32.mrb[0].mxu0
      %6195 = vmatprep.mubr.bf16.mxu0 %v5854
      %6196 = vmatmul.mubr.bf16.gmra.mrb[0].mxu0 %v5852
      %v6197 = vpop.f32.mrb[0].mxu0
      %v6198 = vadd.f32 0.0, %v6197
      %v6199 = vpop.f32.mrb[0].mxu0
      %v6200 = vpop.f32.mrb[0].mxu0
      %v6201 = vadd.f32 0.0, %v6200
      %v6202 = vpop.f32.mrb[0].mxu0
      %6203 = vmatprep.mubr.bf16.mxu0 %v5858
      %6204 = vmatmul.mubr.bf16.gmra.mrb[0].mxu0 %v5856
      %v6205 = vpop.f32.mrb[0].mxu0
      %v6206 = vadd.f32 0.0, %v6205
      %v6207 = vpop.f32.mrb[0].mxu0
      %v6208 = vpop.f32.mrb[0].mxu0
      %v6209 = vadd.f32 0.0, %v6208
      %v6210 = vpop.f32.mrb[0].mxu0
      %6211 = vmatprep.mubr.bf16.mxu0 %v5862
      %6212 = vmatmul.mubr.bf16.gmra.mrb[0].mxu0 %v5860
      %v6213 = vpop.f32.mrb[0].mxu0
      %v6214 = vadd.f32 0.0, %v6213
      %v6215 = vpop.f32.mrb[0].mxu0
      %v6216 = vpop.f32.mrb[0].mxu0
      %v6217 = vadd.f32 0.0, %v6216
      %v6218 = vpop.f32.mrb[0].mxu0
      %6219 = vmatprep.mubr.bf16.mxu0 %v5866
      %6220 = vmatmul.mubr.bf16.gmra.mrb[0].mxu0 %v5864
      %v6221 = vpop.f32.mrb[0].mxu0
      %v6222 = vadd.f32 0.0, %v6221
      %v6223 = vpop.f32.mrb[0].mxu0
      %v6224 = vpop.f32.mrb[0].mxu0
      %v6225 = vadd.f32 0.0, %v6224
      %v6226 = vpop.f32.mrb[0].mxu0
      %6227 = vmatprep.mubr.bf16.mxu0 %v5870
      %6228 = vmatmul.mubr.bf16.gmra.mrb[0].mxu0 %v5868
      %v6229 = vpop.f32.mrb[0].mxu0
      %v6230 = vadd.f32 0.0, %v6229
      %v6231 = vpop.f32.mrb[0].mxu0
      %v6232 = vpop.f32.mrb[0].mxu0
      %v6233 = vadd.f32 0.0, %v6232
      %v6234 = vpop.f32.mrb[0].mxu0
      %6235 = vmatprep.mubr.bf16.mxu0 %v5874
      %6236 = vmatmul.mubr.bf16.gmra.mrb[0].mxu0 %v5872
      %v6237 = vpop.f32.mrb[0].mxu0
      %v6238 = vadd.f32 0.0, %v6237
      %v6239 = vpop.f32.mrb[0].mxu0
      %v6240 = vpop.f32.mrb[0].mxu0
      %v6241 = vadd.f32 0.0, %v6240
      %v6242 = vpop.f32.mrb[0].mxu0
      %6243 = vmatprep.mubr.bf16.mxu0 %v5878
      %6244 = vmatmul.mubr.bf16.gmra.mrb[0].mxu0 %v5876
      %v6245 = vpop.f32.mrb[0].mxu0
      %v6246 = vadd.f32 0.0, %v6245
      %v6247 = vpop.f32.mrb[0].mxu0
      %v6248 = vpop.f32.mrb[0].mxu0
      %v6249 = vadd.f32 0.0, %v6248
      %v6250 = vpop.f32.mrb[0].mxu0
      %6251 = vmatprep.mubr.bf16.mxu0 %v5882
      %6252 = vmatmul.mubr.bf16.gmra.mrb[0].mxu0 %v5880
      %v6253 = vpop.f32.mrb[0].mxu0
      %v6254 = vadd.f32 0.0, %v6253
      %v6255 = vpop.f32.mrb[0].mxu0
      %v6256 = vpop.f32.mrb[0].mxu0
      %v6257 = vadd.f32 0.0, %v6256
      %v6258 = vpop.f32.mrb[0].mxu0
      %6259 = vmatprep.mubr.bf16.mxu0 %v5886
      %6260 = vmatmul.mubr.bf16.gmra.mrb[0].mxu0 %v5884
      %v6261 = vpop.f32.mrb[0].mxu0
      %v6262 = vadd.f32 0.0, %v6261
      %v6263 = vpop.f32.mrb[0].mxu0
      %v6264 = vpop.f32.mrb[0].mxu0
      %v6265 = vadd.f32 0.0, %v6264
      %v6266 = vpop.f32.mrb[0].mxu0
      %6267 = vmatprep.mubr.bf16.mxu0 %v5890
      %6268 = vmatmul.mubr.bf16.gmra.mrb[0].mxu0 %v5888
      %v6269 = vpop.f32.mrb[0].mxu0
      %v6270 = vadd.f32 0.0, %v6269
      %v6271 = vpop.f32.mrb[0].mxu0
      %v6272 = vpop.f32.mrb[0].mxu0
      %v6273 = vadd.f32 0.0, %v6272
      %v6274 = vpop.f32.mrb[0].mxu0
      %6275 = vmatprep.mubr.bf16.mxu0 %v5894
      %6276 = vmatmul.mubr.bf16.gmra.mrb[0].mxu0 %v5892
      %v6277 = vpop.f32.mrb[0].mxu0
      %v6278 = vadd.f32 0.0, %v6277
      %v6279 = vpop.f32.mrb[0].mxu0
      %v6280 = vpop.f32.mrb[0].mxu0
      %v6281 = vadd.f32 0.0, %v6280
      %v6282 = vpop.f32.mrb[0].mxu0
      %6283 = vmatprep.mubr.bf16.mxu0 %v5898
      %6284 = vmatmul.mubr.bf16.gmra.mrb[0].mxu0 %v5896
      %v6285 = vpop.f32.mrb[0].mxu0
      %v6286 = vadd.f32 0.0, %v6285
      %v6287 = vpop.f32.mrb[0].mxu0
      %v6288 = vpop.f32.mrb[0].mxu0
      %v6289 = vadd.f32 0.0, %v6288
      %v6290 = vpop.f32.mrb[0].mxu0
      %6291 = vmatprep.mubr.bf16.mxu0 %v5902
      %6292 = vmatmul.mubr.bf16.gmra.mrb[0].mxu0 %v5900
      %v6293 = vpop.f32.mrb[0].mxu0
      %v6294 = vadd.f32 0.0, %v6293
      %v6295 = vpop.f32.mrb[0].mxu0
      %v6296 = vpop.f32.mrb[0].mxu0
      %v6297 = vadd.f32 0.0, %v6296
      %v6298 = vpop.f32.mrb[0].mxu0
      %6299 = vmatprep.mubr.bf16.mxu0 %v5906
      %6300 = vmatmul.mubr.bf16.gmra.mrb[0].mxu0 %v5904
      %v6301 = vpop.f32.mrb[0].mxu0
      %v6302 = vadd.f32 0.0, %v6301
      %v6303 = vpop.f32.mrb[0].mxu0
      %v6304 = vpop.f32.mrb[0].mxu0
      %v6305 = vadd.f32 0.0, %v6304
      %v6306 = vpop.f32.mrb[0].mxu0
      %6307 = vmatprep.mubr.bf16.mxu0 %v5910
      %6308 = vmatmul.mubr.bf16.gmra.mrb[0].mxu0 %v5908
      %v6309 = vpop.f32.mrb[0].mxu0
      %v6310 = vadd.f32 0.0, %v6309
      %v6311 = vpop.f32.mrb[0].mxu0
      %v6312 = vpop.f32.mrb[0].mxu0
      %v6313 = vadd.f32 0.0, %v6312
      %v6314 = vpop.f32.mrb[0].mxu0
      %6315 = vmatprep.mubr.bf16.mxu0 %v5914
      %6316 = vmatmul.mubr.bf16.gmra.mrb[0].mxu0 %v5912
      %v6317 = vpop.f32.mrb[0].mxu0
      %v6318 = vadd.f32 0.0, %v6317
      %v6319 = vpop.f32.mrb[0].mxu0
      %v6320 = vpop.f32.mrb[0].mxu0
      %v6321 = vadd.f32 0.0, %v6320
      %v6322 = vpop.f32.mrb[0].mxu0
      %6323 = vmatprep.mubr.bf16.mxu0 %v5918
      %6324 = vmatmul.mubr.bf16.gmra.mrb[0].mxu0 %v5916
      %v6325 = vpop.f32.mrb[0].mxu0
      %v6326 = vadd.f32 0.0, %v6325
      %v6327 = vpop.f32.mrb[0].mxu0
      %v6328 = vpop.f32.mrb[0].mxu0
      %v6329 = vadd.f32 0.0, %v6328
      %v6330 = vpop.f32.mrb[0].mxu0
      %6331 = vmatprep.mubr.bf16.mxu0 %v5922
      %6332 = vmatmul.mubr.bf16.gmra.mrb[0].mxu0 %v5920
      %v6333 = vpop.f32.mrb[0].mxu0
      %v6334 = vadd.f32 0.0, %v6333
      %v6335 = vpop.f32.mrb[0].mxu0
      %v6336 = vpop.f32.mrb[0].mxu0
      %v6337 = vadd.f32 0.0, %v6336
      %v6338 = vpop.f32.mrb[0].mxu0
      %6339 = vmatprep.mubr.bf16.mxu0 %v5926
      %6340 = vmatmul.mubr.bf16.gmra.mrb[0].mxu0 %v5924
      %v6341 = vpop.f32.mrb[0].mxu0
      %v6342 = vadd.f32 0.0, %v6341
      %v6343 = vpop.f32.mrb[0].mxu0
      %v6344 = vpop.f32.mrb[0].mxu0
      %v6345 = vadd.f32 0.0, %v6344
      %v6346 = vpop.f32.mrb[0].mxu0
      %6347 = vmatprep.mubr.bf16.mxu0 %v5930
      %6348 = vmatmul.mubr.bf16.gmra.mrb[0].mxu0 %v5928
      %v6349 = vpop.f32.mrb[0].mxu0
      %v6350 = vadd.f32 0.0, %v6349
      %v6351 = vpop.f32.mrb[0].mxu0
      %v6352 = vpop.f32.mrb[0].mxu0
      %v6353 = vadd.f32 0.0, %v6352
      %v6354 = vpop.f32.mrb[0].mxu0
      %6355 = vmatprep.mubr.bf16.mxu0 %v5934
      %6356 = vmatmul.mubr.bf16.gmra.mrb[0].mxu0 %v5932
      %v6357 = vpop.f32.mrb[0].mxu0
      %v6358 = vadd.f32 0.0, %v6357
      %v6359 = vpop.f32.mrb[0].mxu0
      %v6360 = vpop.f32.mrb[0].mxu0
      %v6361 = vadd.f32 0.0, %v6360
      %v6362 = vpop.f32.mrb[0].mxu0
      %6363 = vmatprep.mubr.bf16.mxu0 %v5938
      %6364 = vmatmul.mubr.bf16.gmra.mrb[0].mxu0 %v5936
      %v6365 = vpop.f32.mrb[0].mxu0
      %v6366 = vadd.f32 0.0, %v6365
      %v6367 = vpop.f32.mrb[0].mxu0
      %v6368 = vpop.f32.mrb[0].mxu0
      %v6369 = vadd.f32 0.0, %v6368
      %v6370 = vpop.f32.mrb[0].mxu0
      %6371 = vmatprep.mubr.bf16.mxu0 %v5942
      %6372 = vmatmul.mubr.bf16.gmra.mrb[0].mxu0 %v5940
      %v6373 = vpop.f32.mrb[0].mxu0
      %v6374 = vadd.f32 0.0, %v6373
      %v6375 = vpop.f32.mrb[0].mxu0
      %v6376 = vpop.f32.mrb[0].mxu0
      %v6377 = vadd.f32 0.0, %v6376
      %v6378 = vpop.f32.mrb[0].mxu0
      %6379 = vmatprep.mubr.bf16.mxu0 %v5946
      %6380 = vmatmul.mubr.bf16.gmra.mrb[0].mxu0 %v5944
      %v6381 = vpop.f32.mrb[0].mxu0
      %v6382 = vadd.f32 0.0, %v6381
      %v6383 = vpop.f32.mrb[0].mxu0
      %v6384 = vpop.f32.mrb[0].mxu0
      %v6385 = vadd.f32 0.0, %v6384
      %v6386 = vpop.f32.mrb[0].mxu0
      %6387 = vmatprep.mubr.bf16.mxu0 %v5950
      %6388 = vmatmul.mubr.bf16.gmra.mrb[0].mxu0 %v5948
      %v6389 = vpop.f32.mrb[0].mxu0
      %v6390 = vadd.f32 0.0, %v6389
      %v6391 = vpop.f32.mrb[0].mxu0
      %v6392 = vpop.f32.mrb[0].mxu0
      %v6393 = vadd.f32 0.0, %v6392
      %v6394 = vpop.f32.mrb[0].mxu0
      %6395 = vmatprep.mubr.bf16.mxu0 %v5954
      %6396 = vmatmul.mubr.bf16.gmra.mrb[0].mxu0 %v5952
      %v6397 = vpop.f32.mrb[0].mxu0
      %v6398 = vadd.f32 0.0, %v6397
      %v6399 = vpop.f32.mrb[0].mxu0
      %v6400 = vpop.f32.mrb[0].mxu0
      %v6401 = vadd.f32 0.0, %v6400
      %v6402 = vpop.f32.mrb[0].mxu0
      %6403 = vdwg.mxu0
      %v6404 = vadd.f32 %v5596, %v6150
      %v6405 = vadd.f32 %v5597, %v6153
      %v6406 = vadd.f32 %v5598, %v6158
      %v6407 = vadd.f32 %v5599, %v6161
      %v6408 = vadd.f32 %v5600, %v6166
      %v6409 = vadd.f32 %v5601, %v6169
      %v6410 = vadd.f32 %v5602, %v6174
      %v6411 = vadd.f32 %v5603, %v6177
      %v6412 = vadd.f32 %v5604, %v6182
      %v6413 = vadd.f32 %v5605, %v6185
      %v6414 = vadd.f32 %v5606, %v6190
      %v6415 = vadd.f32 %v5607, %v6193
      %v6416 = vadd.f32 %v5608, %v6198
      %v6417 = vadd.f32 %v5609, %v6201
      %v6418 = vadd.f32 %v5610, %v6206
      %v6419 = vadd.f32 %v5611, %v6209
      %v6420 = vadd.f32 %v5612, %v6214
      %v6421 = vadd.f32 %v5613, %v6217
      %v6422 = vadd.f32 %v5614, %v6222
      %v6423 = vadd.f32 %v5615, %v6225
      %v6424 = vadd.f32 %v5616, %v6230
      %v6425 = vadd.f32 %v5617, %v6233
      %v6426 = vadd.f32 %v5618, %v6238
      %v6427 = vadd.f32 %v5619, %v6241
      %v6428 = vadd.f32 %v5620, %v6246
      %v6429 = vadd.f32 %v5621, %v6249
      %v6430 = vadd.f32 %v5622, %v6254
      %v6431 = vadd.f32 %v5623, %v6257
      %v6432 = vadd.f32 %v5624, %v6262
      %v6433 = vadd.f32 %v5625, %v6265
      %v6434 = vadd.f32 %v5626, %v6270
      %v6435 = vadd.f32 %v5627, %v6273
      %v6436 = vadd.f32 %v5628, %v6278
      %v6437 = vadd.f32 %v5629, %v6281
      %v6438 = vadd.f32 %v5630, %v6286
      %v6439 = vadd.f32 %v5631, %v6289
      %v6440 = vadd.f32 %v5632, %v6294
      %v6441 = vadd.f32 %v5633, %v6297
      %v6442 = vadd.f32 %v5634, %v6302
      %v6443 = vadd.f32 %v5635, %v6305
      %v6444 = vadd.f32 %v5636, %v6310
      %v6445 = vadd.f32 %v5637, %v6313
      %v6446 = vadd.f32 %v5638, %v6318
      %v6447 = vadd.f32 %v5639, %v6321
      %v6448 = vadd.f32 %v5640, %v6326
      %v6449 = vadd.f32 %v5641, %v6329
      %v6450 = vadd.f32 %v5642, %v6334
      %v6451 = vadd.f32 %v5643, %v6337
      %v6452 = vadd.f32 %v5644, %v6342
      %v6453 = vadd.f32 %v5645, %v6345
      %v6454 = vadd.f32 %v5646, %v6350
      %v6455 = vadd.f32 %v5647, %v6353
      %v6456 = vadd.f32 %v5648, %v6358
      %v6457 = vadd.f32 %v5649, %v6361
      %v6458 = vadd.f32 %v5650, %v6366
      %v6459 = vadd.f32 %v5651, %v6369
      %v6460 = vadd.f32 %v5652, %v6374
      %v6461 = vadd.f32 %v5653, %v6377
      %v6462 = vadd.f32 %v5654, %v6382
      %v6463 = vadd.f32 %v5655, %v6385
      %v6464 = vadd.f32 %v5656, %v6390
      %v6465 = vadd.f32 %v5657, %v6393
      %v6466 = vadd.f32 %v5658, %v6398
      %v6467 = vadd.f32 %v5659, %v6401
      %v6468 = vld [vmem:[%s246 + $0x60] sm:$0xff]
      %v6469 = vld [vmem:[%s246 + $0x68] sm:$0xff]
      %v6470 = vld [vmem:[%s246 + $0x70] sm:$0xff]
      %v6471 = vld [vmem:[%s246 + $0x78] sm:$0xff]
      %v6472 = vld [vmem:[%s246 + $0x80] sm:$0xff]
      %v6473 = vld [vmem:[%s246 + $0x88] sm:$0xff]
      %v6474 = vld [vmem:[%s246 + $0x90] sm:$0xff]
      %v6475 = vld [vmem:[%s246 + $0x98] sm:$0xff]
      %v6476 = vld [vmem:[%s246 + $0xa0] sm:$0xff]
      %v6477 = vld [vmem:[%s246 + $0xa8] sm:$0xff]
      %v6478 = vld [vmem:[%s246 + $0xb0] sm:$0xff]
      %v6479 = vld [vmem:[%s246 + $0xb8] sm:$0xff]
      %v6480 = vld [vmem:[%s246 + $0xc0] sm:$0xff]
      %v6481 = vld [vmem:[%s246 + $0xc8] sm:$0xff]
      %v6482 = vld [vmem:[%s246 + $0xd0] sm:$0xff]
      %v6483 = vld [vmem:[%s246 + $0xd8] sm:$0xff]
      %v6484 = vld [vmem:[%s246 + $0xe0] sm:$0xff]
      %v6485 = vld [vmem:[%s246 + $0xe8] sm:$0xff]
      %v6486 = vld [vmem:[%s246 + $0xf0] sm:$0xff]
      %v6487 = vld [vmem:[%s246 + $0xf8] sm:$0xff]
      %v6488 = vld [vmem:[%s246 + $0x100] sm:$0xff]
      %v6489 = vld [vmem:[%s246 + $0x108] sm:$0xff]
      %v6490 = vld [vmem:[%s246 + $0x110] sm:$0xff]
      %v6491 = vld [vmem:[%s246 + $0x118] sm:$0xff]
      %v6492 = vld [vmem:[%s246 + $0x120] sm:$0xff]
      %v6493 = vld [vmem:[%s246 + $0x128] sm:$0xff]
      %v6494 = vld [vmem:[%s246 + $0x130] sm:$0xff]
      %v6495 = vld [vmem:[%s246 + $0x138] sm:$0xff]
      %v6496 = vld [vmem:[%s246 + $0x140] sm:$0xff]
      %v6497 = vld [vmem:[%s246 + $0x148] sm:$0xff]
      %v6498 = vld [vmem:[%s246 + $0x150] sm:$0xff]
      %v6499 = vld [vmem:[%s246 + $0x158] sm:$0xff]
      %v6500 = vld [vmem:[%s246 + $0x160] sm:$0xff]
      %v6501 = vld [vmem:[%s246 + $0x168] sm:$0xff]
      %v6502 = vld [vmem:[%s246 + $0x170] sm:$0xff]
      %v6503 = vld [vmem:[%s246 + $0x178] sm:$0xff]
      %v6504 = vld [vmem:[%s246 + $0x180] sm:$0xff]
      %v6505 = vld [vmem:[%s246 + $0x188] sm:$0xff]
      %v6506 = vld [vmem:[%s246 + $0x190] sm:$0xff]
      %v6507 = vld [vmem:[%s246 + $0x198] sm:$0xff]
      %v6508 = vld [vmem:[%s246 + $0x1a0] sm:$0xff]
      %v6509 = vld [vmem:[%s246 + $0x1a8] sm:$0xff]
      %v6510 = vld [vmem:[%s246 + $0x1b0] sm:$0xff]
      %v6511 = vld [vmem:[%s246 + $0x1b8] sm:$0xff]
      %v6512 = vld [vmem:[%s246 + $0x1c0] sm:$0xff]
      %v6513 = vld [vmem:[%s246 + $0x1c8] sm:$0xff]
      %v6514 = vld [vmem:[%s246 + $0x1d0] sm:$0xff]
      %v6515 = vld [vmem:[%s246 + $0x1d8] sm:$0xff]
      %v6516 = vld [vmem:[%s246 + $0x1e0] sm:$0xff]
      %v6517 = vld [vmem:[%s246 + $0x1e8] sm:$0xff]
      %v6518 = vld [vmem:[%s246 + $0x1f0] sm:$0xff]
      %v6519 = vld [vmem:[%s246 + $0x1f8] sm:$0xff]
      %v6520 = vld [vmem:[%s246 + $0x200] sm:$0xff]
      %v6521 = vld [vmem:[%s246 + $0x208] sm:$0xff]
      %v6522 = vld [vmem:[%s246 + $0x210] sm:$0xff]
      %v6523 = vld [vmem:[%s246 + $0x218] sm:$0xff]
      %v6524 = vld [vmem:[%s246 + $0x220] sm:$0xff]
      %v6525 = vld [vmem:[%s246 + $0x228] sm:$0xff]
      %v6526 = vld [vmem:[%s246 + $0x230] sm:$0xff]
      %v6527 = vld [vmem:[%s246 + $0x238] sm:$0xff]
      %v6528 = vld [vmem:[%s246 + $0x240] sm:$0xff]
      %v6529 = vld [vmem:[%s246 + $0x248] sm:$0xff]
      %v6530 = vld [vmem:[%s246 + $0x250] sm:$0xff]
      %v6531 = vld [vmem:[%s246 + $0x258] sm:$0xff]
      %s6532 = scalar_lea.vmem %s1, 896
      %v6533 = vld [vmem:[%s6532] sm:$0xf]
      %v6534 = vld [vmem:[%s6532 + $0x4] sm:$0xf]
      %v6535 = vld [vmem:[%s6532 + $0x8] sm:$0xf]
      %v6536 = vld [vmem:[%s6532 + $0xc] sm:$0xf]
      %v6537 = vld [vmem:[%s6532 + $0x10] sm:$0xf]
      %v6538 = vld [vmem:[%s6532 + $0x14] sm:$0xf]
      %v6539 = vld [vmem:[%s6532 + $0x18] sm:$0xf]
      %v6540 = vld [vmem:[%s6532 + $0x1c] sm:$0xf]
      %v6541 = vld [vmem:[%s6532 + $0x20] sm:$0xf]
      %v6542 = vld [vmem:[%s6532 + $0x24] sm:$0xf]
      %v6543 = vld [vmem:[%s6532 + $0x28] sm:$0xf]
      %v6544 = vld [vmem:[%s6532 + $0x2c] sm:$0xf]
      %v6545 = vld [vmem:[%s6532 + $0x30] sm:$0xf]
      %v6546 = vld [vmem:[%s6532 + $0x34] sm:$0xf]
      %v6547 = vld [vmem:[%s6532 + $0x38] sm:$0xf]
      %v6548 = vld [vmem:[%s6532 + $0x3c] sm:$0xf]
      %v6549 = vld [vmem:[%s6532 + $0x40] sm:$0xf]
      %v6550 = vld [vmem:[%s6532 + $0x44] sm:$0xf]
      %v6551 = vld [vmem:[%s6532 + $0x48] sm:$0xf]
      %v6552 = vld [vmem:[%s6532 + $0x4c] sm:$0xf]
      %v6553 = vld [vmem:[%s6532 + $0x50] sm:$0xf]
      %v6554 = vld [vmem:[%s6532 + $0x54] sm:$0xf]
      %v6555 = vld [vmem:[%s6532 + $0x58] sm:$0xf]
      %v6556 = vld [vmem:[%s6532 + $0x5c] sm:$0xf]
      %v6557 = vld [vmem:[%s6532 + $0x60] sm:$0xf]
      %v6558 = vld [vmem:[%s6532 + $0x64] sm:$0xf]
      %v6559 = vld [vmem:[%s6532 + $0x68] sm:$0xf]
      %v6560 = vld [vmem:[%s6532 + $0x6c] sm:$0xf]
      %v6561 = vld [vmem:[%s6532 + $0x70] sm:$0xf]
      %v6562 = vld [vmem:[%s6532 + $0x74] sm:$0xf]
      %v6563 = vld [vmem:[%s6532 + $0x78] sm:$0xf]
      %v6564 = vld [vmem:[%s6532 + $0x7c] sm:$0xf]
      %v6629 = vunpack.c.l.b16 %v6468
      %v6630 = vunpack.c.h.b16 %v6468
      %v6631 = vunpack.c.l.b16 %v6469
      %v6632 = vunpack.c.h.b16 %v6469
      %v6633 = vunpack.c.l.b16 %v6470
      %v6634 = vunpack.c.h.b16 %v6470
      %v6635 = vunpack.c.l.b16 %v6471
      %v6636 = vunpack.c.h.b16 %v6471
      %v6637 = vunpack.c.l.b16 %v6472
      %v6638 = vunpack.c.h.b16 %v6472
      %v6639 = vunpack.c.l.b16 %v6473
      %v6640 = vunpack.c.h.b16 %v6473
      %v6641 = vunpack.c.l.b16 %v6474
      %v6642 = vunpack.c.h.b16 %v6474
      %v6643 = vunpack.c.l.b16 %v6475
      %v6644 = vunpack.c.h.b16 %v6475
      %v6645 = vunpack.c.l.b16 %v6476
      %v6646 = vunpack.c.h.b16 %v6476
      %v6647 = vunpack.c.l.b16 %v6477
      %v6648 = vunpack.c.h.b16 %v6477
      %v6649 = vunpack.c.l.b16 %v6478
      %v6650 = vunpack.c.h.b16 %v6478
      %v6651 = vunpack.c.l.b16 %v6479
      %v6652 = vunpack.c.h.b16 %v6479
      %v6653 = vunpack.c.l.b16 %v6480
      %v6654 = vunpack.c.h.b16 %v6480
      %v6655 = vunpack.c.l.b16 %v6481
      %v6656 = vunpack.c.h.b16 %v6481
      %v6657 = vunpack.c.l.b16 %v6482
      %v6658 = vunpack.c.h.b16 %v6482
      %v6659 = vunpack.c.l.b16 %v6483
      %v6660 = vunpack.c.h.b16 %v6483
      %v6661 = vunpack.c.l.b16 %v6484
      %v6662 = vunpack.c.h.b16 %v6484
      %v6663 = vunpack.c.l.b16 %v6485
      %v6664 = vunpack.c.h.b16 %v6485
      %v6665 = vunpack.c.l.b16 %v6486
      %v6666 = vunpack.c.h.b16 %v6486
      %v6667 = vunpack.c.l.b16 %v6487
      %v6668 = vunpack.c.h.b16 %v6487
      %v6669 = vunpack.c.l.b16 %v6488
      %v6670 = vunpack.c.h.b16 %v6488
      %v6671 = vunpack.c.l.b16 %v6489
      %v6672 = vunpack.c.h.b16 %v6489
      %v6673 = vunpack.c.l.b16 %v6490
      %v6674 = vunpack.c.h.b16 %v6490
      %v6675 = vunpack.c.l.b16 %v6491
      %v6676 = vunpack.c.h.b16 %v6491
      %v6677 = vunpack.c.l.b16 %v6492
      %v6678 = vunpack.c.h.b16 %v6492
      %v6679 = vunpack.c.l.b16 %v6493
      %v6680 = vunpack.c.h.b16 %v6493
      %v6681 = vunpack.c.l.b16 %v6494
      %v6682 = vunpack.c.h.b16 %v6494
      %v6683 = vunpack.c.l.b16 %v6495
      %v6684 = vunpack.c.h.b16 %v6495
      %v6685 = vunpack.c.l.b16 %v6496
      %v6686 = vunpack.c.h.b16 %v6496
      %v6687 = vunpack.c.l.b16 %v6497
      %v6688 = vunpack.c.h.b16 %v6497
      %v6689 = vunpack.c.l.b16 %v6498
      %v6690 = vunpack.c.h.b16 %v6498
      %v6691 = vunpack.c.l.b16 %v6499
      %v6692 = vunpack.c.h.b16 %v6499
      %v6693 = vunpack.c.l.b16 %v6500
      %v6694 = vunpack.c.h.b16 %v6500
      %v6695 = vunpack.c.l.b16 %v6501
      %v6696 = vunpack.c.h.b16 %v6501
      %v6697 = vunpack.c.l.b16 %v6502
      %v6698 = vunpack.c.h.b16 %v6502
      %v6699 = vunpack.c.l.b16 %v6503
      %v6700 = vunpack.c.h.b16 %v6503
      %v6701 = vunpack.c.l.b16 %v6504
      %v6702 = vunpack.c.h.b16 %v6504
      %v6703 = vunpack.c.l.b16 %v6505
      %v6704 = vunpack.c.h.b16 %v6505
      %v6705 = vunpack.c.l.b16 %v6506
      %v6706 = vunpack.c.h.b16 %v6506
      %v6707 = vunpack.c.l.b16 %v6507
      %v6708 = vunpack.c.h.b16 %v6507
      %v6709 = vunpack.c.l.b16 %v6508
      %v6710 = vunpack.c.h.b16 %v6508
      %v6711 = vunpack.c.l.b16 %v6509
      %v6712 = vunpack.c.h.b16 %v6509
      %v6713 = vunpack.c.l.b16 %v6510
      %v6714 = vunpack.c.h.b16 %v6510
      %v6715 = vunpack.c.l.b16 %v6511
      %v6716 = vunpack.c.h.b16 %v6511
      %v6717 = vunpack.c.l.b16 %v6512
      %v6718 = vunpack.c.h.b16 %v6512
      %v6719 = vunpack.c.l.b16 %v6513
      %v6720 = vunpack.c.h.b16 %v6513
      %v6721 = vunpack.c.l.b16 %v6514
      %v6722 = vunpack.c.h.b16 %v6514
      %v6723 = vunpack.c.l.b16 %v6515
      %v6724 = vunpack.c.h.b16 %v6515
      %v6725 = vunpack.c.l.b16 %v6516
      %v6726 = vunpack.c.h.b16 %v6516
      %v6727 = vunpack.c.l.b16 %v6517
      %v6728 = vunpack.c.h.b16 %v6517
      %v6729 = vunpack.c.l.b16 %v6518
      %v6730 = vunpack.c.h.b16 %v6518
      %v6731 = vunpack.c.l.b16 %v6519
      %v6732 = vunpack.c.h.b16 %v6519
      %v6733 = vunpack.c.l.b16 %v6520
      %v6734 = vunpack.c.h.b16 %v6520
      %v6735 = vunpack.c.l.b16 %v6521
      %v6736 = vunpack.c.h.b16 %v6521
      %v6737 = vunpack.c.l.b16 %v6522
      %v6738 = vunpack.c.h.b16 %v6522
      %v6739 = vunpack.c.l.b16 %v6523
      %v6740 = vunpack.c.h.b16 %v6523
      %v6741 = vunpack.c.l.b16 %v6524
      %v6742 = vunpack.c.h.b16 %v6524
      %v6743 = vunpack.c.l.b16 %v6525
      %v6744 = vunpack.c.h.b16 %v6525
      %v6745 = vunpack.c.l.b16 %v6526
      %v6746 = vunpack.c.h.b16 %v6526
      %v6747 = vunpack.c.l.b16 %v6527
      %v6748 = vunpack.c.h.b16 %v6527
      %v6749 = vunpack.c.l.b16 %v6528
      %v6750 = vunpack.c.h.b16 %v6528
      %v6751 = vunpack.c.l.b16 %v6529
      %v6752 = vunpack.c.h.b16 %v6529
      %v6753 = vunpack.c.l.b16 %v6530
      %v6754 = vunpack.c.h.b16 %v6530
      %v6755 = vunpack.c.l.b16 %v6531
      %v6756 = vunpack.c.h.b16 %v6531
      %v6757 = vpack.c.b16 %v6631, %v6629
      %v6758 = vpack.c.b16 %v6632, %v6630
      %v6759 = vpack.c.b16 %v6635, %v6633
      %v6760 = vpack.c.b16 %v6636, %v6634
      %v6761 = vpack.c.b16 %v6639, %v6637
      %v6762 = vpack.c.b16 %v6640, %v6638
      %v6763 = vpack.c.b16 %v6643, %v6641
      %v6764 = vpack.c.b16 %v6644, %v6642
      %v6765 = vpack.c.b16 %v6647, %v6645
      %v6766 = vpack.c.b16 %v6648, %v6646
      %v6767 = vpack.c.b16 %v6651, %v6649
      %v6768 = vpack.c.b16 %v6652, %v6650
      %v6769 = vpack.c.b16 %v6655, %v6653
      %v6770 = vpack.c.b16 %v6656, %v6654
      %v6771 = vpack.c.b16 %v6659, %v6657
      %v6772 = vpack.c.b16 %v6660, %v6658
      %v6773 = vpack.c.b16 %v6663, %v6661
      %v6774 = vpack.c.b16 %v6664, %v6662
      %v6775 = vpack.c.b16 %v6667, %v6665
      %v6776 = vpack.c.b16 %v6668, %v6666
      %v6777 = vpack.c.b16 %v6671, %v6669
      %v6778 = vpack.c.b16 %v6672, %v6670
      %v6779 = vpack.c.b16 %v6675, %v6673
      %v6780 = vpack.c.b16 %v6676, %v6674
      %v6781 = vpack.c.b16 %v6679, %v6677
      %v6782 = vpack.c.b16 %v6680, %v6678
      %v6783 = vpack.c.b16 %v6683, %v6681
      %v6784 = vpack.c.b16 %v6684, %v6682
      %v6785 = vpack.c.b16 %v6687, %v6685
      %v6786 = vpack.c.b16 %v6688, %v6686
      %v6787 = vpack.c.b16 %v6691, %v6689
      %v6788 = vpack.c.b16 %v6692, %v6690
      %v6789 = vpack.c.b16 %v6695, %v6693
      %v6790 = vpack.c.b16 %v6696, %v6694
      %v6791 = vpack.c.b16 %v6699, %v6697
      %v6792 = vpack.c.b16 %v6700, %v6698
      %v6793 = vpack.c.b16 %v6703, %v6701
      %v6794 = vpack.c.b16 %v6704, %v6702
      %v6795 = vpack.c.b16 %v6707, %v6705
      %v6796 = vpack.c.b16 %v6708, %v6706
      %v6797 = vpack.c.b16 %v6711, %v6709
      %v6798 = vpack.c.b16 %v6712, %v6710
      %v6799 = vpack.c.b16 %v6715, %v6713
      %v6800 = vpack.c.b16 %v6716, %v6714
      %v6801 = vpack.c.b16 %v6719, %v6717
      %v6802 = vpack.c.b16 %v6720, %v6718
      %v6803 = vpack.c.b16 %v6723, %v6721
      %v6804 = vpack.c.b16 %v6724, %v6722
      %v6805 = vpack.c.b16 %v6727, %v6725
      %v6806 = vpack.c.b16 %v6728, %v6726
      %v6807 = vpack.c.b16 %v6731, %v6729
      %v6808 = vpack.c.b16 %v6732, %v6730
      %v6809 = vpack.c.b16 %v6735, %v6733
      %v6810 = vpack.c.b16 %v6736, %v6734
      %v6811 = vpack.c.b16 %v6739, %v6737
      %v6812 = vpack.c.b16 %v6740, %v6738
      %v6813 = vpack.c.b16 %v6743, %v6741
      %v6814 = vpack.c.b16 %v6744, %v6742
      %v6815 = vpack.c.b16 %v6747, %v6745
      %v6816 = vpack.c.b16 %v6748, %v6746
      %v6817 = vpack.c.b16 %v6751, %v6749
      %v6818 = vpack.c.b16 %v6752, %v6750
      %v6819 = vpack.c.b16 %v6755, %v6753
      %v6820 = vpack.c.b16 %v6756, %v6754
      %v6917 = vunpack.c.l.b16 %v6533
      %v6918 = vunpack.c.l.b16 %v6534
      %v6919 = vunpack.c.l.b16 %v6535
      %v6920 = vunpack.c.l.b16 %v6536
      %v6921 = vunpack.c.l.b16 %v6537
      %v6922 = vunpack.c.l.b16 %v6538
      %v6923 = vunpack.c.l.b16 %v6539
      %v6924 = vunpack.c.l.b16 %v6540
      %v6925 = vunpack.c.l.b16 %v6541
      %v6926 = vunpack.c.l.b16 %v6542
      %v6927 = vunpack.c.l.b16 %v6543
      %v6928 = vunpack.c.l.b16 %v6544
      %v6929 = vunpack.c.l.b16 %v6545
      %v6930 = vunpack.c.l.b16 %v6546
      %v6931 = vunpack.c.l.b16 %v6547
      %v6932 = vunpack.c.l.b16 %v6548
      %v6933 = vunpack.c.l.b16 %v6549
      %v6934 = vunpack.c.l.b16 %v6550
      %v6935 = vunpack.c.l.b16 %v6551
      %v6936 = vunpack.c.l.b16 %v6552
      %v6937 = vunpack.c.l.b16 %v6553
      %v6938 = vunpack.c.l.b16 %v6554
      %v6939 = vunpack.c.l.b16 %v6555
      %v6940 = vunpack.c.l.b16 %v6556
      %v6941 = vunpack.c.l.b16 %v6557
      %v6942 = vunpack.c.l.b16 %v6558
      %v6943 = vunpack.c.l.b16 %v6559
      %v6944 = vunpack.c.l.b16 %v6560
      %v6945 = vunpack.c.l.b16 %v6561
      %v6946 = vunpack.c.l.b16 %v6562
      %v6947 = vunpack.c.l.b16 %v6563
      %v6948 = vunpack.c.l.b16 %v6564
      %v6949 = vpack.c.b16 %v6918, %v6917
      %v6950 = vpack.c.b16 %v6920, %v6919
      %v6951 = vpack.c.b16 %v6922, %v6921
      %v6952 = vpack.c.b16 %v6924, %v6923
      %v6953 = vpack.c.b16 %v6926, %v6925
      %v6954 = vpack.c.b16 %v6928, %v6927
      %v6955 = vpack.c.b16 %v6930, %v6929
      %v6956 = vpack.c.b16 %v6932, %v6931
      %v6957 = vpack.c.b16 %v6934, %v6933
      %v6958 = vpack.c.b16 %v6936, %v6935
      %v6959 = vpack.c.b16 %v6938, %v6937
      %v6960 = vpack.c.b16 %v6940, %v6939
      %v6961 = vpack.c.b16 %v6942, %v6941
      %v6962 = vpack.c.b16 %v6944, %v6943
      %v6963 = vpack.c.b16 %v6946, %v6945
      %v6964 = vpack.c.b16 %v6948, %v6947
      %6981 = vmatprep.subr.bf16.mxu0 0
      %6982 = vmatpush1.bf16.msra.mxu0 %v6949
      %6983 = vmatprep.subr.bf16.mxu0 0
      %6984 = vmatpush1.bf16.msra.mxu0 %v6950
      %6985 = vmatprep.subr.bf16.mxu0 0
      %6986 = vmatpush1.bf16.msra.mxu0 %v6951
      %6987 = vmatprep.subr.bf16.mxu0 0
      %6988 = vmatpush1.bf16.msra.mxu0 %v6952
      %6989 = vmatprep.subr.bf16.mxu0 0
      %6990 = vmatpush1.bf16.msra.mxu0 %v6953
      %6991 = vmatprep.subr.bf16.mxu0 0
      %6992 = vmatpush1.bf16.msra.mxu0 %v6954
      %6993 = vmatprep.subr.bf16.mxu0 0
      %6994 = vmatpush1.bf16.msra.mxu0 %v6955
      %6995 = vmatprep.subr.bf16.mxu0 0
      %6996 = vmatpush1.bf16.msra.mxu0 %v6956
      %6997 = vmatprep.subr.bf16.mxu0 0
      %6998 = vmatpush1.bf16.msra.mxu0 %v6957
      %6999 = vmatprep.subr.bf16.mxu0 0
      %7000 = vmatpush1.bf16.msra.mxu0 %v6958
      %7001 = vmatprep.subr.bf16.mxu0 0
      %7002 = vmatpush1.bf16.msra.mxu0 %v6959
      %7003 = vmatprep.subr.bf16.mxu0 0
      %7004 = vmatpush1.bf16.msra.mxu0 %v6960
      %7005 = vmatprep.subr.bf16.mxu0 0
      %7006 = vmatpush1.bf16.msra.mxu0 %v6961
      %7007 = vmatprep.subr.bf16.mxu0 0
      %7008 = vmatpush1.bf16.msra.mxu0 %v6962
      %7009 = vmatprep.subr.bf16.mxu0 0
      %7010 = vmatpush1.bf16.msra.mxu0 %v6963
      %7011 = vmatprep.subr.bf16.mxu0 0
      %7012 = vmatpush1.bf16.msra.mxu0 %v6964
      %7013 = vmatprep.mubr.bf16.mxu0 %v6758
      %7014 = vmatmul.mubr.bf16.gmra.mrb[0].mxu0 %v6757
      %v7015 = vpop.f32.mrb[0].mxu0
      %v7016 = vadd.f32 0.0, %v7015
      %v7017 = vpop.f32.mrb[0].mxu0
      %v7018 = vpop.f32.mrb[0].mxu0
      %v7019 = vadd.f32 0.0, %v7018
      %v7020 = vpop.f32.mrb[0].mxu0
      %7021 = vmatprep.mubr.bf16.mxu0 %v6760
      %7022 = vmatmul.mubr.bf16.gmra.mrb[0].mxu0 %v6759
      %v7023 = vpop.f32.mrb[0].mxu0
      %v7024 = vadd.f32 0.0, %v7023
      %v7025 = vpop.f32.mrb[0].mxu0
      %v7026 = vpop.f32.mrb[0].mxu0
      %v7027 = vadd.f32 0.0, %v7026
      %v7028 = vpop.f32.mrb[0].mxu0
      %7029 = vmatprep.mubr.bf16.mxu0 %v6762
      %7030 = vmatmul.mubr.bf16.gmra.mrb[0].mxu0 %v6761
      %v7031 = vpop.f32.mrb[0].mxu0
      %v7032 = vadd.f32 0.0, %v7031
      %v7033 = vpop.f32.mrb[0].mxu0
      %v7034 = vpop.f32.mrb[0].mxu0
      %v7035 = vadd.f32 0.0, %v7034
      %v7036 = vpop.f32.mrb[0].mxu0
      %7037 = vmatprep.mubr.bf16.mxu0 %v6764
      %7038 = vmatmul.mubr.bf16.gmra.mrb[0].mxu0 %v6763
      %v7039 = vpop.f32.mrb[0].mxu0
      %v7040 = vadd.f32 0.0, %v7039
      %v7041 = vpop.f32.mrb[0].mxu0
      %v7042 = vpop.f32.mrb[0].mxu0
      %v7043 = vadd.f32 0.0, %v7042
      %v7044 = vpop.f32.mrb[0].mxu0
      %7045 = vmatprep.mubr.bf16.mxu0 %v6766
      %7046 = vmatmul.mubr.bf16.gmra.mrb[0].mxu0 %v6765
      %v7047 = vpop.f32.mrb[0].mxu0
      %v7048 = vadd.f32 0.0, %v7047
      %v7049 = vpop.f32.mrb[0].mxu0
      %v7050 = vpop.f32.mrb[0].mxu0
      %v7051 = vadd.f32 0.0, %v7050
      %v7052 = vpop.f32.mrb[0].mxu0
      %7053 = vmatprep.mubr.bf16.mxu0 %v6768
      %7054 = vmatmul.mubr.bf16.gmra.mrb[0].mxu0 %v6767
      %v7055 = vpop.f32.mrb[0].mxu0
      %v7056 = vadd.f32 0.0, %v7055
      %v7057 = vpop.f32.mrb[0].mxu0
      %v7058 = vpop.f32.mrb[0].mxu0
      %v7059 = vadd.f32 0.0, %v7058
      %v7060 = vpop.f32.mrb[0].mxu0
      %7061 = vmatprep.mubr.bf16.mxu0 %v6770
      %7062 = vmatmul.mubr.bf16.gmra.mrb[0].mxu0 %v6769
      %v7063 = vpop.f32.mrb[0].mxu0
      %v7064 = vadd.f32 0.0, %v7063
      %v7065 = vpop.f32.mrb[0].mxu0
      %v7066 = vpop.f32.mrb[0].mxu0
      %v7067 = vadd.f32 0.0, %v7066
      %v7068 = vpop.f32.mrb[0].mxu0
      %7069 = vmatprep.mubr.bf16.mxu0 %v6772
      %7070 = vmatmul.mubr.bf16.gmra.mrb[0].mxu0 %v6771
      %v7071 = vpop.f32.mrb[0].mxu0
      %v7072 = vadd.f32 0.0, %v7071
      %v7073 = vpop.f32.mrb[0].mxu0
      %v7074 = vpop.f32.mrb[0].mxu0
      %v7075 = vadd.f32 0.0, %v7074
      %v7076 = vpop.f32.mrb[0].mxu0
      %7077 = vmatprep.mubr.bf16.mxu0 %v6774
      %7078 = vmatmul.mubr.bf16.gmra.mrb[0].mxu0 %v6773
      %v7079 = vpop.f32.mrb[0].mxu0
      %v7080 = vadd.f32 0.0, %v7079
      %v7081 = vpop.f32.mrb[0].mxu0
      %v7082 = vpop.f32.mrb[0].mxu0
      %v7083 = vadd.f32 0.0, %v7082
      %v7084 = vpop.f32.mrb[0].mxu0
      %7085 = vmatprep.mubr.bf16.mxu0 %v6776
      %7086 = vmatmul.mubr.bf16.gmra.mrb[0].mxu0 %v6775
      %v7087 = vpop.f32.mrb[0].mxu0
      %v7088 = vadd.f32 0.0, %v7087
      %v7089 = vpop.f32.mrb[0].mxu0
      %v7090 = vpop.f32.mrb[0].mxu0
      %v7091 = vadd.f32 0.0, %v7090
      %v7092 = vpop.f32.mrb[0].mxu0
      %7093 = vmatprep.mubr.bf16.mxu0 %v6778
      %7094 = vmatmul.mubr.bf16.gmra.mrb[0].mxu0 %v6777
      %v7095 = vpop.f32.mrb[0].mxu0
      %v7096 = vadd.f32 0.0, %v7095
      %v7097 = vpop.f32.mrb[0].mxu0
      %v7098 = vpop.f32.mrb[0].mxu0
      %v7099 = vadd.f32 0.0, %v7098
      %v7100 = vpop.f32.mrb[0].mxu0
      %7101 = vmatprep.mubr.bf16.mxu0 %v6780
      %7102 = vmatmul.mubr.bf16.gmra.mrb[0].mxu0 %v6779
      %v7103 = vpop.f32.mrb[0].mxu0
      %v7104 = vadd.f32 0.0, %v7103
      %v7105 = vpop.f32.mrb[0].mxu0
      %v7106 = vpop.f32.mrb[0].mxu0
      %v7107 = vadd.f32 0.0, %v7106
      %v7108 = vpop.f32.mrb[0].mxu0
      %7109 = vmatprep.mubr.bf16.mxu0 %v6782
      %7110 = vmatmul.mubr.bf16.gmra.mrb[0].mxu0 %v6781
      %v7111 = vpop.f32.mrb[0].mxu0
      %v7112 = vadd.f32 0.0, %v7111
      %v7113 = vpop.f32.mrb[0].mxu0
      %v7114 = vpop.f32.mrb[0].mxu0
      %v7115 = vadd.f32 0.0, %v7114
      %v7116 = vpop.f32.mrb[0].mxu0
      %7117 = vmatprep.mubr.bf16.mxu0 %v6784
      %7118 = vmatmul.mubr.bf16.gmra.mrb[0].mxu0 %v6783
      %v7119 = vpop.f32.mrb[0].mxu0
      %v7120 = vadd.f32 0.0, %v7119
      %v7121 = vpop.f32.mrb[0].mxu0
      %v7122 = vpop.f32.mrb[0].mxu0
      %v7123 = vadd.f32 0.0, %v7122
      %v7124 = vpop.f32.mrb[0].mxu0
      %7125 = vmatprep.mubr.bf16.mxu0 %v6786
      %7126 = vmatmul.mubr.bf16.gmra.mrb[0].mxu0 %v6785
      %v7127 = vpop.f32.mrb[0].mxu0
      %v7128 = vadd.f32 0.0, %v7127
      %v7129 = vpop.f32.mrb[0].mxu0
      %v7130 = vpop.f32.mrb[0].mxu0
      %v7131 = vadd.f32 0.0, %v7130
      %v7132 = vpop.f32.mrb[0].mxu0
      %7133 = vmatprep.mubr.bf16.mxu0 %v6788
      %7134 = vmatmul.mubr.bf16.gmra.mrb[0].mxu0 %v6787
      %v7135 = vpop.f32.mrb[0].mxu0
      %v7136 = vadd.f32 0.0, %v7135
      %v7137 = vpop.f32.mrb[0].mxu0
      %v7138 = vpop.f32.mrb[0].mxu0
      %v7139 = vadd.f32 0.0, %v7138
      %v7140 = vpop.f32.mrb[0].mxu0
      %7141 = vmatprep.mubr.bf16.mxu0 %v6790
      %7142 = vmatmul.mubr.bf16.gmra.mrb[0].mxu0 %v6789
      %v7143 = vpop.f32.mrb[0].mxu0
      %v7144 = vadd.f32 0.0, %v7143
      %v7145 = vpop.f32.mrb[0].mxu0
      %v7146 = vpop.f32.mrb[0].mxu0
      %v7147 = vadd.f32 0.0, %v7146
      %v7148 = vpop.f32.mrb[0].mxu0
      %7149 = vmatprep.mubr.bf16.mxu0 %v6792
      %7150 = vmatmul.mubr.bf16.gmra.mrb[0].mxu0 %v6791
      %v7151 = vpop.f32.mrb[0].mxu0
      %v7152 = vadd.f32 0.0, %v7151
      %v7153 = vpop.f32.mrb[0].mxu0
      %v7154 = vpop.f32.mrb[0].mxu0
      %v7155 = vadd.f32 0.0, %v7154
      %v7156 = vpop.f32.mrb[0].mxu0
      %7157 = vmatprep.mubr.bf16.mxu0 %v6794
      %7158 = vmatmul.mubr.bf16.gmra.mrb[0].mxu0 %v6793
      %v7159 = vpop.f32.mrb[0].mxu0
      %v7160 = vadd.f32 0.0, %v7159
      %v7161 = vpop.f32.mrb[0].mxu0
      %v7162 = vpop.f32.mrb[0].mxu0
      %v7163 = vadd.f32 0.0, %v7162
      %v7164 = vpop.f32.mrb[0].mxu0
      %7165 = vmatprep.mubr.bf16.mxu0 %v6796
      %7166 = vmatmul.mubr.bf16.gmra.mrb[0].mxu0 %v6795
      %v7167 = vpop.f32.mrb[0].mxu0
      %v7168 = vadd.f32 0.0, %v7167
      %v7169 = vpop.f32.mrb[0].mxu0
      %v7170 = vpop.f32.mrb[0].mxu0
      %v7171 = vadd.f32 0.0, %v7170
      %v7172 = vpop.f32.mrb[0].mxu0
      %7173 = vmatprep.mubr.bf16.mxu0 %v6798
      %7174 = vmatmul.mubr.bf16.gmra.mrb[0].mxu0 %v6797
      %v7175 = vpop.f32.mrb[0].mxu0
      %v7176 = vadd.f32 0.0, %v7175
      %v7177 = vpop.f32.mrb[0].mxu0
      %v7178 = vpop.f32.mrb[0].mxu0
      %v7179 = vadd.f32 0.0, %v7178
      %v7180 = vpop.f32.mrb[0].mxu0
      %7181 = vmatprep.mubr.bf16.mxu0 %v6800
      %7182 = vmatmul.mubr.bf16.gmra.mrb[0].mxu0 %v6799
      %v7183 = vpop.f32.mrb[0].mxu0
      %v7184 = vadd.f32 0.0, %v7183
      %v7185 = vpop.f32.mrb[0].mxu0
      %v7186 = vpop.f32.mrb[0].mxu0
      %v7187 = vadd.f32 0.0, %v7186
      %v7188 = vpop.f32.mrb[0].mxu0
      %7189 = vmatprep.mubr.bf16.mxu0 %v6802
      %7190 = vmatmul.mubr.bf16.gmra.mrb[0].mxu0 %v6801
      %v7191 = vpop.f32.mrb[0].mxu0
      %v7192 = vadd.f32 0.0, %v7191
      %v7193 = vpop.f32.mrb[0].mxu0
      %v7194 = vpop.f32.mrb[0].mxu0
      %v7195 = vadd.f32 0.0, %v7194
      %v7196 = vpop.f32.mrb[0].mxu0
      %7197 = vmatprep.mubr.bf16.mxu0 %v6804
      %7198 = vmatmul.mubr.bf16.gmra.mrb[0].mxu0 %v6803
      %v7199 = vpop.f32.mrb[0].mxu0
      %v7200 = vadd.f32 0.0, %v7199
      %v7201 = vpop.f32.mrb[0].mxu0
      %v7202 = vpop.f32.mrb[0].mxu0
      %v7203 = vadd.f32 0.0, %v7202
      %v7204 = vpop.f32.mrb[0].mxu0
      %7205 = vmatprep.mubr.bf16.mxu0 %v6806
      %7206 = vmatmul.mubr.bf16.gmra.mrb[0].mxu0 %v6805
      %v7207 = vpop.f32.mrb[0].mxu0
      %v7208 = vadd.f32 0.0, %v7207
      %v7209 = vpop.f32.mrb[0].mxu0
      %v7210 = vpop.f32.mrb[0].mxu0
      %v7211 = vadd.f32 0.0, %v7210
      %v7212 = vpop.f32.mrb[0].mxu0
      %7213 = vmatprep.mubr.bf16.mxu0 %v6808
      %7214 = vmatmul.mubr.bf16.gmra.mrb[0].mxu0 %v6807
      %v7215 = vpop.f32.mrb[0].mxu0
      %v7216 = vadd.f32 0.0, %v7215
      %v7217 = vpop.f32.mrb[0].mxu0
      %v7218 = vpop.f32.mrb[0].mxu0
      %v7219 = vadd.f32 0.0, %v7218
      %v7220 = vpop.f32.mrb[0].mxu0
      %7221 = vmatprep.mubr.bf16.mxu0 %v6810
      %7222 = vmatmul.mubr.bf16.gmra.mrb[0].mxu0 %v6809
      %v7223 = vpop.f32.mrb[0].mxu0
      %v7224 = vadd.f32 0.0, %v7223
      %v7225 = vpop.f32.mrb[0].mxu0
      %v7226 = vpop.f32.mrb[0].mxu0
      %v7227 = vadd.f32 0.0, %v7226
      %v7228 = vpop.f32.mrb[0].mxu0
      %7229 = vmatprep.mubr.bf16.mxu0 %v6812
      %7230 = vmatmul.mubr.bf16.gmra.mrb[0].mxu0 %v6811
      %v7231 = vpop.f32.mrb[0].mxu0
      %v7232 = vadd.f32 0.0, %v7231
      %v7233 = vpop.f32.mrb[0].mxu0
      %v7234 = vpop.f32.mrb[0].mxu0
      %v7235 = vadd.f32 0.0, %v7234
      %v7236 = vpop.f32.mrb[0].mxu0
      %7237 = vmatprep.mubr.bf16.mxu0 %v6814
      %7238 = vmatmul.mubr.bf16.gmra.mrb[0].mxu0 %v6813
      %v7239 = vpop.f32.mrb[0].mxu0
      %v7240 = vadd.f32 0.0, %v7239
      %v7241 = vpop.f32.mrb[0].mxu0
      %v7242 = vpop.f32.mrb[0].mxu0
      %v7243 = vadd.f32 0.0, %v7242
      %v7244 = vpop.f32.mrb[0].mxu0
      %7245 = vmatprep.mubr.bf16.mxu0 %v6816
      %7246 = vmatmul.mubr.bf16.gmra.mrb[0].mxu0 %v6815
      %v7247 = vpop.f32.mrb[0].mxu0
      %v7248 = vadd.f32 0.0, %v7247
      %v7249 = vpop.f32.mrb[0].mxu0
      %v7250 = vpop.f32.mrb[0].mxu0
      %v7251 = vadd.f32 0.0, %v7250
      %v7252 = vpop.f32.mrb[0].mxu0
      %7253 = vmatprep.mubr.bf16.mxu0 %v6818
      %7254 = vmatmul.mubr.bf16.gmra.mrb[0].mxu0 %v6817
      %v7255 = vpop.f32.mrb[0].mxu0
      %v7256 = vadd.f32 0.0, %v7255
      %v7257 = vpop.f32.mrb[0].mxu0
      %v7258 = vpop.f32.mrb[0].mxu0
      %v7259 = vadd.f32 0.0, %v7258
      %v7260 = vpop.f32.mrb[0].mxu0
      %7261 = vmatprep.mubr.bf16.mxu0 %v6820
      %7262 = vmatmul.mubr.bf16.gmra.mrb[0].mxu0 %v6819
      %v7263 = vpop.f32.mrb[0].mxu0
      %v7264 = vadd.f32 0.0, %v7263
      %v7265 = vpop.f32.mrb[0].mxu0
      %v7266 = vpop.f32.mrb[0].mxu0
      %v7267 = vadd.f32 0.0, %v7266
      %v7268 = vpop.f32.mrb[0].mxu0
      %7269 = vdwg.mxu0
      %v7270 = vadd.f32 %v6404, %v7016
      %v7271 = vadd.f32 %v6405, %v7019
      %v7272 = vadd.f32 %v6406, %v7024
      %v7273 = vadd.f32 %v6407, %v7027
      %v7274 = vadd.f32 %v6408, %v7032
      %v7275 = vadd.f32 %v6409, %v7035
      %v7276 = vadd.f32 %v6410, %v7040
      %v7277 = vadd.f32 %v6411, %v7043
      %v7278 = vadd.f32 %v6412, %v7048
      %v7279 = vadd.f32 %v6413, %v7051
      %v7280 = vadd.f32 %v6414, %v7056
      %v7281 = vadd.f32 %v6415, %v7059
      %v7282 = vadd.f32 %v6416, %v7064
      %v7283 = vadd.f32 %v6417, %v7067
      %v7284 = vadd.f32 %v6418, %v7072
      %v7285 = vadd.f32 %v6419, %v7075
      %v7286 = vadd.f32 %v6420, %v7080
      %v7287 = vadd.f32 %v6421, %v7083
      %v7288 = vadd.f32 %v6422, %v7088
      %v7289 = vadd.f32 %v6423, %v7091
      %v7290 = vadd.f32 %v6424, %v7096
      %v7291 = vadd.f32 %v6425, %v7099
      %v7292 = vadd.f32 %v6426, %v7104
      %v7293 = vadd.f32 %v6427, %v7107
      %v7294 = vadd.f32 %v6428, %v7112
      %v7295 = vadd.f32 %v6429, %v7115
      %v7296 = vadd.f32 %v6430, %v7120
      %v7297 = vadd.f32 %v6431, %v7123
      %v7298 = vadd.f32 %v6432, %v7128
      %v7299 = vadd.f32 %v6433, %v7131
      %v7300 = vadd.f32 %v6434, %v7136
      %v7301 = vadd.f32 %v6435, %v7139
      %v7302 = vadd.f32 %v6436, %v7144
      %v7303 = vadd.f32 %v6437, %v7147
      %v7304 = vadd.f32 %v6438, %v7152
      %v7305 = vadd.f32 %v6439, %v7155
      %v7306 = vadd.f32 %v6440, %v7160
      %v7307 = vadd.f32 %v6441, %v7163
      %v7308 = vadd.f32 %v6442, %v7168
      %v7309 = vadd.f32 %v6443, %v7171
      %v7310 = vadd.f32 %v6444, %v7176
      %v7311 = vadd.f32 %v6445, %v7179
      %v7312 = vadd.f32 %v6446, %v7184
      %v7313 = vadd.f32 %v6447, %v7187
      %v7314 = vadd.f32 %v6448, %v7192
      %v7315 = vadd.f32 %v6449, %v7195
      %v7316 = vadd.f32 %v6450, %v7200
      %v7317 = vadd.f32 %v6451, %v7203
      %v7318 = vadd.f32 %v6452, %v7208
      %v7319 = vadd.f32 %v6453, %v7211
      %v7320 = vadd.f32 %v6454, %v7216
      %v7321 = vadd.f32 %v6455, %v7219
      %v7322 = vadd.f32 %v6456, %v7224
      %v7323 = vadd.f32 %v6457, %v7227
      %v7324 = vadd.f32 %v6458, %v7232
      %v7325 = vadd.f32 %v6459, %v7235
      %v7326 = vadd.f32 %v6460, %v7240
      %v7327 = vadd.f32 %v6461, %v7243
      %v7328 = vadd.f32 %v6462, %v7248
      %v7329 = vadd.f32 %v6463, %v7251
      %v7330 = vadd.f32 %v6464, %v7256
      %v7331 = vadd.f32 %v6465, %v7259
      %v7332 = vadd.f32 %v6466, %v7264
      %v7333 = vadd.f32 %v6467, %v7267
      %v7334 = vld [vmem:[#allocation2 + $0x250] sm:$0xff]
      %v7335 = vld [vmem:[#allocation2 + $0x258] sm:$0xff]
      %s7336 = scalar_lea.vmem %s1, 1024
      %v7337 = vld [vmem:[%s7336] sm:$0xf]
      %v7338 = vld [vmem:[%s7336 + $0x4] sm:$0xf]
      %v7339 = vld [vmem:[%s7336 + $0x8] sm:$0xf]
      %v7340 = vld [vmem:[%s7336 + $0xc] sm:$0xf]
      %v7341 = vld [vmem:[%s7336 + $0x10] sm:$0xf]
      %v7342 = vld [vmem:[%s7336 + $0x14] sm:$0xf]
      %v7343 = vld [vmem:[%s7336 + $0x18] sm:$0xf]
      %v7344 = vld [vmem:[%s7336 + $0x1c] sm:$0xf]
      %v7345 = vld [vmem:[%s7336 + $0x20] sm:$0xf]
      %v7346 = vld [vmem:[%s7336 + $0x24] sm:$0xf]
      %v7347 = vld [vmem:[%s7336 + $0x28] sm:$0xf]
      %v7348 = vld [vmem:[%s7336 + $0x2c] sm:$0xf]
      %v7349 = vld [vmem:[%s7336 + $0x30] sm:$0xf]
      %v7350 = vld [vmem:[%s7336 + $0x34] sm:$0xf]
      %v7351 = vld [vmem:[%s7336 + $0x38] sm:$0xf]
      %v7352 = vld [vmem:[%s7336 + $0x3c] sm:$0xf]
      %v7353 = vld [vmem:[%s7336 + $0x40] sm:$0xf]
      %v7354 = vld [vmem:[%s7336 + $0x44] sm:$0xf]
      %v7355 = vld [vmem:[%s7336 + $0x48] sm:$0xf]
      %v7356 = vld [vmem:[%s7336 + $0x4c] sm:$0xf]
      %v7357 = vld [vmem:[%s7336 + $0x50] sm:$0xf]
      %v7358 = vld [vmem:[%s7336 + $0x54] sm:$0xf]
      %v7359 = vld [vmem:[%s7336 + $0x58] sm:$0xf]
      %v7360 = vld [vmem:[%s7336 + $0x5c] sm:$0xf]
      %v7361 = vld [vmem:[%s7336 + $0x60] sm:$0xf]
      %v7362 = vld [vmem:[%s7336 + $0x64] sm:$0xf]
      %v7363 = vld [vmem:[%s7336 + $0x68] sm:$0xf]
      %v7364 = vld [vmem:[%s7336 + $0x6c] sm:$0xf]
      %v7365 = vld [vmem:[%s7336 + $0x70] sm:$0xf]
      %v7366 = vld [vmem:[%s7336 + $0x74] sm:$0xf]
      %v7367 = vld [vmem:[%s7336 + $0x78] sm:$0xf]
      %v7368 = vld [vmem:[%s7336 + $0x7c] sm:$0xf]
      %v7401 = vunpack.c.l.b16 %v7337
      %v7402 = vunpack.c.l.b16 %v7338
      %v7403 = vunpack.c.l.b16 %v7339
      %v7404 = vunpack.c.l.b16 %v7340
      %v7405 = vunpack.c.l.b16 %v7341
      %v7406 = vunpack.c.l.b16 %v7342
      %v7407 = vunpack.c.l.b16 %v7343
      %v7408 = vunpack.c.l.b16 %v7344
      %v7409 = vunpack.c.l.b16 %v7345
      %v7410 = vunpack.c.l.b16 %v7346
      %v7411 = vunpack.c.l.b16 %v7347
      %v7412 = vunpack.c.l.b16 %v7348
      %v7413 = vunpack.c.l.b16 %v7349
      %v7414 = vunpack.c.l.b16 %v7350
      %v7415 = vunpack.c.l.b16 %v7351
      %v7416 = vunpack.c.l.b16 %v7352
      %v7417 = vunpack.c.l.b16 %v7353
      %v7418 = vunpack.c.l.b16 %v7354
      %v7419 = vunpack.c.l.b16 %v7355
      %v7420 = vunpack.c.l.b16 %v7356
      %v7421 = vunpack.c.l.b16 %v7357
      %v7422 = vunpack.c.l.b16 %v7358
      %v7423 = vunpack.c.l.b16 %v7359
      %v7424 = vunpack.c.l.b16 %v7360
      %v7425 = vunpack.c.l.b16 %v7361
      %v7426 = vunpack.c.l.b16 %v7362
      %v7427 = vunpack.c.l.b16 %v7363
      %v7428 = vunpack.c.l.b16 %v7364
      %v7429 = vunpack.c.l.b16 %v7365
      %v7430 = vunpack.c.l.b16 %v7366
      %v7431 = vunpack.c.l.b16 %v7367
      %v7432 = vunpack.c.l.b16 %v7368
      %v7433 = vpack.c.b16 %v7402, %v7401
      %v7434 = vpack.c.b16 %v7404, %v7403
      %v7435 = vpack.c.b16 %v7406, %v7405
      %v7436 = vpack.c.b16 %v7408, %v7407
      %v7437 = vpack.c.b16 %v7410, %v7409
      %v7438 = vpack.c.b16 %v7412, %v7411
      %v7439 = vpack.c.b16 %v7414, %v7413
      %v7440 = vpack.c.b16 %v7416, %v7415
      %v7441 = vpack.c.b16 %v7418, %v7417
      %v7442 = vpack.c.b16 %v7420, %v7419
      %v7443 = vpack.c.b16 %v7422, %v7421
      %v7444 = vpack.c.b16 %v7424, %v7423
      %v7445 = vpack.c.b16 %v7426, %v7425
      %v7446 = vpack.c.b16 %v7428, %v7427
      %v7447 = vpack.c.b16 %v7430, %v7429
      %v7448 = vpack.c.b16 %v7432, %v7431
      %7465 = vmatprep.subr.bf16.mxu0 0
      %7466 = vmatpush1.bf16.msra.mxu0 %v7433
      %7467 = vmatprep.subr.bf16.mxu0 0
      %7468 = vmatpush1.bf16.msra.mxu0 %v7434
      %7469 = vmatprep.subr.bf16.mxu0 0
      %7470 = vmatpush1.bf16.msra.mxu0 %v7435
      %7471 = vmatprep.subr.bf16.mxu0 0
      %7472 = vmatpush1.bf16.msra.mxu0 %v7436
      %7473 = vmatprep.subr.bf16.mxu0 0
      %7474 = vmatpush1.bf16.msra.mxu0 %v7437
      %7475 = vmatprep.subr.bf16.mxu0 0
      %7476 = vmatpush1.bf16.msra.mxu0 %v7438
      %7477 = vmatprep.subr.bf16.mxu0 0
      %7478 = vmatpush1.bf16.msra.mxu0 %v7439
      %7479 = vmatprep.subr.bf16.mxu0 0
      %7480 = vmatpush1.bf16.msra.mxu0 %v7440
      %7481 = vmatprep.subr.bf16.mxu0 0
      %7482 = vmatpush1.bf16.msra.mxu0 %v7441
      %7483 = vmatprep.subr.bf16.mxu0 0
      %7484 = vmatpush1.bf16.msra.mxu0 %v7442
      %7485 = vmatprep.subr.bf16.mxu0 0
      %7486 = vmatpush1.bf16.msra.mxu0 %v7443
      %7487 = vmatprep.subr.bf16.mxu0 0
      %7488 = vmatpush1.bf16.msra.mxu0 %v7444
      %7489 = vmatprep.subr.bf16.mxu0 0
      %7490 = vmatpush1.bf16.msra.mxu0 %v7445
      %7491 = vmatprep.subr.bf16.mxu0 0
      %7492 = vmatpush1.bf16.msra.mxu0 %v7446
      %7493 = vmatprep.subr.bf16.mxu0 0
      %7494 = vmatpush1.bf16.msra.mxu0 %v7447
      %7495 = vmatprep.subr.bf16.mxu0 0
      %7496 = vmatpush1.bf16.msra.mxu0 %v7448
      %7497 = vmatprep.mubr.bf16.mxu0 %v5663
      %7498 = vmatmul.mubr.bf16.gmra.mrb[0].mxu0 %v5662
      %v7499 = vpop.f32.mrb[0].mxu0
      %v7500 = vadd.f32 0.0, %v7499
      %v7501 = vpop.f32.mrb[0].mxu0
      %v7502 = vpop.f32.mrb[0].mxu0
      %v7503 = vadd.f32 0.0, %v7502
      %v7504 = vpop.f32.mrb[0].mxu0
      %7505 = vmatprep.mubr.bf16.mxu0 %v5665
      %7506 = vmatmul.mubr.bf16.gmra.mrb[0].mxu0 %v5664
      %v7507 = vpop.f32.mrb[0].mxu0
      %v7508 = vadd.f32 0.0, %v7507
      %v7509 = vpop.f32.mrb[0].mxu0
      %v7510 = vpop.f32.mrb[0].mxu0
      %v7511 = vadd.f32 0.0, %v7510
      %v7512 = vpop.f32.mrb[0].mxu0
      %7513 = vmatprep.mubr.bf16.mxu0 %v5667
      %7514 = vmatmul.mubr.bf16.gmra.mrb[0].mxu0 %v5666
      %v7515 = vpop.f32.mrb[0].mxu0
      %v7516 = vadd.f32 0.0, %v7515
      %v7517 = vpop.f32.mrb[0].mxu0
      %v7518 = vpop.f32.mrb[0].mxu0
      %v7519 = vadd.f32 0.0, %v7518
      %v7520 = vpop.f32.mrb[0].mxu0
      %7521 = vmatprep.mubr.bf16.mxu0 %v5669
      %7522 = vmatmul.mubr.bf16.gmra.mrb[0].mxu0 %v5668
      %v7523 = vpop.f32.mrb[0].mxu0
      %v7524 = vadd.f32 0.0, %v7523
      %v7525 = vpop.f32.mrb[0].mxu0
      %v7526 = vpop.f32.mrb[0].mxu0
      %v7527 = vadd.f32 0.0, %v7526
      %v7528 = vpop.f32.mrb[0].mxu0
      %7529 = vmatprep.mubr.bf16.mxu0 %v5671
      %7530 = vmatmul.mubr.bf16.gmra.mrb[0].mxu0 %v5670
      %v7531 = vpop.f32.mrb[0].mxu0
      %v7532 = vadd.f32 0.0, %v7531
      %v7533 = vpop.f32.mrb[0].mxu0
      %v7534 = vpop.f32.mrb[0].mxu0
      %v7535 = vadd.f32 0.0, %v7534
      %v7536 = vpop.f32.mrb[0].mxu0
      %7537 = vmatprep.mubr.bf16.mxu0 %v5673
      %7538 = vmatmul.mubr.bf16.gmra.mrb[0].mxu0 %v5672
      %v7539 = vpop.f32.mrb[0].mxu0
      %v7540 = vadd.f32 0.0, %v7539
      %v7541 = vpop.f32.mrb[0].mxu0
      %v7542 = vpop.f32.mrb[0].mxu0
      %v7543 = vadd.f32 0.0, %v7542
      %v7544 = vpop.f32.mrb[0].mxu0
      %7545 = vmatprep.mubr.bf16.mxu0 %v5675
      %7546 = vmatmul.mubr.bf16.gmra.mrb[0].mxu0 %v5674
      %v7547 = vpop.f32.mrb[0].mxu0
      %v7548 = vadd.f32 0.0, %v7547
      %v7549 = vpop.f32.mrb[0].mxu0
      %v7550 = vpop.f32.mrb[0].mxu0
      %v7551 = vadd.f32 0.0, %v7550
      %v7552 = vpop.f32.mrb[0].mxu0
      %7553 = vmatprep.mubr.bf16.mxu0 %v5677
      %7554 = vmatmul.mubr.bf16.gmra.mrb[0].mxu0 %v5676
      %v7555 = vpop.f32.mrb[0].mxu0
      %v7556 = vadd.f32 0.0, %v7555
      %v7557 = vpop.f32.mrb[0].mxu0
      %v7558 = vpop.f32.mrb[0].mxu0
      %v7559 = vadd.f32 0.0, %v7558
      %v7560 = vpop.f32.mrb[0].mxu0
      %7561 = vmatprep.mubr.bf16.mxu0 %v5679
      %7562 = vmatmul.mubr.bf16.gmra.mrb[0].mxu0 %v5678
      %v7563 = vpop.f32.mrb[0].mxu0
      %v7564 = vadd.f32 0.0, %v7563
      %v7565 = vpop.f32.mrb[0].mxu0
      %v7566 = vpop.f32.mrb[0].mxu0
      %v7567 = vadd.f32 0.0, %v7566
      %v7568 = vpop.f32.mrb[0].mxu0
      %7569 = vmatprep.mubr.bf16.mxu0 %v5681
      %7570 = vmatmul.mubr.bf16.gmra.mrb[0].mxu0 %v5680
      %v7571 = vpop.f32.mrb[0].mxu0
      %v7572 = vadd.f32 0.0, %v7571
      %v7573 = vpop.f32.mrb[0].mxu0
      %v7574 = vpop.f32.mrb[0].mxu0
      %v7575 = vadd.f32 0.0, %v7574
      %v7576 = vpop.f32.mrb[0].mxu0
      %7577 = vmatprep.mubr.bf16.mxu0 %v5683
      %7578 = vmatmul.mubr.bf16.gmra.mrb[0].mxu0 %v5682
      %v7579 = vpop.f32.mrb[0].mxu0
      %v7580 = vadd.f32 0.0, %v7579
      %v7581 = vpop.f32.mrb[0].mxu0
      %v7582 = vpop.f32.mrb[0].mxu0
      %v7583 = vadd.f32 0.0, %v7582
      %v7584 = vpop.f32.mrb[0].mxu0
      %7585 = vmatprep.mubr.bf16.mxu0 %v5685
      %7586 = vmatmul.mubr.bf16.gmra.mrb[0].mxu0 %v5684
      %v7587 = vpop.f32.mrb[0].mxu0
      %v7588 = vadd.f32 0.0, %v7587
      %v7589 = vpop.f32.mrb[0].mxu0
      %v7590 = vpop.f32.mrb[0].mxu0
      %v7591 = vadd.f32 0.0, %v7590
      %v7592 = vpop.f32.mrb[0].mxu0
      %7593 = vmatprep.mubr.bf16.mxu0 %v5687
      %7594 = vmatmul.mubr.bf16.gmra.mrb[0].mxu0 %v5686
      %v7595 = vpop.f32.mrb[0].mxu0
      %v7596 = vadd.f32 0.0, %v7595
      %v7597 = vpop.f32.mrb[0].mxu0
      %v7598 = vpop.f32.mrb[0].mxu0
      %v7599 = vadd.f32 0.0, %v7598
      %v7600 = vpop.f32.mrb[0].mxu0
      %7601 = vmatprep.mubr.bf16.mxu0 %v5689
      %7602 = vmatmul.mubr.bf16.gmra.mrb[0].mxu0 %v5688
      %v7603 = vpop.f32.mrb[0].mxu0
      %v7604 = vadd.f32 0.0, %v7603
      %v7605 = vpop.f32.mrb[0].mxu0
      %v7606 = vpop.f32.mrb[0].mxu0
      %v7607 = vadd.f32 0.0, %v7606
      %v7608 = vpop.f32.mrb[0].mxu0
      %7609 = vmatprep.mubr.bf16.mxu0 %v5691
      %7610 = vmatmul.mubr.bf16.gmra.mrb[0].mxu0 %v5690
      %v7611 = vpop.f32.mrb[0].mxu0
      %v7612 = vadd.f32 0.0, %v7611
      %v7613 = vpop.f32.mrb[0].mxu0
      %v7614 = vpop.f32.mrb[0].mxu0
      %v7615 = vadd.f32 0.0, %v7614
      %v7616 = vpop.f32.mrb[0].mxu0
      %7617 = vmatprep.mubr.bf16.mxu0 %v5693
      %7618 = vmatmul.mubr.bf16.gmra.mrb[0].mxu0 %v5692
      %v7619 = vpop.f32.mrb[0].mxu0
      %v7620 = vadd.f32 0.0, %v7619
      %v7621 = vpop.f32.mrb[0].mxu0
      %v7622 = vpop.f32.mrb[0].mxu0
      %v7623 = vadd.f32 0.0, %v7622
      %v7624 = vpop.f32.mrb[0].mxu0
      %7625 = vmatprep.mubr.bf16.mxu0 %v5695
      %7626 = vmatmul.mubr.bf16.gmra.mrb[0].mxu0 %v5694
      %v7627 = vpop.f32.mrb[0].mxu0
      %v7628 = vadd.f32 0.0, %v7627
      %v7629 = vpop.f32.mrb[0].mxu0
      %v7630 = vpop.f32.mrb[0].mxu0
      %v7631 = vadd.f32 0.0, %v7630
      %v7632 = vpop.f32.mrb[0].mxu0
      %7633 = vmatprep.mubr.bf16.mxu0 %v5697
      %7634 = vmatmul.mubr.bf16.gmra.mrb[0].mxu0 %v5696
      %v7635 = vpop.f32.mrb[0].mxu0
      %v7636 = vadd.f32 0.0, %v7635
      %v7637 = vpop.f32.mrb[0].mxu0
      %v7638 = vpop.f32.mrb[0].mxu0
      %v7639 = vadd.f32 0.0, %v7638
      %v7640 = vpop.f32.mrb[0].mxu0
      %7641 = vmatprep.mubr.bf16.mxu0 %v5699
      %7642 = vmatmul.mubr.bf16.gmra.mrb[0].mxu0 %v5698
      %v7643 = vpop.f32.mrb[0].mxu0
      %v7644 = vadd.f32 0.0, %v7643
      %v7645 = vpop.f32.mrb[0].mxu0
      %v7646 = vpop.f32.mrb[0].mxu0
      %v7647 = vadd.f32 0.0, %v7646
      %v7648 = vpop.f32.mrb[0].mxu0
      %7649 = vmatprep.mubr.bf16.mxu0 %v5701
      %7650 = vmatmul.mubr.bf16.gmra.mrb[0].mxu0 %v5700
      %v7651 = vpop.f32.mrb[0].mxu0
      %v7652 = vadd.f32 0.0, %v7651
      %v7653 = vpop.f32.mrb[0].mxu0
      %v7654 = vpop.f32.mrb[0].mxu0
      %v7655 = vadd.f32 0.0, %v7654
      %v7656 = vpop.f32.mrb[0].mxu0
      %7657 = vmatprep.mubr.bf16.mxu0 %v5703
      %7658 = vmatmul.mubr.bf16.gmra.mrb[0].mxu0 %v5702
      %v7659 = vpop.f32.mrb[0].mxu0
      %v7660 = vadd.f32 0.0, %v7659
      %v7661 = vpop.f32.mrb[0].mxu0
      %v7662 = vpop.f32.mrb[0].mxu0
      %v7663 = vadd.f32 0.0, %v7662
      %v7664 = vpop.f32.mrb[0].mxu0
      %7665 = vmatprep.mubr.bf16.mxu0 %v5705
      %7666 = vmatmul.mubr.bf16.gmra.mrb[0].mxu0 %v5704
      %v7667 = vpop.f32.mrb[0].mxu0
      %v7668 = vadd.f32 0.0, %v7667
      %v7669 = vpop.f32.mrb[0].mxu0
      %v7670 = vpop.f32.mrb[0].mxu0
      %v7671 = vadd.f32 0.0, %v7670
      %v7672 = vpop.f32.mrb[0].mxu0
      %7673 = vmatprep.mubr.bf16.mxu0 %v5707
      %7674 = vmatmul.mubr.bf16.gmra.mrb[0].mxu0 %v5706
      %v7675 = vpop.f32.mrb[0].mxu0
      %v7676 = vadd.f32 0.0, %v7675
      %v7677 = vpop.f32.mrb[0].mxu0
      %v7678 = vpop.f32.mrb[0].mxu0
      %v7679 = vadd.f32 0.0, %v7678
      %v7680 = vpop.f32.mrb[0].mxu0
      %7681 = vmatprep.mubr.bf16.mxu0 %v5709
      %7682 = vmatmul.mubr.bf16.gmra.mrb[0].mxu0 %v5708
      %v7683 = vpop.f32.mrb[0].mxu0
      %v7684 = vadd.f32 0.0, %v7683
      %v7685 = vpop.f32.mrb[0].mxu0
      %v7686 = vpop.f32.mrb[0].mxu0
      %v7687 = vadd.f32 0.0, %v7686
      %v7688 = vpop.f32.mrb[0].mxu0
      %7689 = vmatprep.mubr.bf16.mxu0 %v5711
      %7690 = vmatmul.mubr.bf16.gmra.mrb[0].mxu0 %v5710
      %v7691 = vpop.f32.mrb[0].mxu0
      %v7692 = vadd.f32 0.0, %v7691
      %v7693 = vpop.f32.mrb[0].mxu0
      %v7694 = vpop.f32.mrb[0].mxu0
      %v7695 = vadd.f32 0.0, %v7694
      %v7696 = vpop.f32.mrb[0].mxu0
      %7697 = vmatprep.mubr.bf16.mxu0 %v5713
      %7698 = vmatmul.mubr.bf16.gmra.mrb[0].mxu0 %v5712
      %v7699 = vpop.f32.mrb[0].mxu0
      %v7700 = vadd.f32 0.0, %v7699
      %v7701 = vpop.f32.mrb[0].mxu0
      %v7702 = vpop.f32.mrb[0].mxu0
      %v7703 = vadd.f32 0.0, %v7702
      %v7704 = vpop.f32.mrb[0].mxu0
      %7705 = vmatprep.mubr.bf16.mxu0 %v5715
      %7706 = vmatmul.mubr.bf16.gmra.mrb[0].mxu0 %v5714
      %v7707 = vpop.f32.mrb[0].mxu0
      %v7708 = vadd.f32 0.0, %v7707
      %v7709 = vpop.f32.mrb[0].mxu0
      %v7710 = vpop.f32.mrb[0].mxu0
      %v7711 = vadd.f32 0.0, %v7710
      %v7712 = vpop.f32.mrb[0].mxu0
      %7713 = vmatprep.mubr.bf16.mxu0 %v5717
      %7714 = vmatmul.mubr.bf16.gmra.mrb[0].mxu0 %v5716
      %v7715 = vpop.f32.mrb[0].mxu0
      %v7716 = vadd.f32 0.0, %v7715
      %v7717 = vpop.f32.mrb[0].mxu0
      %v7718 = vpop.f32.mrb[0].mxu0
      %v7719 = vadd.f32 0.0, %v7718
      %v7720 = vpop.f32.mrb[0].mxu0
      %7721 = vmatprep.mubr.bf16.mxu0 %v5719
      %7722 = vmatmul.mubr.bf16.gmra.mrb[0].mxu0 %v5718
      %v7723 = vpop.f32.mrb[0].mxu0
      %v7724 = vadd.f32 0.0, %v7723
      %v7725 = vpop.f32.mrb[0].mxu0
      %v7726 = vpop.f32.mrb[0].mxu0
      %v7727 = vadd.f32 0.0, %v7726
      %v7728 = vpop.f32.mrb[0].mxu0
      %7729 = vmatprep.mubr.bf16.mxu0 %v5721
      %7730 = vmatmul.mubr.bf16.gmra.mrb[0].mxu0 %v5720
      %v7731 = vpop.f32.mrb[0].mxu0
      %v7732 = vadd.f32 0.0, %v7731
      %v7733 = vpop.f32.mrb[0].mxu0
      %v7734 = vpop.f32.mrb[0].mxu0
      %v7735 = vadd.f32 0.0, %v7734
      %v7736 = vpop.f32.mrb[0].mxu0
      %7737 = vmatprep.mubr.bf16.mxu0 %v5723
      %7738 = vmatmul.mubr.bf16.gmra.mrb[0].mxu0 %v5722
      %v7739 = vpop.f32.mrb[0].mxu0
      %v7740 = vadd.f32 0.0, %v7739
      %v7741 = vpop.f32.mrb[0].mxu0
      %v7742 = vpop.f32.mrb[0].mxu0
      %v7743 = vadd.f32 0.0, %v7742
      %v7744 = vpop.f32.mrb[0].mxu0
      %7745 = vmatprep.mubr.bf16.mxu0 %v7335
      %7746 = vmatmul.mubr.bf16.gmra.mrb[0].mxu0 %v7334
      %v7747 = vpop.f32.mrb[0].mxu0
      %v7748 = vadd.f32 0.0, %v7747
      %v7749 = vpop.f32.mrb[0].mxu0
      %v7750 = vpop.f32.mrb[0].mxu0
      %v7751 = vadd.f32 0.0, %v7750
      %v7752 = vpop.f32.mrb[0].mxu0
      %7753 = vdwg.mxu0
      %v7754 = vadd.f32 %v7270, %v7500
      %v7755 = vadd.f32 %v7271, %v7503
      %v7756 = vadd.f32 %v7272, %v7508
      %v7757 = vadd.f32 %v7273, %v7511
      %v7758 = vadd.f32 %v7274, %v7516
      %v7759 = vadd.f32 %v7275, %v7519
      %v7760 = vadd.f32 %v7276, %v7524
      %v7761 = vadd.f32 %v7277, %v7527
      %v7762 = vadd.f32 %v7278, %v7532
      %v7763 = vadd.f32 %v7279, %v7535
      %v7764 = vadd.f32 %v7280, %v7540
      %v7765 = vadd.f32 %v7281, %v7543
      %v7766 = vadd.f32 %v7282, %v7548
      %v7767 = vadd.f32 %v7283, %v7551
      %v7768 = vadd.f32 %v7284, %v7556
      %v7769 = vadd.f32 %v7285, %v7559
      %v7770 = vadd.f32 %v7286, %v7564
      %v7771 = vadd.f32 %v7287, %v7567
      %v7772 = vadd.f32 %v7288, %v7572
      %v7773 = vadd.f32 %v7289, %v7575
      %v7774 = vadd.f32 %v7290, %v7580
      %v7775 = vadd.f32 %v7291, %v7583
      %v7776 = vadd.f32 %v7292, %v7588
      %v7777 = vadd.f32 %v7293, %v7591
      %v7778 = vadd.f32 %v7294, %v7596
      %v7779 = vadd.f32 %v7295, %v7599
      %v7780 = vadd.f32 %v7296, %v7604
      %v7781 = vadd.f32 %v7297, %v7607
      %v7782 = vadd.f32 %v7298, %v7612
      %v7783 = vadd.f32 %v7299, %v7615
      %v7784 = vadd.f32 %v7300, %v7620
      %v7785 = vadd.f32 %v7301, %v7623
      %v7786 = vadd.f32 %v7302, %v7628
      %v7787 = vadd.f32 %v7303, %v7631
      %v7788 = vadd.f32 %v7304, %v7636
      %v7789 = vadd.f32 %v7305, %v7639
      %v7790 = vadd.f32 %v7306, %v7644
      %v7791 = vadd.f32 %v7307, %v7647
      %v7792 = vadd.f32 %v7308, %v7652
      %v7793 = vadd.f32 %v7309, %v7655
      %v7794 = vadd.f32 %v7310, %v7660
      %v7795 = vadd.f32 %v7311, %v7663
      %v7796 = vadd.f32 %v7312, %v7668
      %v7797 = vadd.f32 %v7313, %v7671
      %v7798 = vadd.f32 %v7314, %v7676
      %v7799 = vadd.f32 %v7315, %v7679
      %v7800 = vadd.f32 %v7316, %v7684
      %v7801 = vadd.f32 %v7317, %v7687
      %v7802 = vadd.f32 %v7318, %v7692
      %v7803 = vadd.f32 %v7319, %v7695
      %v7804 = vadd.f32 %v7320, %v7700
      %v7805 = vadd.f32 %v7321, %v7703
      %v7806 = vadd.f32 %v7322, %v7708
      %v7807 = vadd.f32 %v7323, %v7711
      %v7808 = vadd.f32 %v7324, %v7716
      %v7809 = vadd.f32 %v7325, %v7719
      %v7810 = vadd.f32 %v7326, %v7724
      %v7811 = vadd.f32 %v7327, %v7727
      %v7812 = vadd.f32 %v7328, %v7732
      %v7813 = vadd.f32 %v7329, %v7735
      %v7814 = vadd.f32 %v7330, %v7740
      %v7815 = vadd.f32 %v7331, %v7743
      %v7816 = vadd.f32 %v7332, %v7748
      %v7817 = vadd.f32 %v7333, %v7751
      %7819 = vset.pattern.permute.xlu0 0
      %7820 = vperm.xlu0 %7819, %v253
      %v7821 = vpop.permute.xlu0 %7820
      %7824 = vset.pattern.permute.xlu0 0
      %7825 = vperm.xlu0 %7824, %v254
      %v7826 = vpop.permute.xlu0 %7825
      %7829 = vset.pattern.permute.xlu0 0
      %7830 = vperm.xlu0 %7829, %v255
      %v7831 = vpop.permute.xlu0 %7830
      %7834 = vset.pattern.permute.xlu0 0
      %7835 = vperm.xlu0 %7834, %v256
      %v7836 = vpop.permute.xlu0 %7835
      %7839 = vset.pattern.permute.xlu0 0
      %7840 = vperm.xlu0 %7839, %v257
      %v7841 = vpop.permute.xlu0 %7840
      %7844 = vset.pattern.permute.xlu0 0
      %7845 = vperm.xlu0 %7844, %v258
      %v7846 = vpop.permute.xlu0 %7845
      %7849 = vset.pattern.permute.xlu0 0
      %7850 = vperm.xlu0 %7849, %v259
      %v7851 = vpop.permute.xlu0 %7850
      %7854 = vset.pattern.permute.xlu0 0
      %7855 = vperm.xlu0 %7854, %v260
      %v7856 = vpop.permute.xlu0 %7855
      %7859 = vset.pattern.permute.xlu0 0
      %7860 = vperm.xlu0 %7859, %v261
      %v7861 = vpop.permute.xlu0 %7860
      %7864 = vset.pattern.permute.xlu0 0
      %7865 = vperm.xlu0 %7864, %v262
      %v7866 = vpop.permute.xlu0 %7865
      %7869 = vset.pattern.permute.xlu0 0
      %7870 = vperm.xlu0 %7869, %v263
      %v7871 = vpop.permute.xlu0 %7870
      %7874 = vset.pattern.permute.xlu0 0
      %7875 = vperm.xlu0 %7874, %v264
      %v7876 = vpop.permute.xlu0 %7875
      %7879 = vset.pattern.permute.xlu0 0
      %7880 = vperm.xlu0 %7879, %v265
      %v7881 = vpop.permute.xlu0 %7880
      %7884 = vset.pattern.permute.xlu0 0
      %7885 = vperm.xlu0 %7884, %v266
      %v7886 = vpop.permute.xlu0 %7885
      %7889 = vset.pattern.permute.xlu0 0
      %7890 = vperm.xlu0 %7889, %v267
      %v7891 = vpop.permute.xlu0 %7890
      %7894 = vset.pattern.permute.xlu0 0
      %7895 = vperm.xlu0 %7894, %v268
      %v7896 = vpop.permute.xlu0 %7895
      %7899 = vset.pattern.permute.xlu0 0
      %7900 = vperm.xlu0 %7899, %v269
      %v7901 = vpop.permute.xlu0 %7900
      %7904 = vset.pattern.permute.xlu0 0
      %7905 = vperm.xlu0 %7904, %v270
      %v7906 = vpop.permute.xlu0 %7905
      %7909 = vset.pattern.permute.xlu0 0
      %7910 = vperm.xlu0 %7909, %v271
      %v7911 = vpop.permute.xlu0 %7910
      %7914 = vset.pattern.permute.xlu0 0
      %7915 = vperm.xlu0 %7914, %v272
      %v7916 = vpop.permute.xlu0 %7915
      %7919 = vset.pattern.permute.xlu0 0
      %7920 = vperm.xlu0 %7919, %v273
      %v7921 = vpop.permute.xlu0 %7920
      %7924 = vset.pattern.permute.xlu0 0
      %7925 = vperm.xlu0 %7924, %v274
      %v7926 = vpop.permute.xlu0 %7925
      %7929 = vset.pattern.permute.xlu0 0
      %7930 = vperm.xlu0 %7929, %v275
      %v7931 = vpop.permute.xlu0 %7930
      %7934 = vset.pattern.permute.xlu0 0
      %7935 = vperm.xlu0 %7934, %v276
      %v7936 = vpop.permute.xlu0 %7935
      %7939 = vset.pattern.permute.xlu0 0
      %7940 = vperm.xlu0 %7939, %v277
      %v7941 = vpop.permute.xlu0 %7940
      %7944 = vset.pattern.permute.xlu0 0
      %7945 = vperm.xlu0 %7944, %v278
      %v7946 = vpop.permute.xlu0 %7945
      %7949 = vset.pattern.permute.xlu0 0
      %7950 = vperm.xlu0 %7949, %v279
      %v7951 = vpop.permute.xlu0 %7950
      %7954 = vset.pattern.permute.xlu0 0
      %7955 = vperm.xlu0 %7954, %v280
      %v7956 = vpop.permute.xlu0 %7955
      %7959 = vset.pattern.permute.xlu0 0
      %7960 = vperm.xlu0 %7959, %v281
      %v7961 = vpop.permute.xlu0 %7960
      %7964 = vset.pattern.permute.xlu0 0
      %7965 = vperm.xlu0 %7964, %v282
      %v7966 = vpop.permute.xlu0 %7965
      %7969 = vset.pattern.permute.xlu0 0
      %7970 = vperm.xlu0 %7969, %v283
      %v7971 = vpop.permute.xlu0 %7970
      %7974 = vset.pattern.permute.xlu0 0
      %7975 = vperm.xlu0 %7974, %v284
      %v7976 = vpop.permute.xlu0 %7975
      %7979 = vset.pattern.permute.xlu0 0
      %7980 = vperm.xlu0 %7979, %v285
      %v7981 = vpop.permute.xlu0 %7980
      %7984 = vset.pattern.permute.xlu0 0
      %7985 = vperm.xlu0 %7984, %v286
      %v7986 = vpop.permute.xlu0 %7985
      %7989 = vset.pattern.permute.xlu0 0
      %7990 = vperm.xlu0 %7989, %v287
      %v7991 = vpop.permute.xlu0 %7990
      %7994 = vset.pattern.permute.xlu0 0
      %7995 = vperm.xlu0 %7994, %v288
      %v7996 = vpop.permute.xlu0 %7995
      %7999 = vset.pattern.permute.xlu0 0
      %8000 = vperm.xlu0 %7999, %v289
      %v8001 = vpop.permute.xlu0 %8000
      %8004 = vset.pattern.permute.xlu0 0
      %8005 = vperm.xlu0 %8004, %v290
      %v8006 = vpop.permute.xlu0 %8005
      %8009 = vset.pattern.permute.xlu0 0
      %8010 = vperm.xlu0 %8009, %v291
      %v8011 = vpop.permute.xlu0 %8010
      %8014 = vset.pattern.permute.xlu0 0
      %8015 = vperm.xlu0 %8014, %v292
      %v8016 = vpop.permute.xlu0 %8015
      %8019 = vset.pattern.permute.xlu0 0
      %8020 = vperm.xlu0 %8019, %v293
      %v8021 = vpop.permute.xlu0 %8020
      %8024 = vset.pattern.permute.xlu0 0
      %8025 = vperm.xlu0 %8024, %v294
      %v8026 = vpop.permute.xlu0 %8025
      %8029 = vset.pattern.permute.xlu0 0
      %8030 = vperm.xlu0 %8029, %v295
      %v8031 = vpop.permute.xlu0 %8030
      %8034 = vset.pattern.permute.xlu0 0
      %8035 = vperm.xlu0 %8034, %v296
      %v8036 = vpop.permute.xlu0 %8035
      %8039 = vset.pattern.permute.xlu0 0
      %8040 = vperm.xlu0 %8039, %v297
      %v8041 = vpop.permute.xlu0 %8040
      %8044 = vset.pattern.permute.xlu0 0
      %8045 = vperm.xlu0 %8044, %v298
      %v8046 = vpop.permute.xlu0 %8045
      %8049 = vset.pattern.permute.xlu0 0
      %8050 = vperm.xlu0 %8049, %v299
      %v8051 = vpop.permute.xlu0 %8050
      %8054 = vset.pattern.permute.xlu0 0
      %8055 = vperm.xlu0 %8054, %v300
      %v8056 = vpop.permute.xlu0 %8055
      %8059 = vset.pattern.permute.xlu0 0
      %8060 = vperm.xlu0 %8059, %v301
      %v8061 = vpop.permute.xlu0 %8060
      %8064 = vset.pattern.permute.xlu0 0
      %8065 = vperm.xlu0 %8064, %v302
      %v8066 = vpop.permute.xlu0 %8065
      %8069 = vset.pattern.permute.xlu0 0
      %8070 = vperm.xlu0 %8069, %v303
      %v8071 = vpop.permute.xlu0 %8070
      %8074 = vset.pattern.permute.xlu0 0
      %8075 = vperm.xlu0 %8074, %v304
      %v8076 = vpop.permute.xlu0 %8075
      %8079 = vset.pattern.permute.xlu0 0
      %8080 = vperm.xlu0 %8079, %v305
      %v8081 = vpop.permute.xlu0 %8080
      %8084 = vset.pattern.permute.xlu0 0
      %8085 = vperm.xlu0 %8084, %v306
      %v8086 = vpop.permute.xlu0 %8085
      %8089 = vset.pattern.permute.xlu0 0
      %8090 = vperm.xlu0 %8089, %v307
      %v8091 = vpop.permute.xlu0 %8090
      %8094 = vset.pattern.permute.xlu0 0
      %8095 = vperm.xlu0 %8094, %v308
      %v8096 = vpop.permute.xlu0 %8095
      %8099 = vset.pattern.permute.xlu0 0
      %8100 = vperm.xlu0 %8099, %v309
      %v8101 = vpop.permute.xlu0 %8100
      %8104 = vset.pattern.permute.xlu0 0
      %8105 = vperm.xlu0 %8104, %v310
      %v8106 = vpop.permute.xlu0 %8105
      %8109 = vset.pattern.permute.xlu0 0
      %8110 = vperm.xlu0 %8109, %v311
      %v8111 = vpop.permute.xlu0 %8110
      %8114 = vset.pattern.permute.xlu0 0
      %8115 = vperm.xlu0 %8114, %v312
      %v8116 = vpop.permute.xlu0 %8115
      %8119 = vset.pattern.permute.xlu0 0
      %8120 = vperm.xlu0 %8119, %v313
      %v8121 = vpop.permute.xlu0 %8120
      %8124 = vset.pattern.permute.xlu0 0
      %8125 = vperm.xlu0 %8124, %v314
      %v8126 = vpop.permute.xlu0 %8125
      %8129 = vset.pattern.permute.xlu0 0
      %8130 = vperm.xlu0 %8129, %v315
      %v8131 = vpop.permute.xlu0 %8130
      %8134 = vset.pattern.permute.xlu0 0
      %8135 = vperm.xlu0 %8134, %v316
      %v8136 = vpop.permute.xlu0 %8135
      %v8138 = vmul.f32 %v7754, %v7821
      %v8139 = vmul.f32 %v7755, %v7826
      %v8140 = vmul.f32 %v7756, %v7831
      %v8141 = vmul.f32 %v7757, %v7836
      %v8142 = vmul.f32 %v7758, %v7841
      %v8143 = vmul.f32 %v7759, %v7846
      %v8144 = vmul.f32 %v7760, %v7851
      %v8145 = vmul.f32 %v7761, %v7856
      %v8146 = vmul.f32 %v7762, %v7861
      %v8147 = vmul.f32 %v7763, %v7866
      %v8148 = vmul.f32 %v7764, %v7871
      %v8149 = vmul.f32 %v7765, %v7876
      %v8150 = vmul.f32 %v7766, %v7881
      %v8151 = vmul.f32 %v7767, %v7886
      %v8152 = vmul.f32 %v7768, %v7891
      %v8153 = vmul.f32 %v7769, %v7896
      %v8154 = vmul.f32 %v7770, %v7901
      %v8155 = vmul.f32 %v7771, %v7906
      %v8156 = vmul.f32 %v7772, %v7911
      %v8157 = vmul.f32 %v7773, %v7916
      %v8158 = vmul.f32 %v7774, %v7921
      %v8159 = vmul.f32 %v7775, %v7926
      %v8160 = vmul.f32 %v7776, %v7931
      %v8161 = vmul.f32 %v7777, %v7936
      %v8162 = vmul.f32 %v7778, %v7941
      %v8163 = vmul.f32 %v7779, %v7946
      %v8164 = vmul.f32 %v7780, %v7951
      %v8165 = vmul.f32 %v7781, %v7956
      %v8166 = vmul.f32 %v7782, %v7961
      %v8167 = vmul.f32 %v7783, %v7966
      %v8168 = vmul.f32 %v7784, %v7971
      %v8169 = vmul.f32 %v7785, %v7976
      %v8170 = vmul.f32 %v7786, %v7981
      %v8171 = vmul.f32 %v7787, %v7986
      %v8172 = vmul.f32 %v7788, %v7991
      %v8173 = vmul.f32 %v7789, %v7996
      %v8174 = vmul.f32 %v7790, %v8001
      %v8175 = vmul.f32 %v7791, %v8006
      %v8176 = vmul.f32 %v7792, %v8011
      %v8177 = vmul.f32 %v7793, %v8016
      %v8178 = vmul.f32 %v7794, %v8021
      %v8179 = vmul.f32 %v7795, %v8026
      %v8180 = vmul.f32 %v7796, %v8031
      %v8181 = vmul.f32 %v7797, %v8036
      %v8182 = vmul.f32 %v7798, %v8041
      %v8183 = vmul.f32 %v7799, %v8046
      %v8184 = vmul.f32 %v7800, %v8051
      %v8185 = vmul.f32 %v7801, %v8056
      %v8186 = vmul.f32 %v7802, %v8061
      %v8187 = vmul.f32 %v7803, %v8066
      %v8188 = vmul.f32 %v7804, %v8071
      %v8189 = vmul.f32 %v7805, %v8076
      %v8190 = vmul.f32 %v7806, %v8081
      %v8191 = vmul.f32 %v7807, %v8086
      %v8192 = vmul.f32 %v7808, %v8091
      %v8193 = vmul.f32 %v7809, %v8096
      %v8194 = vmul.f32 %v7810, %v8101
      %v8195 = vmul.f32 %v7811, %v8106
      %v8196 = vmul.f32 %v7812, %v8111
      %v8197 = vmul.f32 %v7813, %v8116
      %v8198 = vmul.f32 %v7814, %v8121
      %v8199 = vmul.f32 %v7815, %v8126
      %v8200 = vmul.f32 %v7816, %v8131
      %v8201 = vmul.f32 %v7817, %v8136
      %v8202 = vadd.f32 %v8138, %v8139
      %v8203 = vadd.f32 %v8202, %v8140
      %v8204 = vadd.f32 %v8203, %v8141
      %v8205 = vadd.f32 %v8204, %v8142
      %v8206 = vadd.f32 %v8205, %v8143
      %v8207 = vadd.f32 %v8206, %v8144
      %v8208 = vadd.f32 %v8207, %v8145
      %v8209 = vadd.f32 %v8208, %v8146
      %v8210 = vadd.f32 %v8209, %v8147
      %v8211 = vadd.f32 %v8210, %v8148
      %v8212 = vadd.f32 %v8211, %v8149
      %v8213 = vadd.f32 %v8212, %v8150
      %v8214 = vadd.f32 %v8213, %v8151
      %v8215 = vadd.f32 %v8214, %v8152
      %v8216 = vadd.f32 %v8215, %v8153
      %v8217 = vadd.f32 %v8216, %v8154
      %v8218 = vadd.f32 %v8217, %v8155
      %v8219 = vadd.f32 %v8218, %v8156
      %v8220 = vadd.f32 %v8219, %v8157
      %v8221 = vadd.f32 %v8220, %v8158
      %v8222 = vadd.f32 %v8221, %v8159
      %v8223 = vadd.f32 %v8222, %v8160
      %v8224 = vadd.f32 %v8223, %v8161
      %v8225 = vadd.f32 %v8224, %v8162
      %v8226 = vadd.f32 %v8225, %v8163
      %v8227 = vadd.f32 %v8226, %v8164
      %v8228 = vadd.f32 %v8227, %v8165
      %v8229 = vadd.f32 %v8228, %v8166
      %v8230 = vadd.f32 %v8229, %v8167
      %v8231 = vadd.f32 %v8230, %v8168
      %v8232 = vadd.f32 %v8231, %v8169
      %v8233 = vadd.f32 %v8232, %v8170
      %v8234 = vadd.f32 %v8233, %v8171
      %v8235 = vadd.f32 %v8234, %v8172
      %v8236 = vadd.f32 %v8235, %v8173
      %v8237 = vadd.f32 %v8236, %v8174
      %v8238 = vadd.f32 %v8237, %v8175
      %v8239 = vadd.f32 %v8238, %v8176
      %v8240 = vadd.f32 %v8239, %v8177
      %v8241 = vadd.f32 %v8240, %v8178
      %v8242 = vadd.f32 %v8241, %v8179
      %v8243 = vadd.f32 %v8242, %v8180
      %v8244 = vadd.f32 %v8243, %v8181
      %v8245 = vadd.f32 %v8244, %v8182
      %v8246 = vadd.f32 %v8245, %v8183
      %v8247 = vadd.f32 %v8246, %v8184
      %v8248 = vadd.f32 %v8247, %v8185
      %v8249 = vadd.f32 %v8248, %v8186
      %v8250 = vadd.f32 %v8249, %v8187
      %v8251 = vadd.f32 %v8250, %v8188
      %v8252 = vadd.f32 %v8251, %v8189
      %v8253 = vadd.f32 %v8252, %v8190
      %v8254 = vadd.f32 %v8253, %v8191
      %v8255 = vadd.f32 %v8254, %v8192
      %v8256 = vadd.f32 %v8255, %v8193
      %v8257 = vadd.f32 %v8256, %v8194
      %v8258 = vadd.f32 %v8257, %v8195
      %v8259 = vadd.f32 %v8258, %v8196
      %v8260 = vadd.f32 %v8259, %v8197
      %v8261 = vadd.f32 %v8260, %v8198
      %v8262 = vadd.f32 %v8261, %v8199
      %v8263 = vadd.f32 %v8262, %v8200
      %v8264 = vadd.f32 %v8263, %v8201
      %v8265 = vrot.slane %v8264, 4
      %v8266 = vadd.f32 %v8264, %v8265
      %v8267 = vrot.slane %v8266, 2
      %v8268 = vadd.f32 %v8266, %v8267
      %v8269 = vrot.slane %v8268, 1
      %v8270 = vadd.f32 %v8268, %v8269
      %v8271 = vmul.f32 %v8270, 0.00390625
      %v8272 = vmul.f32 %v8138, %v7754
      %v8273 = vmul.f32 %v8139, %v7755
      %v8274 = vmul.f32 %v8140, %v7756
      %v8275 = vmul.f32 %v8141, %v7757
      %v8276 = vmul.f32 %v8142, %v7758
      %v8277 = vmul.f32 %v8143, %v7759
      %v8278 = vmul.f32 %v8144, %v7760
      %v8279 = vmul.f32 %v8145, %v7761
      %v8280 = vmul.f32 %v8146, %v7762
      %v8281 = vmul.f32 %v8147, %v7763
      %v8282 = vmul.f32 %v8148, %v7764
      %v8283 = vmul.f32 %v8149, %v7765
      %v8284 = vmul.f32 %v8150, %v7766
      %v8285 = vmul.f32 %v8151, %v7767
      %v8286 = vmul.f32 %v8152, %v7768
      %v8287 = vmul.f32 %v8153, %v7769
      %v8288 = vmul.f32 %v8154, %v7770
      %v8289 = vmul.f32 %v8155, %v7771
      %v8290 = vmul.f32 %v8156, %v7772
      %v8291 = vmul.f32 %v8157, %v7773
      %v8292 = vmul.f32 %v8158, %v7774
      %v8293 = vmul.f32 %v8159, %v7775
      %v8294 = vmul.f32 %v8160, %v7776
      %v8295 = vmul.f32 %v8161, %v7777
      %v8296 = vmul.f32 %v8162, %v7778
      %v8297 = vmul.f32 %v8163, %v7779
      %v8298 = vmul.f32 %v8164, %v7780
      %v8299 = vmul.f32 %v8165, %v7781
      %v8300 = vmul.f32 %v8166, %v7782
      %v8301 = vmul.f32 %v8167, %v7783
      %v8302 = vmul.f32 %v8168, %v7784
      %v8303 = vmul.f32 %v8169, %v7785
      %v8304 = vmul.f32 %v8170, %v7786
      %v8305 = vmul.f32 %v8171, %v7787
      %v8306 = vmul.f32 %v8172, %v7788
      %v8307 = vmul.f32 %v8173, %v7789
      %v8308 = vmul.f32 %v8174, %v7790
      %v8309 = vmul.f32 %v8175, %v7791
      %v8310 = vmul.f32 %v8176, %v7792
      %v8311 = vmul.f32 %v8177, %v7793
      %v8312 = vmul.f32 %v8178, %v7794
      %v8313 = vmul.f32 %v8179, %v7795
      %v8314 = vmul.f32 %v8180, %v7796
      %v8315 = vmul.f32 %v8181, %v7797
      %v8316 = vmul.f32 %v8182, %v7798
      %v8317 = vmul.f32 %v8183, %v7799
      %v8318 = vmul.f32 %v8184, %v7800
      %v8319 = vmul.f32 %v8185, %v7801
      %v8320 = vmul.f32 %v8186, %v7802
      %v8321 = vmul.f32 %v8187, %v7803
      %v8322 = vmul.f32 %v8188, %v7804
      %v8323 = vmul.f32 %v8189, %v7805
      %v8324 = vmul.f32 %v8190, %v7806
      %v8325 = vmul.f32 %v8191, %v7807
      %v8326 = vmul.f32 %v8192, %v7808
      %v8327 = vmul.f32 %v8193, %v7809
      %v8328 = vmul.f32 %v8194, %v7810
      %v8329 = vmul.f32 %v8195, %v7811
      %v8330 = vmul.f32 %v8196, %v7812
      %v8331 = vmul.f32 %v8197, %v7813
      %v8332 = vmul.f32 %v8198, %v7814
      %v8333 = vmul.f32 %v8199, %v7815
      %v8334 = vmul.f32 %v8200, %v7816
      %v8335 = vmul.f32 %v8201, %v7817
      %v8336 = vadd.f32 %v8272, %v8273
      %v8337 = vadd.f32 %v8336, %v8274
      %v8338 = vadd.f32 %v8337, %v8275
      %v8339 = vadd.f32 %v8338, %v8276
      %v8340 = vadd.f32 %v8339, %v8277
      %v8341 = vadd.f32 %v8340, %v8278
      %v8342 = vadd.f32 %v8341, %v8279
      %v8343 = vadd.f32 %v8342, %v8280
      %v8344 = vadd.f32 %v8343, %v8281
      %v8345 = vadd.f32 %v8344, %v8282
      %v8346 = vadd.f32 %v8345, %v8283
      %v8347 = vadd.f32 %v8346, %v8284
      %v8348 = vadd.f32 %v8347, %v8285
      %v8349 = vadd.f32 %v8348, %v8286
      %v8350 = vadd.f32 %v8349, %v8287
      %v8351 = vadd.f32 %v8350, %v8288
      %v8352 = vadd.f32 %v8351, %v8289
      %v8353 = vadd.f32 %v8352, %v8290
      %v8354 = vadd.f32 %v8353, %v8291
      %v8355 = vadd.f32 %v8354, %v8292
      %v8356 = vadd.f32 %v8355, %v8293
      %v8357 = vadd.f32 %v8356, %v8294
      %v8358 = vadd.f32 %v8357, %v8295
      %v8359 = vadd.f32 %v8358, %v8296
      %v8360 = vadd.f32 %v8359, %v8297
      %v8361 = vadd.f32 %v8360, %v8298
      %v8362 = vadd.f32 %v8361, %v8299
      %v8363 = vadd.f32 %v8362, %v8300
      %v8364 = vadd.f32 %v8363, %v8301
      %v8365 = vadd.f32 %v8364, %v8302
      %v8366 = vadd.f32 %v8365, %v8303
      %v8367 = vadd.f32 %v8366, %v8304
      %v8368 = vadd.f32 %v8367, %v8305
      %v8369 = vadd.f32 %v8368, %v8306
      %v8370 = vadd.f32 %v8369, %v8307
      %v8371 = vadd.f32 %v8370, %v8308
      %v8372 = vadd.f32 %v8371, %v8309
      %v8373 = vadd.f32 %v8372, %v8310
      %v8374 = vadd.f32 %v8373, %v8311
      %v8375 = vadd.f32 %v8374, %v8312
      %v8376 = vadd.f32 %v8375, %v8313
      %v8377 = vadd.f32 %v8376, %v8314
      %v8378 = vadd.f32 %v8377, %v8315
      %v8379 = vadd.f32 %v8378, %v8316
      %v8380 = vadd.f32 %v8379, %v8317
      %v8381 = vadd.f32 %v8380, %v8318
      %v8382 = vadd.f32 %v8381, %v8319
      %v8383 = vadd.f32 %v8382, %v8320
      %v8384 = vadd.f32 %v8383, %v8321
      %v8385 = vadd.f32 %v8384, %v8322
      %v8386 = vadd.f32 %v8385, %v8323
      %v8387 = vadd.f32 %v8386, %v8324
      %v8388 = vadd.f32 %v8387, %v8325
      %v8389 = vadd.f32 %v8388, %v8326
      %v8390 = vadd.f32 %v8389, %v8327
      %v8391 = vadd.f32 %v8390, %v8328
      %v8392 = vadd.f32 %v8391, %v8329
      %v8393 = vadd.f32 %v8392, %v8330
      %v8394 = vadd.f32 %v8393, %v8331
      %v8395 = vadd.f32 %v8394, %v8332
      %v8396 = vadd.f32 %v8395, %v8333
      %v8397 = vadd.f32 %v8396, %v8334
      %v8398 = vadd.f32 %v8397, %v8335
      %v8399 = vrot.slane %v8398, 4
      %v8400 = vadd.f32 %v8398, %v8399
      %v8401 = vrot.slane %v8400, 2
      %v8402 = vadd.f32 %v8400, %v8401
      %v8403 = vrot.slane %v8402, 1
      %v8404 = vadd.f32 %v8402, %v8403
      %v8405 = vmul.f32 %v8404, 0.00390625
      %v8406 = vmul.f32 %v8271, %v8271
      %v8407 = vsub.f32 %v8405, %v8406
      %v8408 = vmax.f32 %v8407, 0.0
      %v8409 = vsub.f32 %v7754, %v8271
      %v8410 = vsub.f32 %v7755, %v8271
      %v8411 = vsub.f32 %v7756, %v8271
      %v8412 = vsub.f32 %v7757, %v8271
      %v8413 = vsub.f32 %v7758, %v8271
      %v8414 = vsub.f32 %v7759, %v8271
      %v8415 = vsub.f32 %v7760, %v8271
      %v8416 = vsub.f32 %v7761, %v8271
      %v8417 = vsub.f32 %v7762, %v8271
      %v8418 = vsub.f32 %v7763, %v8271
      %v8419 = vsub.f32 %v7764, %v8271
      %v8420 = vsub.f32 %v7765, %v8271
      %v8421 = vsub.f32 %v7766, %v8271
      %v8422 = vsub.f32 %v7767, %v8271
      %v8423 = vsub.f32 %v7768, %v8271
      %v8424 = vsub.f32 %v7769, %v8271
      %v8425 = vsub.f32 %v7770, %v8271
      %v8426 = vsub.f32 %v7771, %v8271
      %v8427 = vsub.f32 %v7772, %v8271
      %v8428 = vsub.f32 %v7773, %v8271
      %v8429 = vsub.f32 %v7774, %v8271
      %v8430 = vsub.f32 %v7775, %v8271
      %v8431 = vsub.f32 %v7776, %v8271
      %v8432 = vsub.f32 %v7777, %v8271
      %v8433 = vsub.f32 %v7778, %v8271
      %v8434 = vsub.f32 %v7779, %v8271
      %v8435 = vsub.f32 %v7780, %v8271
      %v8436 = vsub.f32 %v7781, %v8271
      %v8437 = vsub.f32 %v7782, %v8271
      %v8438 = vsub.f32 %v7783, %v8271
      %v8439 = vsub.f32 %v7784, %v8271
      %v8440 = vsub.f32 %v7785, %v8271
      %v8441 = vsub.f32 %v7786, %v8271
      %v8442 = vsub.f32 %v7787, %v8271
      %v8443 = vsub.f32 %v7788, %v8271
      %v8444 = vsub.f32 %v7789, %v8271
      %v8445 = vsub.f32 %v7790, %v8271
      %v8446 = vsub.f32 %v7791, %v8271
      %v8447 = vsub.f32 %v7792, %v8271
      %v8448 = vsub.f32 %v7793, %v8271
      %v8449 = vsub.f32 %v7794, %v8271
      %v8450 = vsub.f32 %v7795, %v8271
      %v8451 = vsub.f32 %v7796, %v8271
      %v8452 = vsub.f32 %v7797, %v8271
      %v8453 = vsub.f32 %v7798, %v8271
      %v8454 = vsub.f32 %v7799, %v8271
      %v8455 = vsub.f32 %v7800, %v8271
      %v8456 = vsub.f32 %v7801, %v8271
      %v8457 = vsub.f32 %v7802, %v8271
      %v8458 = vsub.f32 %v7803, %v8271
      %v8459 = vsub.f32 %v7804, %v8271
      %v8460 = vsub.f32 %v7805, %v8271
      %v8461 = vsub.f32 %v7806, %v8271
      %v8462 = vsub.f32 %v7807, %v8271
      %v8463 = vsub.f32 %v7808, %v8271
      %v8464 = vsub.f32 %v7809, %v8271
      %v8465 = vsub.f32 %v7810, %v8271
      %v8466 = vsub.f32 %v7811, %v8271
      %v8467 = vsub.f32 %v7812, %v8271
      %v8468 = vsub.f32 %v7813, %v8271
      %v8469 = vsub.f32 %v7814, %v8271
      %v8470 = vsub.f32 %v7815, %v8271
      %v8471 = vsub.f32 %v7816, %v8271
      %v8472 = vsub.f32 %v7817, %v8271
      %v8473 = vadd.f32 %v8408, 1e-05
      %v8474 = vrsqrt.pop %v8473
      %v8475 = vmul.f32 %v8409, %v8474
      %v8476 = vmul.f32 %v8410, %v8474
      %v8477 = vmul.f32 %v8411, %v8474
      %v8478 = vmul.f32 %v8412, %v8474
      %v8479 = vmul.f32 %v8413, %v8474
      %v8480 = vmul.f32 %v8414, %v8474
      %v8481 = vmul.f32 %v8415, %v8474
      %v8482 = vmul.f32 %v8416, %v8474
      %v8483 = vmul.f32 %v8417, %v8474
      %v8484 = vmul.f32 %v8418, %v8474
      %v8485 = vmul.f32 %v8419, %v8474
      %v8486 = vmul.f32 %v8420, %v8474
      %v8487 = vmul.f32 %v8421, %v8474
      %v8488 = vmul.f32 %v8422, %v8474
      %v8489 = vmul.f32 %v8423, %v8474
      %v8490 = vmul.f32 %v8424, %v8474
      %v8491 = vmul.f32 %v8425, %v8474
      %v8492 = vmul.f32 %v8426, %v8474
      %v8493 = vmul.f32 %v8427, %v8474
      %v8494 = vmul.f32 %v8428, %v8474
      %v8495 = vmul.f32 %v8429, %v8474
      %v8496 = vmul.f32 %v8430, %v8474
      %v8497 = vmul.f32 %v8431, %v8474
      %v8498 = vmul.f32 %v8432, %v8474
      %v8499 = vmul.f32 %v8433, %v8474
      %v8500 = vmul.f32 %v8434, %v8474
      %v8501 = vmul.f32 %v8435, %v8474
      %v8502 = vmul.f32 %v8436, %v8474
      %v8503 = vmul.f32 %v8437, %v8474
      %v8504 = vmul.f32 %v8438, %v8474
      %v8505 = vmul.f32 %v8439, %v8474
      %v8506 = vmul.f32 %v8440, %v8474
      %v8507 = vmul.f32 %v8441, %v8474
      %v8508 = vmul.f32 %v8442, %v8474
      %v8509 = vmul.f32 %v8443, %v8474
      %v8510 = vmul.f32 %v8444, %v8474
      %v8511 = vmul.f32 %v8445, %v8474
      %v8512 = vmul.f32 %v8446, %v8474
      %v8513 = vmul.f32 %v8447, %v8474
      %v8514 = vmul.f32 %v8448, %v8474
      %v8515 = vmul.f32 %v8449, %v8474
      %v8516 = vmul.f32 %v8450, %v8474
      %v8517 = vmul.f32 %v8451, %v8474
      %v8518 = vmul.f32 %v8452, %v8474
      %v8519 = vmul.f32 %v8453, %v8474
      %v8520 = vmul.f32 %v8454, %v8474
      %v8521 = vmul.f32 %v8455, %v8474
      %v8522 = vmul.f32 %v8456, %v8474
      %v8523 = vmul.f32 %v8457, %v8474
      %v8524 = vmul.f32 %v8458, %v8474
      %v8525 = vmul.f32 %v8459, %v8474
      %v8526 = vmul.f32 %v8460, %v8474
      %v8527 = vmul.f32 %v8461, %v8474
      %v8528 = vmul.f32 %v8462, %v8474
      %v8529 = vmul.f32 %v8463, %v8474
      %v8530 = vmul.f32 %v8464, %v8474
      %v8531 = vmul.f32 %v8465, %v8474
      %v8532 = vmul.f32 %v8466, %v8474
      %v8533 = vmul.f32 %v8467, %v8474
      %v8534 = vmul.f32 %v8468, %v8474
      %v8535 = vmul.f32 %v8469, %v8474
      %v8536 = vmul.f32 %v8470, %v8474
      %v8537 = vmul.f32 %v8471, %v8474
      %v8538 = vmul.f32 %v8472, %v8474
      %v8539 = vmax.f32 %v8475, 0.0
      %v8540 = vmax.f32 %v8476, 0.0
      %v8541 = vmax.f32 %v8477, 0.0
      %v8542 = vmax.f32 %v8478, 0.0
      %v8543 = vmax.f32 %v8479, 0.0
      %v8544 = vmax.f32 %v8480, 0.0
      %v8545 = vmax.f32 %v8481, 0.0
      %v8546 = vmax.f32 %v8482, 0.0
      %v8547 = vmax.f32 %v8483, 0.0
      %v8548 = vmax.f32 %v8484, 0.0
      %v8549 = vmax.f32 %v8485, 0.0
      %v8550 = vmax.f32 %v8486, 0.0
      %v8551 = vmax.f32 %v8487, 0.0
      %v8552 = vmax.f32 %v8488, 0.0
      %v8553 = vmax.f32 %v8489, 0.0
      %v8554 = vmax.f32 %v8490, 0.0
      %v8555 = vmax.f32 %v8491, 0.0
      %v8556 = vmax.f32 %v8492, 0.0
      %v8557 = vmax.f32 %v8493, 0.0
      %v8558 = vmax.f32 %v8494, 0.0
      %v8559 = vmax.f32 %v8495, 0.0
      %v8560 = vmax.f32 %v8496, 0.0
      %v8561 = vmax.f32 %v8497, 0.0
      %v8562 = vmax.f32 %v8498, 0.0
      %v8563 = vmax.f32 %v8499, 0.0
      %v8564 = vmax.f32 %v8500, 0.0
      %v8565 = vmax.f32 %v8501, 0.0
      %v8566 = vmax.f32 %v8502, 0.0
      %v8567 = vmax.f32 %v8503, 0.0
      %v8568 = vmax.f32 %v8504, 0.0
      %v8569 = vmax.f32 %v8505, 0.0
      %v8570 = vmax.f32 %v8506, 0.0
      %v8571 = vmax.f32 %v8507, 0.0
      %v8572 = vmax.f32 %v8508, 0.0
      %v8573 = vmax.f32 %v8509, 0.0
      %v8574 = vmax.f32 %v8510, 0.0
      %v8575 = vmax.f32 %v8511, 0.0
      %v8576 = vmax.f32 %v8512, 0.0
      %v8577 = vmax.f32 %v8513, 0.0
      %v8578 = vmax.f32 %v8514, 0.0
      %v8579 = vmax.f32 %v8515, 0.0
      %v8580 = vmax.f32 %v8516, 0.0
      %v8581 = vmax.f32 %v8517, 0.0
      %v8582 = vmax.f32 %v8518, 0.0
      %v8583 = vmax.f32 %v8519, 0.0
      %v8584 = vmax.f32 %v8520, 0.0
      %v8585 = vmax.f32 %v8521, 0.0
      %v8586 = vmax.f32 %v8522, 0.0
      %v8587 = vmax.f32 %v8523, 0.0
      %v8588 = vmax.f32 %v8524, 0.0
      %v8589 = vmax.f32 %v8525, 0.0
      %v8590 = vmax.f32 %v8526, 0.0
      %v8591 = vmax.f32 %v8527, 0.0
      %v8592 = vmax.f32 %v8528, 0.0
      %v8593 = vmax.f32 %v8529, 0.0
      %v8594 = vmax.f32 %v8530, 0.0
      %v8595 = vmax.f32 %v8531, 0.0
      %v8596 = vmax.f32 %v8532, 0.0
      %v8597 = vmax.f32 %v8533, 0.0
      %v8598 = vmax.f32 %v8534, 0.0
      %v8599 = vmax.f32 %v8535, 0.0
      %v8600 = vmax.f32 %v8536, 0.0
      %v8601 = vmax.f32 %v8537, 0.0
      %v8602 = vmax.f32 %v8538, 0.0
      %v8603 = vmul.f32 %v8539, %v7821
      %v8604 = vmul.f32 %v8540, %v7826
      %v8605 = vmul.f32 %v8541, %v7831
      %v8606 = vmul.f32 %v8542, %v7836
      %v8607 = vmul.f32 %v8543, %v7841
      %v8608 = vmul.f32 %v8544, %v7846
      %v8609 = vmul.f32 %v8545, %v7851
      %v8610 = vmul.f32 %v8546, %v7856
      %v8611 = vmul.f32 %v8547, %v7861
      %v8612 = vmul.f32 %v8548, %v7866
      %v8613 = vmul.f32 %v8549, %v7871
      %v8614 = vmul.f32 %v8550, %v7876
      %v8615 = vmul.f32 %v8551, %v7881
      %v8616 = vmul.f32 %v8552, %v7886
      %v8617 = vmul.f32 %v8553, %v7891
      %v8618 = vmul.f32 %v8554, %v7896
      %v8619 = vmul.f32 %v8555, %v7901
      %v8620 = vmul.f32 %v8556, %v7906
      %v8621 = vmul.f32 %v8557, %v7911
      %v8622 = vmul.f32 %v8558, %v7916
      %v8623 = vmul.f32 %v8559, %v7921
      %v8624 = vmul.f32 %v8560, %v7926
      %v8625 = vmul.f32 %v8561, %v7931
      %v8626 = vmul.f32 %v8562, %v7936
      %v8627 = vmul.f32 %v8563, %v7941
      %v8628 = vmul.f32 %v8564, %v7946
      %v8629 = vmul.f32 %v8565, %v7951
      %v8630 = vmul.f32 %v8566, %v7956
      %v8631 = vmul.f32 %v8567, %v7961
      %v8632 = vmul.f32 %v8568, %v7966
      %v8633 = vmul.f32 %v8569, %v7971
      %v8634 = vmul.f32 %v8570, %v7976
      %v8635 = vmul.f32 %v8571, %v7981
      %v8636 = vmul.f32 %v8572, %v7986
      %v8637 = vmul.f32 %v8573, %v7991
      %v8638 = vmul.f32 %v8574, %v7996
      %v8639 = vmul.f32 %v8575, %v8001
      %v8640 = vmul.f32 %v8576, %v8006
      %v8641 = vmul.f32 %v8577, %v8011
      %v8642 = vmul.f32 %v8578, %v8016
      %v8643 = vmul.f32 %v8579, %v8021
      %v8644 = vmul.f32 %v8580, %v8026
      %v8645 = vmul.f32 %v8581, %v8031
      %v8646 = vmul.f32 %v8582, %v8036
      %v8647 = vmul.f32 %v8583, %v8041
      %v8648 = vmul.f32 %v8584, %v8046
      %v8649 = vmul.f32 %v8585, %v8051
      %v8650 = vmul.f32 %v8586, %v8056
      %v8651 = vmul.f32 %v8587, %v8061
      %v8652 = vmul.f32 %v8588, %v8066
      %v8653 = vmul.f32 %v8589, %v8071
      %v8654 = vmul.f32 %v8590, %v8076
      %v8655 = vmul.f32 %v8591, %v8081
      %v8656 = vmul.f32 %v8592, %v8086
      %v8657 = vmul.f32 %v8593, %v8091
      %v8658 = vmul.f32 %v8594, %v8096
      %v8659 = vmul.f32 %v8595, %v8101
      %v8660 = vmul.f32 %v8596, %v8106
      %v8661 = vmul.f32 %v8597, %v8111
      %v8662 = vmul.f32 %v8598, %v8116
      %v8663 = vmul.f32 %v8599, %v8121
      %v8664 = vmul.f32 %v8600, %v8126
      %v8665 = vmul.f32 %v8601, %v8131
      %v8666 = vmul.f32 %v8602, %v8136
      %v8667 = vpack.c.bf16 %v8604, %v8603
      %v8668 = vpack.c.bf16 %v8606, %v8605
      %v8669 = vpack.c.bf16 %v8608, %v8607
      %v8670 = vpack.c.bf16 %v8610, %v8609
      %v8671 = vpack.c.bf16 %v8612, %v8611
      %v8672 = vpack.c.bf16 %v8614, %v8613
      %v8673 = vpack.c.bf16 %v8616, %v8615
      %v8674 = vpack.c.bf16 %v8618, %v8617
      %v8675 = vpack.c.bf16 %v8620, %v8619
      %v8676 = vpack.c.bf16 %v8622, %v8621
      %v8677 = vpack.c.bf16 %v8624, %v8623
      %v8678 = vpack.c.bf16 %v8626, %v8625
      %v8679 = vpack.c.bf16 %v8628, %v8627
      %v8680 = vpack.c.bf16 %v8630, %v8629
      %v8681 = vpack.c.bf16 %v8632, %v8631
      %v8682 = vpack.c.bf16 %v8634, %v8633
      %v8683 = vpack.c.bf16 %v8636, %v8635
      %v8684 = vpack.c.bf16 %v8638, %v8637
      %v8685 = vpack.c.bf16 %v8640, %v8639
      %v8686 = vpack.c.bf16 %v8642, %v8641
      %v8687 = vpack.c.bf16 %v8644, %v8643
      %v8688 = vpack.c.bf16 %v8646, %v8645
      %v8689 = vpack.c.bf16 %v8648, %v8647
      %v8690 = vpack.c.bf16 %v8650, %v8649
      %v8691 = vpack.c.bf16 %v8652, %v8651
      %v8692 = vpack.c.bf16 %v8654, %v8653
      %v8693 = vpack.c.bf16 %v8656, %v8655
      %v8694 = vpack.c.bf16 %v8658, %v8657
      %v8695 = vpack.c.bf16 %v8660, %v8659
      %v8696 = vpack.c.bf16 %v8662, %v8661
      %v8697 = vpack.c.bf16 %v8664, %v8663
      %v8698 = vpack.c.bf16 %v8666, %v8665
      %8699 = vst [vmem:[#allocation2] sm:$0xff] 0
      %8700 = vst [vmem:[#allocation2 + $0x10] sm:$0xff] 0
      %8701 = vst [vmem:[#allocation2 + $0x20] sm:$0xff] 0
      %8702 = vst [vmem:[#allocation2 + $0x30] sm:$0xff] 0
      %8703 = vst [vmem:[#allocation2 + $0x40] sm:$0xff] %v8667
      %8704 = vst [vmem:[#allocation2 + $0x50] sm:$0xff] %v8668
      %8705 = vst [vmem:[#allocation2 + $0x60] sm:$0xff] %v8669
      %8706 = vst [vmem:[#allocation2 + $0x70] sm:$0xff] %v8670
      %8707 = vst [vmem:[#allocation2 + $0x80] sm:$0xff] %v8671
      %8708 = vst [vmem:[#allocation2 + $0x90] sm:$0xff] %v8672
      %8709 = vst [vmem:[#allocation2 + $0xa0] sm:$0xff] %v8673
      %8710 = vst [vmem:[#allocation2 + $0xb0] sm:$0xff] %v8674
      %8711 = vst [vmem:[#allocation2 + $0xc0] sm:$0xff] %v8675
      %8712 = vst [vmem:[#allocation2 + $0xd0] sm:$0xff] %v8676
      %8713 = vst [vmem:[#allocation2 + $0xe0] sm:$0xff] %v8677
      %8714 = vst [vmem:[#allocation2 + $0xf0] sm:$0xff] %v8678
      %8715 = vst [vmem:[#allocation2 + $0x100] sm:$0xff] %v8679
      %8716 = vst [vmem:[#allocation2 + $0x110] sm:$0xff] %v8680
      %8717 = vst [vmem:[#allocation2 + $0x120] sm:$0xff] %v8681
      %8718 = vst [vmem:[#allocation2 + $0x130] sm:$0xff] %v8682
      %8719 = vst [vmem:[#allocation2 + $0x140] sm:$0xff] %v8683
      %8720 = vst [vmem:[#allocation2 + $0x150] sm:$0xff] %v8684
      %8721 = vst [vmem:[#allocation2 + $0x160] sm:$0xff] %v8685
      %8722 = vst [vmem:[#allocation2 + $0x170] sm:$0xff] %v8686
      %8723 = vst [vmem:[#allocation2 + $0x180] sm:$0xff] %v8687
      %8724 = vst [vmem:[#allocation2 + $0x190] sm:$0xff] %v8688
      %8725 = vst [vmem:[#allocation2 + $0x1a0] sm:$0xff] %v8689
      %8726 = vst [vmem:[#allocation2 + $0x1b0] sm:$0xff] %v8690
      %8727 = vst [vmem:[#allocation2 + $0x1c0] sm:$0xff] %v8691
      %8728 = vst [vmem:[#allocation2 + $0x1d0] sm:$0xff] %v8692
      %8729 = vst [vmem:[#allocation2 + $0x1e0] sm:$0xff] %v8693
      %8730 = vst [vmem:[#allocation2 + $0x1f0] sm:$0xff] %v8694
      %8731 = vst [vmem:[#allocation2 + $0x200] sm:$0xff] %v8695
      %8732 = vst [vmem:[#allocation2 + $0x210] sm:$0xff] %v8696
      %8733 = vst [vmem:[#allocation2 + $0x220] sm:$0xff] %v8697
      %8734 = vst [vmem:[#allocation2 + $0x230] sm:$0xff] %v8698
      %8735 = vst [vmem:[#allocation2 + $0x240] sm:$0xff] 0
      %8736 = vst [vmem:[#allocation2 + $0x250] sm:$0xff] 0
      %8737 = vst [vmem:[#allocation2 + $0x260] sm:$0xff] 0
      %8738 = vst [vmem:[#allocation2 + $0x270] sm:$0xff] 0
      %v8739 = vld [vmem:[#allocation2] sm:$0xff]
      %v8740 = vld [vmem:[#allocation2 + $0x10] sm:$0xff]
      %v8741 = vld [vmem:[#allocation2 + $0x20] sm:$0xff]
      %v8742 = vld [vmem:[#allocation2 + $0x30] sm:$0xff]
      %v8743 = vld [vmem:[#allocation2 + $0x40] sm:$0xff]
      %v8744 = vld [vmem:[#allocation2 + $0x50] sm:$0xff]
      %v8745 = vld [vmem:[#allocation2 + $0x60] sm:$0xff]
      %v8746 = vld [vmem:[#allocation2 + $0x70] sm:$0xff]
      %v8747 = vld [vmem:[#allocation2 + $0x80] sm:$0xff]
      %v8748 = vld [vmem:[#allocation2 + $0x90] sm:$0xff]
      %v8749 = vld [vmem:[#allocation2 + $0xa0] sm:$0xff]
      %v8750 = vld [vmem:[#allocation2 + $0xb0] sm:$0xff]
      %v8751 = vld [vmem:[#allocation2 + $0xc0] sm:$0xff]
      %v8752 = vld [vmem:[#allocation2 + $0xd0] sm:$0xff]
      %v8753 = vld [vmem:[#allocation2 + $0xe0] sm:$0xff]
      %v8754 = vld [vmem:[#allocation2 + $0xf0] sm:$0xff]
      %v8755 = vld [vmem:[#allocation2 + $0x100] sm:$0xff]
      %v8756 = vld [vmem:[#allocation2 + $0x110] sm:$0xff]
      %v8757 = vld [vmem:[#allocation2 + $0x120] sm:$0xff]
      %v8758 = vld [vmem:[#allocation2 + $0x130] sm:$0xff]
      %v8759 = vld [vmem:[#allocation2 + $0x140] sm:$0xff]
      %v8760 = vld [vmem:[#allocation2 + $0x150] sm:$0xff]
      %v8761 = vld [vmem:[#allocation2 + $0x160] sm:$0xff]
      %v8762 = vld [vmem:[#allocation2 + $0x170] sm:$0xff]
      %v8763 = vld [vmem:[#allocation2 + $0x180] sm:$0xff]
      %v8764 = vld [vmem:[#allocation2 + $0x190] sm:$0xff]
      %v8765 = vld [vmem:[#allocation2 + $0x1a0] sm:$0xff]
      %v8766 = vld [vmem:[#allocation2 + $0x1b0] sm:$0xff]
      %v8767 = vld [vmem:[#allocation2 + $0x1c0] sm:$0xff]
      %v8768 = vld [vmem:[#allocation2 + $0x1d0] sm:$0xff]
      %v8769 = vld [vmem:[#allocation2 + $0x1e0] sm:$0xff]
      %v8770 = vld [vmem:[#allocation2 + $0x1f0] sm:$0xff]
      %v8771 = vld [vmem:[#allocation2 + $0x200] sm:$0xff]
      %v8772 = vld [vmem:[#allocation2 + $0x210] sm:$0xff]
      %v8773 = vld [vmem:[#allocation2 + $0x220] sm:$0xff]
      %v8774 = vld [vmem:[#allocation2 + $0x230] sm:$0xff]
      %v8775 = vld [vmem:[#allocation2 + $0x240] sm:$0xff]
      %v8776 = vld [vmem:[#allocation2 + $0x250] sm:$0xff]
      %v8777 = vld [vmem:[#allocation2 + $0x260] sm:$0x1]
      %v8779 = vshrl.u32 %v8739, 16
      %v8781 = vshll.u32 %v8739, 16
      %v8783 = vrot.slane %v8781, 1
      %v8784 = vor.u32 %v8779, %v8783
      %v8786 = vshll.u32 %v8740, 16
      %v8788 = vrot.slane %v8786, 1
      %v8789 = vsel %vm703, %v8784, %v8788
      %v8790 = vshrl.u32 %v8740, 16
      %v8792 = vor.u32 %v8790, %v8788
      %v8794 = vshll.u32 %v8741, 16
      %v8796 = vrot.slane %v8794, 1
      %v8797 = vsel %vm703, %v8792, %v8796
      %v8798 = vshrl.u32 %v8741, 16
      %v8800 = vor.u32 %v8798, %v8796
      %v8802 = vshll.u32 %v8742, 16
      %v8804 = vrot.slane %v8802, 1
      %v8805 = vsel %vm703, %v8800, %v8804
      %v8806 = vshrl.u32 %v8742, 16
      %v8808 = vor.u32 %v8806, %v8804
      %v8810 = vshll.u32 %v8743, 16
      %v8812 = vrot.slane %v8810, 1
      %v8813 = vsel %vm703, %v8808, %v8812
      %v8814 = vshrl.u32 %v8743, 16
      %v8816 = vor.u32 %v8814, %v8812
      %v8818 = vshll.u32 %v8744, 16
      %v8820 = vrot.slane %v8818, 1
      %v8821 = vsel %vm703, %v8816, %v8820
      %v8822 = vshrl.u32 %v8744, 16
      %v8824 = vor.u32 %v8822, %v8820
      %v8826 = vshll.u32 %v8745, 16
      %v8828 = vrot.slane %v8826, 1
      %v8829 = vsel %vm703, %v8824, %v8828
      %v8830 = vshrl.u32 %v8745, 16
      %v8832 = vor.u32 %v8830, %v8828
      %v8834 = vshll.u32 %v8746, 16
      %v8836 = vrot.slane %v8834, 1
      %v8837 = vsel %vm703, %v8832, %v8836
      %v8838 = vshrl.u32 %v8746, 16
      %v8840 = vor.u32 %v8838, %v8836
      %v8842 = vshll.u32 %v8747, 16
      %v8844 = vrot.slane %v8842, 1
      %v8845 = vsel %vm703, %v8840, %v8844
      %v8846 = vshrl.u32 %v8747, 16
      %v8848 = vor.u32 %v8846, %v8844
      %v8850 = vshll.u32 %v8748, 16
      %v8852 = vrot.slane %v8850, 1
      %v8853 = vsel %vm703, %v8848, %v8852
      %v8854 = vshrl.u32 %v8748, 16
      %v8856 = vor.u32 %v8854, %v8852
      %v8858 = vshll.u32 %v8749, 16
      %v8860 = vrot.slane %v8858, 1
      %v8861 = vsel %vm703, %v8856, %v8860
      %v8862 = vshrl.u32 %v8749, 16
      %v8864 = vor.u32 %v8862, %v8860
      %v8866 = vshll.u32 %v8750, 16
      %v8868 = vrot.slane %v8866, 1
      %v8869 = vsel %vm703, %v8864, %v8868
      %v8870 = vshrl.u32 %v8750, 16
      %v8872 = vor.u32 %v8870, %v8868
      %v8874 = vshll.u32 %v8751, 16
      %v8876 = vrot.slane %v8874, 1
      %v8877 = vsel %vm703, %v8872, %v8876
      %v8878 = vshrl.u32 %v8751, 16
      %v8880 = vor.u32 %v8878, %v8876
      %v8882 = vshll.u32 %v8752, 16
      %v8884 = vrot.slane %v8882, 1
      %v8885 = vsel %vm703, %v8880, %v8884
      %v8886 = vshrl.u32 %v8752, 16
      %v8888 = vor.u32 %v8886, %v8884
      %v8890 = vshll.u32 %v8753, 16
      %v8892 = vrot.slane %v8890, 1
      %v8893 = vsel %vm703, %v8888, %v8892
      %v8894 = vshrl.u32 %v8753, 16
      %v8896 = vor.u32 %v8894, %v8892
      %v8898 = vshll.u32 %v8754, 16
      %v8900 = vrot.slane %v8898, 1
      %v8901 = vsel %vm703, %v8896, %v8900
      %v8902 = vshrl.u32 %v8754, 16
      %v8904 = vor.u32 %v8902, %v8900
      %v8906 = vshll.u32 %v8755, 16
      %v8908 = vrot.slane %v8906, 1
      %v8909 = vsel %vm703, %v8904, %v8908
      %v8910 = vshrl.u32 %v8755, 16
      %v8912 = vor.u32 %v8910, %v8908
      %v8914 = vshll.u32 %v8756, 16
      %v8916 = vrot.slane %v8914, 1
      %v8917 = vsel %vm703, %v8912, %v8916
      %v8918 = vshrl.u32 %v8756, 16
      %v8920 = vor.u32 %v8918, %v8916
      %v8922 = vshll.u32 %v8757, 16
      %v8924 = vrot.slane %v8922, 1
      %v8925 = vsel %vm703, %v8920, %v8924
      %v8926 = vshrl.u32 %v8757, 16
      %v8928 = vor.u32 %v8926, %v8924
      %v8930 = vshll.u32 %v8758, 16
      %v8932 = vrot.slane %v8930, 1
      %v8933 = vsel %vm703, %v8928, %v8932
      %v8934 = vshrl.u32 %v8758, 16
      %v8936 = vor.u32 %v8934, %v8932
      %v8938 = vshll.u32 %v8759, 16
      %v8940 = vrot.slane %v8938, 1
      %v8941 = vsel %vm703, %v8936, %v8940
      %v8942 = vshrl.u32 %v8759, 16
      %v8944 = vor.u32 %v8942, %v8940
      %v8946 = vshll.u32 %v8760, 16
      %v8948 = vrot.slane %v8946, 1
      %v8949 = vsel %vm703, %v8944, %v8948
      %v8950 = vshrl.u32 %v8760, 16
      %v8952 = vor.u32 %v8950, %v8948
      %v8954 = vshll.u32 %v8761, 16
      %v8956 = vrot.slane %v8954, 1
      %v8957 = vsel %vm703, %v8952, %v8956
      %v8958 = vshrl.u32 %v8761, 16
      %v8960 = vor.u32 %v8958, %v8956
      %v8962 = vshll.u32 %v8762, 16
      %v8964 = vrot.slane %v8962, 1
      %v8965 = vsel %vm703, %v8960, %v8964
      %v8966 = vshrl.u32 %v8762, 16
      %v8968 = vor.u32 %v8966, %v8964
      %v8970 = vshll.u32 %v8763, 16
      %v8972 = vrot.slane %v8970, 1
      %v8973 = vsel %vm703, %v8968, %v8972
      %v8974 = vshrl.u32 %v8763, 16
      %v8976 = vor.u32 %v8974, %v8972
      %v8978 = vshll.u32 %v8764, 16
      %v8980 = vrot.slane %v8978, 1
      %v8981 = vsel %vm703, %v8976, %v8980
      %v8982 = vshrl.u32 %v8764, 16
      %v8984 = vor.u32 %v8982, %v8980
      %v8986 = vshll.u32 %v8765, 16
      %v8988 = vrot.slane %v8986, 1
      %v8989 = vsel %vm703, %v8984, %v8988
      %v8990 = vshrl.u32 %v8765, 16
      %v8992 = vor.u32 %v8990, %v8988
      %v8994 = vshll.u32 %v8766, 16
      %v8996 = vrot.slane %v8994, 1
      %v8997 = vsel %vm703, %v8992, %v8996
      %v8998 = vshrl.u32 %v8766, 16
      %v9000 = vor.u32 %v8998, %v8996
      %v9002 = vshll.u32 %v8767, 16
      %v9004 = vrot.slane %v9002, 1
      %v9005 = vsel %vm703, %v9000, %v9004
      %v9006 = vshrl.u32 %v8767, 16
      %v9008 = vor.u32 %v9006, %v9004
      %v9010 = vshll.u32 %v8768, 16
      %v9012 = vrot.slane %v9010, 1
      %v9013 = vsel %vm703, %v9008, %v9012
      %v9014 = vshrl.u32 %v8768, 16
      %v9016 = vor.u32 %v9014, %v9012
      %v9018 = vshll.u32 %v8769, 16
      %v9020 = vrot.slane %v9018, 1
      %v9021 = vsel %vm703, %v9016, %v9020
      %v9022 = vshrl.u32 %v8769, 16
      %v9024 = vor.u32 %v9022, %v9020
      %v9026 = vshll.u32 %v8770, 16
      %v9028 = vrot.slane %v9026, 1
      %v9029 = vsel %vm703, %v9024, %v9028
      %v9030 = vshrl.u32 %v8770, 16
      %v9032 = vor.u32 %v9030, %v9028
      %v9034 = vshll.u32 %v8771, 16
      %v9036 = vrot.slane %v9034, 1
      %v9037 = vsel %vm703, %v9032, %v9036
      %v9038 = vshrl.u32 %v8771, 16
      %v9040 = vor.u32 %v9038, %v9036
      %v9042 = vshll.u32 %v8772, 16
      %v9044 = vrot.slane %v9042, 1
      %v9045 = vsel %vm703, %v9040, %v9044
      %v9046 = vshrl.u32 %v8772, 16
      %v9048 = vor.u32 %v9046, %v9044
      %v9050 = vshll.u32 %v8773, 16
      %v9052 = vrot.slane %v9050, 1
      %v9053 = vsel %vm703, %v9048, %v9052
      %v9054 = vshrl.u32 %v8773, 16
      %v9056 = vor.u32 %v9054, %v9052
      %v9058 = vshll.u32 %v8774, 16
      %v9060 = vrot.slane %v9058, 1
      %v9061 = vsel %vm703, %v9056, %v9060
      %v9062 = vshrl.u32 %v8774, 16
      %v9064 = vor.u32 %v9062, %v9060
      %v9066 = vshll.u32 %v8775, 16
      %v9068 = vrot.slane %v9066, 1
      %v9069 = vsel %vm703, %v9064, %v9068
      %v9070 = vshrl.u32 %v8775, 16
      %v9072 = vor.u32 %v9070, %v9068
      %v9074 = vshll.u32 %v8776, 16
      %v9076 = vrot.slane %v9074, 1
      %v9077 = vsel %vm703, %v9072, %v9076
      %v9078 = vshrl.u32 %v8776, 16
      %v9080 = vor.u32 %v9078, %v9076
      %v9082 = vshll.u32 %v8777, 16
      %v9084 = vrot.slane %v9082, 1
      %v9085 = vsel %vm703, %v9080, %v9084
      %9124 = vst [vmem:[#allocation2 + $0x8] sm:$0xff] %v8789
      %9125 = vst [vmem:[#allocation2 + $0x18] sm:$0xff] %v8797
      %9126 = vst [vmem:[#allocation2 + $0x28] sm:$0xff] %v8805
      %9127 = vst [vmem:[#allocation2 + $0x38] sm:$0xff] %v8813
      %9128 = vst [vmem:[#allocation2 + $0x48] sm:$0xff] %v8821
      %9129 = vst [vmem:[#allocation2 + $0x58] sm:$0xff] %v8829
      %9130 = vst [vmem:[#allocation2 + $0x68] sm:$0xff] %v8837
      %9131 = vst [vmem:[#allocation2 + $0x78] sm:$0xff] %v8845
      %9132 = vst [vmem:[#allocation2 + $0x88] sm:$0xff] %v8853
      %9133 = vst [vmem:[#allocation2 + $0x98] sm:$0xff] %v8861
      %9134 = vst [vmem:[#allocation2 + $0xa8] sm:$0xff] %v8869
      %9135 = vst [vmem:[#allocation2 + $0xb8] sm:$0xff] %v8877
      %9136 = vst [vmem:[#allocation2 + $0xc8] sm:$0xff] %v8885
      %9137 = vst [vmem:[#allocation2 + $0xd8] sm:$0xff] %v8893
      %9138 = vst [vmem:[#allocation2 + $0xe8] sm:$0xff] %v8901
      %9139 = vst [vmem:[#allocation2 + $0xf8] sm:$0xff] %v8909
      %9140 = vst [vmem:[#allocation2 + $0x108] sm:$0xff] %v8917
      %9141 = vst [vmem:[#allocation2 + $0x118] sm:$0xff] %v8925
      %9142 = vst [vmem:[#allocation2 + $0x128] sm:$0xff] %v8933
      %9143 = vst [vmem:[#allocation2 + $0x138] sm:$0xff] %v8941
      %9144 = vst [vmem:[#allocation2 + $0x148] sm:$0xff] %v8949
      %9145 = vst [vmem:[#allocation2 + $0x158] sm:$0xff] %v8957
      %9146 = vst [vmem:[#allocation2 + $0x168] sm:$0xff] %v8965
      %9147 = vst [vmem:[#allocation2 + $0x178] sm:$0xff] %v8973
      %9148 = vst [vmem:[#allocation2 + $0x188] sm:$0xff] %v8981
      %9149 = vst [vmem:[#allocation2 + $0x198] sm:$0xff] %v8989
      %9150 = vst [vmem:[#allocation2 + $0x1a8] sm:$0xff] %v8997
      %9151 = vst [vmem:[#allocation2 + $0x1b8] sm:$0xff] %v9005
      %9152 = vst [vmem:[#allocation2 + $0x1c8] sm:$0xff] %v9013
      %9153 = vst [vmem:[#allocation2 + $0x1d8] sm:$0xff] %v9021
      %9154 = vst [vmem:[#allocation2 + $0x1e8] sm:$0xff] %v9029
      %9155 = vst [vmem:[#allocation2 + $0x1f8] sm:$0xff] %v9037
      %9156 = vst [vmem:[#allocation2 + $0x208] sm:$0xff] %v9045
      %9157 = vst [vmem:[#allocation2 + $0x218] sm:$0xff] %v9053
      %9158 = vst [vmem:[#allocation2 + $0x228] sm:$0xff] %v9061
      %9159 = vst [vmem:[#allocation2 + $0x238] sm:$0xff] %v9069
      %9160 = vst [vmem:[#allocation2 + $0x248] sm:$0xff] %v9077
      %9161 = vst [vmem:[#allocation2 + $0x258] sm:$0xff] %v9085
      %v9162 = vld [vmem:[#allocation2 + $0x20] sm:$0xff]
      %v9163 = vld [vmem:[#allocation2 + $0x28] sm:$0xff]
      %v9164 = vld [vmem:[#allocation2 + $0x30] sm:$0xff]
      %v9165 = vld [vmem:[#allocation2 + $0x38] sm:$0xff]
      %v9166 = vld [vmem:[#allocation2 + $0x40] sm:$0xff]
      %v9167 = vld [vmem:[#allocation2 + $0x48] sm:$0xff]
      %v9168 = vld [vmem:[#allocation2 + $0x50] sm:$0xff]
      %v9169 = vld [vmem:[#allocation2 + $0x58] sm:$0xff]
      %v9170 = vld [vmem:[#allocation2 + $0x60] sm:$0xff]
      %v9171 = vld [vmem:[#allocation2 + $0x68] sm:$0xff]
      %v9172 = vld [vmem:[#allocation2 + $0x70] sm:$0xff]
      %v9173 = vld [vmem:[#allocation2 + $0x78] sm:$0xff]
      %v9174 = vld [vmem:[#allocation2 + $0x80] sm:$0xff]
      %v9175 = vld [vmem:[#allocation2 + $0x88] sm:$0xff]
      %v9176 = vld [vmem:[#allocation2 + $0x90] sm:$0xff]
      %v9177 = vld [vmem:[#allocation2 + $0x98] sm:$0xff]
      %v9178 = vld [vmem:[#allocation2 + $0xa0] sm:$0xff]
      %v9179 = vld [vmem:[#allocation2 + $0xa8] sm:$0xff]
      %v9180 = vld [vmem:[#allocation2 + $0xb0] sm:$0xff]
      %v9181 = vld [vmem:[#allocation2 + $0xb8] sm:$0xff]
      %v9182 = vld [vmem:[#allocation2 + $0xc0] sm:$0xff]
      %v9183 = vld [vmem:[#allocation2 + $0xc8] sm:$0xff]
      %v9184 = vld [vmem:[#allocation2 + $0xd0] sm:$0xff]
      %v9185 = vld [vmem:[#allocation2 + $0xd8] sm:$0xff]
      %v9186 = vld [vmem:[#allocation2 + $0xe0] sm:$0xff]
      %v9187 = vld [vmem:[#allocation2 + $0xe8] sm:$0xff]
      %v9188 = vld [vmem:[#allocation2 + $0xf0] sm:$0xff]
      %v9189 = vld [vmem:[#allocation2 + $0xf8] sm:$0xff]
      %v9190 = vld [vmem:[#allocation2 + $0x100] sm:$0xff]
      %v9191 = vld [vmem:[#allocation2 + $0x108] sm:$0xff]
      %v9192 = vld [vmem:[#allocation2 + $0x110] sm:$0xff]
      %v9193 = vld [vmem:[#allocation2 + $0x118] sm:$0xff]
      %v9194 = vld [vmem:[#allocation2 + $0x120] sm:$0xff]
      %v9195 = vld [vmem:[#allocation2 + $0x128] sm:$0xff]
      %v9196 = vld [vmem:[#allocation2 + $0x130] sm:$0xff]
      %v9197 = vld [vmem:[#allocation2 + $0x138] sm:$0xff]
      %v9198 = vld [vmem:[#allocation2 + $0x140] sm:$0xff]
      %v9199 = vld [vmem:[#allocation2 + $0x148] sm:$0xff]
      %v9200 = vld [vmem:[#allocation2 + $0x150] sm:$0xff]
      %v9201 = vld [vmem:[#allocation2 + $0x158] sm:$0xff]
      %v9202 = vld [vmem:[#allocation2 + $0x160] sm:$0xff]
      %v9203 = vld [vmem:[#allocation2 + $0x168] sm:$0xff]
      %v9204 = vld [vmem:[#allocation2 + $0x170] sm:$0xff]
      %v9205 = vld [vmem:[#allocation2 + $0x178] sm:$0xff]
      %v9206 = vld [vmem:[#allocation2 + $0x180] sm:$0xff]
      %v9207 = vld [vmem:[#allocation2 + $0x188] sm:$0xff]
      %v9208 = vld [vmem:[#allocation2 + $0x190] sm:$0xff]
      %v9209 = vld [vmem:[#allocation2 + $0x198] sm:$0xff]
      %v9210 = vld [vmem:[#allocation2 + $0x1a0] sm:$0xff]
      %v9211 = vld [vmem:[#allocation2 + $0x1a8] sm:$0xff]
      %v9212 = vld [vmem:[#allocation2 + $0x1b0] sm:$0xff]
      %v9213 = vld [vmem:[#allocation2 + $0x1b8] sm:$0xff]
      %v9214 = vld [vmem:[#allocation2 + $0x1c0] sm:$0xff]
      %v9215 = vld [vmem:[#allocation2 + $0x1c8] sm:$0xff]
      %v9216 = vld [vmem:[#allocation2 + $0x1d0] sm:$0xff]
      %v9217 = vld [vmem:[#allocation2 + $0x1d8] sm:$0xff]
      %v9218 = vld [vmem:[#allocation2 + $0x1e0] sm:$0xff]
      %v9219 = vld [vmem:[#allocation2 + $0x1e8] sm:$0xff]
      %v9220 = vld [vmem:[#allocation2 + $0x1f0] sm:$0xff]
      %v9221 = vld [vmem:[#allocation2 + $0x1f8] sm:$0xff]
      %v9222 = vld [vmem:[#allocation2 + $0x200] sm:$0xff]
      %v9223 = vld [vmem:[#allocation2 + $0x208] sm:$0xff]
      %v9224 = vld [vmem:[#allocation2 + $0x210] sm:$0xff]
      %v9225 = vld [vmem:[#allocation2 + $0x218] sm:$0xff]
      %v9226 = vld [vmem:[%s2 + $0x40] sm:$0xf]
      %v9227 = vld [vmem:[%s2 + $0x44] sm:$0xf]
      %v9228 = vld [vmem:[%s2 + $0x48] sm:$0xf]
      %v9229 = vld [vmem:[%s2 + $0x4c] sm:$0xf]
      %v9230 = vld [vmem:[%s2 + $0x50] sm:$0xf]
      %v9231 = vld [vmem:[%s2 + $0x54] sm:$0xf]
      %v9232 = vld [vmem:[%s2 + $0x58] sm:$0xf]
      %v9233 = vld [vmem:[%s2 + $0x5c] sm:$0xf]
      %v9234 = vld [vmem:[%s2 + $0x60] sm:$0xf]
      %v9235 = vld [vmem:[%s2 + $0x64] sm:$0xf]
      %v9236 = vld [vmem:[%s2 + $0x68] sm:$0xf]
      %v9237 = vld [vmem:[%s2 + $0x6c] sm:$0xf]
      %v9238 = vld [vmem:[%s2 + $0x70] sm:$0xf]
      %v9239 = vld [vmem:[%s2 + $0x74] sm:$0xf]
      %v9240 = vld [vmem:[%s2 + $0x78] sm:$0xf]
      %v9241 = vld [vmem:[%s2 + $0x7c] sm:$0xf]
      %v9242 = vld [vmem:[%s2 + $0x80] sm:$0xf]
      %v9243 = vld [vmem:[%s2 + $0x84] sm:$0xf]
      %v9244 = vld [vmem:[%s2 + $0x88] sm:$0xf]
      %v9245 = vld [vmem:[%s2 + $0x8c] sm:$0xf]
      %v9246 = vld [vmem:[%s2 + $0x90] sm:$0xf]
      %v9247 = vld [vmem:[%s2 + $0x94] sm:$0xf]
      %v9248 = vld [vmem:[%s2 + $0x98] sm:$0xf]
      %v9249 = vld [vmem:[%s2 + $0x9c] sm:$0xf]
      %v9250 = vld [vmem:[%s2 + $0xa0] sm:$0xf]
      %v9251 = vld [vmem:[%s2 + $0xa4] sm:$0xf]
      %v9252 = vld [vmem:[%s2 + $0xa8] sm:$0xf]
      %v9253 = vld [vmem:[%s2 + $0xac] sm:$0xf]
      %v9254 = vld [vmem:[%s2 + $0xb0] sm:$0xf]
      %v9255 = vld [vmem:[%s2 + $0xb4] sm:$0xf]
      %v9256 = vld [vmem:[%s2 + $0xb8] sm:$0xf]
      %v9257 = vld [vmem:[%s2 + $0xbc] sm:$0xf]
      %v9258 = vld [vmem:[#allocation2 + $0x18] sm:$0x80]
      %v9259 = vld [vmem:[#allocation2 + $0x218] sm:$0x7f]
      %v9260 = vld [vmem:[%s2] sm:$0xf]
      %v9261 = vld [vmem:[%s2 + $0x4] sm:$0xf]
      %v9262 = vld [vmem:[%s2 + $0x8] sm:$0xf]
      %v9263 = vld [vmem:[%s2 + $0xc] sm:$0xf]
      %v9264 = vld [vmem:[%s2 + $0x10] sm:$0xf]
      %v9265 = vld [vmem:[%s2 + $0x14] sm:$0xf]
      %v9266 = vld [vmem:[%s2 + $0x18] sm:$0xf]
      %v9267 = vld [vmem:[%s2 + $0x1c] sm:$0xf]
      %v9268 = vld [vmem:[%s2 + $0x20] sm:$0xf]
      %v9269 = vld [vmem:[%s2 + $0x24] sm:$0xf]
      %v9270 = vld [vmem:[%s2 + $0x28] sm:$0xf]
      %v9271 = vld [vmem:[%s2 + $0x2c] sm:$0xf]
      %v9272 = vld [vmem:[%s2 + $0x30] sm:$0xf]
      %v9273 = vld [vmem:[%s2 + $0x34] sm:$0xf]
      %v9274 = vld [vmem:[%s2 + $0x38] sm:$0xf]
      %v9275 = vld [vmem:[%s2 + $0x3c] sm:$0xf]
      %v9309 = vrot.slane %v9258, 7
      %v9310 = vrot.slane %v9163, 7
      %v9311 = vsel %vm2438, %v9309, %v9310
      %v9312 = vrot.slane %v9165, 7
      %v9313 = vsel %vm2438, %v9310, %v9312
      %v9314 = vrot.slane %v9167, 7
      %v9315 = vsel %vm2438, %v9312, %v9314
      %v9316 = vrot.slane %v9169, 7
      %v9317 = vsel %vm2438, %v9314, %v9316
      %v9318 = vrot.slane %v9171, 7
      %v9319 = vsel %vm2438, %v9316, %v9318
      %v9320 = vrot.slane %v9173, 7
      %v9321 = vsel %vm2438, %v9318, %v9320
      %v9322 = vrot.slane %v9175, 7
      %v9323 = vsel %vm2438, %v9320, %v9322
      %v9324 = vrot.slane %v9177, 7
      %v9325 = vsel %vm2438, %v9322, %v9324
      %v9326 = vrot.slane %v9179, 7
      %v9327 = vsel %vm2438, %v9324, %v9326
      %v9328 = vrot.slane %v9181, 7
      %v9329 = vsel %vm2438, %v9326, %v9328
      %v9330 = vrot.slane %v9183, 7
      %v9331 = vsel %vm2438, %v9328, %v9330
      %v9332 = vrot.slane %v9185, 7
      %v9333 = vsel %vm2438, %v9330, %v9332
      %v9334 = vrot.slane %v9187, 7
      %v9335 = vsel %vm2438, %v9332, %v9334
      %v9336 = vrot.slane %v9189, 7
      %v9337 = vsel %vm2438, %v9334, %v9336
      %v9338 = vrot.slane %v9191, 7
      %v9339 = vsel %vm2438, %v9336, %v9338
      %v9340 = vrot.slane %v9193, 7
      %v9341 = vsel %vm2438, %v9338, %v9340
      %v9342 = vrot.slane %v9195, 7
      %v9343 = vsel %vm2438, %v9340, %v9342
      %v9344 = vrot.slane %v9197, 7
      %v9345 = vsel %vm2438, %v9342, %v9344
      %v9346 = vrot.slane %v9199, 7
      %v9347 = vsel %vm2438, %v9344, %v9346
      %v9348 = vrot.slane %v9201, 7
      %v9349 = vsel %vm2438, %v9346, %v9348
      %v9350 = vrot.slane %v9203, 7
      %v9351 = vsel %vm2438, %v9348, %v9350
      %v9352 = vrot.slane %v9205, 7
      %v9353 = vsel %vm2438, %v9350, %v9352
      %v9354 = vrot.slane %v9207, 7
      %v9355 = vsel %vm2438, %v9352, %v9354
      %v9356 = vrot.slane %v9209, 7
      %v9357 = vsel %vm2438, %v9354, %v9356
      %v9358 = vrot.slane %v9211, 7
      %v9359 = vsel %vm2438, %v9356, %v9358
      %v9360 = vrot.slane %v9213, 7
      %v9361 = vsel %vm2438, %v9358, %v9360
      %v9362 = vrot.slane %v9215, 7
      %v9363 = vsel %vm2438, %v9360, %v9362
      %v9364 = vrot.slane %v9217, 7
      %v9365 = vsel %vm2438, %v9362, %v9364
      %v9366 = vrot.slane %v9219, 7
      %v9367 = vsel %vm2438, %v9364, %v9366
      %v9368 = vrot.slane %v9221, 7
      %v9369 = vsel %vm2438, %v9366, %v9368
      %v9370 = vrot.slane %v9223, 7
      %v9371 = vsel %vm2438, %v9368, %v9370
      %v9372 = vrot.slane %v9259, 7
      %v9373 = vsel %vm2438, %v9370, %v9372
      %v9422 = vunpack.c.l.b16 %v9260
      %v9423 = vunpack.c.l.b16 %v9261
      %v9424 = vunpack.c.l.b16 %v9262
      %v9425 = vunpack.c.l.b16 %v9263
      %v9426 = vunpack.c.l.b16 %v9264
      %v9427 = vunpack.c.l.b16 %v9265
      %v9428 = vunpack.c.l.b16 %v9266
      %v9429 = vunpack.c.l.b16 %v9267
      %v9430 = vunpack.c.l.b16 %v9268
      %v9431 = vunpack.c.l.b16 %v9269
      %v9432 = vunpack.c.l.b16 %v9270
      %v9433 = vunpack.c.l.b16 %v9271
      %v9434 = vunpack.c.l.b16 %v9272
      %v9435 = vunpack.c.l.b16 %v9273
      %v9436 = vunpack.c.l.b16 %v9274
      %v9437 = vunpack.c.l.b16 %v9275
      %v9438 = vpack.c.b16 %v9423, %v9422
      %v9439 = vpack.c.b16 %v9425, %v9424
      %v9440 = vpack.c.b16 %v9427, %v9426
      %v9441 = vpack.c.b16 %v9429, %v9428
      %v9442 = vpack.c.b16 %v9431, %v9430
      %v9443 = vpack.c.b16 %v9433, %v9432
      %v9444 = vpack.c.b16 %v9435, %v9434
      %v9445 = vpack.c.b16 %v9437, %v9436
      %9454 = vmatprep.subr.bf16.mxu0 0
      %9455 = vmatpush1.bf16.msra.mxu0 %v9438
      %9456 = vmatprep.subr.bf16.mxu0 0
      %9457 = vmatpush1.bf16.msra.mxu0 %v9439
      %9458 = vmatprep.subr.bf16.mxu0 0
      %9459 = vmatpush1.bf16.msra.mxu0 %v9440
      %9460 = vmatprep.subr.bf16.mxu0 0
      %9461 = vmatpush1.bf16.msra.mxu0 %v9441
      %9462 = vmatprep.subr.bf16.mxu0 0
      %9463 = vmatpush1.bf16.msra.mxu0 %v9442
      %9464 = vmatprep.subr.bf16.mxu0 0
      %9465 = vmatpush1.bf16.msra.mxu0 %v9443
      %9466 = vmatprep.subr.bf16.mxu0 0
      %9467 = vmatpush1.bf16.msra.mxu0 %v9444
      %9468 = vmatprep.subr.bf16.mxu0 0
      %9469 = vmatpush1.bf16.msra.mxu0 %v9445
      %9470 = vmatprep.subr.bf16.mxu0 0
      %9471 = vmatpush1.bf16.msra.mxu0 0
      %9472 = vmatprep.subr.bf16.mxu0 0
      %9473 = vmatpush1.bf16.msra.mxu0 0
      %9474 = vmatprep.subr.bf16.mxu0 0
      %9475 = vmatpush1.bf16.msra.mxu0 0
      %9476 = vmatprep.subr.bf16.mxu0 0
      %9477 = vmatpush1.bf16.msra.mxu0 0
      %9478 = vmatprep.subr.bf16.mxu0 0
      %9479 = vmatpush1.bf16.msra.mxu0 0
      %9480 = vmatprep.subr.bf16.mxu0 0
      %9481 = vmatpush1.bf16.msra.mxu0 0
      %9482 = vmatprep.subr.bf16.mxu0 0
      %9483 = vmatpush1.bf16.msra.mxu0 0
      %9484 = vmatprep.subr.bf16.mxu0 0
      %9485 = vmatpush1.bf16.msra.mxu0 0
      %9486 = vmatprep.mubr.bf16.mxu0 0
      %9487 = vmatmul.mubr.bf16.gmra.mrb[0].mxu0 %v9311
      %v9488 = vpop.f32.mrb[0].mxu0
      %v9489 = vadd.f32 0.0, %v9488
      %v9490 = vpop.f32.mrb[0].mxu0
      %v9491 = vpop.f32.mrb[0].mxu0
      %v9492 = vadd.f32 0.0, %v9491
      %v9493 = vpop.f32.mrb[0].mxu0
      %9494 = vmatprep.mubr.bf16.mxu0 0
      %9495 = vmatmul.mubr.bf16.gmra.mrb[0].mxu0 %v9313
      %v9496 = vpop.f32.mrb[0].mxu0
      %v9497 = vadd.f32 0.0, %v9496
      %v9498 = vpop.f32.mrb[0].mxu0
      %v9499 = vpop.f32.mrb[0].mxu0
      %v9500 = vadd.f32 0.0, %v9499
      %v9501 = vpop.f32.mrb[0].mxu0
      %9502 = vmatprep.mubr.bf16.mxu0 0
      %9503 = vmatmul.mubr.bf16.gmra.mrb[0].mxu0 %v9315
      %v9504 = vpop.f32.mrb[0].mxu0
      %v9505 = vadd.f32 0.0, %v9504
      %v9506 = vpop.f32.mrb[0].mxu0
      %v9507 = vpop.f32.mrb[0].mxu0
      %v9508 = vadd.f32 0.0, %v9507
      %v9509 = vpop.f32.mrb[0].mxu0
      %9510 = vmatprep.mubr.bf16.mxu0 0
      %9511 = vmatmul.mubr.bf16.gmra.mrb[0].mxu0 %v9317
      %v9512 = vpop.f32.mrb[0].mxu0
      %v9513 = vadd.f32 0.0, %v9512
      %v9514 = vpop.f32.mrb[0].mxu0
      %v9515 = vpop.f32.mrb[0].mxu0
      %v9516 = vadd.f32 0.0, %v9515
      %v9517 = vpop.f32.mrb[0].mxu0
      %9518 = vmatprep.mubr.bf16.mxu0 0
      %9519 = vmatmul.mubr.bf16.gmra.mrb[0].mxu0 %v9319
      %v9520 = vpop.f32.mrb[0].mxu0
      %v9521 = vadd.f32 0.0, %v9520
      %v9522 = vpop.f32.mrb[0].mxu0
      %v9523 = vpop.f32.mrb[0].mxu0
      %v9524 = vadd.f32 0.0, %v9523
      %v9525 = vpop.f32.mrb[0].mxu0
      %9526 = vmatprep.mubr.bf16.mxu0 0
      %9527 = vmatmul.mubr.bf16.gmra.mrb[0].mxu0 %v9321
      %v9528 = vpop.f32.mrb[0].mxu0
      %v9529 = vadd.f32 0.0, %v9528
      %v9530 = vpop.f32.mrb[0].mxu0
      %v9531 = vpop.f32.mrb[0].mxu0
      %v9532 = vadd.f32 0.0, %v9531
      %v9533 = vpop.f32.mrb[0].mxu0
      %9534 = vmatprep.mubr.bf16.mxu0 0
      %9535 = vmatmul.mubr.bf16.gmra.mrb[0].mxu0 %v9323
      %v9536 = vpop.f32.mrb[0].mxu0
      %v9537 = vadd.f32 0.0, %v9536
      %v9538 = vpop.f32.mrb[0].mxu0
      %v9539 = vpop.f32.mrb[0].mxu0
      %v9540 = vadd.f32 0.0, %v9539
      %v9541 = vpop.f32.mrb[0].mxu0
      %9542 = vmatprep.mubr.bf16.mxu0 0
      %9543 = vmatmul.mubr.bf16.gmra.mrb[0].mxu0 %v9325
      %v9544 = vpop.f32.mrb[0].mxu0
      %v9545 = vadd.f32 0.0, %v9544
      %v9546 = vpop.f32.mrb[0].mxu0
      %v9547 = vpop.f32.mrb[0].mxu0
      %v9548 = vadd.f32 0.0, %v9547
      %v9549 = vpop.f32.mrb[0].mxu0
      %9550 = vmatprep.mubr.bf16.mxu0 0
      %9551 = vmatmul.mubr.bf16.gmra.mrb[0].mxu0 %v9327
      %v9552 = vpop.f32.mrb[0].mxu0
      %v9553 = vadd.f32 0.0, %v9552
      %v9554 = vpop.f32.mrb[0].mxu0
      %v9555 = vpop.f32.mrb[0].mxu0
      %v9556 = vadd.f32 0.0, %v9555
      %v9557 = vpop.f32.mrb[0].mxu0
      %9558 = vmatprep.mubr.bf16.mxu0 0
      %9559 = vmatmul.mubr.bf16.gmra.mrb[0].mxu0 %v9329
      %v9560 = vpop.f32.mrb[0].mxu0
      %v9561 = vadd.f32 0.0, %v9560
      %v9562 = vpop.f32.mrb[0].mxu0
      %v9563 = vpop.f32.mrb[0].mxu0
      %v9564 = vadd.f32 0.0, %v9563
      %v9565 = vpop.f32.mrb[0].mxu0
      %9566 = vmatprep.mubr.bf16.mxu0 0
      %9567 = vmatmul.mubr.bf16.gmra.mrb[0].mxu0 %v9331
      %v9568 = vpop.f32.mrb[0].mxu0
      %v9569 = vadd.f32 0.0, %v9568
      %v9570 = vpop.f32.mrb[0].mxu0
      %v9571 = vpop.f32.mrb[0].mxu0
      %v9572 = vadd.f32 0.0, %v9571
      %v9573 = vpop.f32.mrb[0].mxu0
      %9574 = vmatprep.mubr.bf16.mxu0 0
      %9575 = vmatmul.mubr.bf16.gmra.mrb[0].mxu0 %v9333
      %v9576 = vpop.f32.mrb[0].mxu0
      %v9577 = vadd.f32 0.0, %v9576
      %v9578 = vpop.f32.mrb[0].mxu0
      %v9579 = vpop.f32.mrb[0].mxu0
      %v9580 = vadd.f32 0.0, %v9579
      %v9581 = vpop.f32.mrb[0].mxu0
      %9582 = vmatprep.mubr.bf16.mxu0 0
      %9583 = vmatmul.mubr.bf16.gmra.mrb[0].mxu0 %v9335
      %v9584 = vpop.f32.mrb[0].mxu0
      %v9585 = vadd.f32 0.0, %v9584
      %v9586 = vpop.f32.mrb[0].mxu0
      %v9587 = vpop.f32.mrb[0].mxu0
      %v9588 = vadd.f32 0.0, %v9587
      %v9589 = vpop.f32.mrb[0].mxu0
      %9590 = vmatprep.mubr.bf16.mxu0 0
      %9591 = vmatmul.mubr.bf16.gmra.mrb[0].mxu0 %v9337
      %v9592 = vpop.f32.mrb[0].mxu0
      %v9593 = vadd.f32 0.0, %v9592
      %v9594 = vpop.f32.mrb[0].mxu0
      %v9595 = vpop.f32.mrb[0].mxu0
      %v9596 = vadd.f32 0.0, %v9595
      %v9597 = vpop.f32.mrb[0].mxu0
      %9598 = vmatprep.mubr.bf16.mxu0 0
      %9599 = vmatmul.mubr.bf16.gmra.mrb[0].mxu0 %v9339
      %v9600 = vpop.f32.mrb[0].mxu0
      %v9601 = vadd.f32 0.0, %v9600
      %v9602 = vpop.f32.mrb[0].mxu0
      %v9603 = vpop.f32.mrb[0].mxu0
      %v9604 = vadd.f32 0.0, %v9603
      %v9605 = vpop.f32.mrb[0].mxu0
      %9606 = vmatprep.mubr.bf16.mxu0 0
      %9607 = vmatmul.mubr.bf16.gmra.mrb[0].mxu0 %v9341
      %v9608 = vpop.f32.mrb[0].mxu0
      %v9609 = vadd.f32 0.0, %v9608
      %v9610 = vpop.f32.mrb[0].mxu0
      %v9611 = vpop.f32.mrb[0].mxu0
      %v9612 = vadd.f32 0.0, %v9611
      %v9613 = vpop.f32.mrb[0].mxu0
      %9614 = vmatprep.mubr.bf16.mxu0 0
      %9615 = vmatmul.mubr.bf16.gmra.mrb[0].mxu0 %v9343
      %v9616 = vpop.f32.mrb[0].mxu0
      %v9617 = vadd.f32 0.0, %v9616
      %v9618 = vpop.f32.mrb[0].mxu0
      %v9619 = vpop.f32.mrb[0].mxu0
      %v9620 = vadd.f32 0.0, %v9619
      %v9621 = vpop.f32.mrb[0].mxu0
      %9622 = vmatprep.mubr.bf16.mxu0 0
      %9623 = vmatmul.mubr.bf16.gmra.mrb[0].mxu0 %v9345
      %v9624 = vpop.f32.mrb[0].mxu0
      %v9625 = vadd.f32 0.0, %v9624
      %v9626 = vpop.f32.mrb[0].mxu0
      %v9627 = vpop.f32.mrb[0].mxu0
      %v9628 = vadd.f32 0.0, %v9627
      %v9629 = vpop.f32.mrb[0].mxu0
      %9630 = vmatprep.mubr.bf16.mxu0 0
      %9631 = vmatmul.mubr.bf16.gmra.mrb[0].mxu0 %v9347
      %v9632 = vpop.f32.mrb[0].mxu0
      %v9633 = vadd.f32 0.0, %v9632
      %v9634 = vpop.f32.mrb[0].mxu0
      %v9635 = vpop.f32.mrb[0].mxu0
      %v9636 = vadd.f32 0.0, %v9635
      %v9637 = vpop.f32.mrb[0].mxu0
      %9638 = vmatprep.mubr.bf16.mxu0 0
      %9639 = vmatmul.mubr.bf16.gmra.mrb[0].mxu0 %v9349
      %v9640 = vpop.f32.mrb[0].mxu0
      %v9641 = vadd.f32 0.0, %v9640
      %v9642 = vpop.f32.mrb[0].mxu0
      %v9643 = vpop.f32.mrb[0].mxu0
      %v9644 = vadd.f32 0.0, %v9643
      %v9645 = vpop.f32.mrb[0].mxu0
      %9646 = vmatprep.mubr.bf16.mxu0 0
      %9647 = vmatmul.mubr.bf16.gmra.mrb[0].mxu0 %v9351
      %v9648 = vpop.f32.mrb[0].mxu0
      %v9649 = vadd.f32 0.0, %v9648
      %v9650 = vpop.f32.mrb[0].mxu0
      %v9651 = vpop.f32.mrb[0].mxu0
      %v9652 = vadd.f32 0.0, %v9651
      %v9653 = vpop.f32.mrb[0].mxu0
      %9654 = vmatprep.mubr.bf16.mxu0 0
      %9655 = vmatmul.mubr.bf16.gmra.mrb[0].mxu0 %v9353
      %v9656 = vpop.f32.mrb[0].mxu0
      %v9657 = vadd.f32 0.0, %v9656
      %v9658 = vpop.f32.mrb[0].mxu0
      %v9659 = vpop.f32.mrb[0].mxu0
      %v9660 = vadd.f32 0.0, %v9659
      %v9661 = vpop.f32.mrb[0].mxu0
      %9662 = vmatprep.mubr.bf16.mxu0 0
      %9663 = vmatmul.mubr.bf16.gmra.mrb[0].mxu0 %v9355
      %v9664 = vpop.f32.mrb[0].mxu0
      %v9665 = vadd.f32 0.0, %v9664
      %v9666 = vpop.f32.mrb[0].mxu0
      %v9667 = vpop.f32.mrb[0].mxu0
      %v9668 = vadd.f32 0.0, %v9667
      %v9669 = vpop.f32.mrb[0].mxu0
      %9670 = vmatprep.mubr.bf16.mxu0 0
      %9671 = vmatmul.mubr.bf16.gmra.mrb[0].mxu0 %v9357
      %v9672 = vpop.f32.mrb[0].mxu0
      %v9673 = vadd.f32 0.0, %v9672
      %v9674 = vpop.f32.mrb[0].mxu0
      %v9675 = vpop.f32.mrb[0].mxu0
      %v9676 = vadd.f32 0.0, %v9675
      %v9677 = vpop.f32.mrb[0].mxu0
      %9678 = vmatprep.mubr.bf16.mxu0 0
      %9679 = vmatmul.mubr.bf16.gmra.mrb[0].mxu0 %v9359
      %v9680 = vpop.f32.mrb[0].mxu0
      %v9681 = vadd.f32 0.0, %v9680
      %v9682 = vpop.f32.mrb[0].mxu0
      %v9683 = vpop.f32.mrb[0].mxu0
      %v9684 = vadd.f32 0.0, %v9683
      %v9685 = vpop.f32.mrb[0].mxu0
      %9686 = vmatprep.mubr.bf16.mxu0 0
      %9687 = vmatmul.mubr.bf16.gmra.mrb[0].mxu0 %v9361
      %v9688 = vpop.f32.mrb[0].mxu0
      %v9689 = vadd.f32 0.0, %v9688
      %v9690 = vpop.f32.mrb[0].mxu0
      %v9691 = vpop.f32.mrb[0].mxu0
      %v9692 = vadd.f32 0.0, %v9691
      %v9693 = vpop.f32.mrb[0].mxu0
      %9694 = vmatprep.mubr.bf16.mxu0 0
      %9695 = vmatmul.mubr.bf16.gmra.mrb[0].mxu0 %v9363
      %v9696 = vpop.f32.mrb[0].mxu0
      %v9697 = vadd.f32 0.0, %v9696
      %v9698 = vpop.f32.mrb[0].mxu0
      %v9699 = vpop.f32.mrb[0].mxu0
      %v9700 = vadd.f32 0.0, %v9699
      %v9701 = vpop.f32.mrb[0].mxu0
      %9702 = vmatprep.mubr.bf16.mxu0 0
      %9703 = vmatmul.mubr.bf16.gmra.mrb[0].mxu0 %v9365
      %v9704 = vpop.f32.mrb[0].mxu0
      %v9705 = vadd.f32 0.0, %v9704
      %v9706 = vpop.f32.mrb[0].mxu0
      %v9707 = vpop.f32.mrb[0].mxu0
      %v9708 = vadd.f32 0.0, %v9707
      %v9709 = vpop.f32.mrb[0].mxu0
      %9710 = vmatprep.mubr.bf16.mxu0 0
      %9711 = vmatmul.mubr.bf16.gmra.mrb[0].mxu0 %v9367
      %v9712 = vpop.f32.mrb[0].mxu0
      %v9713 = vadd.f32 0.0, %v9712
      %v9714 = vpop.f32.mrb[0].mxu0
      %v9715 = vpop.f32.mrb[0].mxu0
      %v9716 = vadd.f32 0.0, %v9715
      %v9717 = vpop.f32.mrb[0].mxu0
      %9718 = vmatprep.mubr.bf16.mxu0 0
      %9719 = vmatmul.mubr.bf16.gmra.mrb[0].mxu0 %v9369
      %v9720 = vpop.f32.mrb[0].mxu0
      %v9721 = vadd.f32 0.0, %v9720
      %v9722 = vpop.f32.mrb[0].mxu0
      %v9723 = vpop.f32.mrb[0].mxu0
      %v9724 = vadd.f32 0.0, %v9723
      %v9725 = vpop.f32.mrb[0].mxu0
      %9726 = vmatprep.mubr.bf16.mxu0 0
      %9727 = vmatmul.mubr.bf16.gmra.mrb[0].mxu0 %v9371
      %v9728 = vpop.f32.mrb[0].mxu0
      %v9729 = vadd.f32 0.0, %v9728
      %v9730 = vpop.f32.mrb[0].mxu0
      %v9731 = vpop.f32.mrb[0].mxu0
      %v9732 = vadd.f32 0.0, %v9731
      %v9733 = vpop.f32.mrb[0].mxu0
      %9734 = vmatprep.mubr.bf16.mxu0 0
      %9735 = vmatmul.mubr.bf16.gmra.mrb[0].mxu0 %v9373
      %v9736 = vpop.f32.mrb[0].mxu0
      %v9737 = vadd.f32 0.0, %v9736
      %v9738 = vpop.f32.mrb[0].mxu0
      %v9739 = vpop.f32.mrb[0].mxu0
      %v9740 = vadd.f32 0.0, %v9739
      %v9741 = vpop.f32.mrb[0].mxu0
      %9742 = vdwg.mxu0
      %v9775 = vunpack.c.l.b16 %v9226
      %v9776 = vunpack.c.l.b16 %v9227
      %v9777 = vunpack.c.l.b16 %v9228
      %v9778 = vunpack.c.l.b16 %v9229
      %v9779 = vunpack.c.l.b16 %v9230
      %v9780 = vunpack.c.l.b16 %v9231
      %v9781 = vunpack.c.l.b16 %v9232
      %v9782 = vunpack.c.l.b16 %v9233
      %v9783 = vunpack.c.l.b16 %v9234
      %v9784 = vunpack.c.l.b16 %v9235
      %v9785 = vunpack.c.l.b16 %v9236
      %v9786 = vunpack.c.l.b16 %v9237
      %v9787 = vunpack.c.l.b16 %v9238
      %v9788 = vunpack.c.l.b16 %v9239
      %v9789 = vunpack.c.l.b16 %v9240
      %v9790 = vunpack.c.l.b16 %v9241
      %v9791 = vunpack.c.l.b16 %v9242
      %v9792 = vunpack.c.l.b16 %v9243
      %v9793 = vunpack.c.l.b16 %v9244
      %v9794 = vunpack.c.l.b16 %v9245
      %v9795 = vunpack.c.l.b16 %v9246
      %v9796 = vunpack.c.l.b16 %v9247
      %v9797 = vunpack.c.l.b16 %v9248
      %v9798 = vunpack.c.l.b16 %v9249
      %v9799 = vunpack.c.l.b16 %v9250
      %v9800 = vunpack.c.l.b16 %v9251
      %v9801 = vunpack.c.l.b16 %v9252
      %v9802 = vunpack.c.l.b16 %v9253
      %v9803 = vunpack.c.l.b16 %v9254
      %v9804 = vunpack.c.l.b16 %v9255
      %v9805 = vunpack.c.l.b16 %v9256
      %v9806 = vunpack.c.l.b16 %v9257
      %v9807 = vpack.c.b16 %v9776, %v9775
      %v9808 = vpack.c.b16 %v9778, %v9777
      %v9809 = vpack.c.b16 %v9780, %v9779
      %v9810 = vpack.c.b16 %v9782, %v9781
      %v9811 = vpack.c.b16 %v9784, %v9783
      %v9812 = vpack.c.b16 %v9786, %v9785
      %v9813 = vpack.c.b16 %v9788, %v9787
      %v9814 = vpack.c.b16 %v9790, %v9789
      %v9815 = vpack.c.b16 %v9792, %v9791
      %v9816 = vpack.c.b16 %v9794, %v9793
      %v9817 = vpack.c.b16 %v9796, %v9795
      %v9818 = vpack.c.b16 %v9798, %v9797
      %v9819 = vpack.c.b16 %v9800, %v9799
      %v9820 = vpack.c.b16 %v9802, %v9801
      %v9821 = vpack.c.b16 %v9804, %v9803
      %v9822 = vpack.c.b16 %v9806, %v9805
      %9839 = vmatprep.subr.bf16.mxu0 0
      %9840 = vmatpush1.bf16.msra.mxu0 %v9807
      %9841 = vmatprep.subr.bf16.mxu0 0
      %9842 = vmatpush1.bf16.msra.mxu0 %v9808
      %9843 = vmatprep.subr.bf16.mxu0 0
      %9844 = vmatpush1.bf16.msra.mxu0 %v9809
      %9845 = vmatprep.subr.bf16.mxu0 0
      %9846 = vmatpush1.bf16.msra.mxu0 %v9810
      %9847 = vmatprep.subr.bf16.mxu0 0
      %9848 = vmatpush1.bf16.msra.mxu0 %v9811
      %9849 = vmatprep.subr.bf16.mxu0 0
      %9850 = vmatpush1.bf16.msra.mxu0 %v9812
      %9851 = vmatprep.subr.bf16.mxu0 0
      %9852 = vmatpush1.bf16.msra.mxu0 %v9813
      %9853 = vmatprep.subr.bf16.mxu0 0
      %9854 = vmatpush1.bf16.msra.mxu0 %v9814
      %9855 = vmatprep.subr.bf16.mxu0 0
      %9856 = vmatpush1.bf16.msra.mxu0 %v9815
      %9857 = vmatprep.subr.bf16.mxu0 0
      %9858 = vmatpush1.bf16.msra.mxu0 %v9816
      %9859 = vmatprep.subr.bf16.mxu0 0
      %9860 = vmatpush1.bf16.msra.mxu0 %v9817
      %9861 = vmatprep.subr.bf16.mxu0 0
      %9862 = vmatpush1.bf16.msra.mxu0 %v9818
      %9863 = vmatprep.subr.bf16.mxu0 0
      %9864 = vmatpush1.bf16.msra.mxu0 %v9819
      %9865 = vmatprep.subr.bf16.mxu0 0
      %9866 = vmatpush1.bf16.msra.mxu0 %v9820
      %9867 = vmatprep.subr.bf16.mxu0 0
      %9868 = vmatpush1.bf16.msra.mxu0 %v9821
      %9869 = vmatprep.subr.bf16.mxu0 0
      %9870 = vmatpush1.bf16.msra.mxu0 %v9822
      %9871 = vmatprep.mubr.bf16.mxu0 %v9163
      %9872 = vmatmul.mubr.bf16.gmra.mrb[0].mxu0 %v9162
      %v9873 = vpop.f32.mrb[0].mxu0
      %v9874 = vadd.f32 %v9489, %v9873
      %v9875 = vpop.f32.mrb[0].mxu0
      %v9876 = vpop.f32.mrb[0].mxu0
      %v9877 = vadd.f32 %v9492, %v9876
      %v9878 = vpop.f32.mrb[0].mxu0
      %9879 = vmatprep.mubr.bf16.mxu0 %v9165
      %9880 = vmatmul.mubr.bf16.gmra.mrb[0].mxu0 %v9164
      %v9881 = vpop.f32.mrb[0].mxu0
      %v9882 = vadd.f32 %v9497, %v9881
      %v9883 = vpop.f32.mrb[0].mxu0
      %v9884 = vpop.f32.mrb[0].mxu0
      %v9885 = vadd.f32 %v9500, %v9884
      %v9886 = vpop.f32.mrb[0].mxu0
      %9887 = vmatprep.mubr.bf16.mxu0 %v9167
      %9888 = vmatmul.mubr.bf16.gmra.mrb[0].mxu0 %v9166
      %v9889 = vpop.f32.mrb[0].mxu0
      %v9890 = vadd.f32 %v9505, %v9889
      %v9891 = vpop.f32.mrb[0].mxu0
      %v9892 = vpop.f32.mrb[0].mxu0
      %v9893 = vadd.f32 %v9508, %v9892
      %v9894 = vpop.f32.mrb[0].mxu0
      %9895 = vmatprep.mubr.bf16.mxu0 %v9169
      %9896 = vmatmul.mubr.bf16.gmra.mrb[0].mxu0 %v9168
      %v9897 = vpop.f32.mrb[0].mxu0
      %v9898 = vadd.f32 %v9513, %v9897
      %v9899 = vpop.f32.mrb[0].mxu0
      %v9900 = vpop.f32.mrb[0].mxu0
      %v9901 = vadd.f32 %v9516, %v9900
      %v9902 = vpop.f32.mrb[0].mxu0
      %9903 = vmatprep.mubr.bf16.mxu0 %v9171
      %9904 = vmatmul.mubr.bf16.gmra.mrb[0].mxu0 %v9170
      %v9905 = vpop.f32.mrb[0].mxu0
      %v9906 = vadd.f32 %v9521, %v9905
      %v9907 = vpop.f32.mrb[0].mxu0
      %v9908 = vpop.f32.mrb[0].mxu0
      %v9909 = vadd.f32 %v9524, %v9908
      %v9910 = vpop.f32.mrb[0].mxu0
      %9911 = vmatprep.mubr.bf16.mxu0 %v9173
      %9912 = vmatmul.mubr.bf16.gmra.mrb[0].mxu0 %v9172
      %v9913 = vpop.f32.mrb[0].mxu0
      %v9914 = vadd.f32 %v9529, %v9913
      %v9915 = vpop.f32.mrb[0].mxu0
      %v9916 = vpop.f32.mrb[0].mxu0
      %v9917 = vadd.f32 %v9532, %v9916
      %v9918 = vpop.f32.mrb[0].mxu0
      %9919 = vmatprep.mubr.bf16.mxu0 %v9175
      %9920 = vmatmul.mubr.bf16.gmra.mrb[0].mxu0 %v9174
      %v9921 = vpop.f32.mrb[0].mxu0
      %v9922 = vadd.f32 %v9537, %v9921
      %v9923 = vpop.f32.mrb[0].mxu0
      %v9924 = vpop.f32.mrb[0].mxu0
      %v9925 = vadd.f32 %v9540, %v9924
      %v9926 = vpop.f32.mrb[0].mxu0
      %9927 = vmatprep.mubr.bf16.mxu0 %v9177
      %9928 = vmatmul.mubr.bf16.gmra.mrb[0].mxu0 %v9176
      %v9929 = vpop.f32.mrb[0].mxu0
      %v9930 = vadd.f32 %v9545, %v9929
      %v9931 = vpop.f32.mrb[0].mxu0
      %v9932 = vpop.f32.mrb[0].mxu0
      %v9933 = vadd.f32 %v9548, %v9932
      %v9934 = vpop.f32.mrb[0].mxu0
      %9935 = vmatprep.mubr.bf16.mxu0 %v9179
      %9936 = vmatmul.mubr.bf16.gmra.mrb[0].mxu0 %v9178
      %v9937 = vpop.f32.mrb[0].mxu0
      %v9938 = vadd.f32 %v9553, %v9937
      %v9939 = vpop.f32.mrb[0].mxu0
      %v9940 = vpop.f32.mrb[0].mxu0
      %v9941 = vadd.f32 %v9556, %v9940
      %v9942 = vpop.f32.mrb[0].mxu0
      %9943 = vmatprep.mubr.bf16.mxu0 %v9181
      %9944 = vmatmul.mubr.bf16.gmra.mrb[0].mxu0 %v9180
      %v9945 = vpop.f32.mrb[0].mxu0
      %v9946 = vadd.f32 %v9561, %v9945
      %v9947 = vpop.f32.mrb[0].mxu0
      %v9948 = vpop.f32.mrb[0].mxu0
      %v9949 = vadd.f32 %v9564, %v9948
      %v9950 = vpop.f32.mrb[0].mxu0
      %9951 = vmatprep.mubr.bf16.mxu0 %v9183
      %9952 = vmatmul.mubr.bf16.gmra.mrb[0].mxu0 %v9182
      %v9953 = vpop.f32.mrb[0].mxu0
      %v9954 = vadd.f32 %v9569, %v9953
      %v9955 = vpop.f32.mrb[0].mxu0
      %v9956 = vpop.f32.mrb[0].mxu0
      %v9957 = vadd.f32 %v9572, %v9956
      %v9958 = vpop.f32.mrb[0].mxu0
      %9959 = vmatprep.mubr.bf16.mxu0 %v9185
      %9960 = vmatmul.mubr.bf16.gmra.mrb[0].mxu0 %v9184
      %v9961 = vpop.f32.mrb[0].mxu0
      %v9962 = vadd.f32 %v9577, %v9961
      %v9963 = vpop.f32.mrb[0].mxu0
      %v9964 = vpop.f32.mrb[0].mxu0
      %v9965 = vadd.f32 %v9580, %v9964
      %v9966 = vpop.f32.mrb[0].mxu0
      %9967 = vmatprep.mubr.bf16.mxu0 %v9187
      %9968 = vmatmul.mubr.bf16.gmra.mrb[0].mxu0 %v9186
      %v9969 = vpop.f32.mrb[0].mxu0
      %v9970 = vadd.f32 %v9585, %v9969
      %v9971 = vpop.f32.mrb[0].mxu0
      %v9972 = vpop.f32.mrb[0].mxu0
      %v9973 = vadd.f32 %v9588, %v9972
      %v9974 = vpop.f32.mrb[0].mxu0
      %9975 = vmatprep.mubr.bf16.mxu0 %v9189
      %9976 = vmatmul.mubr.bf16.gmra.mrb[0].mxu0 %v9188
      %v9977 = vpop.f32.mrb[0].mxu0
      %v9978 = vadd.f32 %v9593, %v9977
      %v9979 = vpop.f32.mrb[0].mxu0
      %v9980 = vpop.f32.mrb[0].mxu0
      %v9981 = vadd.f32 %v9596, %v9980
      %v9982 = vpop.f32.mrb[0].mxu0
      %9983 = vmatprep.mubr.bf16.mxu0 %v9191
      %9984 = vmatmul.mubr.bf16.gmra.mrb[0].mxu0 %v9190
      %v9985 = vpop.f32.mrb[0].mxu0
      %v9986 = vadd.f32 %v9601, %v9985
      %v9987 = vpop.f32.mrb[0].mxu0
      %v9988 = vpop.f32.mrb[0].mxu0
      %v9989 = vadd.f32 %v9604, %v9988
      %v9990 = vpop.f32.mrb[0].mxu0
      %9991 = vmatprep.mubr.bf16.mxu0 %v9193
      %9992 = vmatmul.mubr.bf16.gmra.mrb[0].mxu0 %v9192
      %v9993 = vpop.f32.mrb[0].mxu0
      %v9994 = vadd.f32 %v9609, %v9993
      %v9995 = vpop.f32.mrb[0].mxu0
      %v9996 = vpop.f32.mrb[0].mxu0
      %v9997 = vadd.f32 %v9612, %v9996
      %v9998 = vpop.f32.mrb[0].mxu0
      %9999 = vmatprep.mubr.bf16.mxu0 %v9195
      %10000 = vmatmul.mubr.bf16.gmra.mrb[0].mxu0 %v9194
      %v10001 = vpop.f32.mrb[0].mxu0
      %v10002 = vadd.f32 %v9617, %v10001
      %v10003 = vpop.f32.mrb[0].mxu0
      %v10004 = vpop.f32.mrb[0].mxu0
      %v10005 = vadd.f32 %v9620, %v10004
      %v10006 = vpop.f32.mrb[0].mxu0
      %10007 = vmatprep.mubr.bf16.mxu0 %v9197
      %10008 = vmatmul.mubr.bf16.gmra.mrb[0].mxu0 %v9196
      %v10009 = vpop.f32.mrb[0].mxu0
      %v10010 = vadd.f32 %v9625, %v10009
      %v10011 = vpop.f32.mrb[0].mxu0
      %v10012 = vpop.f32.mrb[0].mxu0
      %v10013 = vadd.f32 %v9628, %v10012
      %v10014 = vpop.f32.mrb[0].mxu0
      %10015 = vmatprep.mubr.bf16.mxu0 %v9199
      %10016 = vmatmul.mubr.bf16.gmra.mrb[0].mxu0 %v9198
      %v10017 = vpop.f32.mrb[0].mxu0
      %v10018 = vadd.f32 %v9633, %v10017
      %v10019 = vpop.f32.mrb[0].mxu0
      %v10020 = vpop.f32.mrb[0].mxu0
      %v10021 = vadd.f32 %v9636, %v10020
      %v10022 = vpop.f32.mrb[0].mxu0
      %10023 = vmatprep.mubr.bf16.mxu0 %v9201
      %10024 = vmatmul.mubr.bf16.gmra.mrb[0].mxu0 %v9200
      %v10025 = vpop.f32.mrb[0].mxu0
      %v10026 = vadd.f32 %v9641, %v10025
      %v10027 = vpop.f32.mrb[0].mxu0
      %v10028 = vpop.f32.mrb[0].mxu0
      %v10029 = vadd.f32 %v9644, %v10028
      %v10030 = vpop.f32.mrb[0].mxu0
      %10031 = vmatprep.mubr.bf16.mxu0 %v9203
      %10032 = vmatmul.mubr.bf16.gmra.mrb[0].mxu0 %v9202
      %v10033 = vpop.f32.mrb[0].mxu0
      %v10034 = vadd.f32 %v9649, %v10033
      %v10035 = vpop.f32.mrb[0].mxu0
      %v10036 = vpop.f32.mrb[0].mxu0
      %v10037 = vadd.f32 %v9652, %v10036
      %v10038 = vpop.f32.mrb[0].mxu0
      %10039 = vmatprep.mubr.bf16.mxu0 %v9205
      %10040 = vmatmul.mubr.bf16.gmra.mrb[0].mxu0 %v9204
      %v10041 = vpop.f32.mrb[0].mxu0
      %v10042 = vadd.f32 %v9657, %v10041
      %v10043 = vpop.f32.mrb[0].mxu0
      %v10044 = vpop.f32.mrb[0].mxu0
      %v10045 = vadd.f32 %v9660, %v10044
      %v10046 = vpop.f32.mrb[0].mxu0
      %10047 = vmatprep.mubr.bf16.mxu0 %v9207
      %10048 = vmatmul.mubr.bf16.gmra.mrb[0].mxu0 %v9206
      %v10049 = vpop.f32.mrb[0].mxu0
      %v10050 = vadd.f32 %v9665, %v10049
      %v10051 = vpop.f32.mrb[0].mxu0
      %v10052 = vpop.f32.mrb[0].mxu0
      %v10053 = vadd.f32 %v9668, %v10052
      %v10054 = vpop.f32.mrb[0].mxu0
      %10055 = vmatprep.mubr.bf16.mxu0 %v9209
      %10056 = vmatmul.mubr.bf16.gmra.mrb[0].mxu0 %v9208
      %v10057 = vpop.f32.mrb[0].mxu0
      %v10058 = vadd.f32 %v9673, %v10057
      %v10059 = vpop.f32.mrb[0].mxu0
      %v10060 = vpop.f32.mrb[0].mxu0
      %v10061 = vadd.f32 %v9676, %v10060
      %v10062 = vpop.f32.mrb[0].mxu0
      %10063 = vmatprep.mubr.bf16.mxu0 %v9211
      %10064 = vmatmul.mubr.bf16.gmra.mrb[0].mxu0 %v9210
      %v10065 = vpop.f32.mrb[0].mxu0
      %v10066 = vadd.f32 %v9681, %v10065
      %v10067 = vpop.f32.mrb[0].mxu0
      %v10068 = vpop.f32.mrb[0].mxu0
      %v10069 = vadd.f32 %v9684, %v10068
      %v10070 = vpop.f32.mrb[0].mxu0
      %10071 = vmatprep.mubr.bf16.mxu0 %v9213
      %10072 = vmatmul.mubr.bf16.gmra.mrb[0].mxu0 %v9212
      %v10073 = vpop.f32.mrb[0].mxu0
      %v10074 = vadd.f32 %v9689, %v10073
      %v10075 = vpop.f32.mrb[0].mxu0
      %v10076 = vpop.f32.mrb[0].mxu0
      %v10077 = vadd.f32 %v9692, %v10076
      %v10078 = vpop.f32.mrb[0].mxu0
      %10079 = vmatprep.mubr.bf16.mxu0 %v9215
      %10080 = vmatmul.mubr.bf16.gmra.mrb[0].mxu0 %v9214
      %v10081 = vpop.f32.mrb[0].mxu0
      %v10082 = vadd.f32 %v9697, %v10081
      %v10083 = vpop.f32.mrb[0].mxu0
      %v10084 = vpop.f32.mrb[0].mxu0
      %v10085 = vadd.f32 %v9700, %v10084
      %v10086 = vpop.f32.mrb[0].mxu0
      %10087 = vmatprep.mubr.bf16.mxu0 %v9217
      %10088 = vmatmul.mubr.bf16.gmra.mrb[0].mxu0 %v9216
      %v10089 = vpop.f32.mrb[0].mxu0
      %v10090 = vadd.f32 %v9705, %v10089
      %v10091 = vpop.f32.mrb[0].mxu0
      %v10092 = vpop.f32.mrb[0].mxu0
      %v10093 = vadd.f32 %v9708, %v10092
      %v10094 = vpop.f32.mrb[0].mxu0
      %10095 = vmatprep.mubr.bf16.mxu0 %v9219
      %10096 = vmatmul.mubr.bf16.gmra.mrb[0].mxu0 %v9218
      %v10097 = vpop.f32.mrb[0].mxu0
      %v10098 = vadd.f32 %v9713, %v10097
      %v10099 = vpop.f32.mrb[0].mxu0
      %v10100 = vpop.f32.mrb[0].mxu0
      %v10101 = vadd.f32 %v9716, %v10100
      %v10102 = vpop.f32.mrb[0].mxu0
      %10103 = vmatprep.mubr.bf16.mxu0 %v9221
      %10104 = vmatmul.mubr.bf16.gmra.mrb[0].mxu0 %v9220
      %v10105 = vpop.f32.mrb[0].mxu0
      %v10106 = vadd.f32 %v9721, %v10105
      %v10107 = vpop.f32.mrb[0].mxu0
      %v10108 = vpop.f32.mrb[0].mxu0
      %v10109 = vadd.f32 %v9724, %v10108
      %v10110 = vpop.f32.mrb[0].mxu0
      %10111 = vmatprep.mubr.bf16.mxu0 %v9223
      %10112 = vmatmul.mubr.bf16.gmra.mrb[0].mxu0 %v9222
      %v10113 = vpop.f32.mrb[0].mxu0
      %v10114 = vadd.f32 %v9729, %v10113
      %v10115 = vpop.f32.mrb[0].mxu0
      %v10116 = vpop.f32.mrb[0].mxu0
      %v10117 = vadd.f32 %v9732, %v10116
      %v10118 = vpop.f32.mrb[0].mxu0
      %10119 = vmatprep.mubr.bf16.mxu0 %v9225
      %10120 = vmatmul.mubr.bf16.gmra.mrb[0].mxu0 %v9224
      %v10121 = vpop.f32.mrb[0].mxu0
      %v10122 = vadd.f32 %v9737, %v10121
      %v10123 = vpop.f32.mrb[0].mxu0
      %v10124 = vpop.f32.mrb[0].mxu0
      %v10125 = vadd.f32 %v9740, %v10124
      %v10126 = vpop.f32.mrb[0].mxu0
      %10127 = vdwg.mxu0
      %v10128 = vld [vmem:[#allocation2 + $0x40] sm:$0xff]
      %v10129 = vld [vmem:[#allocation2 + $0x48] sm:$0xff]
      %v10130 = vld [vmem:[#allocation2 + $0x50] sm:$0xff]
      %v10131 = vld [vmem:[#allocation2 + $0x58] sm:$0xff]
      %v10132 = vld [vmem:[#allocation2 + $0x60] sm:$0xff]
      %v10133 = vld [vmem:[#allocation2 + $0x68] sm:$0xff]
      %v10134 = vld [vmem:[#allocation2 + $0x70] sm:$0xff]
      %v10135 = vld [vmem:[#allocation2 + $0x78] sm:$0xff]
      %v10136 = vld [vmem:[#allocation2 + $0x80] sm:$0xff]
      %v10137 = vld [vmem:[#allocation2 + $0x88] sm:$0xff]
      %v10138 = vld [vmem:[#allocation2 + $0x90] sm:$0xff]
      %v10139 = vld [vmem:[#allocation2 + $0x98] sm:$0xff]
      %v10140 = vld [vmem:[#allocation2 + $0xa0] sm:$0xff]
      %v10141 = vld [vmem:[#allocation2 + $0xa8] sm:$0xff]
      %v10142 = vld [vmem:[#allocation2 + $0xb0] sm:$0xff]
      %v10143 = vld [vmem:[#allocation2 + $0xb8] sm:$0xff]
      %v10144 = vld [vmem:[#allocation2 + $0xc0] sm:$0xff]
      %v10145 = vld [vmem:[#allocation2 + $0xc8] sm:$0xff]
      %v10146 = vld [vmem:[#allocation2 + $0xd0] sm:$0xff]
      %v10147 = vld [vmem:[#allocation2 + $0xd8] sm:$0xff]
      %v10148 = vld [vmem:[#allocation2 + $0xe0] sm:$0xff]
      %v10149 = vld [vmem:[#allocation2 + $0xe8] sm:$0xff]
      %v10150 = vld [vmem:[#allocation2 + $0xf0] sm:$0xff]
      %v10151 = vld [vmem:[#allocation2 + $0xf8] sm:$0xff]
      %v10152 = vld [vmem:[#allocation2 + $0x100] sm:$0xff]
      %v10153 = vld [vmem:[#allocation2 + $0x108] sm:$0xff]
      %v10154 = vld [vmem:[#allocation2 + $0x110] sm:$0xff]
      %v10155 = vld [vmem:[#allocation2 + $0x118] sm:$0xff]
      %v10156 = vld [vmem:[#allocation2 + $0x120] sm:$0xff]
      %v10157 = vld [vmem:[#allocation2 + $0x128] sm:$0xff]
      %v10158 = vld [vmem:[#allocation2 + $0x130] sm:$0xff]
      %v10159 = vld [vmem:[#allocation2 + $0x138] sm:$0xff]
      %v10160 = vld [vmem:[#allocation2 + $0x140] sm:$0xff]
      %v10161 = vld [vmem:[#allocation2 + $0x148] sm:$0xff]
      %v10162 = vld [vmem:[#allocation2 + $0x150] sm:$0xff]
      %v10163 = vld [vmem:[#allocation2 + $0x158] sm:$0xff]
      %v10164 = vld [vmem:[#allocation2 + $0x160] sm:$0xff]
      %v10165 = vld [vmem:[#allocation2 + $0x168] sm:$0xff]
      %v10166 = vld [vmem:[#allocation2 + $0x170] sm:$0xff]
      %v10167 = vld [vmem:[#allocation2 + $0x178] sm:$0xff]
      %v10168 = vld [vmem:[#allocation2 + $0x180] sm:$0xff]
      %v10169 = vld [vmem:[#allocation2 + $0x188] sm:$0xff]
      %v10170 = vld [vmem:[#allocation2 + $0x190] sm:$0xff]
      %v10171 = vld [vmem:[#allocation2 + $0x198] sm:$0xff]
      %v10172 = vld [vmem:[#allocation2 + $0x1a0] sm:$0xff]
      %v10173 = vld [vmem:[#allocation2 + $0x1a8] sm:$0xff]
      %v10174 = vld [vmem:[#allocation2 + $0x1b0] sm:$0xff]
      %v10175 = vld [vmem:[#allocation2 + $0x1b8] sm:$0xff]
      %v10176 = vld [vmem:[#allocation2 + $0x1c0] sm:$0xff]
      %v10177 = vld [vmem:[#allocation2 + $0x1c8] sm:$0xff]
      %v10178 = vld [vmem:[#allocation2 + $0x1d0] sm:$0xff]
      %v10179 = vld [vmem:[#allocation2 + $0x1d8] sm:$0xff]
      %v10180 = vld [vmem:[#allocation2 + $0x1e0] sm:$0xff]
      %v10181 = vld [vmem:[#allocation2 + $0x1e8] sm:$0xff]
      %v10182 = vld [vmem:[#allocation2 + $0x1f0] sm:$0xff]
      %v10183 = vld [vmem:[#allocation2 + $0x1f8] sm:$0xff]
      %v10184 = vld [vmem:[#allocation2 + $0x200] sm:$0xff]
      %v10185 = vld [vmem:[#allocation2 + $0x208] sm:$0xff]
      %v10186 = vld [vmem:[#allocation2 + $0x210] sm:$0xff]
      %v10187 = vld [vmem:[#allocation2 + $0x218] sm:$0xff]
      %v10188 = vld [vmem:[#allocation2 + $0x220] sm:$0xff]
      %v10189 = vld [vmem:[#allocation2 + $0x228] sm:$0xff]
      %v10190 = vld [vmem:[#allocation2 + $0x230] sm:$0xff]
      %v10191 = vld [vmem:[#allocation2 + $0x238] sm:$0xff]
      %s10192 = scalar_lea.vmem %s2, 192
      %v10193 = vld [vmem:[%s10192 + $0x40] sm:$0xf]
      %v10194 = vld [vmem:[%s10192 + $0x44] sm:$0xf]
      %v10195 = vld [vmem:[%s10192 + $0x48] sm:$0xf]
      %v10196 = vld [vmem:[%s10192 + $0x4c] sm:$0xf]
      %v10197 = vld [vmem:[%s10192 + $0x50] sm:$0xf]
      %v10198 = vld [vmem:[%s10192 + $0x54] sm:$0xf]
      %v10199 = vld [vmem:[%s10192 + $0x58] sm:$0xf]
      %v10200 = vld [vmem:[%s10192 + $0x5c] sm:$0xf]
      %v10201 = vld [vmem:[%s10192 + $0x60] sm:$0xf]
      %v10202 = vld [vmem:[%s10192 + $0x64] sm:$0xf]
      %v10203 = vld [vmem:[%s10192 + $0x68] sm:$0xf]
      %v10204 = vld [vmem:[%s10192 + $0x6c] sm:$0xf]
      %v10205 = vld [vmem:[%s10192 + $0x70] sm:$0xf]
      %v10206 = vld [vmem:[%s10192 + $0x74] sm:$0xf]
      %v10207 = vld [vmem:[%s10192 + $0x78] sm:$0xf]
      %v10208 = vld [vmem:[%s10192 + $0x7c] sm:$0xf]
      %v10209 = vld [vmem:[%s10192 + $0x80] sm:$0xf]
      %v10210 = vld [vmem:[%s10192 + $0x84] sm:$0xf]
      %v10211 = vld [vmem:[%s10192 + $0x88] sm:$0xf]
      %v10212 = vld [vmem:[%s10192 + $0x8c] sm:$0xf]
      %v10213 = vld [vmem:[%s10192 + $0x90] sm:$0xf]
      %v10214 = vld [vmem:[%s10192 + $0x94] sm:$0xf]
      %v10215 = vld [vmem:[%s10192 + $0x98] sm:$0xf]
      %v10216 = vld [vmem:[%s10192 + $0x9c] sm:$0xf]
      %v10217 = vld [vmem:[%s10192 + $0xa0] sm:$0xf]
      %v10218 = vld [vmem:[%s10192 + $0xa4] sm:$0xf]
      %v10219 = vld [vmem:[%s10192 + $0xa8] sm:$0xf]
      %v10220 = vld [vmem:[%s10192 + $0xac] sm:$0xf]
      %v10221 = vld [vmem:[%s10192 + $0xb0] sm:$0xf]
      %v10222 = vld [vmem:[%s10192 + $0xb4] sm:$0xf]
      %v10223 = vld [vmem:[%s10192 + $0xb8] sm:$0xf]
      %v10224 = vld [vmem:[%s10192 + $0xbc] sm:$0xf]
      %v10225 = vld [vmem:[#allocation2 + $0x38] sm:$0x80]
      %v10226 = vld [vmem:[#allocation2 + $0x238] sm:$0x7f]
      %v10227 = vld [vmem:[%s10192] sm:$0xf]
      %v10228 = vld [vmem:[%s10192 + $0x4] sm:$0xf]
      %v10229 = vld [vmem:[%s10192 + $0x8] sm:$0xf]
      %v10230 = vld [vmem:[%s10192 + $0xc] sm:$0xf]
      %v10231 = vld [vmem:[%s10192 + $0x10] sm:$0xf]
      %v10232 = vld [vmem:[%s10192 + $0x14] sm:$0xf]
      %v10233 = vld [vmem:[%s10192 + $0x18] sm:$0xf]
      %v10234 = vld [vmem:[%s10192 + $0x1c] sm:$0xf]
      %v10235 = vld [vmem:[%s10192 + $0x20] sm:$0xf]
      %v10236 = vld [vmem:[%s10192 + $0x24] sm:$0xf]
      %v10237 = vld [vmem:[%s10192 + $0x28] sm:$0xf]
      %v10238 = vld [vmem:[%s10192 + $0x2c] sm:$0xf]
      %v10239 = vld [vmem:[%s10192 + $0x30] sm:$0xf]
      %v10240 = vld [vmem:[%s10192 + $0x34] sm:$0xf]
      %v10241 = vld [vmem:[%s10192 + $0x38] sm:$0xf]
      %v10242 = vld [vmem:[%s10192 + $0x3c] sm:$0xf]
      %v10276 = vrot.slane %v10225, 7
      %v10277 = vrot.slane %v10129, 7
      %v10278 = vsel %vm2438, %v10276, %v10277
      %v10279 = vrot.slane %v10131, 7
      %v10280 = vsel %vm2438, %v10277, %v10279
      %v10281 = vrot.slane %v10133, 7
      %v10282 = vsel %vm2438, %v10279, %v10281
      %v10283 = vrot.slane %v10135, 7
      %v10284 = vsel %vm2438, %v10281, %v10283
      %v10285 = vrot.slane %v10137, 7
      %v10286 = vsel %vm2438, %v10283, %v10285
      %v10287 = vrot.slane %v10139, 7
      %v10288 = vsel %vm2438, %v10285, %v10287
      %v10289 = vrot.slane %v10141, 7
      %v10290 = vsel %vm2438, %v10287, %v10289
      %v10291 = vrot.slane %v10143, 7
      %v10292 = vsel %vm2438, %v10289, %v10291
      %v10293 = vrot.slane %v10145, 7
      %v10294 = vsel %vm2438, %v10291, %v10293
      %v10295 = vrot.slane %v10147, 7
      %v10296 = vsel %vm2438, %v10293, %v10295
      %v10297 = vrot.slane %v10149, 7
      %v10298 = vsel %vm2438, %v10295, %v10297
      %v10299 = vrot.slane %v10151, 7
      %v10300 = vsel %vm2438, %v10297, %v10299
      %v10301 = vrot.slane %v10153, 7
      %v10302 = vsel %vm2438, %v10299, %v10301
      %v10303 = vrot.slane %v10155, 7
      %v10304 = vsel %vm2438, %v10301, %v10303
      %v10305 = vrot.slane %v10157, 7
      %v10306 = vsel %vm2438, %v10303, %v10305
      %v10307 = vrot.slane %v10159, 7
      %v10308 = vsel %vm2438, %v10305, %v10307
      %v10309 = vrot.slane %v10161, 7
      %v10310 = vsel %vm2438, %v10307, %v10309
      %v10311 = vrot.slane %v10163, 7
      %v10312 = vsel %vm2438, %v10309, %v10311
      %v10313 = vrot.slane %v10165, 7
      %v10314 = vsel %vm2438, %v10311, %v10313
      %v10315 = vrot.slane %v10167, 7
      %v10316 = vsel %vm2438, %v10313, %v10315
      %v10317 = vrot.slane %v10169, 7
      %v10318 = vsel %vm2438, %v10315, %v10317
      %v10319 = vrot.slane %v10171, 7
      %v10320 = vsel %vm2438, %v10317, %v10319
      %v10321 = vrot.slane %v10173, 7
      %v10322 = vsel %vm2438, %v10319, %v10321
      %v10323 = vrot.slane %v10175, 7
      %v10324 = vsel %vm2438, %v10321, %v10323
      %v10325 = vrot.slane %v10177, 7
      %v10326 = vsel %vm2438, %v10323, %v10325
      %v10327 = vrot.slane %v10179, 7
      %v10328 = vsel %vm2438, %v10325, %v10327
      %v10329 = vrot.slane %v10181, 7
      %v10330 = vsel %vm2438, %v10327, %v10329
      %v10331 = vrot.slane %v10183, 7
      %v10332 = vsel %vm2438, %v10329, %v10331
      %v10333 = vrot.slane %v10185, 7
      %v10334 = vsel %vm2438, %v10331, %v10333
      %v10335 = vrot.slane %v10187, 7
      %v10336 = vsel %vm2438, %v10333, %v10335
      %v10337 = vrot.slane %v10189, 7
      %v10338 = vsel %vm2438, %v10335, %v10337
      %v10339 = vrot.slane %v10226, 7
      %v10340 = vsel %vm2438, %v10337, %v10339
      %v10389 = vunpack.c.l.b16 %v10227
      %v10390 = vunpack.c.l.b16 %v10228
      %v10391 = vunpack.c.l.b16 %v10229
      %v10392 = vunpack.c.l.b16 %v10230
      %v10393 = vunpack.c.l.b16 %v10231
      %v10394 = vunpack.c.l.b16 %v10232
      %v10395 = vunpack.c.l.b16 %v10233
      %v10396 = vunpack.c.l.b16 %v10234
      %v10397 = vunpack.c.l.b16 %v10235
      %v10398 = vunpack.c.l.b16 %v10236
      %v10399 = vunpack.c.l.b16 %v10237
      %v10400 = vunpack.c.l.b16 %v10238
      %v10401 = vunpack.c.l.b16 %v10239
      %v10402 = vunpack.c.l.b16 %v10240
      %v10403 = vunpack.c.l.b16 %v10241
      %v10404 = vunpack.c.l.b16 %v10242
      %v10405 = vpack.c.b16 %v10390, %v10389
      %v10406 = vpack.c.b16 %v10392, %v10391
      %v10407 = vpack.c.b16 %v10394, %v10393
      %v10408 = vpack.c.b16 %v10396, %v10395
      %v10409 = vpack.c.b16 %v10398, %v10397
      %v10410 = vpack.c.b16 %v10400, %v10399
      %v10411 = vpack.c.b16 %v10402, %v10401
      %v10412 = vpack.c.b16 %v10404, %v10403
      %10421 = vmatprep.subr.bf16.mxu0 0
      %10422 = vmatpush1.bf16.msra.mxu0 %v10405
      %10423 = vmatprep.subr.bf16.mxu0 0
      %10424 = vmatpush1.bf16.msra.mxu0 %v10406
      %10425 = vmatprep.subr.bf16.mxu0 0
      %10426 = vmatpush1.bf16.msra.mxu0 %v10407
      %10427 = vmatprep.subr.bf16.mxu0 0
      %10428 = vmatpush1.bf16.msra.mxu0 %v10408
      %10429 = vmatprep.subr.bf16.mxu0 0
      %10430 = vmatpush1.bf16.msra.mxu0 %v10409
      %10431 = vmatprep.subr.bf16.mxu0 0
      %10432 = vmatpush1.bf16.msra.mxu0 %v10410
      %10433 = vmatprep.subr.bf16.mxu0 0
      %10434 = vmatpush1.bf16.msra.mxu0 %v10411
      %10435 = vmatprep.subr.bf16.mxu0 0
      %10436 = vmatpush1.bf16.msra.mxu0 %v10412
      %10437 = vmatprep.subr.bf16.mxu0 0
      %10438 = vmatpush1.bf16.msra.mxu0 0
      %10439 = vmatprep.subr.bf16.mxu0 0
      %10440 = vmatpush1.bf16.msra.mxu0 0
      %10441 = vmatprep.subr.bf16.mxu0 0
      %10442 = vmatpush1.bf16.msra.mxu0 0
      %10443 = vmatprep.subr.bf16.mxu0 0
      %10444 = vmatpush1.bf16.msra.mxu0 0
      %10445 = vmatprep.subr.bf16.mxu0 0
      %10446 = vmatpush1.bf16.msra.mxu0 0
      %10447 = vmatprep.subr.bf16.mxu0 0
      %10448 = vmatpush1.bf16.msra.mxu0 0
      %10449 = vmatprep.subr.bf16.mxu0 0
      %10450 = vmatpush1.bf16.msra.mxu0 0
      %10451 = vmatprep.subr.bf16.mxu0 0
      %10452 = vmatpush1.bf16.msra.mxu0 0
      %10453 = vmatprep.mubr.bf16.mxu0 0
      %10454 = vmatmul.mubr.bf16.gmra.mrb[0].mxu0 %v10278
      %v10455 = vpop.f32.mrb[0].mxu0
      %v10456 = vadd.f32 0.0, %v10455
      %v10457 = vpop.f32.mrb[0].mxu0
      %v10458 = vpop.f32.mrb[0].mxu0
      %v10459 = vadd.f32 0.0, %v10458
      %v10460 = vpop.f32.mrb[0].mxu0
      %10461 = vmatprep.mubr.bf16.mxu0 0
      %10462 = vmatmul.mubr.bf16.gmra.mrb[0].mxu0 %v10280
      %v10463 = vpop.f32.mrb[0].mxu0
      %v10464 = vadd.f32 0.0, %v10463
      %v10465 = vpop.f32.mrb[0].mxu0
      %v10466 = vpop.f32.mrb[0].mxu0
      %v10467 = vadd.f32 0.0, %v10466
      %v10468 = vpop.f32.mrb[0].mxu0
      %10469 = vmatprep.mubr.bf16.mxu0 0
      %10470 = vmatmul.mubr.bf16.gmra.mrb[0].mxu0 %v10282
      %v10471 = vpop.f32.mrb[0].mxu0
      %v10472 = vadd.f32 0.0, %v10471
      %v10473 = vpop.f32.mrb[0].mxu0
      %v10474 = vpop.f32.mrb[0].mxu0
      %v10475 = vadd.f32 0.0, %v10474
      %v10476 = vpop.f32.mrb[0].mxu0
      %10477 = vmatprep.mubr.bf16.mxu0 0
      %10478 = vmatmul.mubr.bf16.gmra.mrb[0].mxu0 %v10284
      %v10479 = vpop.f32.mrb[0].mxu0
      %v10480 = vadd.f32 0.0, %v10479
      %v10481 = vpop.f32.mrb[0].mxu0
      %v10482 = vpop.f32.mrb[0].mxu0
      %v10483 = vadd.f32 0.0, %v10482
      %v10484 = vpop.f32.mrb[0].mxu0
      %10485 = vmatprep.mubr.bf16.mxu0 0
      %10486 = vmatmul.mubr.bf16.gmra.mrb[0].mxu0 %v10286
      %v10487 = vpop.f32.mrb[0].mxu0
      %v10488 = vadd.f32 0.0, %v10487
      %v10489 = vpop.f32.mrb[0].mxu0
      %v10490 = vpop.f32.mrb[0].mxu0
      %v10491 = vadd.f32 0.0, %v10490
      %v10492 = vpop.f32.mrb[0].mxu0
      %10493 = vmatprep.mubr.bf16.mxu0 0
      %10494 = vmatmul.mubr.bf16.gmra.mrb[0].mxu0 %v10288
      %v10495 = vpop.f32.mrb[0].mxu0
      %v10496 = vadd.f32 0.0, %v10495
      %v10497 = vpop.f32.mrb[0].mxu0
      %v10498 = vpop.f32.mrb[0].mxu0
      %v10499 = vadd.f32 0.0, %v10498
      %v10500 = vpop.f32.mrb[0].mxu0
      %10501 = vmatprep.mubr.bf16.mxu0 0
      %10502 = vmatmul.mubr.bf16.gmra.mrb[0].mxu0 %v10290
      %v10503 = vpop.f32.mrb[0].mxu0
      %v10504 = vadd.f32 0.0, %v10503
      %v10505 = vpop.f32.mrb[0].mxu0
      %v10506 = vpop.f32.mrb[0].mxu0
      %v10507 = vadd.f32 0.0, %v10506
      %v10508 = vpop.f32.mrb[0].mxu0
      %10509 = vmatprep.mubr.bf16.mxu0 0
      %10510 = vmatmul.mubr.bf16.gmra.mrb[0].mxu0 %v10292
      %v10511 = vpop.f32.mrb[0].mxu0
      %v10512 = vadd.f32 0.0, %v10511
      %v10513 = vpop.f32.mrb[0].mxu0
      %v10514 = vpop.f32.mrb[0].mxu0
      %v10515 = vadd.f32 0.0, %v10514
      %v10516 = vpop.f32.mrb[0].mxu0
      %10517 = vmatprep.mubr.bf16.mxu0 0
      %10518 = vmatmul.mubr.bf16.gmra.mrb[0].mxu0 %v10294
      %v10519 = vpop.f32.mrb[0].mxu0
      %v10520 = vadd.f32 0.0, %v10519
      %v10521 = vpop.f32.mrb[0].mxu0
      %v10522 = vpop.f32.mrb[0].mxu0
      %v10523 = vadd.f32 0.0, %v10522
      %v10524 = vpop.f32.mrb[0].mxu0
      %10525 = vmatprep.mubr.bf16.mxu0 0
      %10526 = vmatmul.mubr.bf16.gmra.mrb[0].mxu0 %v10296
      %v10527 = vpop.f32.mrb[0].mxu0
      %v10528 = vadd.f32 0.0, %v10527
      %v10529 = vpop.f32.mrb[0].mxu0
      %v10530 = vpop.f32.mrb[0].mxu0
      %v10531 = vadd.f32 0.0, %v10530
      %v10532 = vpop.f32.mrb[0].mxu0
      %10533 = vmatprep.mubr.bf16.mxu0 0
      %10534 = vmatmul.mubr.bf16.gmra.mrb[0].mxu0 %v10298
      %v10535 = vpop.f32.mrb[0].mxu0
      %v10536 = vadd.f32 0.0, %v10535
      %v10537 = vpop.f32.mrb[0].mxu0
      %v10538 = vpop.f32.mrb[0].mxu0
      %v10539 = vadd.f32 0.0, %v10538
      %v10540 = vpop.f32.mrb[0].mxu0
      %10541 = vmatprep.mubr.bf16.mxu0 0
      %10542 = vmatmul.mubr.bf16.gmra.mrb[0].mxu0 %v10300
      %v10543 = vpop.f32.mrb[0].mxu0
      %v10544 = vadd.f32 0.0, %v10543
      %v10545 = vpop.f32.mrb[0].mxu0
      %v10546 = vpop.f32.mrb[0].mxu0
      %v10547 = vadd.f32 0.0, %v10546
      %v10548 = vpop.f32.mrb[0].mxu0
      %10549 = vmatprep.mubr.bf16.mxu0 0
      %10550 = vmatmul.mubr.bf16.gmra.mrb[0].mxu0 %v10302
      %v10551 = vpop.f32.mrb[0].mxu0
      %v10552 = vadd.f32 0.0, %v10551
      %v10553 = vpop.f32.mrb[0].mxu0
      %v10554 = vpop.f32.mrb[0].mxu0
      %v10555 = vadd.f32 0.0, %v10554
      %v10556 = vpop.f32.mrb[0].mxu0
      %10557 = vmatprep.mubr.bf16.mxu0 0
      %10558 = vmatmul.mubr.bf16.gmra.mrb[0].mxu0 %v10304
      %v10559 = vpop.f32.mrb[0].mxu0
      %v10560 = vadd.f32 0.0, %v10559
      %v10561 = vpop.f32.mrb[0].mxu0
      %v10562 = vpop.f32.mrb[0].mxu0
      %v10563 = vadd.f32 0.0, %v10562
      %v10564 = vpop.f32.mrb[0].mxu0
      %10565 = vmatprep.mubr.bf16.mxu0 0
      %10566 = vmatmul.mubr.bf16.gmra.mrb[0].mxu0 %v10306
      %v10567 = vpop.f32.mrb[0].mxu0
      %v10568 = vadd.f32 0.0, %v10567
      %v10569 = vpop.f32.mrb[0].mxu0
      %v10570 = vpop.f32.mrb[0].mxu0
      %v10571 = vadd.f32 0.0, %v10570
      %v10572 = vpop.f32.mrb[0].mxu0
      %10573 = vmatprep.mubr.bf16.mxu0 0
      %10574 = vmatmul.mubr.bf16.gmra.mrb[0].mxu0 %v10308
      %v10575 = vpop.f32.mrb[0].mxu0
      %v10576 = vadd.f32 0.0, %v10575
      %v10577 = vpop.f32.mrb[0].mxu0
      %v10578 = vpop.f32.mrb[0].mxu0
      %v10579 = vadd.f32 0.0, %v10578
      %v10580 = vpop.f32.mrb[0].mxu0
      %10581 = vmatprep.mubr.bf16.mxu0 0
      %10582 = vmatmul.mubr.bf16.gmra.mrb[0].mxu0 %v10310
      %v10583 = vpop.f32.mrb[0].mxu0
      %v10584 = vadd.f32 0.0, %v10583
      %v10585 = vpop.f32.mrb[0].mxu0
      %v10586 = vpop.f32.mrb[0].mxu0
      %v10587 = vadd.f32 0.0, %v10586
      %v10588 = vpop.f32.mrb[0].mxu0
      %10589 = vmatprep.mubr.bf16.mxu0 0
      %10590 = vmatmul.mubr.bf16.gmra.mrb[0].mxu0 %v10312
      %v10591 = vpop.f32.mrb[0].mxu0
      %v10592 = vadd.f32 0.0, %v10591
      %v10593 = vpop.f32.mrb[0].mxu0
      %v10594 = vpop.f32.mrb[0].mxu0
      %v10595 = vadd.f32 0.0, %v10594
      %v10596 = vpop.f32.mrb[0].mxu0
      %10597 = vmatprep.mubr.bf16.mxu0 0
      %10598 = vmatmul.mubr.bf16.gmra.mrb[0].mxu0 %v10314
      %v10599 = vpop.f32.mrb[0].mxu0
      %v10600 = vadd.f32 0.0, %v10599
      %v10601 = vpop.f32.mrb[0].mxu0
      %v10602 = vpop.f32.mrb[0].mxu0
      %v10603 = vadd.f32 0.0, %v10602
      %v10604 = vpop.f32.mrb[0].mxu0
      %10605 = vmatprep.mubr.bf16.mxu0 0
      %10606 = vmatmul.mubr.bf16.gmra.mrb[0].mxu0 %v10316
      %v10607 = vpop.f32.mrb[0].mxu0
      %v10608 = vadd.f32 0.0, %v10607
      %v10609 = vpop.f32.mrb[0].mxu0
      %v10610 = vpop.f32.mrb[0].mxu0
      %v10611 = vadd.f32 0.0, %v10610
      %v10612 = vpop.f32.mrb[0].mxu0
      %10613 = vmatprep.mubr.bf16.mxu0 0
      %10614 = vmatmul.mubr.bf16.gmra.mrb[0].mxu0 %v10318
      %v10615 = vpop.f32.mrb[0].mxu0
      %v10616 = vadd.f32 0.0, %v10615
      %v10617 = vpop.f32.mrb[0].mxu0
      %v10618 = vpop.f32.mrb[0].mxu0
      %v10619 = vadd.f32 0.0, %v10618
      %v10620 = vpop.f32.mrb[0].mxu0
      %10621 = vmatprep.mubr.bf16.mxu0 0
      %10622 = vmatmul.mubr.bf16.gmra.mrb[0].mxu0 %v10320
      %v10623 = vpop.f32.mrb[0].mxu0
      %v10624 = vadd.f32 0.0, %v10623
      %v10625 = vpop.f32.mrb[0].mxu0
      %v10626 = vpop.f32.mrb[0].mxu0
      %v10627 = vadd.f32 0.0, %v10626
      %v10628 = vpop.f32.mrb[0].mxu0
      %10629 = vmatprep.mubr.bf16.mxu0 0
      %10630 = vmatmul.mubr.bf16.gmra.mrb[0].mxu0 %v10322
      %v10631 = vpop.f32.mrb[0].mxu0
      %v10632 = vadd.f32 0.0, %v10631
      %v10633 = vpop.f32.mrb[0].mxu0
      %v10634 = vpop.f32.mrb[0].mxu0
      %v10635 = vadd.f32 0.0, %v10634
      %v10636 = vpop.f32.mrb[0].mxu0
      %10637 = vmatprep.mubr.bf16.mxu0 0
      %10638 = vmatmul.mubr.bf16.gmra.mrb[0].mxu0 %v10324
      %v10639 = vpop.f32.mrb[0].mxu0
      %v10640 = vadd.f32 0.0, %v10639
      %v10641 = vpop.f32.mrb[0].mxu0
      %v10642 = vpop.f32.mrb[0].mxu0
      %v10643 = vadd.f32 0.0, %v10642
      %v10644 = vpop.f32.mrb[0].mxu0
      %10645 = vmatprep.mubr.bf16.mxu0 0
      %10646 = vmatmul.mubr.bf16.gmra.mrb[0].mxu0 %v10326
      %v10647 = vpop.f32.mrb[0].mxu0
      %v10648 = vadd.f32 0.0, %v10647
      %v10649 = vpop.f32.mrb[0].mxu0
      %v10650 = vpop.f32.mrb[0].mxu0
      %v10651 = vadd.f32 0.0, %v10650
      %v10652 = vpop.f32.mrb[0].mxu0
      %10653 = vmatprep.mubr.bf16.mxu0 0
      %10654 = vmatmul.mubr.bf16.gmra.mrb[0].mxu0 %v10328
      %v10655 = vpop.f32.mrb[0].mxu0
      %v10656 = vadd.f32 0.0, %v10655
      %v10657 = vpop.f32.mrb[0].mxu0
      %v10658 = vpop.f32.mrb[0].mxu0
      %v10659 = vadd.f32 0.0, %v10658
      %v10660 = vpop.f32.mrb[0].mxu0
      %10661 = vmatprep.mubr.bf16.mxu0 0
      %10662 = vmatmul.mubr.bf16.gmra.mrb[0].mxu0 %v10330
      %v10663 = vpop.f32.mrb[0].mxu0
      %v10664 = vadd.f32 0.0, %v10663
      %v10665 = vpop.f32.mrb[0].mxu0
      %v10666 = vpop.f32.mrb[0].mxu0
      %v10667 = vadd.f32 0.0, %v10666
      %v10668 = vpop.f32.mrb[0].mxu0
      %10669 = vmatprep.mubr.bf16.mxu0 0
      %10670 = vmatmul.mubr.bf16.gmra.mrb[0].mxu0 %v10332
      %v10671 = vpop.f32.mrb[0].mxu0
      %v10672 = vadd.f32 0.0, %v10671
      %v10673 = vpop.f32.mrb[0].mxu0
      %v10674 = vpop.f32.mrb[0].mxu0
      %v10675 = vadd.f32 0.0, %v10674
      %v10676 = vpop.f32.mrb[0].mxu0
      %10677 = vmatprep.mubr.bf16.mxu0 0
      %10678 = vmatmul.mubr.bf16.gmra.mrb[0].mxu0 %v10334
      %v10679 = vpop.f32.mrb[0].mxu0
      %v10680 = vadd.f32 0.0, %v10679
      %v10681 = vpop.f32.mrb[0].mxu0
      %v10682 = vpop.f32.mrb[0].mxu0
      %v10683 = vadd.f32 0.0, %v10682
      %v10684 = vpop.f32.mrb[0].mxu0
      %10685 = vmatprep.mubr.bf16.mxu0 0
      %10686 = vmatmul.mubr.bf16.gmra.mrb[0].mxu0 %v10336
      %v10687 = vpop.f32.mrb[0].mxu0
      %v10688 = vadd.f32 0.0, %v10687
      %v10689 = vpop.f32.mrb[0].mxu0
      %v10690 = vpop.f32.mrb[0].mxu0
      %v10691 = vadd.f32 0.0, %v10690
      %v10692 = vpop.f32.mrb[0].mxu0
      %10693 = vmatprep.mubr.bf16.mxu0 0
      %10694 = vmatmul.mubr.bf16.gmra.mrb[0].mxu0 %v10338
      %v10695 = vpop.f32.mrb[0].mxu0
      %v10696 = vadd.f32 0.0, %v10695
      %v10697 = vpop.f32.mrb[0].mxu0
      %v10698 = vpop.f32.mrb[0].mxu0
      %v10699 = vadd.f32 0.0, %v10698
      %v10700 = vpop.f32.mrb[0].mxu0
      %10701 = vmatprep.mubr.bf16.mxu0 0
      %10702 = vmatmul.mubr.bf16.gmra.mrb[0].mxu0 %v10340
      %v10703 = vpop.f32.mrb[0].mxu0
      %v10704 = vadd.f32 0.0, %v10703
      %v10705 = vpop.f32.mrb[0].mxu0
      %v10706 = vpop.f32.mrb[0].mxu0
      %v10707 = vadd.f32 0.0, %v10706
      %v10708 = vpop.f32.mrb[0].mxu0
      %10709 = vdwg.mxu0
      %v10742 = vunpack.c.l.b16 %v10193
      %v10743 = vunpack.c.l.b16 %v10194
      %v10744 = vunpack.c.l.b16 %v10195
      %v10745 = vunpack.c.l.b16 %v10196
      %v10746 = vunpack.c.l.b16 %v10197
      %v10747 = vunpack.c.l.b16 %v10198
      %v10748 = vunpack.c.l.b16 %v10199
      %v10749 = vunpack.c.l.b16 %v10200
      %v10750 = vunpack.c.l.b16 %v10201
      %v10751 = vunpack.c.l.b16 %v10202
      %v10752 = vunpack.c.l.b16 %v10203
      %v10753 = vunpack.c.l.b16 %v10204
      %v10754 = vunpack.c.l.b16 %v10205
      %v10755 = vunpack.c.l.b16 %v10206
      %v10756 = vunpack.c.l.b16 %v10207
      %v10757 = vunpack.c.l.b16 %v10208
      %v10758 = vunpack.c.l.b16 %v10209
      %v10759 = vunpack.c.l.b16 %v10210
      %v10760 = vunpack.c.l.b16 %v10211
      %v10761 = vunpack.c.l.b16 %v10212
      %v10762 = vunpack.c.l.b16 %v10213
      %v10763 = vunpack.c.l.b16 %v10214
      %v10764 = vunpack.c.l.b16 %v10215
      %v10765 = vunpack.c.l.b16 %v10216
      %v10766 = vunpack.c.l.b16 %v10217
      %v10767 = vunpack.c.l.b16 %v10218
      %v10768 = vunpack.c.l.b16 %v10219
      %v10769 = vunpack.c.l.b16 %v10220
      %v10770 = vunpack.c.l.b16 %v10221
      %v10771 = vunpack.c.l.b16 %v10222
      %v10772 = vunpack.c.l.b16 %v10223
      %v10773 = vunpack.c.l.b16 %v10224
      %v10774 = vpack.c.b16 %v10743, %v10742
      %v10775 = vpack.c.b16 %v10745, %v10744
      %v10776 = vpack.c.b16 %v10747, %v10746
      %v10777 = vpack.c.b16 %v10749, %v10748
      %v10778 = vpack.c.b16 %v10751, %v10750
      %v10779 = vpack.c.b16 %v10753, %v10752
      %v10780 = vpack.c.b16 %v10755, %v10754
      %v10781 = vpack.c.b16 %v10757, %v10756
      %v10782 = vpack.c.b16 %v10759, %v10758
      %v10783 = vpack.c.b16 %v10761, %v10760
      %v10784 = vpack.c.b16 %v10763, %v10762
      %v10785 = vpack.c.b16 %v10765, %v10764
      %v10786 = vpack.c.b16 %v10767, %v10766
      %v10787 = vpack.c.b16 %v10769, %v10768
      %v10788 = vpack.c.b16 %v10771, %v10770
      %v10789 = vpack.c.b16 %v10773, %v10772
      %10806 = vmatprep.subr.bf16.mxu0 0
      %10807 = vmatpush1.bf16.msra.mxu0 %v10774
      %10808 = vmatprep.subr.bf16.mxu0 0
      %10809 = vmatpush1.bf16.msra.mxu0 %v10775
      %10810 = vmatprep.subr.bf16.mxu0 0
      %10811 = vmatpush1.bf16.msra.mxu0 %v10776
      %10812 = vmatprep.subr.bf16.mxu0 0
      %10813 = vmatpush1.bf16.msra.mxu0 %v10777
      %10814 = vmatprep.subr.bf16.mxu0 0
      %10815 = vmatpush1.bf16.msra.mxu0 %v10778
      %10816 = vmatprep.subr.bf16.mxu0 0
      %10817 = vmatpush1.bf16.msra.mxu0 %v10779
      %10818 = vmatprep.subr.bf16.mxu0 0
      %10819 = vmatpush1.bf16.msra.mxu0 %v10780
      %10820 = vmatprep.subr.bf16.mxu0 0
      %10821 = vmatpush1.bf16.msra.mxu0 %v10781
      %10822 = vmatprep.subr.bf16.mxu0 0
      %10823 = vmatpush1.bf16.msra.mxu0 %v10782
      %10824 = vmatprep.subr.bf16.mxu0 0
      %10825 = vmatpush1.bf16.msra.mxu0 %v10783
      %10826 = vmatprep.subr.bf16.mxu0 0
      %10827 = vmatpush1.bf16.msra.mxu0 %v10784
      %10828 = vmatprep.subr.bf16.mxu0 0
      %10829 = vmatpush1.bf16.msra.mxu0 %v10785
      %10830 = vmatprep.subr.bf16.mxu0 0
      %10831 = vmatpush1.bf16.msra.mxu0 %v10786
      %10832 = vmatprep.subr.bf16.mxu0 0
      %10833 = vmatpush1.bf16.msra.mxu0 %v10787
      %10834 = vmatprep.subr.bf16.mxu0 0
      %10835 = vmatpush1.bf16.msra.mxu0 %v10788
      %10836 = vmatprep.subr.bf16.mxu0 0
      %10837 = vmatpush1.bf16.msra.mxu0 %v10789
      %10838 = vmatprep.mubr.bf16.mxu0 %v10129
      %10839 = vmatmul.mubr.bf16.gmra.mrb[0].mxu0 %v10128
      %v10840 = vpop.f32.mrb[0].mxu0
      %v10841 = vadd.f32 %v10456, %v10840
      %v10842 = vpop.f32.mrb[0].mxu0
      %v10843 = vpop.f32.mrb[0].mxu0
      %v10844 = vadd.f32 %v10459, %v10843
      %v10845 = vpop.f32.mrb[0].mxu0
      %10846 = vmatprep.mubr.bf16.mxu0 %v10131
      %10847 = vmatmul.mubr.bf16.gmra.mrb[0].mxu0 %v10130
      %v10848 = vpop.f32.mrb[0].mxu0
      %v10849 = vadd.f32 %v10464, %v10848
      %v10850 = vpop.f32.mrb[0].mxu0
      %v10851 = vpop.f32.mrb[0].mxu0
      %v10852 = vadd.f32 %v10467, %v10851
      %v10853 = vpop.f32.mrb[0].mxu0
      %10854 = vmatprep.mubr.bf16.mxu0 %v10133
      %10855 = vmatmul.mubr.bf16.gmra.mrb[0].mxu0 %v10132
      %v10856 = vpop.f32.mrb[0].mxu0
      %v10857 = vadd.f32 %v10472, %v10856
      %v10858 = vpop.f32.mrb[0].mxu0
      %v10859 = vpop.f32.mrb[0].mxu0
      %v10860 = vadd.f32 %v10475, %v10859
      %v10861 = vpop.f32.mrb[0].mxu0
      %10862 = vmatprep.mubr.bf16.mxu0 %v10135
      %10863 = vmatmul.mubr.bf16.gmra.mrb[0].mxu0 %v10134
      %v10864 = vpop.f32.mrb[0].mxu0
      %v10865 = vadd.f32 %v10480, %v10864
      %v10866 = vpop.f32.mrb[0].mxu0
      %v10867 = vpop.f32.mrb[0].mxu0
      %v10868 = vadd.f32 %v10483, %v10867
      %v10869 = vpop.f32.mrb[0].mxu0
      %10870 = vmatprep.mubr.bf16.mxu0 %v10137
      %10871 = vmatmul.mubr.bf16.gmra.mrb[0].mxu0 %v10136
      %v10872 = vpop.f32.mrb[0].mxu0
      %v10873 = vadd.f32 %v10488, %v10872
      %v10874 = vpop.f32.mrb[0].mxu0
      %v10875 = vpop.f32.mrb[0].mxu0
      %v10876 = vadd.f32 %v10491, %v10875
      %v10877 = vpop.f32.mrb[0].mxu0
      %10878 = vmatprep.mubr.bf16.mxu0 %v10139
      %10879 = vmatmul.mubr.bf16.gmra.mrb[0].mxu0 %v10138
      %v10880 = vpop.f32.mrb[0].mxu0
      %v10881 = vadd.f32 %v10496, %v10880
      %v10882 = vpop.f32.mrb[0].mxu0
      %v10883 = vpop.f32.mrb[0].mxu0
      %v10884 = vadd.f32 %v10499, %v10883
      %v10885 = vpop.f32.mrb[0].mxu0
      %10886 = vmatprep.mubr.bf16.mxu0 %v10141
      %10887 = vmatmul.mubr.bf16.gmra.mrb[0].mxu0 %v10140
      %v10888 = vpop.f32.mrb[0].mxu0
      %v10889 = vadd.f32 %v10504, %v10888
      %v10890 = vpop.f32.mrb[0].mxu0
      %v10891 = vpop.f32.mrb[0].mxu0
      %v10892 = vadd.f32 %v10507, %v10891
      %v10893 = vpop.f32.mrb[0].mxu0
      %10894 = vmatprep.mubr.bf16.mxu0 %v10143
      %10895 = vmatmul.mubr.bf16.gmra.mrb[0].mxu0 %v10142
      %v10896 = vpop.f32.mrb[0].mxu0
      %v10897 = vadd.f32 %v10512, %v10896
      %v10898 = vpop.f32.mrb[0].mxu0
      %v10899 = vpop.f32.mrb[0].mxu0
      %v10900 = vadd.f32 %v10515, %v10899
      %v10901 = vpop.f32.mrb[0].mxu0
      %10902 = vmatprep.mubr.bf16.mxu0 %v10145
      %10903 = vmatmul.mubr.bf16.gmra.mrb[0].mxu0 %v10144
      %v10904 = vpop.f32.mrb[0].mxu0
      %v10905 = vadd.f32 %v10520, %v10904
      %v10906 = vpop.f32.mrb[0].mxu0
      %v10907 = vpop.f32.mrb[0].mxu0
      %v10908 = vadd.f32 %v10523, %v10907
      %v10909 = vpop.f32.mrb[0].mxu0
      %10910 = vmatprep.mubr.bf16.mxu0 %v10147
      %10911 = vmatmul.mubr.bf16.gmra.mrb[0].mxu0 %v10146
      %v10912 = vpop.f32.mrb[0].mxu0
      %v10913 = vadd.f32 %v10528, %v10912
      %v10914 = vpop.f32.mrb[0].mxu0
      %v10915 = vpop.f32.mrb[0].mxu0
      %v10916 = vadd.f32 %v10531, %v10915
      %v10917 = vpop.f32.mrb[0].mxu0
      %10918 = vmatprep.mubr.bf16.mxu0 %v10149
      %10919 = vmatmul.mubr.bf16.gmra.mrb[0].mxu0 %v10148
      %v10920 = vpop.f32.mrb[0].mxu0
      %v10921 = vadd.f32 %v10536, %v10920
      %v10922 = vpop.f32.mrb[0].mxu0
      %v10923 = vpop.f32.mrb[0].mxu0
      %v10924 = vadd.f32 %v10539, %v10923
      %v10925 = vpop.f32.mrb[0].mxu0
      %10926 = vmatprep.mubr.bf16.mxu0 %v10151
      %10927 = vmatmul.mubr.bf16.gmra.mrb[0].mxu0 %v10150
      %v10928 = vpop.f32.mrb[0].mxu0
      %v10929 = vadd.f32 %v10544, %v10928
      %v10930 = vpop.f32.mrb[0].mxu0
      %v10931 = vpop.f32.mrb[0].mxu0
      %v10932 = vadd.f32 %v10547, %v10931
      %v10933 = vpop.f32.mrb[0].mxu0
      %10934 = vmatprep.mubr.bf16.mxu0 %v10153
      %10935 = vmatmul.mubr.bf16.gmra.mrb[0].mxu0 %v10152
      %v10936 = vpop.f32.mrb[0].mxu0
      %v10937 = vadd.f32 %v10552, %v10936
      %v10938 = vpop.f32.mrb[0].mxu0
      %v10939 = vpop.f32.mrb[0].mxu0
      %v10940 = vadd.f32 %v10555, %v10939
      %v10941 = vpop.f32.mrb[0].mxu0
      %10942 = vmatprep.mubr.bf16.mxu0 %v10155
      %10943 = vmatmul.mubr.bf16.gmra.mrb[0].mxu0 %v10154
      %v10944 = vpop.f32.mrb[0].mxu0
      %v10945 = vadd.f32 %v10560, %v10944
      %v10946 = vpop.f32.mrb[0].mxu0
      %v10947 = vpop.f32.mrb[0].mxu0
      %v10948 = vadd.f32 %v10563, %v10947
      %v10949 = vpop.f32.mrb[0].mxu0
      %10950 = vmatprep.mubr.bf16.mxu0 %v10157
      %10951 = vmatmul.mubr.bf16.gmra.mrb[0].mxu0 %v10156
      %v10952 = vpop.f32.mrb[0].mxu0
      %v10953 = vadd.f32 %v10568, %v10952
      %v10954 = vpop.f32.mrb[0].mxu0
      %v10955 = vpop.f32.mrb[0].mxu0
      %v10956 = vadd.f32 %v10571, %v10955
      %v10957 = vpop.f32.mrb[0].mxu0
      %10958 = vmatprep.mubr.bf16.mxu0 %v10159
      %10959 = vmatmul.mubr.bf16.gmra.mrb[0].mxu0 %v10158
      %v10960 = vpop.f32.mrb[0].mxu0
      %v10961 = vadd.f32 %v10576, %v10960
      %v10962 = vpop.f32.mrb[0].mxu0
      %v10963 = vpop.f32.mrb[0].mxu0
      %v10964 = vadd.f32 %v10579, %v10963
      %v10965 = vpop.f32.mrb[0].mxu0
      %10966 = vmatprep.mubr.bf16.mxu0 %v10161
      %10967 = vmatmul.mubr.bf16.gmra.mrb[0].mxu0 %v10160
      %v10968 = vpop.f32.mrb[0].mxu0
      %v10969 = vadd.f32 %v10584, %v10968
      %v10970 = vpop.f32.mrb[0].mxu0
      %v10971 = vpop.f32.mrb[0].mxu0
      %v10972 = vadd.f32 %v10587, %v10971
      %v10973 = vpop.f32.mrb[0].mxu0
      %10974 = vmatprep.mubr.bf16.mxu0 %v10163
      %10975 = vmatmul.mubr.bf16.gmra.mrb[0].mxu0 %v10162
      %v10976 = vpop.f32.mrb[0].mxu0
      %v10977 = vadd.f32 %v10592, %v10976
      %v10978 = vpop.f32.mrb[0].mxu0
      %v10979 = vpop.f32.mrb[0].mxu0
      %v10980 = vadd.f32 %v10595, %v10979
      %v10981 = vpop.f32.mrb[0].mxu0
      %10982 = vmatprep.mubr.bf16.mxu0 %v10165
      %10983 = vmatmul.mubr.bf16.gmra.mrb[0].mxu0 %v10164
      %v10984 = vpop.f32.mrb[0].mxu0
      %v10985 = vadd.f32 %v10600, %v10984
      %v10986 = vpop.f32.mrb[0].mxu0
      %v10987 = vpop.f32.mrb[0].mxu0
      %v10988 = vadd.f32 %v10603, %v10987
      %v10989 = vpop.f32.mrb[0].mxu0
      %10990 = vmatprep.mubr.bf16.mxu0 %v10167
      %10991 = vmatmul.mubr.bf16.gmra.mrb[0].mxu0 %v10166
      %v10992 = vpop.f32.mrb[0].mxu0
      %v10993 = vadd.f32 %v10608, %v10992
      %v10994 = vpop.f32.mrb[0].mxu0
      %v10995 = vpop.f32.mrb[0].mxu0
      %v10996 = vadd.f32 %v10611, %v10995
      %v10997 = vpop.f32.mrb[0].mxu0
      %10998 = vmatprep.mubr.bf16.mxu0 %v10169
      %10999 = vmatmul.mubr.bf16.gmra.mrb[0].mxu0 %v10168
      %v11000 = vpop.f32.mrb[0].mxu0
      %v11001 = vadd.f32 %v10616, %v11000
      %v11002 = vpop.f32.mrb[0].mxu0
      %v11003 = vpop.f32.mrb[0].mxu0
      %v11004 = vadd.f32 %v10619, %v11003
      %v11005 = vpop.f32.mrb[0].mxu0
      %11006 = vmatprep.mubr.bf16.mxu0 %v10171
      %11007 = vmatmul.mubr.bf16.gmra.mrb[0].mxu0 %v10170
      %v11008 = vpop.f32.mrb[0].mxu0
      %v11009 = vadd.f32 %v10624, %v11008
      %v11010 = vpop.f32.mrb[0].mxu0
      %v11011 = vpop.f32.mrb[0].mxu0
      %v11012 = vadd.f32 %v10627, %v11011
      %v11013 = vpop.f32.mrb[0].mxu0
      %11014 = vmatprep.mubr.bf16.mxu0 %v10173
      %11015 = vmatmul.mubr.bf16.gmra.mrb[0].mxu0 %v10172
      %v11016 = vpop.f32.mrb[0].mxu0
      %v11017 = vadd.f32 %v10632, %v11016
      %v11018 = vpop.f32.mrb[0].mxu0
      %v11019 = vpop.f32.mrb[0].mxu0
      %v11020 = vadd.f32 %v10635, %v11019
      %v11021 = vpop.f32.mrb[0].mxu0
      %11022 = vmatprep.mubr.bf16.mxu0 %v10175
      %11023 = vmatmul.mubr.bf16.gmra.mrb[0].mxu0 %v10174
      %v11024 = vpop.f32.mrb[0].mxu0
      %v11025 = vadd.f32 %v10640, %v11024
      %v11026 = vpop.f32.mrb[0].mxu0
      %v11027 = vpop.f32.mrb[0].mxu0
      %v11028 = vadd.f32 %v10643, %v11027
      %v11029 = vpop.f32.mrb[0].mxu0
      %11030 = vmatprep.mubr.bf16.mxu0 %v10177
      %11031 = vmatmul.mubr.bf16.gmra.mrb[0].mxu0 %v10176
      %v11032 = vpop.f32.mrb[0].mxu0
      %v11033 = vadd.f32 %v10648, %v11032
      %v11034 = vpop.f32.mrb[0].mxu0
      %v11035 = vpop.f32.mrb[0].mxu0
      %v11036 = vadd.f32 %v10651, %v11035
      %v11037 = vpop.f32.mrb[0].mxu0
      %11038 = vmatprep.mubr.bf16.mxu0 %v10179
      %11039 = vmatmul.mubr.bf16.gmra.mrb[0].mxu0 %v10178
      %v11040 = vpop.f32.mrb[0].mxu0
      %v11041 = vadd.f32 %v10656, %v11040
      %v11042 = vpop.f32.mrb[0].mxu0
      %v11043 = vpop.f32.mrb[0].mxu0
      %v11044 = vadd.f32 %v10659, %v11043
      %v11045 = vpop.f32.mrb[0].mxu0
      %11046 = vmatprep.mubr.bf16.mxu0 %v10181
      %11047 = vmatmul.mubr.bf16.gmra.mrb[0].mxu0 %v10180
      %v11048 = vpop.f32.mrb[0].mxu0
      %v11049 = vadd.f32 %v10664, %v11048
      %v11050 = vpop.f32.mrb[0].mxu0
      %v11051 = vpop.f32.mrb[0].mxu0
      %v11052 = vadd.f32 %v10667, %v11051
      %v11053 = vpop.f32.mrb[0].mxu0
      %11054 = vmatprep.mubr.bf16.mxu0 %v10183
      %11055 = vmatmul.mubr.bf16.gmra.mrb[0].mxu0 %v10182
      %v11056 = vpop.f32.mrb[0].mxu0
      %v11057 = vadd.f32 %v10672, %v11056
      %v11058 = vpop.f32.mrb[0].mxu0
      %v11059 = vpop.f32.mrb[0].mxu0
      %v11060 = vadd.f32 %v10675, %v11059
      %v11061 = vpop.f32.mrb[0].mxu0
      %11062 = vmatprep.mubr.bf16.mxu0 %v10185
      %11063 = vmatmul.mubr.bf16.gmra.mrb[0].mxu0 %v10184
      %v11064 = vpop.f32.mrb[0].mxu0
      %v11065 = vadd.f32 %v10680, %v11064
      %v11066 = vpop.f32.mrb[0].mxu0
      %v11067 = vpop.f32.mrb[0].mxu0
      %v11068 = vadd.f32 %v10683, %v11067
      %v11069 = vpop.f32.mrb[0].mxu0
      %11070 = vmatprep.mubr.bf16.mxu0 %v10187
      %11071 = vmatmul.mubr.bf16.gmra.mrb[0].mxu0 %v10186
      %v11072 = vpop.f32.mrb[0].mxu0
      %v11073 = vadd.f32 %v10688, %v11072
      %v11074 = vpop.f32.mrb[0].mxu0
      %v11075 = vpop.f32.mrb[0].mxu0
      %v11076 = vadd.f32 %v10691, %v11075
      %v11077 = vpop.f32.mrb[0].mxu0
      %11078 = vmatprep.mubr.bf16.mxu0 %v10189
      %11079 = vmatmul.mubr.bf16.gmra.mrb[0].mxu0 %v10188
      %v11080 = vpop.f32.mrb[0].mxu0
      %v11081 = vadd.f32 %v10696, %v11080
      %v11082 = vpop.f32.mrb[0].mxu0
      %v11083 = vpop.f32.mrb[0].mxu0
      %v11084 = vadd.f32 %v10699, %v11083
      %v11085 = vpop.f32.mrb[0].mxu0
      %11086 = vmatprep.mubr.bf16.mxu0 %v10191
      %11087 = vmatmul.mubr.bf16.gmra.mrb[0].mxu0 %v10190
      %v11088 = vpop.f32.mrb[0].mxu0
      %v11089 = vadd.f32 %v10704, %v11088
      %v11090 = vpop.f32.mrb[0].mxu0
      %v11091 = vpop.f32.mrb[0].mxu0
      %v11092 = vadd.f32 %v10707, %v11091
      %v11093 = vpop.f32.mrb[0].mxu0
      %11094 = vdwg.mxu0
      %v11095 = vadd.f32 %v9874, %v10841
      %v11096 = vadd.f32 %v9877, %v10844
      %v11097 = vadd.f32 %v9882, %v10849
      %v11098 = vadd.f32 %v9885, %v10852
      %v11099 = vadd.f32 %v9890, %v10857
      %v11100 = vadd.f32 %v9893, %v10860
      %v11101 = vadd.f32 %v9898, %v10865
      %v11102 = vadd.f32 %v9901, %v10868
      %v11103 = vadd.f32 %v9906, %v10873
      %v11104 = vadd.f32 %v9909, %v10876
      %v11105 = vadd.f32 %v9914, %v10881
      %v11106 = vadd.f32 %v9917, %v10884
      %v11107 = vadd.f32 %v9922, %v10889
      %v11108 = vadd.f32 %v9925, %v10892
      %v11109 = vadd.f32 %v9930, %v10897
      %v11110 = vadd.f32 %v9933, %v10900
      %v11111 = vadd.f32 %v9938, %v10905
      %v11112 = vadd.f32 %v9941, %v10908
      %v11113 = vadd.f32 %v9946, %v10913
      %v11114 = vadd.f32 %v9949, %v10916
      %v11115 = vadd.f32 %v9954, %v10921
      %v11116 = vadd.f32 %v9957, %v10924
      %v11117 = vadd.f32 %v9962, %v10929
      %v11118 = vadd.f32 %v9965, %v10932
      %v11119 = vadd.f32 %v9970, %v10937
      %v11120 = vadd.f32 %v9973, %v10940
      %v11121 = vadd.f32 %v9978, %v10945
      %v11122 = vadd.f32 %v9981, %v10948
      %v11123 = vadd.f32 %v9986, %v10953
      %v11124 = vadd.f32 %v9989, %v10956
      %v11125 = vadd.f32 %v9994, %v10961
      %v11126 = vadd.f32 %v9997, %v10964
      %v11127 = vadd.f32 %v10002, %v10969
      %v11128 = vadd.f32 %v10005, %v10972
      %v11129 = vadd.f32 %v10010, %v10977
      %v11130 = vadd.f32 %v10013, %v10980
      %v11131 = vadd.f32 %v10018, %v10985
      %v11132 = vadd.f32 %v10021, %v10988
      %v11133 = vadd.f32 %v10026, %v10993
      %v11134 = vadd.f32 %v10029, %v10996
      %v11135 = vadd.f32 %v10034, %v11001
      %v11136 = vadd.f32 %v10037, %v11004
      %v11137 = vadd.f32 %v10042, %v11009
      %v11138 = vadd.f32 %v10045, %v11012
      %v11139 = vadd.f32 %v10050, %v11017
      %v11140 = vadd.f32 %v10053, %v11020
      %v11141 = vadd.f32 %v10058, %v11025
      %v11142 = vadd.f32 %v10061, %v11028
      %v11143 = vadd.f32 %v10066, %v11033
      %v11144 = vadd.f32 %v10069, %v11036
      %v11145 = vadd.f32 %v10074, %v11041
      %v11146 = vadd.f32 %v10077, %v11044
      %v11147 = vadd.f32 %v10082, %v11049
      %v11148 = vadd.f32 %v10085, %v11052
      %v11149 = vadd.f32 %v10090, %v11057
      %v11150 = vadd.f32 %v10093, %v11060
      %v11151 = vadd.f32 %v10098, %v11065
      %v11152 = vadd.f32 %v10101, %v11068
      %v11153 = vadd.f32 %v10106, %v11073
      %v11154 = vadd.f32 %v10109, %v11076
      %v11155 = vadd.f32 %v10114, %v11081
      %v11156 = vadd.f32 %v10117, %v11084
      %v11157 = vadd.f32 %v10122, %v11089
      %v11158 = vadd.f32 %v10125, %v11092
      %v11159 = vld [vmem:[#allocation2 + $0x60] sm:$0xff]
      %v11160 = vld [vmem:[#allocation2 + $0x68] sm:$0xff]
      %v11161 = vld [vmem:[#allocation2 + $0x70] sm:$0xff]
      %v11162 = vld [vmem:[#allocation2 + $0x78] sm:$0xff]
      %v11163 = vld [vmem:[#allocation2 + $0x80] sm:$0xff]
      %v11164 = vld [vmem:[#allocation2 + $0x88] sm:$0xff]
      %v11165 = vld [vmem:[#allocation2 + $0x90] sm:$0xff]
      %v11166 = vld [vmem:[#allocation2 + $0x98] sm:$0xff]
      %v11167 = vld [vmem:[#allocation2 + $0xa0] sm:$0xff]
      %v11168 = vld [vmem:[#allocation2 + $0xa8] sm:$0xff]
      %v11169 = vld [vmem:[#allocation2 + $0xb0] sm:$0xff]
      %v11170 = vld [vmem:[#allocation2 + $0xb8] sm:$0xff]
      %v11171 = vld [vmem:[#allocation2 + $0xc0] sm:$0xff]
      %v11172 = vld [vmem:[#allocation2 + $0xc8] sm:$0xff]
      %v11173 = vld [vmem:[#allocation2 + $0xd0] sm:$0xff]
      %v11174 = vld [vmem:[#allocation2 + $0xd8] sm:$0xff]
      %v11175 = vld [vmem:[#allocation2 + $0xe0] sm:$0xff]
      %v11176 = vld [vmem:[#allocation2 + $0xe8] sm:$0xff]
      %v11177 = vld [vmem:[#allocation2 + $0xf0] sm:$0xff]
      %v11178 = vld [vmem:[#allocation2 + $0xf8] sm:$0xff]
      %v11179 = vld [vmem:[#allocation2 + $0x100] sm:$0xff]
      %v11180 = vld [vmem:[#allocation2 + $0x108] sm:$0xff]
      %v11181 = vld [vmem:[#allocation2 + $0x110] sm:$0xff]
      %v11182 = vld [vmem:[#allocation2 + $0x118] sm:$0xff]
      %v11183 = vld [vmem:[#allocation2 + $0x120] sm:$0xff]
      %v11184 = vld [vmem:[#allocation2 + $0x128] sm:$0xff]
      %v11185 = vld [vmem:[#allocation2 + $0x130] sm:$0xff]
      %v11186 = vld [vmem:[#allocation2 + $0x138] sm:$0xff]
      %v11187 = vld [vmem:[#allocation2 + $0x140] sm:$0xff]
      %v11188 = vld [vmem:[#allocation2 + $0x148] sm:$0xff]
      %v11189 = vld [vmem:[#allocation2 + $0x150] sm:$0xff]
      %v11190 = vld [vmem:[#allocation2 + $0x158] sm:$0xff]
      %v11191 = vld [vmem:[#allocation2 + $0x160] sm:$0xff]
      %v11192 = vld [vmem:[#allocation2 + $0x168] sm:$0xff]
      %v11193 = vld [vmem:[#allocation2 + $0x170] sm:$0xff]
      %v11194 = vld [vmem:[#allocation2 + $0x178] sm:$0xff]
      %v11195 = vld [vmem:[#allocation2 + $0x180] sm:$0xff]
      %v11196 = vld [vmem:[#allocation2 + $0x188] sm:$0xff]
      %v11197 = vld [vmem:[#allocation2 + $0x190] sm:$0xff]
      %v11198 = vld [vmem:[#allocation2 + $0x198] sm:$0xff]
      %v11199 = vld [vmem:[#allocation2 + $0x1a0] sm:$0xff]
      %v11200 = vld [vmem:[#allocation2 + $0x1a8] sm:$0xff]
      %v11201 = vld [vmem:[#allocation2 + $0x1b0] sm:$0xff]
      %v11202 = vld [vmem:[#allocation2 + $0x1b8] sm:$0xff]
      %v11203 = vld [vmem:[#allocation2 + $0x1c0] sm:$0xff]
      %v11204 = vld [vmem:[#allocation2 + $0x1c8] sm:$0xff]
      %v11205 = vld [vmem:[#allocation2 + $0x1d0] sm:$0xff]
      %v11206 = vld [vmem:[#allocation2 + $0x1d8] sm:$0xff]
      %v11207 = vld [vmem:[#allocation2 + $0x1e0] sm:$0xff]
      %v11208 = vld [vmem:[#allocation2 + $0x1e8] sm:$0xff]
      %v11209 = vld [vmem:[#allocation2 + $0x1f0] sm:$0xff]
      %v11210 = vld [vmem:[#allocation2 + $0x1f8] sm:$0xff]
      %v11211 = vld [vmem:[#allocation2 + $0x200] sm:$0xff]
      %v11212 = vld [vmem:[#allocation2 + $0x208] sm:$0xff]
      %v11213 = vld [vmem:[#allocation2 + $0x210] sm:$0xff]
      %v11214 = vld [vmem:[#allocation2 + $0x218] sm:$0xff]
      %v11215 = vld [vmem:[#allocation2 + $0x220] sm:$0xff]
      %v11216 = vld [vmem:[#allocation2 + $0x228] sm:$0xff]
      %v11217 = vld [vmem:[#allocation2 + $0x230] sm:$0xff]
      %v11218 = vld [vmem:[#allocation2 + $0x238] sm:$0xff]
      %v11219 = vld [vmem:[#allocation2 + $0x240] sm:$0xff]
      %v11220 = vld [vmem:[#allocation2 + $0x248] sm:$0xff]
      %v11221 = vld [vmem:[#allocation2 + $0x250] sm:$0xff]
      %v11222 = vld [vmem:[#allocation2 + $0x258] sm:$0xff]
      %s11223 = scalar_lea.vmem %s2, 384
      %v11224 = vld [vmem:[%s11223 + $0x40] sm:$0xf]
      %v11225 = vld [vmem:[%s11223 + $0x44] sm:$0xf]
      %v11226 = vld [vmem:[%s11223 + $0x48] sm:$0xf]
      %v11227 = vld [vmem:[%s11223 + $0x4c] sm:$0xf]
      %v11228 = vld [vmem:[%s11223 + $0x50] sm:$0xf]
      %v11229 = vld [vmem:[%s11223 + $0x54] sm:$0xf]
      %v11230 = vld [vmem:[%s11223 + $0x58] sm:$0xf]
      %v11231 = vld [vmem:[%s11223 + $0x5c] sm:$0xf]
      %v11232 = vld [vmem:[%s11223 + $0x60] sm:$0xf]
      %v11233 = vld [vmem:[%s11223 + $0x64] sm:$0xf]
      %v11234 = vld [vmem:[%s11223 + $0x68] sm:$0xf]
      %v11235 = vld [vmem:[%s11223 + $0x6c] sm:$0xf]
      %v11236 = vld [vmem:[%s11223 + $0x70] sm:$0xf]
      %v11237 = vld [vmem:[%s11223 + $0x74] sm:$0xf]
      %v11238 = vld [vmem:[%s11223 + $0x78] sm:$0xf]
      %v11239 = vld [vmem:[%s11223 + $0x7c] sm:$0xf]
      %v11240 = vld [vmem:[%s11223 + $0x80] sm:$0xf]
      %v11241 = vld [vmem:[%s11223 + $0x84] sm:$0xf]
      %v11242 = vld [vmem:[%s11223 + $0x88] sm:$0xf]
      %v11243 = vld [vmem:[%s11223 + $0x8c] sm:$0xf]
      %v11244 = vld [vmem:[%s11223 + $0x90] sm:$0xf]
      %v11245 = vld [vmem:[%s11223 + $0x94] sm:$0xf]
      %v11246 = vld [vmem:[%s11223 + $0x98] sm:$0xf]
      %v11247 = vld [vmem:[%s11223 + $0x9c] sm:$0xf]
      %v11248 = vld [vmem:[%s11223 + $0xa0] sm:$0xf]
      %v11249 = vld [vmem:[%s11223 + $0xa4] sm:$0xf]
      %v11250 = vld [vmem:[%s11223 + $0xa8] sm:$0xf]
      %v11251 = vld [vmem:[%s11223 + $0xac] sm:$0xf]
      %v11252 = vld [vmem:[%s11223 + $0xb0] sm:$0xf]
      %v11253 = vld [vmem:[%s11223 + $0xb4] sm:$0xf]
      %v11254 = vld [vmem:[%s11223 + $0xb8] sm:$0xf]
      %v11255 = vld [vmem:[%s11223 + $0xbc] sm:$0xf]
      %v11256 = vld [vmem:[#allocation2 + $0x58] sm:$0x80]
      %v11257 = vld [vmem:[#allocation2 + $0x258] sm:$0x7f]
      %v11258 = vld [vmem:[%s11223] sm:$0xf]
      %v11259 = vld [vmem:[%s11223 + $0x4] sm:$0xf]
      %v11260 = vld [vmem:[%s11223 + $0x8] sm:$0xf]
      %v11261 = vld [vmem:[%s11223 + $0xc] sm:$0xf]
      %v11262 = vld [vmem:[%s11223 + $0x10] sm:$0xf]
      %v11263 = vld [vmem:[%s11223 + $0x14] sm:$0xf]
      %v11264 = vld [vmem:[%s11223 + $0x18] sm:$0xf]
      %v11265 = vld [vmem:[%s11223 + $0x1c] sm:$0xf]
      %v11266 = vld [vmem:[%s11223 + $0x20] sm:$0xf]
      %v11267 = vld [vmem:[%s11223 + $0x24] sm:$0xf]
      %v11268 = vld [vmem:[%s11223 + $0x28] sm:$0xf]
      %v11269 = vld [vmem:[%s11223 + $0x2c] sm:$0xf]
      %v11270 = vld [vmem:[%s11223 + $0x30] sm:$0xf]
      %v11271 = vld [vmem:[%s11223 + $0x34] sm:$0xf]
      %v11272 = vld [vmem:[%s11223 + $0x38] sm:$0xf]
      %v11273 = vld [vmem:[%s11223 + $0x3c] sm:$0xf]
      %v11307 = vrot.slane %v11256, 7
      %v11308 = vrot.slane %v11160, 7
      %v11309 = vsel %vm2438, %v11307, %v11308
      %v11310 = vrot.slane %v11162, 7
      %v11311 = vsel %vm2438, %v11308, %v11310
      %v11312 = vrot.slane %v11164, 7
      %v11313 = vsel %vm2438, %v11310, %v11312
      %v11314 = vrot.slane %v11166, 7
      %v11315 = vsel %vm2438, %v11312, %v11314
      %v11316 = vrot.slane %v11168, 7
      %v11317 = vsel %vm2438, %v11314, %v11316
      %v11318 = vrot.slane %v11170, 7
      %v11319 = vsel %vm2438, %v11316, %v11318
      %v11320 = vrot.slane %v11172, 7
      %v11321 = vsel %vm2438, %v11318, %v11320
      %v11322 = vrot.slane %v11174, 7
      %v11323 = vsel %vm2438, %v11320, %v11322
      %v11324 = vrot.slane %v11176, 7
      %v11325 = vsel %vm2438, %v11322, %v11324
      %v11326 = vrot.slane %v11178, 7
      %v11327 = vsel %vm2438, %v11324, %v11326
      %v11328 = vrot.slane %v11180, 7
      %v11329 = vsel %vm2438, %v11326, %v11328
      %v11330 = vrot.slane %v11182, 7
      %v11331 = vsel %vm2438, %v11328, %v11330
      %v11332 = vrot.slane %v11184, 7
      %v11333 = vsel %vm2438, %v11330, %v11332
      %v11334 = vrot.slane %v11186, 7
      %v11335 = vsel %vm2438, %v11332, %v11334
      %v11336 = vrot.slane %v11188, 7
      %v11337 = vsel %vm2438, %v11334, %v11336
      %v11338 = vrot.slane %v11190, 7
      %v11339 = vsel %vm2438, %v11336, %v11338
      %v11340 = vrot.slane %v11192, 7
      %v11341 = vsel %vm2438, %v11338, %v11340
      %v11342 = vrot.slane %v11194, 7
      %v11343 = vsel %vm2438, %v11340, %v11342
      %v11344 = vrot.slane %v11196, 7
      %v11345 = vsel %vm2438, %v11342, %v11344
      %v11346 = vrot.slane %v11198, 7
      %v11347 = vsel %vm2438, %v11344, %v11346
      %v11348 = vrot.slane %v11200, 7
      %v11349 = vsel %vm2438, %v11346, %v11348
      %v11350 = vrot.slane %v11202, 7
      %v11351 = vsel %vm2438, %v11348, %v11350
      %v11352 = vrot.slane %v11204, 7
      %v11353 = vsel %vm2438, %v11350, %v11352
      %v11354 = vrot.slane %v11206, 7
      %v11355 = vsel %vm2438, %v11352, %v11354
      %v11356 = vrot.slane %v11208, 7
      %v11357 = vsel %vm2438, %v11354, %v11356
      %v11358 = vrot.slane %v11210, 7
      %v11359 = vsel %vm2438, %v11356, %v11358
      %v11360 = vrot.slane %v11212, 7
      %v11361 = vsel %vm2438, %v11358, %v11360
      %v11362 = vrot.slane %v11214, 7
      %v11363 = vsel %vm2438, %v11360, %v11362
      %v11364 = vrot.slane %v11216, 7
      %v11365 = vsel %vm2438, %v11362, %v11364
      %v11366 = vrot.slane %v11218, 7
      %v11367 = vsel %vm2438, %v11364, %v11366
      %v11368 = vrot.slane %v11220, 7
      %v11369 = vsel %vm2438, %v11366, %v11368
      %v11370 = vrot.slane %v11257, 7
      %v11371 = vsel %vm2438, %v11368, %v11370
      %v11420 = vunpack.c.l.b16 %v11258
      %v11421 = vunpack.c.l.b16 %v11259
      %v11422 = vunpack.c.l.b16 %v11260
      %v11423 = vunpack.c.l.b16 %v11261
      %v11424 = vunpack.c.l.b16 %v11262
      %v11425 = vunpack.c.l.b16 %v11263
      %v11426 = vunpack.c.l.b16 %v11264
      %v11427 = vunpack.c.l.b16 %v11265
      %v11428 = vunpack.c.l.b16 %v11266
      %v11429 = vunpack.c.l.b16 %v11267
      %v11430 = vunpack.c.l.b16 %v11268
      %v11431 = vunpack.c.l.b16 %v11269
      %v11432 = vunpack.c.l.b16 %v11270
      %v11433 = vunpack.c.l.b16 %v11271
      %v11434 = vunpack.c.l.b16 %v11272
      %v11435 = vunpack.c.l.b16 %v11273
      %v11436 = vpack.c.b16 %v11421, %v11420
      %v11437 = vpack.c.b16 %v11423, %v11422
      %v11438 = vpack.c.b16 %v11425, %v11424
      %v11439 = vpack.c.b16 %v11427, %v11426
      %v11440 = vpack.c.b16 %v11429, %v11428
      %v11441 = vpack.c.b16 %v11431, %v11430
      %v11442 = vpack.c.b16 %v11433, %v11432
      %v11443 = vpack.c.b16 %v11435, %v11434
      %11452 = vmatprep.subr.bf16.mxu0 0
      %11453 = vmatpush1.bf16.msra.mxu0 %v11436
      %11454 = vmatprep.subr.bf16.mxu0 0
      %11455 = vmatpush1.bf16.msra.mxu0 %v11437
      %11456 = vmatprep.subr.bf16.mxu0 0
      %11457 = vmatpush1.bf16.msra.mxu0 %v11438
      %11458 = vmatprep.subr.bf16.mxu0 0
      %11459 = vmatpush1.bf16.msra.mxu0 %v11439
      %11460 = vmatprep.subr.bf16.mxu0 0
      %11461 = vmatpush1.bf16.msra.mxu0 %v11440
      %11462 = vmatprep.subr.bf16.mxu0 0
      %11463 = vmatpush1.bf16.msra.mxu0 %v11441
      %11464 = vmatprep.subr.bf16.mxu0 0
      %11465 = vmatpush1.bf16.msra.mxu0 %v11442
      %11466 = vmatprep.subr.bf16.mxu0 0
      %11467 = vmatpush1.bf16.msra.mxu0 %v11443
      %11468 = vmatprep.subr.bf16.mxu0 0
      %11469 = vmatpush1.bf16.msra.mxu0 0
      %11470 = vmatprep.subr.bf16.mxu0 0
      %11471 = vmatpush1.bf16.msra.mxu0 0
      %11472 = vmatprep.subr.bf16.mxu0 0
      %11473 = vmatpush1.bf16.msra.mxu0 0
      %11474 = vmatprep.subr.bf16.mxu0 0
      %11475 = vmatpush1.bf16.msra.mxu0 0
      %11476 = vmatprep.subr.bf16.mxu0 0
      %11477 = vmatpush1.bf16.msra.mxu0 0
      %11478 = vmatprep.subr.bf16.mxu0 0
      %11479 = vmatpush1.bf16.msra.mxu0 0
      %11480 = vmatprep.subr.bf16.mxu0 0
      %11481 = vmatpush1.bf16.msra.mxu0 0
      %11482 = vmatprep.subr.bf16.mxu0 0
      %11483 = vmatpush1.bf16.msra.mxu0 0
      %11484 = vmatprep.mubr.bf16.mxu0 0
      %11485 = vmatmul.mubr.bf16.gmra.mrb[0].mxu0 %v11309
      %v11486 = vpop.f32.mrb[0].mxu0
      %v11487 = vadd.f32 0.0, %v11486
      %v11488 = vpop.f32.mrb[0].mxu0
      %v11489 = vpop.f32.mrb[0].mxu0
      %v11490 = vadd.f32 0.0, %v11489
      %v11491 = vpop.f32.mrb[0].mxu0
      %11492 = vmatprep.mubr.bf16.mxu0 0
      %11493 = vmatmul.mubr.bf16.gmra.mrb[0].mxu0 %v11311
      %v11494 = vpop.f32.mrb[0].mxu0
      %v11495 = vadd.f32 0.0, %v11494
      %v11496 = vpop.f32.mrb[0].mxu0
      %v11497 = vpop.f32.mrb[0].mxu0
      %v11498 = vadd.f32 0.0, %v11497
      %v11499 = vpop.f32.mrb[0].mxu0
      %11500 = vmatprep.mubr.bf16.mxu0 0
      %11501 = vmatmul.mubr.bf16.gmra.mrb[0].mxu0 %v11313
      %v11502 = vpop.f32.mrb[0].mxu0
      %v11503 = vadd.f32 0.0, %v11502
      %v11504 = vpop.f32.mrb[0].mxu0
      %v11505 = vpop.f32.mrb[0].mxu0
      %v11506 = vadd.f32 0.0, %v11505
      %v11507 = vpop.f32.mrb[0].mxu0
      %11508 = vmatprep.mubr.bf16.mxu0 0
      %11509 = vmatmul.mubr.bf16.gmra.mrb[0].mxu0 %v11315
      %v11510 = vpop.f32.mrb[0].mxu0
      %v11511 = vadd.f32 0.0, %v11510
      %v11512 = vpop.f32.mrb[0].mxu0
      %v11513 = vpop.f32.mrb[0].mxu0
      %v11514 = vadd.f32 0.0, %v11513
      %v11515 = vpop.f32.mrb[0].mxu0
      %11516 = vmatprep.mubr.bf16.mxu0 0
      %11517 = vmatmul.mubr.bf16.gmra.mrb[0].mxu0 %v11317
      %v11518 = vpop.f32.mrb[0].mxu0
      %v11519 = vadd.f32 0.0, %v11518
      %v11520 = vpop.f32.mrb[0].mxu0
      %v11521 = vpop.f32.mrb[0].mxu0
      %v11522 = vadd.f32 0.0, %v11521
      %v11523 = vpop.f32.mrb[0].mxu0
      %11524 = vmatprep.mubr.bf16.mxu0 0
      %11525 = vmatmul.mubr.bf16.gmra.mrb[0].mxu0 %v11319
      %v11526 = vpop.f32.mrb[0].mxu0
      %v11527 = vadd.f32 0.0, %v11526
      %v11528 = vpop.f32.mrb[0].mxu0
      %v11529 = vpop.f32.mrb[0].mxu0
      %v11530 = vadd.f32 0.0, %v11529
      %v11531 = vpop.f32.mrb[0].mxu0
      %11532 = vmatprep.mubr.bf16.mxu0 0
      %11533 = vmatmul.mubr.bf16.gmra.mrb[0].mxu0 %v11321
      %v11534 = vpop.f32.mrb[0].mxu0
      %v11535 = vadd.f32 0.0, %v11534
      %v11536 = vpop.f32.mrb[0].mxu0
      %v11537 = vpop.f32.mrb[0].mxu0
      %v11538 = vadd.f32 0.0, %v11537
      %v11539 = vpop.f32.mrb[0].mxu0
      %11540 = vmatprep.mubr.bf16.mxu0 0
      %11541 = vmatmul.mubr.bf16.gmra.mrb[0].mxu0 %v11323
      %v11542 = vpop.f32.mrb[0].mxu0
      %v11543 = vadd.f32 0.0, %v11542
      %v11544 = vpop.f32.mrb[0].mxu0
      %v11545 = vpop.f32.mrb[0].mxu0
      %v11546 = vadd.f32 0.0, %v11545
      %v11547 = vpop.f32.mrb[0].mxu0
      %11548 = vmatprep.mubr.bf16.mxu0 0
      %11549 = vmatmul.mubr.bf16.gmra.mrb[0].mxu0 %v11325
      %v11550 = vpop.f32.mrb[0].mxu0
      %v11551 = vadd.f32 0.0, %v11550
      %v11552 = vpop.f32.mrb[0].mxu0
      %v11553 = vpop.f32.mrb[0].mxu0
      %v11554 = vadd.f32 0.0, %v11553
      %v11555 = vpop.f32.mrb[0].mxu0
      %11556 = vmatprep.mubr.bf16.mxu0 0
      %11557 = vmatmul.mubr.bf16.gmra.mrb[0].mxu0 %v11327
      %v11558 = vpop.f32.mrb[0].mxu0
      %v11559 = vadd.f32 0.0, %v11558
      %v11560 = vpop.f32.mrb[0].mxu0
      %v11561 = vpop.f32.mrb[0].mxu0
      %v11562 = vadd.f32 0.0, %v11561
      %v11563 = vpop.f32.mrb[0].mxu0
      %11564 = vmatprep.mubr.bf16.mxu0 0
      %11565 = vmatmul.mubr.bf16.gmra.mrb[0].mxu0 %v11329
      %v11566 = vpop.f32.mrb[0].mxu0
      %v11567 = vadd.f32 0.0, %v11566
      %v11568 = vpop.f32.mrb[0].mxu0
      %v11569 = vpop.f32.mrb[0].mxu0
      %v11570 = vadd.f32 0.0, %v11569
      %v11571 = vpop.f32.mrb[0].mxu0
      %11572 = vmatprep.mubr.bf16.mxu0 0
      %11573 = vmatmul.mubr.bf16.gmra.mrb[0].mxu0 %v11331
      %v11574 = vpop.f32.mrb[0].mxu0
      %v11575 = vadd.f32 0.0, %v11574
      %v11576 = vpop.f32.mrb[0].mxu0
      %v11577 = vpop.f32.mrb[0].mxu0
      %v11578 = vadd.f32 0.0, %v11577
      %v11579 = vpop.f32.mrb[0].mxu0
      %11580 = vmatprep.mubr.bf16.mxu0 0
      %11581 = vmatmul.mubr.bf16.gmra.mrb[0].mxu0 %v11333
      %v11582 = vpop.f32.mrb[0].mxu0
      %v11583 = vadd.f32 0.0, %v11582
      %v11584 = vpop.f32.mrb[0].mxu0
      %v11585 = vpop.f32.mrb[0].mxu0
      %v11586 = vadd.f32 0.0, %v11585
      %v11587 = vpop.f32.mrb[0].mxu0
      %11588 = vmatprep.mubr.bf16.mxu0 0
      %11589 = vmatmul.mubr.bf16.gmra.mrb[0].mxu0 %v11335
      %v11590 = vpop.f32.mrb[0].mxu0
      %v11591 = vadd.f32 0.0, %v11590
      %v11592 = vpop.f32.mrb[0].mxu0
      %v11593 = vpop.f32.mrb[0].mxu0
      %v11594 = vadd.f32 0.0, %v11593
      %v11595 = vpop.f32.mrb[0].mxu0
      %11596 = vmatprep.mubr.bf16.mxu0 0
      %11597 = vmatmul.mubr.bf16.gmra.mrb[0].mxu0 %v11337
      %v11598 = vpop.f32.mrb[0].mxu0
      %v11599 = vadd.f32 0.0, %v11598
      %v11600 = vpop.f32.mrb[0].mxu0
      %v11601 = vpop.f32.mrb[0].mxu0
      %v11602 = vadd.f32 0.0, %v11601
      %v11603 = vpop.f32.mrb[0].mxu0
      %11604 = vmatprep.mubr.bf16.mxu0 0
      %11605 = vmatmul.mubr.bf16.gmra.mrb[0].mxu0 %v11339
      %v11606 = vpop.f32.mrb[0].mxu0
      %v11607 = vadd.f32 0.0, %v11606
      %v11608 = vpop.f32.mrb[0].mxu0
      %v11609 = vpop.f32.mrb[0].mxu0
      %v11610 = vadd.f32 0.0, %v11609
      %v11611 = vpop.f32.mrb[0].mxu0
      %11612 = vmatprep.mubr.bf16.mxu0 0
      %11613 = vmatmul.mubr.bf16.gmra.mrb[0].mxu0 %v11341
      %v11614 = vpop.f32.mrb[0].mxu0
      %v11615 = vadd.f32 0.0, %v11614
      %v11616 = vpop.f32.mrb[0].mxu0
      %v11617 = vpop.f32.mrb[0].mxu0
      %v11618 = vadd.f32 0.0, %v11617
      %v11619 = vpop.f32.mrb[0].mxu0
      %11620 = vmatprep.mubr.bf16.mxu0 0
      %11621 = vmatmul.mubr.bf16.gmra.mrb[0].mxu0 %v11343
      %v11622 = vpop.f32.mrb[0].mxu0
      %v11623 = vadd.f32 0.0, %v11622
      %v11624 = vpop.f32.mrb[0].mxu0
      %v11625 = vpop.f32.mrb[0].mxu0
      %v11626 = vadd.f32 0.0, %v11625
      %v11627 = vpop.f32.mrb[0].mxu0
      %11628 = vmatprep.mubr.bf16.mxu0 0
      %11629 = vmatmul.mubr.bf16.gmra.mrb[0].mxu0 %v11345
      %v11630 = vpop.f32.mrb[0].mxu0
      %v11631 = vadd.f32 0.0, %v11630
      %v11632 = vpop.f32.mrb[0].mxu0
      %v11633 = vpop.f32.mrb[0].mxu0
      %v11634 = vadd.f32 0.0, %v11633
      %v11635 = vpop.f32.mrb[0].mxu0
      %11636 = vmatprep.mubr.bf16.mxu0 0
      %11637 = vmatmul.mubr.bf16.gmra.mrb[0].mxu0 %v11347
      %v11638 = vpop.f32.mrb[0].mxu0
      %v11639 = vadd.f32 0.0, %v11638
      %v11640 = vpop.f32.mrb[0].mxu0
      %v11641 = vpop.f32.mrb[0].mxu0
      %v11642 = vadd.f32 0.0, %v11641
      %v11643 = vpop.f32.mrb[0].mxu0
      %11644 = vmatprep.mubr.bf16.mxu0 0
      %11645 = vmatmul.mubr.bf16.gmra.mrb[0].mxu0 %v11349
      %v11646 = vpop.f32.mrb[0].mxu0
      %v11647 = vadd.f32 0.0, %v11646
      %v11648 = vpop.f32.mrb[0].mxu0
      %v11649 = vpop.f32.mrb[0].mxu0
      %v11650 = vadd.f32 0.0, %v11649
      %v11651 = vpop.f32.mrb[0].mxu0
      %11652 = vmatprep.mubr.bf16.mxu0 0
      %11653 = vmatmul.mubr.bf16.gmra.mrb[0].mxu0 %v11351
      %v11654 = vpop.f32.mrb[0].mxu0
      %v11655 = vadd.f32 0.0, %v11654
      %v11656 = vpop.f32.mrb[0].mxu0
      %v11657 = vpop.f32.mrb[0].mxu0
      %v11658 = vadd.f32 0.0, %v11657
      %v11659 = vpop.f32.mrb[0].mxu0
      %11660 = vmatprep.mubr.bf16.mxu0 0
      %11661 = vmatmul.mubr.bf16.gmra.mrb[0].mxu0 %v11353
      %v11662 = vpop.f32.mrb[0].mxu0
      %v11663 = vadd.f32 0.0, %v11662
      %v11664 = vpop.f32.mrb[0].mxu0
      %v11665 = vpop.f32.mrb[0].mxu0
      %v11666 = vadd.f32 0.0, %v11665
      %v11667 = vpop.f32.mrb[0].mxu0
      %11668 = vmatprep.mubr.bf16.mxu0 0
      %11669 = vmatmul.mubr.bf16.gmra.mrb[0].mxu0 %v11355
      %v11670 = vpop.f32.mrb[0].mxu0
      %v11671 = vadd.f32 0.0, %v11670
      %v11672 = vpop.f32.mrb[0].mxu0
      %v11673 = vpop.f32.mrb[0].mxu0
      %v11674 = vadd.f32 0.0, %v11673
      %v11675 = vpop.f32.mrb[0].mxu0
      %11676 = vmatprep.mubr.bf16.mxu0 0
      %11677 = vmatmul.mubr.bf16.gmra.mrb[0].mxu0 %v11357
      %v11678 = vpop.f32.mrb[0].mxu0
      %v11679 = vadd.f32 0.0, %v11678
      %v11680 = vpop.f32.mrb[0].mxu0
      %v11681 = vpop.f32.mrb[0].mxu0
      %v11682 = vadd.f32 0.0, %v11681
      %v11683 = vpop.f32.mrb[0].mxu0
      %11684 = vmatprep.mubr.bf16.mxu0 0
      %11685 = vmatmul.mubr.bf16.gmra.mrb[0].mxu0 %v11359
      %v11686 = vpop.f32.mrb[0].mxu0
      %v11687 = vadd.f32 0.0, %v11686
      %v11688 = vpop.f32.mrb[0].mxu0
      %v11689 = vpop.f32.mrb[0].mxu0
      %v11690 = vadd.f32 0.0, %v11689
      %v11691 = vpop.f32.mrb[0].mxu0
      %11692 = vmatprep.mubr.bf16.mxu0 0
      %11693 = vmatmul.mubr.bf16.gmra.mrb[0].mxu0 %v11361
      %v11694 = vpop.f32.mrb[0].mxu0
      %v11695 = vadd.f32 0.0, %v11694
      %v11696 = vpop.f32.mrb[0].mxu0
      %v11697 = vpop.f32.mrb[0].mxu0
      %v11698 = vadd.f32 0.0, %v11697
      %v11699 = vpop.f32.mrb[0].mxu0
      %11700 = vmatprep.mubr.bf16.mxu0 0
      %11701 = vmatmul.mubr.bf16.gmra.mrb[0].mxu0 %v11363
      %v11702 = vpop.f32.mrb[0].mxu0
      %v11703 = vadd.f32 0.0, %v11702
      %v11704 = vpop.f32.mrb[0].mxu0
      %v11705 = vpop.f32.mrb[0].mxu0
      %v11706 = vadd.f32 0.0, %v11705
      %v11707 = vpop.f32.mrb[0].mxu0
      %11708 = vmatprep.mubr.bf16.mxu0 0
      %11709 = vmatmul.mubr.bf16.gmra.mrb[0].mxu0 %v11365
      %v11710 = vpop.f32.mrb[0].mxu0
      %v11711 = vadd.f32 0.0, %v11710
      %v11712 = vpop.f32.mrb[0].mxu0
      %v11713 = vpop.f32.mrb[0].mxu0
      %v11714 = vadd.f32 0.0, %v11713
      %v11715 = vpop.f32.mrb[0].mxu0
      %11716 = vmatprep.mubr.bf16.mxu0 0
      %11717 = vmatmul.mubr.bf16.gmra.mrb[0].mxu0 %v11367
      %v11718 = vpop.f32.mrb[0].mxu0
      %v11719 = vadd.f32 0.0, %v11718
      %v11720 = vpop.f32.mrb[0].mxu0
      %v11721 = vpop.f32.mrb[0].mxu0
      %v11722 = vadd.f32 0.0, %v11721
      %v11723 = vpop.f32.mrb[0].mxu0
      %11724 = vmatprep.mubr.bf16.mxu0 0
      %11725 = vmatmul.mubr.bf16.gmra.mrb[0].mxu0 %v11369
      %v11726 = vpop.f32.mrb[0].mxu0
      %v11727 = vadd.f32 0.0, %v11726
      %v11728 = vpop.f32.mrb[0].mxu0
      %v11729 = vpop.f32.mrb[0].mxu0
      %v11730 = vadd.f32 0.0, %v11729
      %v11731 = vpop.f32.mrb[0].mxu0
      %11732 = vmatprep.mubr.bf16.mxu0 0
      %11733 = vmatmul.mubr.bf16.gmra.mrb[0].mxu0 %v11371
      %v11734 = vpop.f32.mrb[0].mxu0
      %v11735 = vadd.f32 0.0, %v11734
      %v11736 = vpop.f32.mrb[0].mxu0
      %v11737 = vpop.f32.mrb[0].mxu0
      %v11738 = vadd.f32 0.0, %v11737
      %v11739 = vpop.f32.mrb[0].mxu0
      %11740 = vdwg.mxu0
      %v11773 = vunpack.c.l.b16 %v11224
      %v11774 = vunpack.c.l.b16 %v11225
      %v11775 = vunpack.c.l.b16 %v11226
      %v11776 = vunpack.c.l.b16 %v11227
      %v11777 = vunpack.c.l.b16 %v11228
      %v11778 = vunpack.c.l.b16 %v11229
      %v11779 = vunpack.c.l.b16 %v11230
      %v11780 = vunpack.c.l.b16 %v11231
      %v11781 = vunpack.c.l.b16 %v11232
      %v11782 = vunpack.c.l.b16 %v11233
      %v11783 = vunpack.c.l.b16 %v11234
      %v11784 = vunpack.c.l.b16 %v11235
      %v11785 = vunpack.c.l.b16 %v11236
      %v11786 = vunpack.c.l.b16 %v11237
      %v11787 = vunpack.c.l.b16 %v11238
      %v11788 = vunpack.c.l.b16 %v11239
      %v11789 = vunpack.c.l.b16 %v11240
      %v11790 = vunpack.c.l.b16 %v11241
      %v11791 = vunpack.c.l.b16 %v11242
      %v11792 = vunpack.c.l.b16 %v11243
      %v11793 = vunpack.c.l.b16 %v11244
      %v11794 = vunpack.c.l.b16 %v11245
      %v11795 = vunpack.c.l.b16 %v11246
      %v11796 = vunpack.c.l.b16 %v11247
      %v11797 = vunpack.c.l.b16 %v11248
      %v11798 = vunpack.c.l.b16 %v11249
      %v11799 = vunpack.c.l.b16 %v11250
      %v11800 = vunpack.c.l.b16 %v11251
      %v11801 = vunpack.c.l.b16 %v11252
      %v11802 = vunpack.c.l.b16 %v11253
      %v11803 = vunpack.c.l.b16 %v11254
      %v11804 = vunpack.c.l.b16 %v11255
      %v11805 = vpack.c.b16 %v11774, %v11773
      %v11806 = vpack.c.b16 %v11776, %v11775
      %v11807 = vpack.c.b16 %v11778, %v11777
      %v11808 = vpack.c.b16 %v11780, %v11779
      %v11809 = vpack.c.b16 %v11782, %v11781
      %v11810 = vpack.c.b16 %v11784, %v11783
      %v11811 = vpack.c.b16 %v11786, %v11785
      %v11812 = vpack.c.b16 %v11788, %v11787
      %v11813 = vpack.c.b16 %v11790, %v11789
      %v11814 = vpack.c.b16 %v11792, %v11791
      %v11815 = vpack.c.b16 %v11794, %v11793
      %v11816 = vpack.c.b16 %v11796, %v11795
      %v11817 = vpack.c.b16 %v11798, %v11797
      %v11818 = vpack.c.b16 %v11800, %v11799
      %v11819 = vpack.c.b16 %v11802, %v11801
      %v11820 = vpack.c.b16 %v11804, %v11803
      %11837 = vmatprep.subr.bf16.mxu0 0
      %11838 = vmatpush1.bf16.msra.mxu0 %v11805
      %11839 = vmatprep.subr.bf16.mxu0 0
      %11840 = vmatpush1.bf16.msra.mxu0 %v11806
      %11841 = vmatprep.subr.bf16.mxu0 0
      %11842 = vmatpush1.bf16.msra.mxu0 %v11807
      %11843 = vmatprep.subr.bf16.mxu0 0
      %11844 = vmatpush1.bf16.msra.mxu0 %v11808
      %11845 = vmatprep.subr.bf16.mxu0 0
      %11846 = vmatpush1.bf16.msra.mxu0 %v11809
      %11847 = vmatprep.subr.bf16.mxu0 0
      %11848 = vmatpush1.bf16.msra.mxu0 %v11810
      %11849 = vmatprep.subr.bf16.mxu0 0
      %11850 = vmatpush1.bf16.msra.mxu0 %v11811
      %11851 = vmatprep.subr.bf16.mxu0 0
      %11852 = vmatpush1.bf16.msra.mxu0 %v11812
      %11853 = vmatprep.subr.bf16.mxu0 0
      %11854 = vmatpush1.bf16.msra.mxu0 %v11813
      %11855 = vmatprep.subr.bf16.mxu0 0
      %11856 = vmatpush1.bf16.msra.mxu0 %v11814
      %11857 = vmatprep.subr.bf16.mxu0 0
      %11858 = vmatpush1.bf16.msra.mxu0 %v11815
      %11859 = vmatprep.subr.bf16.mxu0 0
      %11860 = vmatpush1.bf16.msra.mxu0 %v11816
      %11861 = vmatprep.subr.bf16.mxu0 0
      %11862 = vmatpush1.bf16.msra.mxu0 %v11817
      %11863 = vmatprep.subr.bf16.mxu0 0
      %11864 = vmatpush1.bf16.msra.mxu0 %v11818
      %11865 = vmatprep.subr.bf16.mxu0 0
      %11866 = vmatpush1.bf16.msra.mxu0 %v11819
      %11867 = vmatprep.subr.bf16.mxu0 0
      %11868 = vmatpush1.bf16.msra.mxu0 %v11820
      %11869 = vmatprep.mubr.bf16.mxu0 %v11160
      %11870 = vmatmul.mubr.bf16.gmra.mrb[0].mxu0 %v11159
      %v11871 = vpop.f32.mrb[0].mxu0
      %v11872 = vadd.f32 %v11487, %v11871
      %v11873 = vpop.f32.mrb[0].mxu0
      %v11874 = vpop.f32.mrb[0].mxu0
      %v11875 = vadd.f32 %v11490, %v11874
      %v11876 = vpop.f32.mrb[0].mxu0
      %11877 = vmatprep.mubr.bf16.mxu0 %v11162
      %11878 = vmatmul.mubr.bf16.gmra.mrb[0].mxu0 %v11161
      %v11879 = vpop.f32.mrb[0].mxu0
      %v11880 = vadd.f32 %v11495, %v11879
      %v11881 = vpop.f32.mrb[0].mxu0
      %v11882 = vpop.f32.mrb[0].mxu0
      %v11883 = vadd.f32 %v11498, %v11882
      %v11884 = vpop.f32.mrb[0].mxu0
      %11885 = vmatprep.mubr.bf16.mxu0 %v11164
      %11886 = vmatmul.mubr.bf16.gmra.mrb[0].mxu0 %v11163
      %v11887 = vpop.f32.mrb[0].mxu0
      %v11888 = vadd.f32 %v11503, %v11887
      %v11889 = vpop.f32.mrb[0].mxu0
      %v11890 = vpop.f32.mrb[0].mxu0
      %v11891 = vadd.f32 %v11506, %v11890
      %v11892 = vpop.f32.mrb[0].mxu0
      %11893 = vmatprep.mubr.bf16.mxu0 %v11166
      %11894 = vmatmul.mubr.bf16.gmra.mrb[0].mxu0 %v11165
      %v11895 = vpop.f32.mrb[0].mxu0
      %v11896 = vadd.f32 %v11511, %v11895
      %v11897 = vpop.f32.mrb[0].mxu0
      %v11898 = vpop.f32.mrb[0].mxu0
      %v11899 = vadd.f32 %v11514, %v11898
      %v11900 = vpop.f32.mrb[0].mxu0
      %11901 = vmatprep.mubr.bf16.mxu0 %v11168
      %11902 = vmatmul.mubr.bf16.gmra.mrb[0].mxu0 %v11167
      %v11903 = vpop.f32.mrb[0].mxu0
      %v11904 = vadd.f32 %v11519, %v11903
      %v11905 = vpop.f32.mrb[0].mxu0
      %v11906 = vpop.f32.mrb[0].mxu0
      %v11907 = vadd.f32 %v11522, %v11906
      %v11908 = vpop.f32.mrb[0].mxu0
      %11909 = vmatprep.mubr.bf16.mxu0 %v11170
      %11910 = vmatmul.mubr.bf16.gmra.mrb[0].mxu0 %v11169
      %v11911 = vpop.f32.mrb[0].mxu0
      %v11912 = vadd.f32 %v11527, %v11911
      %v11913 = vpop.f32.mrb[0].mxu0
      %v11914 = vpop.f32.mrb[0].mxu0
      %v11915 = vadd.f32 %v11530, %v11914
      %v11916 = vpop.f32.mrb[0].mxu0
      %11917 = vmatprep.mubr.bf16.mxu0 %v11172
      %11918 = vmatmul.mubr.bf16.gmra.mrb[0].mxu0 %v11171
      %v11919 = vpop.f32.mrb[0].mxu0
      %v11920 = vadd.f32 %v11535, %v11919
      %v11921 = vpop.f32.mrb[0].mxu0
      %v11922 = vpop.f32.mrb[0].mxu0
      %v11923 = vadd.f32 %v11538, %v11922
      %v11924 = vpop.f32.mrb[0].mxu0
      %11925 = vmatprep.mubr.bf16.mxu0 %v11174
      %11926 = vmatmul.mubr.bf16.gmra.mrb[0].mxu0 %v11173
      %v11927 = vpop.f32.mrb[0].mxu0
      %v11928 = vadd.f32 %v11543, %v11927
      %v11929 = vpop.f32.mrb[0].mxu0
      %v11930 = vpop.f32.mrb[0].mxu0
      %v11931 = vadd.f32 %v11546, %v11930
      %v11932 = vpop.f32.mrb[0].mxu0
      %11933 = vmatprep.mubr.bf16.mxu0 %v11176
      %11934 = vmatmul.mubr.bf16.gmra.mrb[0].mxu0 %v11175
      %v11935 = vpop.f32.mrb[0].mxu0
      %v11936 = vadd.f32 %v11551, %v11935
      %v11937 = vpop.f32.mrb[0].mxu0
      %v11938 = vpop.f32.mrb[0].mxu0
      %v11939 = vadd.f32 %v11554, %v11938
      %v11940 = vpop.f32.mrb[0].mxu0
      %11941 = vmatprep.mubr.bf16.mxu0 %v11178
      %11942 = vmatmul.mubr.bf16.gmra.mrb[0].mxu0 %v11177
      %v11943 = vpop.f32.mrb[0].mxu0
      %v11944 = vadd.f32 %v11559, %v11943
      %v11945 = vpop.f32.mrb[0].mxu0
      %v11946 = vpop.f32.mrb[0].mxu0
      %v11947 = vadd.f32 %v11562, %v11946
      %v11948 = vpop.f32.mrb[0].mxu0
      %11949 = vmatprep.mubr.bf16.mxu0 %v11180
      %11950 = vmatmul.mubr.bf16.gmra.mrb[0].mxu0 %v11179
      %v11951 = vpop.f32.mrb[0].mxu0
      %v11952 = vadd.f32 %v11567, %v11951
      %v11953 = vpop.f32.mrb[0].mxu0
      %v11954 = vpop.f32.mrb[0].mxu0
      %v11955 = vadd.f32 %v11570, %v11954
      %v11956 = vpop.f32.mrb[0].mxu0
      %11957 = vmatprep.mubr.bf16.mxu0 %v11182
      %11958 = vmatmul.mubr.bf16.gmra.mrb[0].mxu0 %v11181
      %v11959 = vpop.f32.mrb[0].mxu0
      %v11960 = vadd.f32 %v11575, %v11959
      %v11961 = vpop.f32.mrb[0].mxu0
      %v11962 = vpop.f32.mrb[0].mxu0
      %v11963 = vadd.f32 %v11578, %v11962
      %v11964 = vpop.f32.mrb[0].mxu0
      %11965 = vmatprep.mubr.bf16.mxu0 %v11184
      %11966 = vmatmul.mubr.bf16.gmra.mrb[0].mxu0 %v11183
      %v11967 = vpop.f32.mrb[0].mxu0
      %v11968 = vadd.f32 %v11583, %v11967
      %v11969 = vpop.f32.mrb[0].mxu0
      %v11970 = vpop.f32.mrb[0].mxu0
      %v11971 = vadd.f32 %v11586, %v11970
      %v11972 = vpop.f32.mrb[0].mxu0
      %11973 = vmatprep.mubr.bf16.mxu0 %v11186
      %11974 = vmatmul.mubr.bf16.gmra.mrb[0].mxu0 %v11185
      %v11975 = vpop.f32.mrb[0].mxu0
      %v11976 = vadd.f32 %v11591, %v11975
      %v11977 = vpop.f32.mrb[0].mxu0
      %v11978 = vpop.f32.mrb[0].mxu0
      %v11979 = vadd.f32 %v11594, %v11978
      %v11980 = vpop.f32.mrb[0].mxu0
      %11981 = vmatprep.mubr.bf16.mxu0 %v11188
      %11982 = vmatmul.mubr.bf16.gmra.mrb[0].mxu0 %v11187
      %v11983 = vpop.f32.mrb[0].mxu0
      %v11984 = vadd.f32 %v11599, %v11983
      %v11985 = vpop.f32.mrb[0].mxu0
      %v11986 = vpop.f32.mrb[0].mxu0
      %v11987 = vadd.f32 %v11602, %v11986
      %v11988 = vpop.f32.mrb[0].mxu0
      %11989 = vmatprep.mubr.bf16.mxu0 %v11190
      %11990 = vmatmul.mubr.bf16.gmra.mrb[0].mxu0 %v11189
      %v11991 = vpop.f32.mrb[0].mxu0
      %v11992 = vadd.f32 %v11607, %v11991
      %v11993 = vpop.f32.mrb[0].mxu0
      %v11994 = vpop.f32.mrb[0].mxu0
      %v11995 = vadd.f32 %v11610, %v11994
      %v11996 = vpop.f32.mrb[0].mxu0
      %11997 = vmatprep.mubr.bf16.mxu0 %v11192
      %11998 = vmatmul.mubr.bf16.gmra.mrb[0].mxu0 %v11191
      %v11999 = vpop.f32.mrb[0].mxu0
      %v12000 = vadd.f32 %v11615, %v11999
      %v12001 = vpop.f32.mrb[0].mxu0
      %v12002 = vpop.f32.mrb[0].mxu0
      %v12003 = vadd.f32 %v11618, %v12002
      %v12004 = vpop.f32.mrb[0].mxu0
      %12005 = vmatprep.mubr.bf16.mxu0 %v11194
      %12006 = vmatmul.mubr.bf16.gmra.mrb[0].mxu0 %v11193
      %v12007 = vpop.f32.mrb[0].mxu0
      %v12008 = vadd.f32 %v11623, %v12007
      %v12009 = vpop.f32.mrb[0].mxu0
      %v12010 = vpop.f32.mrb[0].mxu0
      %v12011 = vadd.f32 %v11626, %v12010
      %v12012 = vpop.f32.mrb[0].mxu0
      %12013 = vmatprep.mubr.bf16.mxu0 %v11196
      %12014 = vmatmul.mubr.bf16.gmra.mrb[0].mxu0 %v11195
      %v12015 = vpop.f32.mrb[0].mxu0
      %v12016 = vadd.f32 %v11631, %v12015
      %v12017 = vpop.f32.mrb[0].mxu0
      %v12018 = vpop.f32.mrb[0].mxu0
      %v12019 = vadd.f32 %v11634, %v12018
      %v12020 = vpop.f32.mrb[0].mxu0
      %12021 = vmatprep.mubr.bf16.mxu0 %v11198
      %12022 = vmatmul.mubr.bf16.gmra.mrb[0].mxu0 %v11197
      %v12023 = vpop.f32.mrb[0].mxu0
      %v12024 = vadd.f32 %v11639, %v12023
      %v12025 = vpop.f32.mrb[0].mxu0
      %v12026 = vpop.f32.mrb[0].mxu0
      %v12027 = vadd.f32 %v11642, %v12026
      %v12028 = vpop.f32.mrb[0].mxu0
      %12029 = vmatprep.mubr.bf16.mxu0 %v11200
      %12030 = vmatmul.mubr.bf16.gmra.mrb[0].mxu0 %v11199
      %v12031 = vpop.f32.mrb[0].mxu0
      %v12032 = vadd.f32 %v11647, %v12031
      %v12033 = vpop.f32.mrb[0].mxu0
      %v12034 = vpop.f32.mrb[0].mxu0
      %v12035 = vadd.f32 %v11650, %v12034
      %v12036 = vpop.f32.mrb[0].mxu0
      %12037 = vmatprep.mubr.bf16.mxu0 %v11202
      %12038 = vmatmul.mubr.bf16.gmra.mrb[0].mxu0 %v11201
      %v12039 = vpop.f32.mrb[0].mxu0
      %v12040 = vadd.f32 %v11655, %v12039
      %v12041 = vpop.f32.mrb[0].mxu0
      %v12042 = vpop.f32.mrb[0].mxu0
      %v12043 = vadd.f32 %v11658, %v12042
      %v12044 = vpop.f32.mrb[0].mxu0
      %12045 = vmatprep.mubr.bf16.mxu0 %v11204
      %12046 = vmatmul.mubr.bf16.gmra.mrb[0].mxu0 %v11203
      %v12047 = vpop.f32.mrb[0].mxu0
      %v12048 = vadd.f32 %v11663, %v12047
      %v12049 = vpop.f32.mrb[0].mxu0
      %v12050 = vpop.f32.mrb[0].mxu0
      %v12051 = vadd.f32 %v11666, %v12050
      %v12052 = vpop.f32.mrb[0].mxu0
      %12053 = vmatprep.mubr.bf16.mxu0 %v11206
      %12054 = vmatmul.mubr.bf16.gmra.mrb[0].mxu0 %v11205
      %v12055 = vpop.f32.mrb[0].mxu0
      %v12056 = vadd.f32 %v11671, %v12055
      %v12057 = vpop.f32.mrb[0].mxu0
      %v12058 = vpop.f32.mrb[0].mxu0
      %v12059 = vadd.f32 %v11674, %v12058
      %v12060 = vpop.f32.mrb[0].mxu0
      %12061 = vmatprep.mubr.bf16.mxu0 %v11208
      %12062 = vmatmul.mubr.bf16.gmra.mrb[0].mxu0 %v11207
      %v12063 = vpop.f32.mrb[0].mxu0
      %v12064 = vadd.f32 %v11679, %v12063
      %v12065 = vpop.f32.mrb[0].mxu0
      %v12066 = vpop.f32.mrb[0].mxu0
      %v12067 = vadd.f32 %v11682, %v12066
      %v12068 = vpop.f32.mrb[0].mxu0
      %12069 = vmatprep.mubr.bf16.mxu0 %v11210
      %12070 = vmatmul.mubr.bf16.gmra.mrb[0].mxu0 %v11209
      %v12071 = vpop.f32.mrb[0].mxu0
      %v12072 = vadd.f32 %v11687, %v12071
      %v12073 = vpop.f32.mrb[0].mxu0
      %v12074 = vpop.f32.mrb[0].mxu0
      %v12075 = vadd.f32 %v11690, %v12074
      %v12076 = vpop.f32.mrb[0].mxu0
      %12077 = vmatprep.mubr.bf16.mxu0 %v11212
      %12078 = vmatmul.mubr.bf16.gmra.mrb[0].mxu0 %v11211
      %v12079 = vpop.f32.mrb[0].mxu0
      %v12080 = vadd.f32 %v11695, %v12079
      %v12081 = vpop.f32.mrb[0].mxu0
      %v12082 = vpop.f32.mrb[0].mxu0
      %v12083 = vadd.f32 %v11698, %v12082
      %v12084 = vpop.f32.mrb[0].mxu0
      %12085 = vmatprep.mubr.bf16.mxu0 %v11214
      %12086 = vmatmul.mubr.bf16.gmra.mrb[0].mxu0 %v11213
      %v12087 = vpop.f32.mrb[0].mxu0
      %v12088 = vadd.f32 %v11703, %v12087
      %v12089 = vpop.f32.mrb[0].mxu0
      %v12090 = vpop.f32.mrb[0].mxu0
      %v12091 = vadd.f32 %v11706, %v12090
      %v12092 = vpop.f32.mrb[0].mxu0
      %12093 = vmatprep.mubr.bf16.mxu0 %v11216
      %12094 = vmatmul.mubr.bf16.gmra.mrb[0].mxu0 %v11215
      %v12095 = vpop.f32.mrb[0].mxu0
      %v12096 = vadd.f32 %v11711, %v12095
      %v12097 = vpop.f32.mrb[0].mxu0
      %v12098 = vpop.f32.mrb[0].mxu0
      %v12099 = vadd.f32 %v11714, %v12098
      %v12100 = vpop.f32.mrb[0].mxu0
      %12101 = vmatprep.mubr.bf16.mxu0 %v11218
      %12102 = vmatmul.mubr.bf16.gmra.mrb[0].mxu0 %v11217
      %v12103 = vpop.f32.mrb[0].mxu0
      %v12104 = vadd.f32 %v11719, %v12103
      %v12105 = vpop.f32.mrb[0].mxu0
      %v12106 = vpop.f32.mrb[0].mxu0
      %v12107 = vadd.f32 %v11722, %v12106
      %v12108 = vpop.f32.mrb[0].mxu0
      %12109 = vmatprep.mubr.bf16.mxu0 %v11220
      %12110 = vmatmul.mubr.bf16.gmra.mrb[0].mxu0 %v11219
      %v12111 = vpop.f32.mrb[0].mxu0
      %v12112 = vadd.f32 %v11727, %v12111
      %v12113 = vpop.f32.mrb[0].mxu0
      %v12114 = vpop.f32.mrb[0].mxu0
      %v12115 = vadd.f32 %v11730, %v12114
      %v12116 = vpop.f32.mrb[0].mxu0
      %12117 = vmatprep.mubr.bf16.mxu0 %v11222
      %12118 = vmatmul.mubr.bf16.gmra.mrb[0].mxu0 %v11221
      %v12119 = vpop.f32.mrb[0].mxu0
      %v12120 = vadd.f32 %v11735, %v12119
      %v12121 = vpop.f32.mrb[0].mxu0
      %v12122 = vpop.f32.mrb[0].mxu0
      %v12123 = vadd.f32 %v11738, %v12122
      %v12124 = vpop.f32.mrb[0].mxu0
      %12125 = vdwg.mxu0
      %v12126 = vadd.f32 %v11095, %v11872
      %v12127 = vadd.f32 %v11096, %v11875
      %v12128 = vadd.f32 %v11097, %v11880
      %v12129 = vadd.f32 %v11098, %v11883
      %v12130 = vadd.f32 %v11099, %v11888
      %v12131 = vadd.f32 %v11100, %v11891
      %v12132 = vadd.f32 %v11101, %v11896
      %v12133 = vadd.f32 %v11102, %v11899
      %v12134 = vadd.f32 %v11103, %v11904
      %v12135 = vadd.f32 %v11104, %v11907
      %v12136 = vadd.f32 %v11105, %v11912
      %v12137 = vadd.f32 %v11106, %v11915
      %v12138 = vadd.f32 %v11107, %v11920
      %v12139 = vadd.f32 %v11108, %v11923
      %v12140 = vadd.f32 %v11109, %v11928
      %v12141 = vadd.f32 %v11110, %v11931
      %v12142 = vadd.f32 %v11111, %v11936
      %v12143 = vadd.f32 %v11112, %v11939
      %v12144 = vadd.f32 %v11113, %v11944
      %v12145 = vadd.f32 %v11114, %v11947
      %v12146 = vadd.f32 %v11115, %v11952
      %v12147 = vadd.f32 %v11116, %v11955
      %v12148 = vadd.f32 %v11117, %v11960
      %v12149 = vadd.f32 %v11118, %v11963
      %v12150 = vadd.f32 %v11119, %v11968
      %v12151 = vadd.f32 %v11120, %v11971
      %v12152 = vadd.f32 %v11121, %v11976
      %v12153 = vadd.f32 %v11122, %v11979
      %v12154 = vadd.f32 %v11123, %v11984
      %v12155 = vadd.f32 %v11124, %v11987
      %v12156 = vadd.f32 %v11125, %v11992
      %v12157 = vadd.f32 %v11126, %v11995
      %v12158 = vadd.f32 %v11127, %v12000
      %v12159 = vadd.f32 %v11128, %v12003
      %v12160 = vadd.f32 %v11129, %v12008
      %v12161 = vadd.f32 %v11130, %v12011
      %v12162 = vadd.f32 %v11131, %v12016
      %v12163 = vadd.f32 %v11132, %v12019
      %v12164 = vadd.f32 %v11133, %v12024
      %v12165 = vadd.f32 %v11134, %v12027
      %v12166 = vadd.f32 %v11135, %v12032
      %v12167 = vadd.f32 %v11136, %v12035
      %v12168 = vadd.f32 %v11137, %v12040
      %v12169 = vadd.f32 %v11138, %v12043
      %v12170 = vadd.f32 %v11139, %v12048
      %v12171 = vadd.f32 %v11140, %v12051
      %v12172 = vadd.f32 %v11141, %v12056
      %v12173 = vadd.f32 %v11142, %v12059
      %v12174 = vadd.f32 %v11143, %v12064
      %v12175 = vadd.f32 %v11144, %v12067
      %v12176 = vadd.f32 %v11145, %v12072
      %v12177 = vadd.f32 %v11146, %v12075
      %v12178 = vadd.f32 %v11147, %v12080
      %v12179 = vadd.f32 %v11148, %v12083
      %v12180 = vadd.f32 %v11149, %v12088
      %v12181 = vadd.f32 %v11150, %v12091
      %v12182 = vadd.f32 %v11151, %v12096
      %v12183 = vadd.f32 %v11152, %v12099
      %v12184 = vadd.f32 %v11153, %v12104
      %v12185 = vadd.f32 %v11154, %v12107
      %v12186 = vadd.f32 %v11155, %v12112
      %v12187 = vadd.f32 %v11156, %v12115
      %v12188 = vadd.f32 %v11157, %v12120
      %v12189 = vadd.f32 %v11158, %v12123
      %v12190 = vmul.f32 %v12126, %v7821
      %v12191 = vmul.f32 %v12127, %v7826
      %v12192 = vmul.f32 %v12128, %v7831
      %v12193 = vmul.f32 %v12129, %v7836
      %v12194 = vmul.f32 %v12130, %v7841
      %v12195 = vmul.f32 %v12131, %v7846
      %v12196 = vmul.f32 %v12132, %v7851
      %v12197 = vmul.f32 %v12133, %v7856
      %v12198 = vmul.f32 %v12134, %v7861
      %v12199 = vmul.f32 %v12135, %v7866
      %v12200 = vmul.f32 %v12136, %v7871
      %v12201 = vmul.f32 %v12137, %v7876
      %v12202 = vmul.f32 %v12138, %v7881
      %v12203 = vmul.f32 %v12139, %v7886
      %v12204 = vmul.f32 %v12140, %v7891
      %v12205 = vmul.f32 %v12141, %v7896
      %v12206 = vmul.f32 %v12142, %v7901
      %v12207 = vmul.f32 %v12143, %v7906
      %v12208 = vmul.f32 %v12144, %v7911
      %v12209 = vmul.f32 %v12145, %v7916
      %v12210 = vmul.f32 %v12146, %v7921
      %v12211 = vmul.f32 %v12147, %v7926
      %v12212 = vmul.f32 %v12148, %v7931
      %v12213 = vmul.f32 %v12149, %v7936
      %v12214 = vmul.f32 %v12150, %v7941
      %v12215 = vmul.f32 %v12151, %v7946
      %v12216 = vmul.f32 %v12152, %v7951
      %v12217 = vmul.f32 %v12153, %v7956
      %v12218 = vmul.f32 %v12154, %v7961
      %v12219 = vmul.f32 %v12155, %v7966
      %v12220 = vmul.f32 %v12156, %v7971
      %v12221 = vmul.f32 %v12157, %v7976
      %v12222 = vmul.f32 %v12158, %v7981
      %v12223 = vmul.f32 %v12159, %v7986
      %v12224 = vmul.f32 %v12160, %v7991
      %v12225 = vmul.f32 %v12161, %v7996
      %v12226 = vmul.f32 %v12162, %v8001
      %v12227 = vmul.f32 %v12163, %v8006
      %v12228 = vmul.f32 %v12164, %v8011
      %v12229 = vmul.f32 %v12165, %v8016
      %v12230 = vmul.f32 %v12166, %v8021
      %v12231 = vmul.f32 %v12167, %v8026
      %v12232 = vmul.f32 %v12168, %v8031
      %v12233 = vmul.f32 %v12169, %v8036
      %v12234 = vmul.f32 %v12170, %v8041
      %v12235 = vmul.f32 %v12171, %v8046
      %v12236 = vmul.f32 %v12172, %v8051
      %v12237 = vmul.f32 %v12173, %v8056
      %v12238 = vmul.f32 %v12174, %v8061
      %v12239 = vmul.f32 %v12175, %v8066
      %v12240 = vmul.f32 %v12176, %v8071
      %v12241 = vmul.f32 %v12177, %v8076
      %v12242 = vmul.f32 %v12178, %v8081
      %v12243 = vmul.f32 %v12179, %v8086
      %v12244 = vmul.f32 %v12180, %v8091
      %v12245 = vmul.f32 %v12181, %v8096
      %v12246 = vmul.f32 %v12182, %v8101
      %v12247 = vmul.f32 %v12183, %v8106
      %v12248 = vmul.f32 %v12184, %v8111
      %v12249 = vmul.f32 %v12185, %v8116
      %v12250 = vmul.f32 %v12186, %v8121
      %v12251 = vmul.f32 %v12187, %v8126
      %v12252 = vmul.f32 %v12188, %v8131
      %v12253 = vmul.f32 %v12189, %v8136
      %v12254 = vadd.f32 %v12190, %v12191
      %v12255 = vadd.f32 %v12254, %v12192
      %v12256 = vadd.f32 %v12255, %v12193
      %v12257 = vadd.f32 %v12256, %v12194
      %v12258 = vadd.f32 %v12257, %v12195
      %v12259 = vadd.f32 %v12258, %v12196
      %v12260 = vadd.f32 %v12259, %v12197
      %v12261 = vadd.f32 %v12260, %v12198
      %v12262 = vadd.f32 %v12261, %v12199
      %v12263 = vadd.f32 %v12262, %v12200
      %v12264 = vadd.f32 %v12263, %v12201
      %v12265 = vadd.f32 %v12264, %v12202
      %v12266 = vadd.f32 %v12265, %v12203
      %v12267 = vadd.f32 %v12266, %v12204
      %v12268 = vadd.f32 %v12267, %v12205
      %v12269 = vadd.f32 %v12268, %v12206
      %v12270 = vadd.f32 %v12269, %v12207
      %v12271 = vadd.f32 %v12270, %v12208
      %v12272 = vadd.f32 %v12271, %v12209
      %v12273 = vadd.f32 %v12272, %v12210
      %v12274 = vadd.f32 %v12273, %v12211
      %v12275 = vadd.f32 %v12274, %v12212
      %v12276 = vadd.f32 %v12275, %v12213
      %v12277 = vadd.f32 %v12276, %v12214
      %v12278 = vadd.f32 %v12277, %v12215
      %v12279 = vadd.f32 %v12278, %v12216
      %v12280 = vadd.f32 %v12279, %v12217
      %v12281 = vadd.f32 %v12280, %v12218
      %v12282 = vadd.f32 %v12281, %v12219
      %v12283 = vadd.f32 %v12282, %v12220
      %v12284 = vadd.f32 %v12283, %v12221
      %v12285 = vadd.f32 %v12284, %v12222
      %v12286 = vadd.f32 %v12285, %v12223
      %v12287 = vadd.f32 %v12286, %v12224
      %v12288 = vadd.f32 %v12287, %v12225
      %v12289 = vadd.f32 %v12288, %v12226
      %v12290 = vadd.f32 %v12289, %v12227
      %v12291 = vadd.f32 %v12290, %v12228
      %v12292 = vadd.f32 %v12291, %v12229
      %v12293 = vadd.f32 %v12292, %v12230
      %v12294 = vadd.f32 %v12293, %v12231
      %v12295 = vadd.f32 %v12294, %v12232
      %v12296 = vadd.f32 %v12295, %v12233
      %v12297 = vadd.f32 %v12296, %v12234
      %v12298 = vadd.f32 %v12297, %v12235
      %v12299 = vadd.f32 %v12298, %v12236
      %v12300 = vadd.f32 %v12299, %v12237
      %v12301 = vadd.f32 %v12300, %v12238
      %v12302 = vadd.f32 %v12301, %v12239
      %v12303 = vadd.f32 %v12302, %v12240
      %v12304 = vadd.f32 %v12303, %v12241
      %v12305 = vadd.f32 %v12304, %v12242
      %v12306 = vadd.f32 %v12305, %v12243
      %v12307 = vadd.f32 %v12306, %v12244
      %v12308 = vadd.f32 %v12307, %v12245
      %v12309 = vadd.f32 %v12308, %v12246
      %v12310 = vadd.f32 %v12309, %v12247
      %v12311 = vadd.f32 %v12310, %v12248
      %v12312 = vadd.f32 %v12311, %v12249
      %v12313 = vadd.f32 %v12312, %v12250
      %v12314 = vadd.f32 %v12313, %v12251
      %v12315 = vadd.f32 %v12314, %v12252
      %v12316 = vadd.f32 %v12315, %v12253
      %v12317 = vrot.slane %v12316, 4
      %v12318 = vadd.f32 %v12316, %v12317
      %v12319 = vrot.slane %v12318, 2
      %v12320 = vadd.f32 %v12318, %v12319
      %v12321 = vrot.slane %v12320, 1
      %v12322 = vadd.f32 %v12320, %v12321
      %v12323 = vmul.f32 %v12322, 0.00390625
      %v12324 = vmul.f32 %v12190, %v12126
      %v12325 = vmul.f32 %v12191, %v12127
      %v12326 = vmul.f32 %v12192, %v12128
      %v12327 = vmul.f32 %v12193, %v12129
      %v12328 = vmul.f32 %v12194, %v12130
      %v12329 = vmul.f32 %v12195, %v12131
      %v12330 = vmul.f32 %v12196, %v12132
      %v12331 = vmul.f32 %v12197, %v12133
      %v12332 = vmul.f32 %v12198, %v12134
      %v12333 = vmul.f32 %v12199, %v12135
      %v12334 = vmul.f32 %v12200, %v12136
      %v12335 = vmul.f32 %v12201, %v12137
      %v12336 = vmul.f32 %v12202, %v12138
      %v12337 = vmul.f32 %v12203, %v12139
      %v12338 = vmul.f32 %v12204, %v12140
      %v12339 = vmul.f32 %v12205, %v12141
      %v12340 = vmul.f32 %v12206, %v12142
      %v12341 = vmul.f32 %v12207, %v12143
      %v12342 = vmul.f32 %v12208, %v12144
      %v12343 = vmul.f32 %v12209, %v12145
      %v12344 = vmul.f32 %v12210, %v12146
      %v12345 = vmul.f32 %v12211, %v12147
      %v12346 = vmul.f32 %v12212, %v12148
      %v12347 = vmul.f32 %v12213, %v12149
      %v12348 = vmul.f32 %v12214, %v12150
      %v12349 = vmul.f32 %v12215, %v12151
      %v12350 = vmul.f32 %v12216, %v12152
      %v12351 = vmul.f32 %v12217, %v12153
      %v12352 = vmul.f32 %v12218, %v12154
      %v12353 = vmul.f32 %v12219, %v12155
      %v12354 = vmul.f32 %v12220, %v12156
      %v12355 = vmul.f32 %v12221, %v12157
      %v12356 = vmul.f32 %v12222, %v12158
      %v12357 = vmul.f32 %v12223, %v12159
      %v12358 = vmul.f32 %v12224, %v12160
      %v12359 = vmul.f32 %v12225, %v12161
      %v12360 = vmul.f32 %v12226, %v12162
      %v12361 = vmul.f32 %v12227, %v12163
      %v12362 = vmul.f32 %v12228, %v12164
      %v12363 = vmul.f32 %v12229, %v12165
      %v12364 = vmul.f32 %v12230, %v12166
      %v12365 = vmul.f32 %v12231, %v12167
      %v12366 = vmul.f32 %v12232, %v12168
      %v12367 = vmul.f32 %v12233, %v12169
      %v12368 = vmul.f32 %v12234, %v12170
      %v12369 = vmul.f32 %v12235, %v12171
      %v12370 = vmul.f32 %v12236, %v12172
      %v12371 = vmul.f32 %v12237, %v12173
      %v12372 = vmul.f32 %v12238, %v12174
      %v12373 = vmul.f32 %v12239, %v12175
      %v12374 = vmul.f32 %v12240, %v12176
      %v12375 = vmul.f32 %v12241, %v12177
      %v12376 = vmul.f32 %v12242, %v12178
      %v12377 = vmul.f32 %v12243, %v12179
      %v12378 = vmul.f32 %v12244, %v12180
      %v12379 = vmul.f32 %v12245, %v12181
      %v12380 = vmul.f32 %v12246, %v12182
      %v12381 = vmul.f32 %v12247, %v12183
      %v12382 = vmul.f32 %v12248, %v12184
      %v12383 = vmul.f32 %v12249, %v12185
      %v12384 = vmul.f32 %v12250, %v12186
      %v12385 = vmul.f32 %v12251, %v12187
      %v12386 = vmul.f32 %v12252, %v12188
      %v12387 = vmul.f32 %v12253, %v12189
      %v12388 = vadd.f32 %v12324, %v12325
      %v12389 = vadd.f32 %v12388, %v12326
      %v12390 = vadd.f32 %v12389, %v12327
      %v12391 = vadd.f32 %v12390, %v12328
      %v12392 = vadd.f32 %v12391, %v12329
      %v12393 = vadd.f32 %v12392, %v12330
      %v12394 = vadd.f32 %v12393, %v12331
      %v12395 = vadd.f32 %v12394, %v12332
      %v12396 = vadd.f32 %v12395, %v12333
      %v12397 = vadd.f32 %v12396, %v12334
      %v12398 = vadd.f32 %v12397, %v12335
      %v12399 = vadd.f32 %v12398, %v12336
      %v12400 = vadd.f32 %v12399, %v12337
      %v12401 = vadd.f32 %v12400, %v12338
      %v12402 = vadd.f32 %v12401, %v12339
      %v12403 = vadd.f32 %v12402, %v12340
      %v12404 = vadd.f32 %v12403, %v12341
      %v12405 = vadd.f32 %v12404, %v12342
      %v12406 = vadd.f32 %v12405, %v12343
      %v12407 = vadd.f32 %v12406, %v12344
      %v12408 = vadd.f32 %v12407, %v12345
      %v12409 = vadd.f32 %v12408, %v12346
      %v12410 = vadd.f32 %v12409, %v12347
      %v12411 = vadd.f32 %v12410, %v12348
      %v12412 = vadd.f32 %v12411, %v12349
      %v12413 = vadd.f32 %v12412, %v12350
      %v12414 = vadd.f32 %v12413, %v12351
      %v12415 = vadd.f32 %v12414, %v12352
      %v12416 = vadd.f32 %v12415, %v12353
      %v12417 = vadd.f32 %v12416, %v12354
      %v12418 = vadd.f32 %v12417, %v12355
      %v12419 = vadd.f32 %v12418, %v12356
      %v12420 = vadd.f32 %v12419, %v12357
      %v12421 = vadd.f32 %v12420, %v12358
      %v12422 = vadd.f32 %v12421, %v12359
      %v12423 = vadd.f32 %v12422, %v12360
      %v12424 = vadd.f32 %v12423, %v12361
      %v12425 = vadd.f32 %v12424, %v12362
      %v12426 = vadd.f32 %v12425, %v12363
      %v12427 = vadd.f32 %v12426, %v12364
      %v12428 = vadd.f32 %v12427, %v12365
      %v12429 = vadd.f32 %v12428, %v12366
      %v12430 = vadd.f32 %v12429, %v12367
      %v12431 = vadd.f32 %v12430, %v12368
      %v12432 = vadd.f32 %v12431, %v12369
      %v12433 = vadd.f32 %v12432, %v12370
      %v12434 = vadd.f32 %v12433, %v12371
      %v12435 = vadd.f32 %v12434, %v12372
      %v12436 = vadd.f32 %v12435, %v12373
      %v12437 = vadd.f32 %v12436, %v12374
      %v12438 = vadd.f32 %v12437, %v12375
      %v12439 = vadd.f32 %v12438, %v12376
      %v12440 = vadd.f32 %v12439, %v12377
      %v12441 = vadd.f32 %v12440, %v12378
      %v12442 = vadd.f32 %v12441, %v12379
      %v12443 = vadd.f32 %v12442, %v12380
      %v12444 = vadd.f32 %v12443, %v12381
      %v12445 = vadd.f32 %v12444, %v12382
      %v12446 = vadd.f32 %v12445, %v12383
      %v12447 = vadd.f32 %v12446, %v12384
      %v12448 = vadd.f32 %v12447, %v12385
      %v12449 = vadd.f32 %v12448, %v12386
      %v12450 = vadd.f32 %v12449, %v12387
      %v12451 = vrot.slane %v12450, 4
      %v12452 = vadd.f32 %v12450, %v12451
      %v12453 = vrot.slane %v12452, 2
      %v12454 = vadd.f32 %v12452, %v12453
      %v12455 = vrot.slane %v12454, 1
      %v12456 = vadd.f32 %v12454, %v12455
      %v12457 = vmul.f32 %v12456, 0.00390625
      %v12458 = vmul.f32 %v12323, %v12323
      %v12459 = vsub.f32 %v12457, %v12458
      %v12460 = vmax.f32 %v12459, 0.0
      %v12461 = vsub.f32 %v12126, %v12323
      %v12462 = vsub.f32 %v12127, %v12323
      %v12463 = vsub.f32 %v12128, %v12323
      %v12464 = vsub.f32 %v12129, %v12323
      %v12465 = vsub.f32 %v12130, %v12323
      %v12466 = vsub.f32 %v12131, %v12323
      %v12467 = vsub.f32 %v12132, %v12323
      %v12468 = vsub.f32 %v12133, %v12323
      %v12469 = vsub.f32 %v12134, %v12323
      %v12470 = vsub.f32 %v12135, %v12323
      %v12471 = vsub.f32 %v12136, %v12323
      %v12472 = vsub.f32 %v12137, %v12323
      %v12473 = vsub.f32 %v12138, %v12323
      %v12474 = vsub.f32 %v12139, %v12323
      %v12475 = vsub.f32 %v12140, %v12323
      %v12476 = vsub.f32 %v12141, %v12323
      %v12477 = vsub.f32 %v12142, %v12323
      %v12478 = vsub.f32 %v12143, %v12323
      %v12479 = vsub.f32 %v12144, %v12323
      %v12480 = vsub.f32 %v12145, %v12323
      %v12481 = vsub.f32 %v12146, %v12323
      %v12482 = vsub.f32 %v12147, %v12323
      %v12483 = vsub.f32 %v12148, %v12323
      %v12484 = vsub.f32 %v12149, %v12323
      %v12485 = vsub.f32 %v12150, %v12323
      %v12486 = vsub.f32 %v12151, %v12323
      %v12487 = vsub.f32 %v12152, %v12323
      %v12488 = vsub.f32 %v12153, %v12323
      %v12489 = vsub.f32 %v12154, %v12323
      %v12490 = vsub.f32 %v12155, %v12323
      %v12491 = vsub.f32 %v12156, %v12323
      %v12492 = vsub.f32 %v12157, %v12323
      %v12493 = vsub.f32 %v12158, %v12323
      %v12494 = vsub.f32 %v12159, %v12323
      %v12495 = vsub.f32 %v12160, %v12323
      %v12496 = vsub.f32 %v12161, %v12323
      %v12497 = vsub.f32 %v12162, %v12323
      %v12498 = vsub.f32 %v12163, %v12323
      %v12499 = vsub.f32 %v12164, %v12323
      %v12500 = vsub.f32 %v12165, %v12323
      %v12501 = vsub.f32 %v12166, %v12323
      %v12502 = vsub.f32 %v12167, %v12323
      %v12503 = vsub.f32 %v12168, %v12323
      %v12504 = vsub.f32 %v12169, %v12323
      %v12505 = vsub.f32 %v12170, %v12323
      %v12506 = vsub.f32 %v12171, %v12323
      %v12507 = vsub.f32 %v12172, %v12323
      %v12508 = vsub.f32 %v12173, %v12323
      %v12509 = vsub.f32 %v12174, %v12323
      %v12510 = vsub.f32 %v12175, %v12323
      %v12511 = vsub.f32 %v12176, %v12323
      %v12512 = vsub.f32 %v12177, %v12323
      %v12513 = vsub.f32 %v12178, %v12323
      %v12514 = vsub.f32 %v12179, %v12323
      %v12515 = vsub.f32 %v12180, %v12323
      %v12516 = vsub.f32 %v12181, %v12323
      %v12517 = vsub.f32 %v12182, %v12323
      %v12518 = vsub.f32 %v12183, %v12323
      %v12519 = vsub.f32 %v12184, %v12323
      %v12520 = vsub.f32 %v12185, %v12323
      %v12521 = vsub.f32 %v12186, %v12323
      %v12522 = vsub.f32 %v12187, %v12323
      %v12523 = vsub.f32 %v12188, %v12323
      %v12524 = vsub.f32 %v12189, %v12323
      %v12525 = vadd.f32 %v12460, 1e-05
      %v12526 = vrsqrt.pop %v12525
      %v12527 = vmul.f32 %v12461, %v12526
      %v12528 = vmul.f32 %v12462, %v12526
      %v12529 = vmul.f32 %v12463, %v12526
      %v12530 = vmul.f32 %v12464, %v12526
      %v12531 = vmul.f32 %v12465, %v12526
      %v12532 = vmul.f32 %v12466, %v12526
      %v12533 = vmul.f32 %v12467, %v12526
      %v12534 = vmul.f32 %v12468, %v12526
      %v12535 = vmul.f32 %v12469, %v12526
      %v12536 = vmul.f32 %v12470, %v12526
      %v12537 = vmul.f32 %v12471, %v12526
      %v12538 = vmul.f32 %v12472, %v12526
      %v12539 = vmul.f32 %v12473, %v12526
      %v12540 = vmul.f32 %v12474, %v12526
      %v12541 = vmul.f32 %v12475, %v12526
      %v12542 = vmul.f32 %v12476, %v12526
      %v12543 = vmul.f32 %v12477, %v12526
      %v12544 = vmul.f32 %v12478, %v12526
      %v12545 = vmul.f32 %v12479, %v12526
      %v12546 = vmul.f32 %v12480, %v12526
      %v12547 = vmul.f32 %v12481, %v12526
      %v12548 = vmul.f32 %v12482, %v12526
      %v12549 = vmul.f32 %v12483, %v12526
      %v12550 = vmul.f32 %v12484, %v12526
      %v12551 = vmul.f32 %v12485, %v12526
      %v12552 = vmul.f32 %v12486, %v12526
      %v12553 = vmul.f32 %v12487, %v12526
      %v12554 = vmul.f32 %v12488, %v12526
      %v12555 = vmul.f32 %v12489, %v12526
      %v12556 = vmul.f32 %v12490, %v12526
      %v12557 = vmul.f32 %v12491, %v12526
      %v12558 = vmul.f32 %v12492, %v12526
      %v12559 = vmul.f32 %v12493, %v12526
      %v12560 = vmul.f32 %v12494, %v12526
      %v12561 = vmul.f32 %v12495, %v12526
      %v12562 = vmul.f32 %v12496, %v12526
      %v12563 = vmul.f32 %v12497, %v12526
      %v12564 = vmul.f32 %v12498, %v12526
      %v12565 = vmul.f32 %v12499, %v12526
      %v12566 = vmul.f32 %v12500, %v12526
      %v12567 = vmul.f32 %v12501, %v12526
      %v12568 = vmul.f32 %v12502, %v12526
      %v12569 = vmul.f32 %v12503, %v12526
      %v12570 = vmul.f32 %v12504, %v12526
      %v12571 = vmul.f32 %v12505, %v12526
      %v12572 = vmul.f32 %v12506, %v12526
      %v12573 = vmul.f32 %v12507, %v12526
      %v12574 = vmul.f32 %v12508, %v12526
      %v12575 = vmul.f32 %v12509, %v12526
      %v12576 = vmul.f32 %v12510, %v12526
      %v12577 = vmul.f32 %v12511, %v12526
      %v12578 = vmul.f32 %v12512, %v12526
      %v12579 = vmul.f32 %v12513, %v12526
      %v12580 = vmul.f32 %v12514, %v12526
      %v12581 = vmul.f32 %v12515, %v12526
      %v12582 = vmul.f32 %v12516, %v12526
      %v12583 = vmul.f32 %v12517, %v12526
      %v12584 = vmul.f32 %v12518, %v12526
      %v12585 = vmul.f32 %v12519, %v12526
      %v12586 = vmul.f32 %v12520, %v12526
      %v12587 = vmul.f32 %v12521, %v12526
      %v12588 = vmul.f32 %v12522, %v12526
      %v12589 = vmul.f32 %v12523, %v12526
      %v12590 = vmul.f32 %v12524, %v12526
      %v12591 = vmax.f32 %v12527, 0.0
      %v12592 = vmax.f32 %v12528, 0.0
      %v12593 = vmax.f32 %v12529, 0.0
      %v12594 = vmax.f32 %v12530, 0.0
      %v12595 = vmax.f32 %v12531, 0.0
      %v12596 = vmax.f32 %v12532, 0.0
      %v12597 = vmax.f32 %v12533, 0.0
      %v12598 = vmax.f32 %v12534, 0.0
      %v12599 = vmax.f32 %v12535, 0.0
      %v12600 = vmax.f32 %v12536, 0.0
      %v12601 = vmax.f32 %v12537, 0.0
      %v12602 = vmax.f32 %v12538, 0.0
      %v12603 = vmax.f32 %v12539, 0.0
      %v12604 = vmax.f32 %v12540, 0.0
      %v12605 = vmax.f32 %v12541, 0.0
      %v12606 = vmax.f32 %v12542, 0.0
      %v12607 = vmax.f32 %v12543, 0.0
      %v12608 = vmax.f32 %v12544, 0.0
      %v12609 = vmax.f32 %v12545, 0.0
      %v12610 = vmax.f32 %v12546, 0.0
      %v12611 = vmax.f32 %v12547, 0.0
      %v12612 = vmax.f32 %v12548, 0.0
      %v12613 = vmax.f32 %v12549, 0.0
      %v12614 = vmax.f32 %v12550, 0.0
      %v12615 = vmax.f32 %v12551, 0.0
      %v12616 = vmax.f32 %v12552, 0.0
      %v12617 = vmax.f32 %v12553, 0.0
      %v12618 = vmax.f32 %v12554, 0.0
      %v12619 = vmax.f32 %v12555, 0.0
      %v12620 = vmax.f32 %v12556, 0.0
      %v12621 = vmax.f32 %v12557, 0.0
      %v12622 = vmax.f32 %v12558, 0.0
      %v12623 = vmax.f32 %v12559, 0.0
      %v12624 = vmax.f32 %v12560, 0.0
      %v12625 = vmax.f32 %v12561, 0.0
      %v12626 = vmax.f32 %v12562, 0.0
      %v12627 = vmax.f32 %v12563, 0.0
      %v12628 = vmax.f32 %v12564, 0.0
      %v12629 = vmax.f32 %v12565, 0.0
      %v12630 = vmax.f32 %v12566, 0.0
      %v12631 = vmax.f32 %v12567, 0.0
      %v12632 = vmax.f32 %v12568, 0.0
      %v12633 = vmax.f32 %v12569, 0.0
      %v12634 = vmax.f32 %v12570, 0.0
      %v12635 = vmax.f32 %v12571, 0.0
      %v12636 = vmax.f32 %v12572, 0.0
      %v12637 = vmax.f32 %v12573, 0.0
      %v12638 = vmax.f32 %v12574, 0.0
      %v12639 = vmax.f32 %v12575, 0.0
      %v12640 = vmax.f32 %v12576, 0.0
      %v12641 = vmax.f32 %v12577, 0.0
      %v12642 = vmax.f32 %v12578, 0.0
      %v12643 = vmax.f32 %v12579, 0.0
      %v12644 = vmax.f32 %v12580, 0.0
      %v12645 = vmax.f32 %v12581, 0.0
      %v12646 = vmax.f32 %v12582, 0.0
      %v12647 = vmax.f32 %v12583, 0.0
      %v12648 = vmax.f32 %v12584, 0.0
      %v12649 = vmax.f32 %v12585, 0.0
      %v12650 = vmax.f32 %v12586, 0.0
      %v12651 = vmax.f32 %v12587, 0.0
      %v12652 = vmax.f32 %v12588, 0.0
      %v12653 = vmax.f32 %v12589, 0.0
      %v12654 = vmax.f32 %v12590, 0.0
      %v12655 = vpack.c.bf16 %v12592, %v12591
      %v12656 = vpack.c.bf16 %v12594, %v12593
      %v12657 = vpack.c.bf16 %v12596, %v12595
      %v12658 = vpack.c.bf16 %v12598, %v12597
      %v12659 = vpack.c.bf16 %v12600, %v12599
      %v12660 = vpack.c.bf16 %v12602, %v12601
      %v12661 = vpack.c.bf16 %v12604, %v12603
      %v12662 = vpack.c.bf16 %v12606, %v12605
      %v12663 = vpack.c.bf16 %v12608, %v12607
      %v12664 = vpack.c.bf16 %v12610, %v12609
      %v12665 = vpack.c.bf16 %v12612, %v12611
      %v12666 = vpack.c.bf16 %v12614, %v12613
      %v12667 = vpack.c.bf16 %v12616, %v12615
      %v12668 = vpack.c.bf16 %v12618, %v12617
      %v12669 = vpack.c.bf16 %v12620, %v12619
      %v12670 = vpack.c.bf16 %v12622, %v12621
      %v12671 = vpack.c.bf16 %v12624, %v12623
      %v12672 = vpack.c.bf16 %v12626, %v12625
      %v12673 = vpack.c.bf16 %v12628, %v12627
      %v12674 = vpack.c.bf16 %v12630, %v12629
      %v12675 = vpack.c.bf16 %v12632, %v12631
      %v12676 = vpack.c.bf16 %v12634, %v12633
      %v12677 = vpack.c.bf16 %v12636, %v12635
      %v12678 = vpack.c.bf16 %v12638, %v12637
      %v12679 = vpack.c.bf16 %v12640, %v12639
      %v12680 = vpack.c.bf16 %v12642, %v12641
      %v12681 = vpack.c.bf16 %v12644, %v12643
      %v12682 = vpack.c.bf16 %v12646, %v12645
      %v12683 = vpack.c.bf16 %v12648, %v12647
      %v12684 = vpack.c.bf16 %v12650, %v12649
      %v12685 = vpack.c.bf16 %v12652, %v12651
      %v12686 = vpack.c.bf16 %v12654, %v12653
      %v12687 = vld [vmem:[%s3] sm:$0xf]
      %v12688 = vld [vmem:[%s3 + $0x4] sm:$0xf]
      %v12689 = vld [vmem:[%s3 + $0x8] sm:$0xf]
      %v12690 = vld [vmem:[%s3 + $0xc] sm:$0xf]
      %v12691 = vld [vmem:[%s3 + $0x10] sm:$0xf]
      %v12692 = vld [vmem:[%s3 + $0x14] sm:$0xf]
      %v12693 = vld [vmem:[%s3 + $0x18] sm:$0xf]
      %v12694 = vld [vmem:[%s3 + $0x1c] sm:$0xf]
      %v12695 = vld [vmem:[%s3 + $0x20] sm:$0xf]
      %v12696 = vld [vmem:[%s3 + $0x24] sm:$0xf]
      %v12697 = vld [vmem:[%s3 + $0x28] sm:$0xf]
      %v12698 = vld [vmem:[%s3 + $0x2c] sm:$0xf]
      %v12699 = vld [vmem:[%s3 + $0x30] sm:$0xf]
      %v12700 = vld [vmem:[%s3 + $0x34] sm:$0xf]
      %v12701 = vld [vmem:[%s3 + $0x38] sm:$0xf]
      %v12702 = vld [vmem:[%s3 + $0x3c] sm:$0xf]
      %v12703 = vld [vmem:[%s4] sm:$0x1]
      %v12705 = vlaneseq
      %v12706 = vshrl.u32 %v12705, 7
      %v12707 = vsub.s32 0, %v12706
      %v12708 = vrot.slane %v12703, %v12707
      %v12726 = vunpack.c.l.b16 %v12687
      %v12727 = vunpack.c.l.b16 %v12688
      %v12728 = vunpack.c.l.b16 %v12689
      %v12729 = vunpack.c.l.b16 %v12690
      %v12730 = vunpack.c.l.b16 %v12691
      %v12731 = vunpack.c.l.b16 %v12692
      %v12732 = vunpack.c.l.b16 %v12693
      %v12733 = vunpack.c.l.b16 %v12694
      %v12734 = vunpack.c.l.b16 %v12695
      %v12735 = vunpack.c.l.b16 %v12696
      %v12736 = vunpack.c.l.b16 %v12697
      %v12737 = vunpack.c.l.b16 %v12698
      %v12738 = vunpack.c.l.b16 %v12699
      %v12739 = vunpack.c.l.b16 %v12700
      %v12740 = vunpack.c.l.b16 %v12701
      %v12741 = vunpack.c.l.b16 %v12702
      %v12742 = vpack.c.b16 %v12727, %v12726
      %v12743 = vpack.c.b16 %v12729, %v12728
      %v12744 = vpack.c.b16 %v12731, %v12730
      %v12745 = vpack.c.b16 %v12733, %v12732
      %v12746 = vpack.c.b16 %v12735, %v12734
      %v12747 = vpack.c.b16 %v12737, %v12736
      %v12748 = vpack.c.b16 %v12739, %v12738
      %v12749 = vpack.c.b16 %v12741, %v12740
      %12758 = vmatprep.subr.bf16.mxu0 0
      %12759 = vmatpush1.bf16.msra.mxu0 %v12742
      %12760 = vmatprep.subr.bf16.mxu0 0
      %12761 = vmatpush1.bf16.msra.mxu0 %v12743
      %12762 = vmatprep.subr.bf16.mxu0 0
      %12763 = vmatpush1.bf16.msra.mxu0 %v12744
      %12764 = vmatprep.subr.bf16.mxu0 0
      %12765 = vmatpush1.bf16.msra.mxu0 %v12745
      %12766 = vmatprep.subr.bf16.mxu0 0
      %12767 = vmatpush1.bf16.msra.mxu0 %v12746
      %12768 = vmatprep.subr.bf16.mxu0 0
      %12769 = vmatpush1.bf16.msra.mxu0 %v12747
      %12770 = vmatprep.subr.bf16.mxu0 0
      %12771 = vmatpush1.bf16.msra.mxu0 %v12748
      %12772 = vmatprep.subr.bf16.mxu0 0
      %12773 = vmatpush1.bf16.msra.mxu0 %v12749
      %12774 = vmatprep.subr.bf16.mxu0 0
      %12775 = vmatpush1.bf16.msra.mxu0 0
      %12776 = vmatprep.subr.bf16.mxu0 0
      %12777 = vmatpush1.bf16.msra.mxu0 0
      %12778 = vmatprep.subr.bf16.mxu0 0
      %12779 = vmatpush1.bf16.msra.mxu0 0
      %12780 = vmatprep.subr.bf16.mxu0 0
      %12781 = vmatpush1.bf16.msra.mxu0 0
      %12782 = vmatprep.subr.bf16.mxu0 0
      %12783 = vmatpush1.bf16.msra.mxu0 0
      %12784 = vmatprep.subr.bf16.mxu0 0
      %12785 = vmatpush1.bf16.msra.mxu0 0
      %12786 = vmatprep.subr.bf16.mxu0 0
      %12787 = vmatpush1.bf16.msra.mxu0 0
      %12788 = vmatprep.subr.bf16.mxu0 0
      %12789 = vmatpush1.bf16.msra.mxu0 0
      %12790 = vmatprep.mubr.bf16.mxu0 0
      %12791 = vmatmul.mubr.bf16.gmra.mrb[0].mxu0 %v12655
      %v12792 = vpop.f32.mrb[0].mxu0
      %v12793 = vadd.f32 %v12708, %v12792
      %v12794 = vpop.f32.mrb[0].mxu0
      %v12795 = vpop.f32.mrb[0].mxu0
      %v12796 = vadd.f32 %v12708, %v12795
      %v12797 = vpop.f32.mrb[0].mxu0
      %12798 = vmatprep.mubr.bf16.mxu0 0
      %12799 = vmatmul.mubr.bf16.gmra.mrb[0].mxu0 %v12656
      %v12800 = vpop.f32.mrb[0].mxu0
      %v12801 = vadd.f32 %v12708, %v12800
      %v12802 = vpop.f32.mrb[0].mxu0
      %v12803 = vpop.f32.mrb[0].mxu0
      %v12804 = vadd.f32 %v12708, %v12803
      %v12805 = vpop.f32.mrb[0].mxu0
      %12806 = vmatprep.mubr.bf16.mxu0 0
      %12807 = vmatmul.mubr.bf16.gmra.mrb[0].mxu0 %v12657
      %v12808 = vpop.f32.mrb[0].mxu0
      %v12809 = vadd.f32 %v12708, %v12808
      %v12810 = vpop.f32.mrb[0].mxu0
      %v12811 = vpop.f32.mrb[0].mxu0
      %v12812 = vadd.f32 %v12708, %v12811
      %v12813 = vpop.f32.mrb[0].mxu0
      %12814 = vmatprep.mubr.bf16.mxu0 0
      %12815 = vmatmul.mubr.bf16.gmra.mrb[0].mxu0 %v12658
      %v12816 = vpop.f32.mrb[0].mxu0
      %v12817 = vadd.f32 %v12708, %v12816
      %v12818 = vpop.f32.mrb[0].mxu0
      %v12819 = vpop.f32.mrb[0].mxu0
      %v12820 = vadd.f32 %v12708, %v12819
      %v12821 = vpop.f32.mrb[0].mxu0
      %12822 = vmatprep.mubr.bf16.mxu0 0
      %12823 = vmatmul.mubr.bf16.gmra.mrb[0].mxu0 %v12659
      %v12824 = vpop.f32.mrb[0].mxu0
      %v12825 = vadd.f32 %v12708, %v12824
      %v12826 = vpop.f32.mrb[0].mxu0
      %v12827 = vpop.f32.mrb[0].mxu0
      %v12828 = vadd.f32 %v12708, %v12827
      %v12829 = vpop.f32.mrb[0].mxu0
      %12830 = vmatprep.mubr.bf16.mxu0 0
      %12831 = vmatmul.mubr.bf16.gmra.mrb[0].mxu0 %v12660
      %v12832 = vpop.f32.mrb[0].mxu0
      %v12833 = vadd.f32 %v12708, %v12832
      %v12834 = vpop.f32.mrb[0].mxu0
      %v12835 = vpop.f32.mrb[0].mxu0
      %v12836 = vadd.f32 %v12708, %v12835
      %v12837 = vpop.f32.mrb[0].mxu0
      %12838 = vmatprep.mubr.bf16.mxu0 0
      %12839 = vmatmul.mubr.bf16.gmra.mrb[0].mxu0 %v12661
      %v12840 = vpop.f32.mrb[0].mxu0
      %v12841 = vadd.f32 %v12708, %v12840
      %v12842 = vpop.f32.mrb[0].mxu0
      %v12843 = vpop.f32.mrb[0].mxu0
      %v12844 = vadd.f32 %v12708, %v12843
      %v12845 = vpop.f32.mrb[0].mxu0
      %12846 = vmatprep.mubr.bf16.mxu0 0
      %12847 = vmatmul.mubr.bf16.gmra.mrb[0].mxu0 %v12662
      %v12848 = vpop.f32.mrb[0].mxu0
      %v12849 = vadd.f32 %v12708, %v12848
      %v12850 = vpop.f32.mrb[0].mxu0
      %v12851 = vpop.f32.mrb[0].mxu0
      %v12852 = vadd.f32 %v12708, %v12851
      %v12853 = vpop.f32.mrb[0].mxu0
      %12854 = vmatprep.mubr.bf16.mxu0 0
      %12855 = vmatmul.mubr.bf16.gmra.mrb[0].mxu0 %v12663
      %v12856 = vpop.f32.mrb[0].mxu0
      %v12857 = vadd.f32 %v12708, %v12856
      %v12858 = vpop.f32.mrb[0].mxu0
      %v12859 = vpop.f32.mrb[0].mxu0
      %v12860 = vadd.f32 %v12708, %v12859
      %v12861 = vpop.f32.mrb[0].mxu0
      %12862 = vmatprep.mubr.bf16.mxu0 0
      %12863 = vmatmul.mubr.bf16.gmra.mrb[0].mxu0 %v12664
      %v12864 = vpop.f32.mrb[0].mxu0
      %v12865 = vadd.f32 %v12708, %v12864
      %v12866 = vpop.f32.mrb[0].mxu0
      %v12867 = vpop.f32.mrb[0].mxu0
      %v12868 = vadd.f32 %v12708, %v12867
      %v12869 = vpop.f32.mrb[0].mxu0
      %12870 = vmatprep.mubr.bf16.mxu0 0
      %12871 = vmatmul.mubr.bf16.gmra.mrb[0].mxu0 %v12665
      %v12872 = vpop.f32.mrb[0].mxu0
      %v12873 = vadd.f32 %v12708, %v12872
      %v12874 = vpop.f32.mrb[0].mxu0
      %v12875 = vpop.f32.mrb[0].mxu0
      %v12876 = vadd.f32 %v12708, %v12875
      %v12877 = vpop.f32.mrb[0].mxu0
      %12878 = vmatprep.mubr.bf16.mxu0 0
      %12879 = vmatmul.mubr.bf16.gmra.mrb[0].mxu0 %v12666
      %v12880 = vpop.f32.mrb[0].mxu0
      %v12881 = vadd.f32 %v12708, %v12880
      %v12882 = vpop.f32.mrb[0].mxu0
      %v12883 = vpop.f32.mrb[0].mxu0
      %v12884 = vadd.f32 %v12708, %v12883
      %v12885 = vpop.f32.mrb[0].mxu0
      %12886 = vmatprep.mubr.bf16.mxu0 0
      %12887 = vmatmul.mubr.bf16.gmra.mrb[0].mxu0 %v12667
      %v12888 = vpop.f32.mrb[0].mxu0
      %v12889 = vadd.f32 %v12708, %v12888
      %v12890 = vpop.f32.mrb[0].mxu0
      %v12891 = vpop.f32.mrb[0].mxu0
      %v12892 = vadd.f32 %v12708, %v12891
      %v12893 = vpop.f32.mrb[0].mxu0
      %12894 = vmatprep.mubr.bf16.mxu0 0
      %12895 = vmatmul.mubr.bf16.gmra.mrb[0].mxu0 %v12668
      %v12896 = vpop.f32.mrb[0].mxu0
      %v12897 = vadd.f32 %v12708, %v12896
      %v12898 = vpop.f32.mrb[0].mxu0
      %v12899 = vpop.f32.mrb[0].mxu0
      %v12900 = vadd.f32 %v12708, %v12899
      %v12901 = vpop.f32.mrb[0].mxu0
      %12902 = vmatprep.mubr.bf16.mxu0 0
      %12903 = vmatmul.mubr.bf16.gmra.mrb[0].mxu0 %v12669
      %v12904 = vpop.f32.mrb[0].mxu0
      %v12905 = vadd.f32 %v12708, %v12904
      %v12906 = vpop.f32.mrb[0].mxu0
      %v12907 = vpop.f32.mrb[0].mxu0
      %v12908 = vadd.f32 %v12708, %v12907
      %v12909 = vpop.f32.mrb[0].mxu0
      %12910 = vmatprep.mubr.bf16.mxu0 0
      %12911 = vmatmul.mubr.bf16.gmra.mrb[0].mxu0 %v12670
      %v12912 = vpop.f32.mrb[0].mxu0
      %v12913 = vadd.f32 %v12708, %v12912
      %v12914 = vpop.f32.mrb[0].mxu0
      %v12915 = vpop.f32.mrb[0].mxu0
      %v12916 = vadd.f32 %v12708, %v12915
      %v12917 = vpop.f32.mrb[0].mxu0
      %12918 = vmatprep.mubr.bf16.mxu0 0
      %12919 = vmatmul.mubr.bf16.gmra.mrb[0].mxu0 %v12671
      %v12920 = vpop.f32.mrb[0].mxu0
      %v12921 = vadd.f32 %v12708, %v12920
      %v12922 = vpop.f32.mrb[0].mxu0
      %v12923 = vpop.f32.mrb[0].mxu0
      %v12924 = vadd.f32 %v12708, %v12923
      %v12925 = vpop.f32.mrb[0].mxu0
      %12926 = vmatprep.mubr.bf16.mxu0 0
      %12927 = vmatmul.mubr.bf16.gmra.mrb[0].mxu0 %v12672
      %v12928 = vpop.f32.mrb[0].mxu0
      %v12929 = vadd.f32 %v12708, %v12928
      %v12930 = vpop.f32.mrb[0].mxu0
      %v12931 = vpop.f32.mrb[0].mxu0
      %v12932 = vadd.f32 %v12708, %v12931
      %v12933 = vpop.f32.mrb[0].mxu0
      %12934 = vmatprep.mubr.bf16.mxu0 0
      %12935 = vmatmul.mubr.bf16.gmra.mrb[0].mxu0 %v12673
      %v12936 = vpop.f32.mrb[0].mxu0
      %v12937 = vadd.f32 %v12708, %v12936
      %v12938 = vpop.f32.mrb[0].mxu0
      %v12939 = vpop.f32.mrb[0].mxu0
      %v12940 = vadd.f32 %v12708, %v12939
      %v12941 = vpop.f32.mrb[0].mxu0
      %12942 = vmatprep.mubr.bf16.mxu0 0
      %12943 = vmatmul.mubr.bf16.gmra.mrb[0].mxu0 %v12674
      %v12944 = vpop.f32.mrb[0].mxu0
      %v12945 = vadd.f32 %v12708, %v12944
      %v12946 = vpop.f32.mrb[0].mxu0
      %v12947 = vpop.f32.mrb[0].mxu0
      %v12948 = vadd.f32 %v12708, %v12947
      %v12949 = vpop.f32.mrb[0].mxu0
      %12950 = vmatprep.mubr.bf16.mxu0 0
      %12951 = vmatmul.mubr.bf16.gmra.mrb[0].mxu0 %v12675
      %v12952 = vpop.f32.mrb[0].mxu0
      %v12953 = vadd.f32 %v12708, %v12952
      %v12954 = vpop.f32.mrb[0].mxu0
      %v12955 = vpop.f32.mrb[0].mxu0
      %v12956 = vadd.f32 %v12708, %v12955
      %v12957 = vpop.f32.mrb[0].mxu0
      %12958 = vmatprep.mubr.bf16.mxu0 0
      %12959 = vmatmul.mubr.bf16.gmra.mrb[0].mxu0 %v12676
      %v12960 = vpop.f32.mrb[0].mxu0
      %v12961 = vadd.f32 %v12708, %v12960
      %v12962 = vpop.f32.mrb[0].mxu0
      %v12963 = vpop.f32.mrb[0].mxu0
      %v12964 = vadd.f32 %v12708, %v12963
      %v12965 = vpop.f32.mrb[0].mxu0
      %12966 = vmatprep.mubr.bf16.mxu0 0
      %12967 = vmatmul.mubr.bf16.gmra.mrb[0].mxu0 %v12677
      %v12968 = vpop.f32.mrb[0].mxu0
      %v12969 = vadd.f32 %v12708, %v12968
      %v12970 = vpop.f32.mrb[0].mxu0
      %v12971 = vpop.f32.mrb[0].mxu0
      %v12972 = vadd.f32 %v12708, %v12971
      %v12973 = vpop.f32.mrb[0].mxu0
      %12974 = vmatprep.mubr.bf16.mxu0 0
      %12975 = vmatmul.mubr.bf16.gmra.mrb[0].mxu0 %v12678
      %v12976 = vpop.f32.mrb[0].mxu0
      %v12977 = vadd.f32 %v12708, %v12976
      %v12978 = vpop.f32.mrb[0].mxu0
      %v12979 = vpop.f32.mrb[0].mxu0
      %v12980 = vadd.f32 %v12708, %v12979
      %v12981 = vpop.f32.mrb[0].mxu0
      %12982 = vmatprep.mubr.bf16.mxu0 0
      %12983 = vmatmul.mubr.bf16.gmra.mrb[0].mxu0 %v12679
      %v12984 = vpop.f32.mrb[0].mxu0
      %v12985 = vadd.f32 %v12708, %v12984
      %v12986 = vpop.f32.mrb[0].mxu0
      %v12987 = vpop.f32.mrb[0].mxu0
      %v12988 = vadd.f32 %v12708, %v12987
      %v12989 = vpop.f32.mrb[0].mxu0
      %12990 = vmatprep.mubr.bf16.mxu0 0
      %12991 = vmatmul.mubr.bf16.gmra.mrb[0].mxu0 %v12680
      %v12992 = vpop.f32.mrb[0].mxu0
      %v12993 = vadd.f32 %v12708, %v12992
      %v12994 = vpop.f32.mrb[0].mxu0
      %v12995 = vpop.f32.mrb[0].mxu0
      %v12996 = vadd.f32 %v12708, %v12995
      %v12997 = vpop.f32.mrb[0].mxu0
      %12998 = vmatprep.mubr.bf16.mxu0 0
      %12999 = vmatmul.mubr.bf16.gmra.mrb[0].mxu0 %v12681
      %v13000 = vpop.f32.mrb[0].mxu0
      %v13001 = vadd.f32 %v12708, %v13000
      %v13002 = vpop.f32.mrb[0].mxu0
      %v13003 = vpop.f32.mrb[0].mxu0
      %v13004 = vadd.f32 %v12708, %v13003
      %v13005 = vpop.f32.mrb[0].mxu0
      %13006 = vmatprep.mubr.bf16.mxu0 0
      %13007 = vmatmul.mubr.bf16.gmra.mrb[0].mxu0 %v12682
      %v13008 = vpop.f32.mrb[0].mxu0
      %v13009 = vadd.f32 %v12708, %v13008
      %v13010 = vpop.f32.mrb[0].mxu0
      %v13011 = vpop.f32.mrb[0].mxu0
      %v13012 = vadd.f32 %v12708, %v13011
      %v13013 = vpop.f32.mrb[0].mxu0
      %13014 = vmatprep.mubr.bf16.mxu0 0
      %13015 = vmatmul.mubr.bf16.gmra.mrb[0].mxu0 %v12683
      %v13016 = vpop.f32.mrb[0].mxu0
      %v13017 = vadd.f32 %v12708, %v13016
      %v13018 = vpop.f32.mrb[0].mxu0
      %v13019 = vpop.f32.mrb[0].mxu0
      %v13020 = vadd.f32 %v12708, %v13019
      %v13021 = vpop.f32.mrb[0].mxu0
      %13022 = vmatprep.mubr.bf16.mxu0 0
      %13023 = vmatmul.mubr.bf16.gmra.mrb[0].mxu0 %v12684
      %v13024 = vpop.f32.mrb[0].mxu0
      %v13025 = vadd.f32 %v12708, %v13024
      %v13026 = vpop.f32.mrb[0].mxu0
      %v13027 = vpop.f32.mrb[0].mxu0
      %v13028 = vadd.f32 %v12708, %v13027
      %v13029 = vpop.f32.mrb[0].mxu0
      %13030 = vmatprep.mubr.bf16.mxu0 0
      %13031 = vmatmul.mubr.bf16.gmra.mrb[0].mxu0 %v12685
      %v13032 = vpop.f32.mrb[0].mxu0
      %v13033 = vadd.f32 %v12708, %v13032
      %v13034 = vpop.f32.mrb[0].mxu0
      %v13035 = vpop.f32.mrb[0].mxu0
      %v13036 = vadd.f32 %v12708, %v13035
      %v13037 = vpop.f32.mrb[0].mxu0
      %13038 = vmatprep.mubr.bf16.mxu0 0
      %13039 = vmatmul.mubr.bf16.gmra.mrb[0].mxu0 %v12686
      %v13040 = vpop.f32.mrb[0].mxu0
      %v13041 = vadd.f32 %v12708, %v13040
      %v13042 = vpop.f32.mrb[0].mxu0
      %v13043 = vpop.f32.mrb[0].mxu0
      %v13044 = vadd.f32 %v12708, %v13043
      %v13045 = vpop.f32.mrb[0].mxu0
      %13046 = vdwg.mxu0
      %13047 = vst [vmem:[%s251] sm:$0xff] %v12793
      %13048 = vst [vmem:[%s251 + $0x8] sm:$0xff] %v12796
      %13049 = vst [vmem:[%s251 + $0x10] sm:$0xff] %v12801
      %13050 = vst [vmem:[%s251 + $0x18] sm:$0xff] %v12804
      %13051 = vst [vmem:[%s251 + $0x20] sm:$0xff] %v12809
      %13052 = vst [vmem:[%s251 + $0x28] sm:$0xff] %v12812
      %13053 = vst [vmem:[%s251 + $0x30] sm:$0xff] %v12817
      %13054 = vst [vmem:[%s251 + $0x38] sm:$0xff] %v12820
      %13055 = vst [vmem:[%s251 + $0x40] sm:$0xff] %v12825
      %13056 = vst [vmem:[%s251 + $0x48] sm:$0xff] %v12828
      %13057 = vst [vmem:[%s251 + $0x50] sm:$0xff] %v12833
      %13058 = vst [vmem:[%s251 + $0x58] sm:$0xff] %v12836
      %13059 = vst [vmem:[%s251 + $0x60] sm:$0xff] %v12841
      %13060 = vst [vmem:[%s251 + $0x68] sm:$0xff] %v12844
      %13061 = vst [vmem:[%s251 + $0x70] sm:$0xff] %v12849
      %13062 = vst [vmem:[%s251 + $0x78] sm:$0xff] %v12852
      %13063 = vst [vmem:[%s251 + $0x80] sm:$0xff] %v12857
      %13064 = vst [vmem:[%s251 + $0x88] sm:$0xff] %v12860
      %13065 = vst [vmem:[%s251 + $0x90] sm:$0xff] %v12865
      %13066 = vst [vmem:[%s251 + $0x98] sm:$0xff] %v12868
      %13067 = vst [vmem:[%s251 + $0xa0] sm:$0xff] %v12873
      %13068 = vst [vmem:[%s251 + $0xa8] sm:$0xff] %v12876
      %13069 = vst [vmem:[%s251 + $0xb0] sm:$0xff] %v12881
      %13070 = vst [vmem:[%s251 + $0xb8] sm:$0xff] %v12884
      %13071 = vst [vmem:[%s251 + $0xc0] sm:$0xff] %v12889
      %13072 = vst [vmem:[%s251 + $0xc8] sm:$0xff] %v12892
      %13073 = vst [vmem:[%s251 + $0xd0] sm:$0xff] %v12897
      %13074 = vst [vmem:[%s251 + $0xd8] sm:$0xff] %v12900
      %13075 = vst [vmem:[%s251 + $0xe0] sm:$0xff] %v12905
      %13076 = vst [vmem:[%s251 + $0xe8] sm:$0xff] %v12908
      %13077 = vst [vmem:[%s251 + $0xf0] sm:$0xff] %v12913
      %13078 = vst [vmem:[%s251 + $0xf8] sm:$0xff] %v12916
      %13079 = vst [vmem:[%s251 + $0x100] sm:$0xff] %v12921
      %13080 = vst [vmem:[%s251 + $0x108] sm:$0xff] %v12924
      %13081 = vst [vmem:[%s251 + $0x110] sm:$0xff] %v12929
      %13082 = vst [vmem:[%s251 + $0x118] sm:$0xff] %v12932
      %13083 = vst [vmem:[%s251 + $0x120] sm:$0xff] %v12937
      %13084 = vst [vmem:[%s251 + $0x128] sm:$0xff] %v12940
      %13085 = vst [vmem:[%s251 + $0x130] sm:$0xff] %v12945
      %13086 = vst [vmem:[%s251 + $0x138] sm:$0xff] %v12948
      %13087 = vst [vmem:[%s251 + $0x140] sm:$0xff] %v12953
      %13088 = vst [vmem:[%s251 + $0x148] sm:$0xff] %v12956
      %13089 = vst [vmem:[%s251 + $0x150] sm:$0xff] %v12961
      %13090 = vst [vmem:[%s251 + $0x158] sm:$0xff] %v12964
      %13091 = vst [vmem:[%s251 + $0x160] sm:$0xff] %v12969
      %13092 = vst [vmem:[%s251 + $0x168] sm:$0xff] %v12972
      %13093 = vst [vmem:[%s251 + $0x170] sm:$0xff] %v12977
      %13094 = vst [vmem:[%s251 + $0x178] sm:$0xff] %v12980
      %13095 = vst [vmem:[%s251 + $0x180] sm:$0xff] %v12985
      %13096 = vst [vmem:[%s251 + $0x188] sm:$0xff] %v12988
      %13097 = vst [vmem:[%s251 + $0x190] sm:$0xff] %v12993
      %13098 = vst [vmem:[%s251 + $0x198] sm:$0xff] %v12996
      %13099 = vst [vmem:[%s251 + $0x1a0] sm:$0xff] %v13001
      %13100 = vst [vmem:[%s251 + $0x1a8] sm:$0xff] %v13004
      %13101 = vst [vmem:[%s251 + $0x1b0] sm:$0xff] %v13009
      %13102 = vst [vmem:[%s251 + $0x1b8] sm:$0xff] %v13012
      %13103 = vst [vmem:[%s251 + $0x1c0] sm:$0xff] %v13017
      %13104 = vst [vmem:[%s251 + $0x1c8] sm:$0xff] %v13020
      %13105 = vst [vmem:[%s251 + $0x1d0] sm:$0xff] %v13025
      %13106 = vst [vmem:[%s251 + $0x1d8] sm:$0xff] %v13028
      %13107 = vst [vmem:[%s251 + $0x1e0] sm:$0xff] %v13033
      %13108 = vst [vmem:[%s251 + $0x1e8] sm:$0xff] %v13036
      %13109 = vst [vmem:[%s251 + $0x1f0] sm:$0xff] %v13041
      %13110 = vst [vmem:[%s251 + $0x1f8] sm:$0xff] %v13044
      %p13111 = scmp.lt.s32.totalorder %s17, 1
      %s13112 = scalar_select %p13111, %s17, 1
      %s13113 = smul.addr %s13112, 64
      %s13114 = smul.addr %s13113, 8
      %s13115 = scalar_lea.vmem %s6, %s13114
      // Predicated region
      $region45: #{encoder_eff_forward.1} parent=43 // pred_check
        %p13116 = pneg %p166
      $region46: #{encoder_eff_forward.1} parent=43 // pred_check_branch
        %13118 = sbr.rel (%p13116) target = $region48
      $region47: #{encoder_eff_forward.1} parent=43 // pred_region
        _
      $region48: #{encoder_eff_forward.1} parent=43 // pred_fallthru
        _
    $region44: #{encoder_eff_forward.1} parent=5 // pred_fallthru
      _
    %p13119 = scmp.le.s32.totalorder 2, %s12
    // Predicated region
    $region49: #{encoder_eff_forward.1} parent=5 // pred_check
      %p13120 = pneg %p13119
    $region50: #{encoder_eff_forward.1} parent=5 // pred_check_branch
      %13122 = sbr.rel (%p13120) target = $region52
    $region51: #{encoder_eff_forward.1} parent=5 // pred_region
      %s13123 = ssub.s32 %s12, 2
      // Predicated region
      $region53: #{encoder_eff_forward.1} parent=51 // pred_check
        %p13124 = pneg %p172
      $region54: #{encoder_eff_forward.1} parent=51 // pred_check_branch
        %13126 = sbr.rel (%p13124) target = $region56
      $region55: #{encoder_eff_forward.1} parent=51 // pred_region
        %p13127 = scmp.lt.s32.totalorder %s18, 1
        %s13128 = scalar_select %p13127, %s18, 1
        %s13129 = smul.addr %s13128, 64
        %s13130 = smul.addr %s13129, 8
        %s13131 = scalar_lea.vmem %s6, %s13130
      $region56: #{encoder_eff_forward.1} parent=51 // pred_fallthru
        _
    $region52: #{encoder_eff_forward.1} parent=5 // pred_fallthru
      _
  $region6: #{encoder_eff_forward.1} parent=0 // loop_footer
    %s16 = sadd.s32 1, %s12
  $region7: #{encoder_eff_forward.1} parent=0 // loop_footer_branch
    %11 = sbr.rel target = $region3
  $region8: #{encoder_eff_forward.1} parent=0 // loop_exit
    _

</llo_original>
